<compile_context>
chip_gen: v5e
topology: v5e:2x2
jax: 0.10.0
libtpu: 0.0.40
codegen_flags: <defaults>
</compile_context>

<pallas_src>
import functools

import jax
import jax.numpy as jnp
from jax.experimental import pallas as pl
from jax.experimental.pallas import tpu as pltpu


# Module constants (from ImagePatcher).
NUM_CHANNELS = 1
IMAGE_SIZE = 256
PATCH_SIZE = 16


def _patcher_kernel(x_ref, o_ref, *, C, P, Wp, S):
    # x_ref: (1, C, S*P, W)     -- S horizontal stripes of P image rows each
    # o_ref: (1, S*Wp, C*P*P)   -- the S*Wp patches of those stripes, flattened
    for s in range(S):          # static loop over stripes in this block
        for c in range(C):      # static loop; C == 1 for ImagePatcher
            x = x_ref[0, c, s * P:(s + 1) * P, :]     # (P, W)
            x = x.reshape(P, Wp, P)                   # split cols into patches
            x = jnp.transpose(x, (1, 0, 2))           # (Wp, P, P)
            # Full 256-lane-wide unmasked store for this stripe/channel.
            o_ref[0, s * Wp:(s + 1) * Wp, c * P * P:(c + 1) * P * P] = (
                x.reshape(Wp, P * P)
            )


def image_patcher(images, stripes_per_step=None):
    """images: (N, C, H, W) float array -> (N, L, C*P*P) patches."""
    N, C, H, W = images.shape
    P = PATCH_SIZE
    assert H % P == 0 and W % P == 0, "IMAGE SIZE should be divisible by PATCH SIZE"
    Hp, Wp = H // P, W // P
    L = Hp * Wp

    if stripes_per_step is None:
        # Largest divisor of Hp that is <= 8 while keeping the stripe grid
        # axis at extent >= 2 (pipeline overlap + both v7x TensorCores busy).
        S = 1
        for cand in range(1, Hp + 1):
            if Hp % cand == 0 and cand <= 8 and Hp // cand >= 2:
                S = max(S, cand)
    else:
        S = stripes_per_step
        assert Hp % S == 0

    kernel = functools.partial(_patcher_kernel, C=C, P=P, Wp=Wp, S=S)

    return pl.pallas_call(
        kernel,
        out_shape=jax.ShapeDtypeStruct((N, L, C * P * P), images.dtype),
        grid=(N, Hp // S),
        in_specs=[
            # One block = S stripes of P rows, all channels, all columns.
            pl.BlockSpec((1, C, S * P, W), lambda n, b: (n, 0, b, 0)),
        ],
        out_specs=pl.BlockSpec((1, S * Wp, C * P * P), lambda n, b: (n, b, 0)),
        compiler_params=pltpu.CompilerParams(
            dimension_semantics=("parallel", "parallel"),
        ),
    )(images)


def _reference_patcher(images):
    # Pure-JAX reference reproducing nn.Unfold(P, stride=P) + transpose(1, 2).
    N, C, H, W = images.shape
    P = PATCH_SIZE
    Hp, Wp = H // P, W // P
    x = images.reshape(N, C, Hp, P, Wp, P)
    x = jnp.transpose(x, (0, 2, 4, 1, 3, 5))       # (N, Hp, Wp, C, P, P)
    return x.reshape(N, Hp * Wp, C * P * P)


if __name__ == "__main__":
    key = jax.random.PRNGKey(0)
    N = 2
    images = jax.random.normal(
        key, (N, NUM_CHANNELS, IMAGE_SIZE, IMAGE_SIZE), dtype=jnp.float32
    )

    out = image_patcher(images)
    out = jax.block_until_ready(out)

    ref = _reference_patcher(images)
    assert out.shape == (N, (IMAGE_SIZE // PATCH_SIZE) ** 2,
                         NUM_CHANNELS * PATCH_SIZE * PATCH_SIZE)
    # Pure data movement -> must be bit-exact.
    assert jnp.array_equal(out, ref), "Pallas output does not match reference"

    print("KERNEL_OK")
</pallas_src>

<mosaic_0001>
module attributes {stable_mosaic.version = 11 : i64} {
  func.func @_patcher_kernel(%arg0: i32, %arg1: i32, %arg2: memref<1x1x128x256xf32, #tpu.memory_space<vmem>>, %arg3: memref<1x128x256xf32, #tpu.memory_space<vmem>>) attributes {dimension_semantics = [#tpu.dimension_semantics<parallel>, #tpu.dimension_semantics<parallel>], iteration_bounds = array<i64: 2, 2>, scalar_prefetch = 0 : i64, scratch_operands = 0 : i64, tpu.core_type = #tpu.core_type<tc>, window_params = [{transform_indices = @transform_0, window_bounds = array<i64: 1, 1, 128, 256>}, {transform_indices = @transform_1, window_bounds = array<i64: 1, 128, 256>}]} {
    %c0 = arith.constant 0 : index
    %c0_0 = arith.constant 0 : index
    %c0_1 = arith.constant 0 : index
    %c0_2 = arith.constant 0 : index
    %0 = vector.load %arg2[%c0, %c0_0, %c0_1, %c0_2] : memref<1x1x128x256xf32, #tpu.memory_space<vmem>>, vector<1x1x16x256xf32>
    %1 = vector.shape_cast %0 : vector<1x1x16x256xf32> to vector<16x256xf32>
    %2 = vector.shape_cast %1 : vector<16x256xf32> to vector<16x16x16xf32>
    %3 = tpu.transpose %2, [1, 0, 2] : vector<16x16x16xf32> -> vector<16x16x16xf32>
    %4 = vector.shape_cast %3 : vector<16x16x16xf32> to vector<16x256xf32>
    %c0_3 = arith.constant 0 : index
    %c0_4 = arith.constant 0 : index
    %c0_5 = arith.constant 0 : index
    %5 = vector.load %arg3[%c0_3, %c0_4, %c0_5] : memref<1x128x256xf32, #tpu.memory_space<vmem>>, vector<1x16x256xf32>
    %6 = vector.shape_cast %5 : vector<1x16x256xf32> to vector<16x256xf32>
    %7 = vector.shape_cast %4 : vector<16x256xf32> to vector<1x16x256xf32>
    tpu.vector_store %arg3[%c0_3, %c0_4, %c0_5], %7 {strides = array<i32>} : memref<1x128x256xf32, #tpu.memory_space<vmem>>, vector<1x16x256xf32>,
    %c0_6 = arith.constant 0 : index
    %c0_7 = arith.constant 0 : index
    %c16 = arith.constant 16 : index
    %c0_8 = arith.constant 0 : index
    %8 = vector.load %arg2[%c0_6, %c0_7, %c16, %c0_8] : memref<1x1x128x256xf32, #tpu.memory_space<vmem>>, vector<1x1x16x256xf32>
    %9 = vector.shape_cast %8 : vector<1x1x16x256xf32> to vector<16x256xf32>
    %10 = vector.shape_cast %9 : vector<16x256xf32> to vector<16x16x16xf32>
    %11 = tpu.transpose %10, [1, 0, 2] : vector<16x16x16xf32> -> vector<16x16x16xf32>
    %12 = vector.shape_cast %11 : vector<16x16x16xf32> to vector<16x256xf32>
    %c0_9 = arith.constant 0 : index
    %c16_10 = arith.constant 16 : index
    %c0_11 = arith.constant 0 : index
    %13 = vector.load %arg3[%c0_9, %c16_10, %c0_11] : memref<1x128x256xf32, #tpu.memory_space<vmem>>, vector<1x16x256xf32>
    %14 = vector.shape_cast %13 : vector<1x16x256xf32> to vector<16x256xf32>
    %15 = vector.shape_cast %12 : vector<16x256xf32> to vector<1x16x256xf32>
    tpu.vector_store %arg3[%c0_9, %c16_10, %c0_11], %15 {strides = array<i32>} : memref<1x128x256xf32, #tpu.memory_space<vmem>>, vector<1x16x256xf32>,
    %c0_12 = arith.constant 0 : index
    %c0_13 = arith.constant 0 : index
    %c32 = arith.constant 32 : index
    %c0_14 = arith.constant 0 : index
    %16 = vector.load %arg2[%c0_12, %c0_13, %c32, %c0_14] : memref<1x1x128x256xf32, #tpu.memory_space<vmem>>, vector<1x1x16x256xf32>
    %17 = vector.shape_cast %16 : vector<1x1x16x256xf32> to vector<16x256xf32>
    %18 = vector.shape_cast %17 : vector<16x256xf32> to vector<16x16x16xf32>
    %19 = tpu.transpose %18, [1, 0, 2] : vector<16x16x16xf32> -> vector<16x16x16xf32>
    %20 = vector.shape_cast %19 : vector<16x16x16xf32> to vector<16x256xf32>
    %c0_15 = arith.constant 0 : index
    %c32_16 = arith.constant 32 : index
    %c0_17 = arith.constant 0 : index
    %21 = vector.load %arg3[%c0_15, %c32_16, %c0_17] : memref<1x128x256xf32, #tpu.memory_space<vmem>>, vector<1x16x256xf32>
    %22 = vector.shape_cast %21 : vector<1x16x256xf32> to vector<16x256xf32>
    %23 = vector.shape_cast %20 : vector<16x256xf32> to vector<1x16x256xf32>
    tpu.vector_store %arg3[%c0_15, %c32_16, %c0_17], %23 {strides = array<i32>} : memref<1x128x256xf32, #tpu.memory_space<vmem>>, vector<1x16x256xf32>,
    %c0_18 = arith.constant 0 : index
    %c0_19 = arith.constant 0 : index
    %c48 = arith.constant 48 : index
    %c0_20 = arith.constant 0 : index
    %24 = vector.load %arg2[%c0_18, %c0_19, %c48, %c0_20] : memref<1x1x128x256xf32, #tpu.memory_space<vmem>>, vector<1x1x16x256xf32>
    %25 = vector.shape_cast %24 : vector<1x1x16x256xf32> to vector<16x256xf32>
    %26 = vector.shape_cast %25 : vector<16x256xf32> to vector<16x16x16xf32>
    %27 = tpu.transpose %26, [1, 0, 2] : vector<16x16x16xf32> -> vector<16x16x16xf32>
    %28 = vector.shape_cast %27 : vector<16x16x16xf32> to vector<16x256xf32>
    %c0_21 = arith.constant 0 : index
    %c48_22 = arith.constant 48 : index
    %c0_23 = arith.constant 0 : index
    %29 = vector.load %arg3[%c0_21, %c48_22, %c0_23] : memref<1x128x256xf32, #tpu.memory_space<vmem>>, vector<1x16x256xf32>
    %30 = vector.shape_cast %29 : vector<1x16x256xf32> to vector<16x256xf32>
    %31 = vector.shape_cast %28 : vector<16x256xf32> to vector<1x16x256xf32>
    tpu.vector_store %arg3[%c0_21, %c48_22, %c0_23], %31 {strides = array<i32>} : memref<1x128x256xf32, #tpu.memory_space<vmem>>, vector<1x16x256xf32>,
    %c0_24 = arith.constant 0 : index
    %c0_25 = arith.constant 0 : index
    %c64 = arith.constant 64 : index
    %c0_26 = arith.constant 0 : index
    %32 = vector.load %arg2[%c0_24, %c0_25, %c64, %c0_26] : memref<1x1x128x256xf32, #tpu.memory_space<vmem>>, vector<1x1x16x256xf32>
    %33 = vector.shape_cast %32 : vector<1x1x16x256xf32> to vector<16x256xf32>
    %34 = vector.shape_cast %33 : vector<16x256xf32> to vector<16x16x16xf32>
    %35 = tpu.transpose %34, [1, 0, 2] : vector<16x16x16xf32> -> vector<16x16x16xf32>
    %36 = vector.shape_cast %35 : vector<16x16x16xf32> to vector<16x256xf32>
    %c0_27 = arith.constant 0 : index
    %c64_28 = arith.constant 64 : index
    %c0_29 = arith.constant 0 : index
    %37 = vector.load %arg3[%c0_27, %c64_28, %c0_29] : memref<1x128x256xf32, #tpu.memory_space<vmem>>, vector<1x16x256xf32>
    %38 = vector.shape_cast %37 : vector<1x16x256xf32> to vector<16x256xf32>
    %39 = vector.shape_cast %36 : vector<16x256xf32> to vector<1x16x256xf32>
    tpu.vector_store %arg3[%c0_27, %c64_28, %c0_29], %39 {strides = array<i32>} : memref<1x128x256xf32, #tpu.memory_space<vmem>>, vector<1x16x256xf32>,
    %c0_30 = arith.constant 0 : index
    %c0_31 = arith.constant 0 : index
    %c80 = arith.constant 80 : index
    %c0_32 = arith.constant 0 : index
    %40 = vector.load %arg2[%c0_30, %c0_31, %c80, %c0_32] : memref<1x1x128x256xf32, #tpu.memory_space<vmem>>, vector<1x1x16x256xf32>
    %41 = vector.shape_cast %40 : vector<1x1x16x256xf32> to vector<16x256xf32>
    %42 = vector.shape_cast %41 : vector<16x256xf32> to vector<16x16x16xf32>
    %43 = tpu.transpose %42, [1, 0, 2] : vector<16x16x16xf32> -> vector<16x16x16xf32>
    %44 = vector.shape_cast %43 : vector<16x16x16xf32> to vector<16x256xf32>
    %c0_33 = arith.constant 0 : index
    %c80_34 = arith.constant 80 : index
    %c0_35 = arith.constant 0 : index
    %45 = vector.load %arg3[%c0_33, %c80_34, %c0_35] : memref<1x128x256xf32, #tpu.memory_space<vmem>>, vector<1x16x256xf32>
    %46 = vector.shape_cast %45 : vector<1x16x256xf32> to vector<16x256xf32>
    %47 = vector.shape_cast %44 : vector<16x256xf32> to vector<1x16x256xf32>
    tpu.vector_store %arg3[%c0_33, %c80_34, %c0_35], %47 {strides = array<i32>} : memref<1x128x256xf32, #tpu.memory_space<vmem>>, vector<1x16x256xf32>,
    %c0_36 = arith.constant 0 : index
    %c0_37 = arith.constant 0 : index
    %c96 = arith.constant 96 : index
    %c0_38 = arith.constant 0 : index
    %48 = vector.load %arg2[%c0_36, %c0_37, %c96, %c0_38] : memref<1x1x128x256xf32, #tpu.memory_space<vmem>>, vector<1x1x16x256xf32>
    %49 = vector.shape_cast %48 : vector<1x1x16x256xf32> to vector<16x256xf32>
    %50 = vector.shape_cast %49 : vector<16x256xf32> to vector<16x16x16xf32>
    %51 = tpu.transpose %50, [1, 0, 2] : vector<16x16x16xf32> -> vector<16x16x16xf32>
    %52 = vector.shape_cast %51 : vector<16x16x16xf32> to vector<16x256xf32>
    %c0_39 = arith.constant 0 : index
    %c96_40 = arith.constant 96 : index
    %c0_41 = arith.constant 0 : index
    %53 = vector.load %arg3[%c0_39, %c96_40, %c0_41] : memref<1x128x256xf32, #tpu.memory_space<vmem>>, vector<1x16x256xf32>
    %54 = vector.shape_cast %53 : vector<1x16x256xf32> to vector<16x256xf32>
    %55 = vector.shape_cast %52 : vector<16x256xf32> to vector<1x16x256xf32>
    tpu.vector_store %arg3[%c0_39, %c96_40, %c0_41], %55 {strides = array<i32>} : memref<1x128x256xf32, #tpu.memory_space<vmem>>, vector<1x16x256xf32>,
    %c0_42 = arith.constant 0 : index
    %c0_43 = arith.constant 0 : index
    %c112 = arith.constant 112 : index
    %c0_44 = arith.constant 0 : index
    %56 = vector.load %arg2[%c0_42, %c0_43, %c112, %c0_44] : memref<1x1x128x256xf32, #tpu.memory_space<vmem>>, vector<1x1x16x256xf32>
    %57 = vector.shape_cast %56 : vector<1x1x16x256xf32> to vector<16x256xf32>
    %58 = vector.shape_cast %57 : vector<16x256xf32> to vector<16x16x16xf32>
    %59 = tpu.transpose %58, [1, 0, 2] : vector<16x16x16xf32> -> vector<16x16x16xf32>
    %60 = vector.shape_cast %59 : vector<16x16x16xf32> to vector<16x256xf32>
    %c0_45 = arith.constant 0 : index
    %c112_46 = arith.constant 112 : index
    %c0_47 = arith.constant 0 : index
    %61 = vector.load %arg3[%c0_45, %c112_46, %c0_47] : memref<1x128x256xf32, #tpu.memory_space<vmem>>, vector<1x16x256xf32>
    %62 = vector.shape_cast %61 : vector<1x16x256xf32> to vector<16x256xf32>
    %63 = vector.shape_cast %60 : vector<16x256xf32> to vector<1x16x256xf32>
    tpu.vector_store %arg3[%c0_45, %c112_46, %c0_47], %63 {strides = array<i32>} : memref<1x128x256xf32, #tpu.memory_space<vmem>>, vector<1x16x256xf32>,
    return
  }
  func.func @transform_0(%arg0: i32, %arg1: i32) -> (i32, i32, i32, i32) {
    %c0_i32 = arith.constant 0 : i32
    %c0_i32_0 = arith.constant 0 : i32
    %c0_i32_1 = arith.constant 0 : i32
    return %arg0, %c0_i32, %arg1, %c0_i32_0 : i32, i32, i32, i32
  }
  func.func @transform_1(%arg0: i32, %arg1: i32) -> (i32, i32, i32) {
    %c0_i32 = arith.constant 0 : i32
    %c0_i32_0 = arith.constant 0 : i32
    return %arg0, %arg1, %c0_i32 : i32, i32, i32
  }
}

</mosaic_0001>

<llo_original>
// kernel: tpu_custom_call.1
$region0: #{tpu_custom_call.1}
  #allocation0 [shape = 'u32[]', space=smem, size = 0x4, offset = 0x4, fixed_abs, tag = 'smem constant byte address 0x4 - core index']
  #allocation1 [shape = 'u32[72,128]{1,0:T(1,128)}', space=vmem, size = 0x9000, scoped, tag = 'internal scratch']
  %s0 = inlined_call_operand.hbm [shape: f32[2,1,256,256], index: 0, kind: input, shape index: {}]
  %s1 = inlined_call_operand.hbm [shape: f32[2,256,256], index: 1, kind: output, shape index: {}]
  %s2 = sld [smem:[#allocation0]]
  $region41: #{tpu_custom_call.1} parent=0
    _
  %s4 = ssub.s32 1, %s2
  %s5 = scalar_select 0, %s4, %s2
  $region1: #{tpu_custom_call.1} parent=0
    #allocation2 [shape = 'u8[262144]{0}', space=vmem, size = 0x40000, scoped, tag = 'input window, operand 0']
    #allocation3 [shape = 's32[2]{0}', space=sflag, size = 0x8, scoped, tag = 'scoped memory for tpu_custom_call.1']
    #allocation4 [shape = 's32[2]{0}', space=sflag, size = 0x8, scoped, tag = 'scoped memory for tpu_custom_call.1']
    #allocation5 [shape = 'u8[262144]{0}', space=vmem, size = 0x40000, scoped, tag = 'output window, operand 0']
    %6 = vsyncpa [#allocation3], 0
    %s7 = scalar_lea.sflag [#allocation3], 1
    %8 = vsyncpa %s7, 0
    %9 = vsyncpa [#allocation4], 0
    %s10 = scalar_lea.sflag [#allocation4], 1
    %11 = vsyncpa %s10, 0
    loop: start=0, step=1, limit=6
    $region2: #{tpu_custom_call.1} parent=1 // loop_pre_header
      _
    $region3: #{tpu_custom_call.1} parent=1 // loop_header
      %s13 = sphi 0, %s17
      %p14 = scmp.ge.s32.totalorder %s13, 6
      %s20 = sphi 0, %s32
      %s21 = sphi 0, %s28
      %s22 = sphi 0, %s20
      %s23 = sphi 0, %s21
      %s24 = sphi 0, %s22
      %s25 = sphi 0, %s23
      %s37 = sphi 0, %s39
      %s40 = sphi 0, %s37
      %s41 = sphi 0, %s40
      %s57 = sphi 0, %s41
      %s65 = sphi 0, %s67
      %s68 = sphi 0, %s65
      %s69 = sphi 0, %s68
      %s85 = sphi 0, %s69
    $region4: #{tpu_custom_call.1} parent=1 // loop_header_branch
      %16 = sbr.rel (%p14) target = $region8
    $region5: #{tpu_custom_call.1} parent=1 // loop_body
      %s18 = ssub.s32 %s13, 1
      %s19 = ssub.s32 %s13, 2
      %s26 = sadd.s32 1, %s21
      %p27 = scmp.ge.s32.totalorder %s26, 2
      %s28 = scalar_select %p27, 0, %s26
      %s29 = sadd.s32 1, %s20
      %s30 = scalar_select %p27, %s29, %s20
      %p31 = scmp.ge.s32.totalorder %s30, 2
      %s32 = scalar_select %p31, 0, %s30
      %s33 = ssub.s32 %s20, %s32
      %s34 = ssub.s32 %s21, %s28
      %s35 = sor.u32 %s33, %s34
      %p36 = scmp.eq.s32.totalorder %s35, 0
      %s38 = sadd.s32 %s37, 1
      %s39 = scalar_select %p36, %s37, %s38
      %p42 = pneg %p36
      %p43 = scmp.eq.s32.totalorder %s13, 3
      %p44 = por %p42, %p43
      %p45 = scmp.ne.s32.totalorder %s37, %s40
      %p46 = scmp.eq.s32.totalorder %s13, 0
      %p47 = por %p45, %p46
      %p48 = scmp.ne.s32.totalorder %s37, %s40
      %p49 = scmp.eq.s32.totalorder %s18, 3
      %p50 = por %p48, %p49
      %p51 = scmp.ne.s32.totalorder %s40, %s41
      %p52 = scmp.eq.s32.totalorder %s18, 0
      %p53 = por %p51, %p52
      %p54 = scmp.ne.s32.totalorder %s40, %s41
      %p55 = scmp.eq.s32.totalorder %s19, 3
      %p56 = por %p54, %p55
      %p58 = scmp.ne.s32.totalorder %s41, %s57
      %p59 = scmp.eq.s32.totalorder %s19, 0
      %p60 = por %p58, %p59
      %s61 = ssub.s32 %s20, %s32
      %s62 = ssub.s32 %s21, %s28
      %s63 = sor.u32 %s61, %s62
      %p64 = scmp.eq.s32.totalorder %s63, 0
      %s66 = sadd.s32 %s65, 1
      %s67 = scalar_select %p64, %s65, %s66
      %p70 = pneg %p64
      %p71 = scmp.eq.s32.totalorder %s13, 3
      %p72 = por %p70, %p71
      %p73 = scmp.ne.s32.totalorder %s65, %s68
      %p74 = scmp.eq.s32.totalorder %s13, 0
      %p75 = por %p73, %p74
      %p76 = scmp.ne.s32.totalorder %s65, %s68
      %p77 = scmp.eq.s32.totalorder %s18, 3
      %p78 = por %p76, %p77
      %p79 = scmp.ne.s32.totalorder %s68, %s69
      %p80 = scmp.eq.s32.totalorder %s18, 0
      %p81 = por %p79, %p80
      %p82 = scmp.ne.s32.totalorder %s68, %s69
      %p83 = scmp.eq.s32.totalorder %s19, 3
      %p84 = por %p82, %p83
      %p86 = scmp.ne.s32.totalorder %s69, %s85
      %p87 = scmp.eq.s32.totalorder %s19, 0
      %p88 = por %p86, %p87
      %p89 = scmp.le.s32.totalorder 1, %s13
      %p90 = scmp.lt.s32.totalorder %s13, 5
      %p91 = pnand %p89, %p90
      %p92 = pneg %p91
      // Predicated region
      $region9: #{tpu_custom_call.1} parent=5 // pred_check
        _
      $region10: #{tpu_custom_call.1} parent=5 // pred_check_branch
        %94 = sbr.rel (%p91) target = $region12
      $region11: #{tpu_custom_call.1} parent=5 // pred_region
        %s95 = ssub.s32 %s13, 1
      $region12: #{tpu_custom_call.1} parent=5 // pred_fallthru
        _
      %p96 = scmp.lt.s32.totalorder %s13, 4
      // Predicated region
      $region13: #{tpu_custom_call.1} parent=5 // pred_check
        %p97 = pneg %p96
      $region14: #{tpu_custom_call.1} parent=5 // pred_check_branch
        %99 = sbr.rel (%p97) target = $region16
      $region15: #{tpu_custom_call.1} parent=5 // pred_region
        // Predicated region
        $region17: #{tpu_custom_call.1} parent=15 // pred_check
          %p100 = pneg %p47
        $region18: #{tpu_custom_call.1} parent=15 // pred_check_branch
          %102 = sbr.rel (%p100) target = $region20
        $region19: #{tpu_custom_call.1} parent=15 // pred_region
          %s103 = sand.u32 %s37, 1
          %s104 = scalar_lea.sflag [#allocation3], %s103
          %s105 = sand.u32 %s37, 1
          %s106 = smul.addr %s105, 256
          %s107 = scalar_lea.vmem [#allocation2], %s106
          %s108 = smul.u32 16, %s21
          %110 = vsyncadd %s104, 0
          %s111 = smul.addr %s108, 2
          %s112 = smul.addr %s20, 64
          %s113 = sadd.s32 %s111, %s112
          %s114 = smul.addr %s113, 8
          %s115 = scalar_lea.hbm %s0, %s114
          %s116 = sshll.u32 %s115, 4
          %s117 = int_to_ptr.hbm [resolvable:$true] %s116
          %s118 = sshll.u32 %s107, 4
          %s119 = int_to_ptr.vmem [resolvable:$true] %s118
          %124 = dma.hbm_to_vmem [thread:$0]  %s117, 4096, %s119, %s104, 256, 256, 16
        $region20: #{tpu_custom_call.1} parent=15 // pred_fallthru
          _
      $region16: #{tpu_custom_call.1} parent=5 // pred_fallthru
        _
      %p125 = scmp.le.s32.totalorder 1, %s13
      %p126 = scmp.lt.s32.totalorder %s13, 5
      %p127 = pnand %p125, %p126
      %p128 = pneg %p127
      // Predicated region
      $region21: #{tpu_custom_call.1} parent=5 // pred_check
        _
      $region22: #{tpu_custom_call.1} parent=5 // pred_check_branch
        %130 = sbr.rel (%p127) target = $region24
      $region23: #{tpu_custom_call.1} parent=5 // pred_region
        %s131 = ssub.s32 %s13, 1
        %s132 = sand.u32 %s40, 1
        %s133 = scalar_lea.sflag [#allocation3], %s132
        %s134 = sand.u32 %s40, 1
        %s135 = smul.addr %s134, 256
        %s136 = scalar_lea.vmem [#allocation2], %s135
        // Predicated region
        $region25: #{tpu_custom_call.1} parent=23 // pred_check
          %p137 = pneg %p53
        $region26: #{tpu_custom_call.1} parent=23 // pred_check_branch
          %139 = sbr.rel (%p137) target = $region28
        $region27: #{tpu_custom_call.1} parent=23 // pred_region
          %141 = dma.done %s133, 4096
        $region28: #{tpu_custom_call.1} parent=23 // pred_fallthru
          _
        %s142 = sand.u32 %s40, 1
        %s143 = scalar_lea.sflag [#allocation3], %s142
        %s144 = sand.u32 %s40, 1
        %s145 = smul.addr %s144, 256
        %s146 = scalar_lea.vmem [#allocation2], %s145
        %p147 = pneg %p53
        %p148 = pneg %p50
        %p149 = pneg %p81
        %p150 = pneg %p78
        %s151 = sand.u32 %s68, 1
        %s152 = scalar_lea.sflag [#allocation4], %s151
        %s153 = sand.u32 %s68, 1
        %s154 = smul.addr %s153, 256
        %s155 = scalar_lea.vmem [#allocation5], %s154
        %s156 = smul.u32 16, %s23
        %s157 = smul.u32 16, %s23
        %v158 = vld [vmem:[%s136] sm:$0xff]
        %v159 = vld [vmem:[%s136 + $0x8] sm:$0xff]
        %v160 = vld [vmem:[%s136 + $0x10] sm:$0xff]
        %v161 = vld [vmem:[%s136 + $0x18] sm:$0xff]
        %164 = vrot.lane.b32.xlu0 %v158, 112
        %v165 = vpop.permute.xlu0 %164
        %166 = vrot.lane.b32.xlu0 %v160, 112
        %v167 = vpop.permute.xlu0 %166
        %170 = vrot.lane.b32.xlu0 %v158, 96
        %v171 = vpop.permute.xlu0 %170
        %172 = vrot.lane.b32.xlu0 %v160, 96
        %v173 = vpop.permute.xlu0 %172
        %176 = vrot.lane.b32.xlu0 %v158, 80
        %v177 = vpop.permute.xlu0 %176
        %178 = vrot.lane.b32.xlu0 %v160, 80
        %v179 = vpop.permute.xlu0 %178
        %182 = vrot.lane.b32.xlu0 %v158, 64
        %v183 = vpop.permute.xlu0 %182
        %184 = vrot.lane.b32.xlu0 %v160, 64
        %v185 = vpop.permute.xlu0 %184
        %188 = vrot.lane.b32.xlu0 %v158, 48
        %v189 = vpop.permute.xlu0 %188
        %190 = vrot.lane.b32.xlu0 %v160, 48
        %v191 = vpop.permute.xlu0 %190
        %194 = vrot.lane.b32.xlu0 %v158, 32
        %v195 = vpop.permute.xlu0 %194
        %196 = vrot.lane.b32.xlu0 %v160, 32
        %v197 = vpop.permute.xlu0 %196
        %200 = vrot.lane.b32.xlu0 %v158, 16
        %v201 = vpop.permute.xlu0 %200
        %202 = vrot.lane.b32.xlu0 %v160, 16
        %v203 = vpop.permute.xlu0 %202
        %208 = vrot.lane.b32.xlu0 %v159, 112
        %v209 = vpop.permute.xlu0 %208
        %210 = vrot.lane.b32.xlu0 %v161, 112
        %v211 = vpop.permute.xlu0 %210
        %214 = vrot.lane.b32.xlu0 %v159, 96
        %v215 = vpop.permute.xlu0 %214
        %216 = vrot.lane.b32.xlu0 %v161, 96
        %v217 = vpop.permute.xlu0 %216
        %220 = vrot.lane.b32.xlu0 %v159, 80
        %v221 = vpop.permute.xlu0 %220
        %222 = vrot.lane.b32.xlu0 %v161, 80
        %v223 = vpop.permute.xlu0 %222
        %226 = vrot.lane.b32.xlu0 %v159, 64
        %v227 = vpop.permute.xlu0 %226
        %228 = vrot.lane.b32.xlu0 %v161, 64
        %v229 = vpop.permute.xlu0 %228
        %232 = vrot.lane.b32.xlu0 %v159, 48
        %v233 = vpop.permute.xlu0 %232
        %234 = vrot.lane.b32.xlu0 %v161, 48
        %v235 = vpop.permute.xlu0 %234
        %238 = vrot.lane.b32.xlu0 %v159, 32
        %v239 = vpop.permute.xlu0 %238
        %240 = vrot.lane.b32.xlu0 %v161, 32
        %v241 = vpop.permute.xlu0 %240
        %244 = vrot.lane.b32.xlu0 %v159, 16
        %v245 = vpop.permute.xlu0 %244
        %246 = vrot.lane.b32.xlu0 %v161, 16
        %v247 = vpop.permute.xlu0 %246
        %v250 = vrot.slane %v171, 4
        %vm251 = vcmask 1047556
        %v252 = vsel %vm251, %v250, %v158
        %v253 = vrot.slane %v158, 4
        %v254 = vsel %vm251, %v171, %v253
        %v256 = vunpack.c.l.s4 1983009808
        %v257 = vunpack.c.0.s8 %v256
        %v258 = vperm.slane %v252, %v257
        %v260 = vunpack.c.l.s4 1983009808
        %v261 = vunpack.c.0.s8 %v260
        %v262 = vperm.slane %v254, %v261
        %v263 = vrot.slane %v177, 4
        %v264 = vsel %vm251, %v263, %v165
        %v265 = vrot.slane %v165, 4
        %v266 = vsel %vm251, %v177, %v265
        %v268 = vunpack.c.l.s4 1983009808
        %v269 = vunpack.c.0.s8 %v268
        %v270 = vperm.slane %v264, %v269
        %v272 = vunpack.c.l.s4 1983009808
        %v273 = vunpack.c.0.s8 %v272
        %v274 = vperm.slane %v266, %v273
        %v275 = vrot.slane %v195, 4
        %v276 = vsel %vm251, %v275, %v183
        %v277 = vrot.slane %v183, 4
        %v278 = vsel %vm251, %v195, %v277
        %v280 = vunpack.c.l.s4 1983009808
        %v281 = vunpack.c.0.s8 %v280
        %v282 = vperm.slane %v276, %v281
        %v284 = vunpack.c.l.s4 1983009808
        %v285 = vunpack.c.0.s8 %v284
        %v286 = vperm.slane %v278, %v285
        %v287 = vrot.slane %v201, 4
        %v288 = vsel %vm251, %v287, %v189
        %v289 = vrot.slane %v189, 4
        %v290 = vsel %vm251, %v201, %v289
        %v292 = vunpack.c.l.s4 1983009808
        %v293 = vunpack.c.0.s8 %v292
        %v294 = vperm.slane %v288, %v293
        %v296 = vunpack.c.l.s4 1983009808
        %v297 = vunpack.c.0.s8 %v296
        %v298 = vperm.slane %v290, %v297
        %v299 = vrot.slane %v270, 4
        %v300 = vsel %vm251, %v299, %v258
        %v301 = vrot.slane %v258, 4
        %v302 = vsel %vm251, %v270, %v301
        %v304 = vunpack.c.l.s4 1934713408
        %v305 = vunpack.c.0.s8 %v304
        %v306 = vperm.slane %v300, %v305
        %v308 = vunpack.c.l.s4 1934713408
        %v309 = vunpack.c.0.s8 %v308
        %v310 = vperm.slane %v302, %v309
        %v311 = vrot.slane %v274, 4
        %v312 = vsel %vm251, %v311, %v262
        %v313 = vrot.slane %v262, 4
        %v314 = vsel %vm251, %v274, %v313
        %v316 = vunpack.c.l.s4 1934713408
        %v317 = vunpack.c.0.s8 %v316
        %v318 = vperm.slane %v312, %v317
        %v320 = vunpack.c.l.s4 1934713408
        %v321 = vunpack.c.0.s8 %v320
        %v322 = vperm.slane %v314, %v321
        %v323 = vrot.slane %v294, 4
        %v324 = vsel %vm251, %v323, %v282
        %v325 = vrot.slane %v282, 4
        %v326 = vsel %vm251, %v294, %v325
        %v328 = vunpack.c.l.s4 1934713408
        %v329 = vunpack.c.0.s8 %v328
        %v330 = vperm.slane %v324, %v329
        %v332 = vunpack.c.l.s4 1934713408
        %v333 = vunpack.c.0.s8 %v332
        %v334 = vperm.slane %v326, %v333
        %v335 = vrot.slane %v298, 4
        %v336 = vsel %vm251, %v335, %v286
        %v337 = vrot.slane %v286, 4
        %v338 = vsel %vm251, %v298, %v337
        %v340 = vunpack.c.l.s4 1934713408
        %v341 = vunpack.c.0.s8 %v340
        %v342 = vperm.slane %v336, %v341
        %v344 = vunpack.c.l.s4 1934713408
        %v345 = vunpack.c.0.s8 %v344
        %v346 = vperm.slane %v338, %v345
        %v347 = vrot.slane %v330, 4
        %v348 = vsel %vm251, %v347, %v306
        %v349 = vrot.slane %v306, 4
        %v350 = vsel %vm251, %v330, %v349
        %v351 = vrot.slane %v334, 4
        %v352 = vsel %vm251, %v351, %v310
        %v353 = vrot.slane %v310, 4
        %v354 = vsel %vm251, %v334, %v353
        %v355 = vrot.slane %v342, 4
        %v356 = vsel %vm251, %v355, %v318
        %v357 = vrot.slane %v318, 4
        %v358 = vsel %vm251, %v342, %v357
        %v359 = vrot.slane %v346, 4
        %v360 = vsel %vm251, %v359, %v322
        %v361 = vrot.slane %v322, 4
        %v362 = vsel %vm251, %v346, %v361
        %v363 = vrot.slane %v215, 4
        %v364 = vsel %vm251, %v363, %v159
        %v365 = vrot.slane %v159, 4
        %v366 = vsel %vm251, %v215, %v365
        %v368 = vunpack.c.l.s4 1983009808
        %v369 = vunpack.c.0.s8 %v368
        %v370 = vperm.slane %v364, %v369
        %v372 = vunpack.c.l.s4 1983009808
        %v373 = vunpack.c.0.s8 %v372
        %v374 = vperm.slane %v366, %v373
        %v375 = vrot.slane %v221, 4
        %v376 = vsel %vm251, %v375, %v209
        %v377 = vrot.slane %v209, 4
        %v378 = vsel %vm251, %v221, %v377
        %v380 = vunpack.c.l.s4 1983009808
        %v381 = vunpack.c.0.s8 %v380
        %v382 = vperm.slane %v376, %v381
        %v384 = vunpack.c.l.s4 1983009808
        %v385 = vunpack.c.0.s8 %v384
        %v386 = vperm.slane %v378, %v385
        %v387 = vrot.slane %v239, 4
        %v388 = vsel %vm251, %v387, %v227
        %v389 = vrot.slane %v227, 4
        %v390 = vsel %vm251, %v239, %v389
        %v392 = vunpack.c.l.s4 1983009808
        %v393 = vunpack.c.0.s8 %v392
        %v394 = vperm.slane %v388, %v393
        %v396 = vunpack.c.l.s4 1983009808
        %v397 = vunpack.c.0.s8 %v396
        %v398 = vperm.slane %v390, %v397
        %v399 = vrot.slane %v245, 4
        %v400 = vsel %vm251, %v399, %v233
        %v401 = vrot.slane %v233, 4
        %v402 = vsel %vm251, %v245, %v401
        %v404 = vunpack.c.l.s4 1983009808
        %v405 = vunpack.c.0.s8 %v404
        %v406 = vperm.slane %v400, %v405
        %v408 = vunpack.c.l.s4 1983009808
        %v409 = vunpack.c.0.s8 %v408
        %v410 = vperm.slane %v402, %v409
        %v411 = vrot.slane %v382, 4
        %v412 = vsel %vm251, %v411, %v370
        %v413 = vrot.slane %v370, 4
        %v414 = vsel %vm251, %v382, %v413
        %v416 = vunpack.c.l.s4 1934713408
        %v417 = vunpack.c.0.s8 %v416
        %v418 = vperm.slane %v412, %v417
        %v420 = vunpack.c.l.s4 1934713408
        %v421 = vunpack.c.0.s8 %v420
        %v422 = vperm.slane %v414, %v421
        %v423 = vrot.slane %v386, 4
        %v424 = vsel %vm251, %v423, %v374
        %v425 = vrot.slane %v374, 4
        %v426 = vsel %vm251, %v386, %v425
        %v428 = vunpack.c.l.s4 1934713408
        %v429 = vunpack.c.0.s8 %v428
        %v430 = vperm.slane %v424, %v429
        %v432 = vunpack.c.l.s4 1934713408
        %v433 = vunpack.c.0.s8 %v432
        %v434 = vperm.slane %v426, %v433
        %v435 = vrot.slane %v406, 4
        %v436 = vsel %vm251, %v435, %v394
        %v437 = vrot.slane %v394, 4
        %v438 = vsel %vm251, %v406, %v437
        %v440 = vunpack.c.l.s4 1934713408
        %v441 = vunpack.c.0.s8 %v440
        %v442 = vperm.slane %v436, %v441
        %v444 = vunpack.c.l.s4 1934713408
        %v445 = vunpack.c.0.s8 %v444
        %v446 = vperm.slane %v438, %v445
        %v447 = vrot.slane %v410, 4
        %v448 = vsel %vm251, %v447, %v398
        %v449 = vrot.slane %v398, 4
        %v450 = vsel %vm251, %v410, %v449
        %v452 = vunpack.c.l.s4 1934713408
        %v453 = vunpack.c.0.s8 %v452
        %v454 = vperm.slane %v448, %v453
        %v456 = vunpack.c.l.s4 1934713408
        %v457 = vunpack.c.0.s8 %v456
        %v458 = vperm.slane %v450, %v457
        %v459 = vrot.slane %v442, 4
        %v460 = vsel %vm251, %v459, %v418
        %v461 = vrot.slane %v418, 4
        %v462 = vsel %vm251, %v442, %v461
        %v463 = vrot.slane %v446, 4
        %v464 = vsel %vm251, %v463, %v422
        %v465 = vrot.slane %v422, 4
        %v466 = vsel %vm251, %v446, %v465
        %v467 = vrot.slane %v454, 4
        %v468 = vsel %vm251, %v467, %v430
        %v469 = vrot.slane %v430, 4
        %v470 = vsel %vm251, %v454, %v469
        %v471 = vrot.slane %v458, 4
        %v472 = vsel %vm251, %v471, %v434
        %v473 = vrot.slane %v434, 4
        %v474 = vsel %vm251, %v458, %v473
        %v475 = vrot.slane %v173, 4
        %v476 = vsel %vm251, %v475, %v160
        %v477 = vrot.slane %v160, 4
        %v478 = vsel %vm251, %v173, %v477
        %v480 = vunpack.c.l.s4 1983009808
        %v481 = vunpack.c.0.s8 %v480
        %v482 = vperm.slane %v476, %v481
        %v484 = vunpack.c.l.s4 1983009808
        %v485 = vunpack.c.0.s8 %v484
        %v486 = vperm.slane %v478, %v485
        %v487 = vrot.slane %v179, 4
        %v488 = vsel %vm251, %v487, %v167
        %v489 = vrot.slane %v167, 4
        %v490 = vsel %vm251, %v179, %v489
        %v492 = vunpack.c.l.s4 1983009808
        %v493 = vunpack.c.0.s8 %v492
        %v494 = vperm.slane %v488, %v493
        %v496 = vunpack.c.l.s4 1983009808
        %v497 = vunpack.c.0.s8 %v496
        %v498 = vperm.slane %v490, %v497
        %v499 = vrot.slane %v197, 4
        %v500 = vsel %vm251, %v499, %v185
        %v501 = vrot.slane %v185, 4
        %v502 = vsel %vm251, %v197, %v501
        %v504 = vunpack.c.l.s4 1983009808
        %v505 = vunpack.c.0.s8 %v504
        %v506 = vperm.slane %v500, %v505
        %v508 = vunpack.c.l.s4 1983009808
        %v509 = vunpack.c.0.s8 %v508
        %v510 = vperm.slane %v502, %v509
        %v511 = vrot.slane %v203, 4
        %v512 = vsel %vm251, %v511, %v191
        %v513 = vrot.slane %v191, 4
        %v514 = vsel %vm251, %v203, %v513
        %v516 = vunpack.c.l.s4 1983009808
        %v517 = vunpack.c.0.s8 %v516
        %v518 = vperm.slane %v512, %v517
        %v520 = vunpack.c.l.s4 1983009808
        %v521 = vunpack.c.0.s8 %v520
        %v522 = vperm.slane %v514, %v521
        %v523 = vrot.slane %v494, 4
        %v524 = vsel %vm251, %v523, %v482
        %v525 = vrot.slane %v482, 4
        %v526 = vsel %vm251, %v494, %v525
        %v528 = vunpack.c.l.s4 1934713408
        %v529 = vunpack.c.0.s8 %v528
        %v530 = vperm.slane %v524, %v529
        %v532 = vunpack.c.l.s4 1934713408
        %v533 = vunpack.c.0.s8 %v532
        %v534 = vperm.slane %v526, %v533
        %v535 = vrot.slane %v498, 4
        %v536 = vsel %vm251, %v535, %v486
        %v537 = vrot.slane %v486, 4
        %v538 = vsel %vm251, %v498, %v537
        %v540 = vunpack.c.l.s4 1934713408
        %v541 = vunpack.c.0.s8 %v540
        %v542 = vperm.slane %v536, %v541
        %v544 = vunpack.c.l.s4 1934713408
        %v545 = vunpack.c.0.s8 %v544
        %v546 = vperm.slane %v538, %v545
        %v547 = vrot.slane %v518, 4
        %v548 = vsel %vm251, %v547, %v506
        %v549 = vrot.slane %v506, 4
        %v550 = vsel %vm251, %v518, %v549
        %v552 = vunpack.c.l.s4 1934713408
        %v553 = vunpack.c.0.s8 %v552
        %v554 = vperm.slane %v548, %v553
        %v556 = vunpack.c.l.s4 1934713408
        %v557 = vunpack.c.0.s8 %v556
        %v558 = vperm.slane %v550, %v557
        %v559 = vrot.slane %v522, 4
        %v560 = vsel %vm251, %v559, %v510
        %v561 = vrot.slane %v510, 4
        %v562 = vsel %vm251, %v522, %v561
        %v564 = vunpack.c.l.s4 1934713408
        %v565 = vunpack.c.0.s8 %v564
        %v566 = vperm.slane %v560, %v565
        %v568 = vunpack.c.l.s4 1934713408
        %v569 = vunpack.c.0.s8 %v568
        %v570 = vperm.slane %v562, %v569
        %v571 = vrot.slane %v554, 4
        %v572 = vsel %vm251, %v571, %v530
        %v573 = vrot.slane %v530, 4
        %v574 = vsel %vm251, %v554, %v573
        %v575 = vrot.slane %v558, 4
        %v576 = vsel %vm251, %v575, %v534
        %v577 = vrot.slane %v534, 4
        %v578 = vsel %vm251, %v558, %v577
        %v579 = vrot.slane %v566, 4
        %v580 = vsel %vm251, %v579, %v542
        %v581 = vrot.slane %v542, 4
        %v582 = vsel %vm251, %v566, %v581
        %v583 = vrot.slane %v570, 4
        %v584 = vsel %vm251, %v583, %v546
        %v585 = vrot.slane %v546, 4
        %v586 = vsel %vm251, %v570, %v585
        %v587 = vrot.slane %v217, 4
        %v588 = vsel %vm251, %v587, %v161
        %v589 = vrot.slane %v161, 4
        %v590 = vsel %vm251, %v217, %v589
        %v592 = vunpack.c.l.s4 1983009808
        %v593 = vunpack.c.0.s8 %v592
        %v594 = vperm.slane %v588, %v593
        %v596 = vunpack.c.l.s4 1983009808
        %v597 = vunpack.c.0.s8 %v596
        %v598 = vperm.slane %v590, %v597
        %v599 = vrot.slane %v223, 4
        %v600 = vsel %vm251, %v599, %v211
        %v601 = vrot.slane %v211, 4
        %v602 = vsel %vm251, %v223, %v601
        %v604 = vunpack.c.l.s4 1983009808
        %v605 = vunpack.c.0.s8 %v604
        %v606 = vperm.slane %v600, %v605
        %v608 = vunpack.c.l.s4 1983009808
        %v609 = vunpack.c.0.s8 %v608
        %v610 = vperm.slane %v602, %v609
        %v611 = vrot.slane %v241, 4
        %v612 = vsel %vm251, %v611, %v229
        %v613 = vrot.slane %v229, 4
        %v614 = vsel %vm251, %v241, %v613
        %v616 = vunpack.c.l.s4 1983009808
        %v617 = vunpack.c.0.s8 %v616
        %v618 = vperm.slane %v612, %v617
        %v620 = vunpack.c.l.s4 1983009808
        %v621 = vunpack.c.0.s8 %v620
        %v622 = vperm.slane %v614, %v621
        %v623 = vrot.slane %v247, 4
        %v624 = vsel %vm251, %v623, %v235
        %v625 = vrot.slane %v235, 4
        %v626 = vsel %vm251, %v247, %v625
        %v628 = vunpack.c.l.s4 1983009808
        %v629 = vunpack.c.0.s8 %v628
        %v630 = vperm.slane %v624, %v629
        %v632 = vunpack.c.l.s4 1983009808
        %v633 = vunpack.c.0.s8 %v632
        %v634 = vperm.slane %v626, %v633
        %v635 = vrot.slane %v606, 4
        %v636 = vsel %vm251, %v635, %v594
        %v637 = vrot.slane %v594, 4
        %v638 = vsel %vm251, %v606, %v637
        %v640 = vunpack.c.l.s4 1934713408
        %v641 = vunpack.c.0.s8 %v640
        %v642 = vperm.slane %v636, %v641
        %v644 = vunpack.c.l.s4 1934713408
        %v645 = vunpack.c.0.s8 %v644
        %v646 = vperm.slane %v638, %v645
        %v647 = vrot.slane %v610, 4
        %v648 = vsel %vm251, %v647, %v598
        %v649 = vrot.slane %v598, 4
        %v650 = vsel %vm251, %v610, %v649
        %v652 = vunpack.c.l.s4 1934713408
        %v653 = vunpack.c.0.s8 %v652
        %v654 = vperm.slane %v648, %v653
        %v656 = vunpack.c.l.s4 1934713408
        %v657 = vunpack.c.0.s8 %v656
        %v658 = vperm.slane %v650, %v657
        %v659 = vrot.slane %v630, 4
        %v660 = vsel %vm251, %v659, %v618
        %v661 = vrot.slane %v618, 4
        %v662 = vsel %vm251, %v630, %v661
        %v664 = vunpack.c.l.s4 1934713408
        %v665 = vunpack.c.0.s8 %v664
        %v666 = vperm.slane %v660, %v665
        %v668 = vunpack.c.l.s4 1934713408
        %v669 = vunpack.c.0.s8 %v668
        %v670 = vperm.slane %v662, %v669
        %v671 = vrot.slane %v634, 4
        %v672 = vsel %vm251, %v671, %v622
        %v673 = vrot.slane %v622, 4
        %v674 = vsel %vm251, %v634, %v673
        %v676 = vunpack.c.l.s4 1934713408
        %v677 = vunpack.c.0.s8 %v676
        %v678 = vperm.slane %v672, %v677
        %v680 = vunpack.c.l.s4 1934713408
        %v681 = vunpack.c.0.s8 %v680
        %v682 = vperm.slane %v674, %v681
        %v683 = vrot.slane %v666, 4
        %v684 = vsel %vm251, %v683, %v642
        %v685 = vrot.slane %v642, 4
        %v686 = vsel %vm251, %v666, %v685
        %v687 = vrot.slane %v670, 4
        %v688 = vsel %vm251, %v687, %v646
        %v689 = vrot.slane %v646, 4
        %v690 = vsel %vm251, %v670, %v689
        %v691 = vrot.slane %v678, 4
        %v692 = vsel %vm251, %v691, %v654
        %v693 = vrot.slane %v654, 4
        %v694 = vsel %vm251, %v678, %v693
        %v695 = vrot.slane %v682, 4
        %v696 = vsel %vm251, %v695, %v658
        %v697 = vrot.slane %v658, 4
        %v698 = vsel %vm251, %v682, %v697
        %v699 = vrot.slane %v352, 4
        %v700 = vsel %vm251, %v699, %v348
        %v701 = vrot.slane %v348, 4
        %v702 = vsel %vm251, %v352, %v701
        %v704 = vunpack.c.l.s4 1983009808
        %v705 = vunpack.c.0.s8 %v704
        %v706 = vperm.slane %v700, %v705
        %v708 = vunpack.c.l.s4 1983009808
        %v709 = vunpack.c.0.s8 %v708
        %v710 = vperm.slane %v702, %v709
        %v711 = vrot.slane %v354, 4
        %v712 = vsel %vm251, %v711, %v350
        %v713 = vrot.slane %v350, 4
        %v714 = vsel %vm251, %v354, %v713
        %v716 = vunpack.c.l.s4 1983009808
        %v717 = vunpack.c.0.s8 %v716
        %v718 = vperm.slane %v712, %v717
        %v720 = vunpack.c.l.s4 1983009808
        %v721 = vunpack.c.0.s8 %v720
        %v722 = vperm.slane %v714, %v721
        %v723 = vrot.slane %v360, 4
        %v724 = vsel %vm251, %v723, %v356
        %v725 = vrot.slane %v356, 4
        %v726 = vsel %vm251, %v360, %v725
        %v728 = vunpack.c.l.s4 1983009808
        %v729 = vunpack.c.0.s8 %v728
        %v730 = vperm.slane %v724, %v729
        %v732 = vunpack.c.l.s4 1983009808
        %v733 = vunpack.c.0.s8 %v732
        %v734 = vperm.slane %v726, %v733
        %v735 = vrot.slane %v362, 4
        %v736 = vsel %vm251, %v735, %v358
        %v737 = vrot.slane %v358, 4
        %v738 = vsel %vm251, %v362, %v737
        %v740 = vunpack.c.l.s4 1983009808
        %v741 = vunpack.c.0.s8 %v740
        %v742 = vperm.slane %v736, %v741
        %v744 = vunpack.c.l.s4 1983009808
        %v745 = vunpack.c.0.s8 %v744
        %v746 = vperm.slane %v738, %v745
        %v747 = vrot.slane %v718, 4
        %v748 = vsel %vm251, %v747, %v706
        %v749 = vrot.slane %v706, 4
        %v750 = vsel %vm251, %v718, %v749
        %v752 = vunpack.c.l.s4 1934713408
        %v753 = vunpack.c.0.s8 %v752
        %v754 = vperm.slane %v748, %v753
        %v756 = vunpack.c.l.s4 1934713408
        %v757 = vunpack.c.0.s8 %v756
        %v758 = vperm.slane %v750, %v757
        %v759 = vrot.slane %v722, 4
        %v760 = vsel %vm251, %v759, %v710
        %v761 = vrot.slane %v710, 4
        %v762 = vsel %vm251, %v722, %v761
        %v764 = vunpack.c.l.s4 1934713408
        %v765 = vunpack.c.0.s8 %v764
        %v766 = vperm.slane %v760, %v765
        %v768 = vunpack.c.l.s4 1934713408
        %v769 = vunpack.c.0.s8 %v768
        %v770 = vperm.slane %v762, %v769
        %v771 = vrot.slane %v742, 4
        %v772 = vsel %vm251, %v771, %v730
        %v773 = vrot.slane %v730, 4
        %v774 = vsel %vm251, %v742, %v773
        %v776 = vunpack.c.l.s4 1934713408
        %v777 = vunpack.c.0.s8 %v776
        %v778 = vperm.slane %v772, %v777
        %v780 = vunpack.c.l.s4 1934713408
        %v781 = vunpack.c.0.s8 %v780
        %v782 = vperm.slane %v774, %v781
        %v783 = vrot.slane %v746, 4
        %v784 = vsel %vm251, %v783, %v734
        %v785 = vrot.slane %v734, 4
        %v786 = vsel %vm251, %v746, %v785
        %v788 = vunpack.c.l.s4 1934713408
        %v789 = vunpack.c.0.s8 %v788
        %v790 = vperm.slane %v784, %v789
        %v792 = vunpack.c.l.s4 1934713408
        %v793 = vunpack.c.0.s8 %v792
        %v794 = vperm.slane %v786, %v793
        %v795 = vrot.slane %v778, 4
        %v796 = vsel %vm251, %v795, %v754
        %v797 = vrot.slane %v754, 4
        %v798 = vsel %vm251, %v778, %v797
        %v799 = vrot.slane %v782, 4
        %v800 = vsel %vm251, %v799, %v758
        %v801 = vrot.slane %v758, 4
        %v802 = vsel %vm251, %v782, %v801
        %v803 = vrot.slane %v790, 4
        %v804 = vsel %vm251, %v803, %v766
        %v805 = vrot.slane %v766, 4
        %v806 = vsel %vm251, %v790, %v805
        %v807 = vrot.slane %v794, 4
        %v808 = vsel %vm251, %v807, %v770
        %v809 = vrot.slane %v770, 4
        %v810 = vsel %vm251, %v794, %v809
        %v811 = vrot.slane %v576, 4
        %v812 = vsel %vm251, %v811, %v572
        %v813 = vrot.slane %v572, 4
        %v814 = vsel %vm251, %v576, %v813
        %v816 = vunpack.c.l.s4 1983009808
        %v817 = vunpack.c.0.s8 %v816
        %v818 = vperm.slane %v812, %v817
        %v820 = vunpack.c.l.s4 1983009808
        %v821 = vunpack.c.0.s8 %v820
        %v822 = vperm.slane %v814, %v821
        %v823 = vrot.slane %v578, 4
        %v824 = vsel %vm251, %v823, %v574
        %v825 = vrot.slane %v574, 4
        %v826 = vsel %vm251, %v578, %v825
        %v828 = vunpack.c.l.s4 1983009808
        %v829 = vunpack.c.0.s8 %v828
        %v830 = vperm.slane %v824, %v829
        %v832 = vunpack.c.l.s4 1983009808
        %v833 = vunpack.c.0.s8 %v832
        %v834 = vperm.slane %v826, %v833
        %v835 = vrot.slane %v584, 4
        %v836 = vsel %vm251, %v835, %v580
        %v837 = vrot.slane %v580, 4
        %v838 = vsel %vm251, %v584, %v837
        %v840 = vunpack.c.l.s4 1983009808
        %v841 = vunpack.c.0.s8 %v840
        %v842 = vperm.slane %v836, %v841
        %v844 = vunpack.c.l.s4 1983009808
        %v845 = vunpack.c.0.s8 %v844
        %v846 = vperm.slane %v838, %v845
        %v847 = vrot.slane %v586, 4
        %v848 = vsel %vm251, %v847, %v582
        %v849 = vrot.slane %v582, 4
        %v850 = vsel %vm251, %v586, %v849
        %v852 = vunpack.c.l.s4 1983009808
        %v853 = vunpack.c.0.s8 %v852
        %v854 = vperm.slane %v848, %v853
        %v856 = vunpack.c.l.s4 1983009808
        %v857 = vunpack.c.0.s8 %v856
        %v858 = vperm.slane %v850, %v857
        %v859 = vrot.slane %v830, 4
        %v860 = vsel %vm251, %v859, %v818
        %v861 = vrot.slane %v818, 4
        %v862 = vsel %vm251, %v830, %v861
        %v864 = vunpack.c.l.s4 1934713408
        %v865 = vunpack.c.0.s8 %v864
        %v866 = vperm.slane %v860, %v865
        %v868 = vunpack.c.l.s4 1934713408
        %v869 = vunpack.c.0.s8 %v868
        %v870 = vperm.slane %v862, %v869
        %v871 = vrot.slane %v834, 4
        %v872 = vsel %vm251, %v871, %v822
        %v873 = vrot.slane %v822, 4
        %v874 = vsel %vm251, %v834, %v873
        %v876 = vunpack.c.l.s4 1934713408
        %v877 = vunpack.c.0.s8 %v876
        %v878 = vperm.slane %v872, %v877
        %v880 = vunpack.c.l.s4 1934713408
        %v881 = vunpack.c.0.s8 %v880
        %v882 = vperm.slane %v874, %v881
        %v883 = vrot.slane %v854, 4
        %v884 = vsel %vm251, %v883, %v842
        %v885 = vrot.slane %v842, 4
        %v886 = vsel %vm251, %v854, %v885
        %v888 = vunpack.c.l.s4 1934713408
        %v889 = vunpack.c.0.s8 %v888
        %v890 = vperm.slane %v884, %v889
        %v892 = vunpack.c.l.s4 1934713408
        %v893 = vunpack.c.0.s8 %v892
        %v894 = vperm.slane %v886, %v893
        %v895 = vrot.slane %v858, 4
        %v896 = vsel %vm251, %v895, %v846
        %v897 = vrot.slane %v846, 4
        %v898 = vsel %vm251, %v858, %v897
        %v900 = vunpack.c.l.s4 1934713408
        %v901 = vunpack.c.0.s8 %v900
        %v902 = vperm.slane %v896, %v901
        %v904 = vunpack.c.l.s4 1934713408
        %v905 = vunpack.c.0.s8 %v904
        %v906 = vperm.slane %v898, %v905
        %v907 = vrot.slane %v890, 4
        %v908 = vsel %vm251, %v907, %v866
        %v909 = vrot.slane %v866, 4
        %v910 = vsel %vm251, %v890, %v909
        %v911 = vrot.slane %v894, 4
        %v912 = vsel %vm251, %v911, %v870
        %v913 = vrot.slane %v870, 4
        %v914 = vsel %vm251, %v894, %v913
        %v915 = vrot.slane %v902, 4
        %v916 = vsel %vm251, %v915, %v878
        %v917 = vrot.slane %v878, 4
        %v918 = vsel %vm251, %v902, %v917
        %v919 = vrot.slane %v906, 4
        %v920 = vsel %vm251, %v919, %v882
        %v921 = vrot.slane %v882, 4
        %v922 = vsel %vm251, %v906, %v921
        %v923 = vrot.slane %v464, 4
        %v924 = vsel %vm251, %v923, %v460
        %v925 = vrot.slane %v460, 4
        %v926 = vsel %vm251, %v464, %v925
        %v928 = vunpack.c.l.s4 1983009808
        %v929 = vunpack.c.0.s8 %v928
        %v930 = vperm.slane %v924, %v929
        %v932 = vunpack.c.l.s4 1983009808
        %v933 = vunpack.c.0.s8 %v932
        %v934 = vperm.slane %v926, %v933
        %v935 = vrot.slane %v466, 4
        %v936 = vsel %vm251, %v935, %v462
        %v937 = vrot.slane %v462, 4
        %v938 = vsel %vm251, %v466, %v937
        %v940 = vunpack.c.l.s4 1983009808
        %v941 = vunpack.c.0.s8 %v940
        %v942 = vperm.slane %v936, %v941
        %v944 = vunpack.c.l.s4 1983009808
        %v945 = vunpack.c.0.s8 %v944
        %v946 = vperm.slane %v938, %v945
        %v947 = vrot.slane %v472, 4
        %v948 = vsel %vm251, %v947, %v468
        %v949 = vrot.slane %v468, 4
        %v950 = vsel %vm251, %v472, %v949
        %v952 = vunpack.c.l.s4 1983009808
        %v953 = vunpack.c.0.s8 %v952
        %v954 = vperm.slane %v948, %v953
        %v956 = vunpack.c.l.s4 1983009808
        %v957 = vunpack.c.0.s8 %v956
        %v958 = vperm.slane %v950, %v957
        %v959 = vrot.slane %v474, 4
        %v960 = vsel %vm251, %v959, %v470
        %v961 = vrot.slane %v470, 4
        %v962 = vsel %vm251, %v474, %v961
        %v964 = vunpack.c.l.s4 1983009808
        %v965 = vunpack.c.0.s8 %v964
        %v966 = vperm.slane %v960, %v965
        %v968 = vunpack.c.l.s4 1983009808
        %v969 = vunpack.c.0.s8 %v968
        %v970 = vperm.slane %v962, %v969
        %v971 = vrot.slane %v942, 4
        %v972 = vsel %vm251, %v971, %v930
        %v973 = vrot.slane %v930, 4
        %v974 = vsel %vm251, %v942, %v973
        %v976 = vunpack.c.l.s4 1934713408
        %v977 = vunpack.c.0.s8 %v976
        %v978 = vperm.slane %v972, %v977
        %v980 = vunpack.c.l.s4 1934713408
        %v981 = vunpack.c.0.s8 %v980
        %v982 = vperm.slane %v974, %v981
        %v983 = vrot.slane %v946, 4
        %v984 = vsel %vm251, %v983, %v934
        %v985 = vrot.slane %v934, 4
        %v986 = vsel %vm251, %v946, %v985
        %v988 = vunpack.c.l.s4 1934713408
        %v989 = vunpack.c.0.s8 %v988
        %v990 = vperm.slane %v984, %v989
        %v992 = vunpack.c.l.s4 1934713408
        %v993 = vunpack.c.0.s8 %v992
        %v994 = vperm.slane %v986, %v993
        %v995 = vrot.slane %v966, 4
        %v996 = vsel %vm251, %v995, %v954
        %v997 = vrot.slane %v954, 4
        %v998 = vsel %vm251, %v966, %v997
        %v1000 = vunpack.c.l.s4 1934713408
        %v1001 = vunpack.c.0.s8 %v1000
        %v1002 = vperm.slane %v996, %v1001
        %v1004 = vunpack.c.l.s4 1934713408
        %v1005 = vunpack.c.0.s8 %v1004
        %v1006 = vperm.slane %v998, %v1005
        %v1007 = vrot.slane %v970, 4
        %v1008 = vsel %vm251, %v1007, %v958
        %v1009 = vrot.slane %v958, 4
        %v1010 = vsel %vm251, %v970, %v1009
        %v1012 = vunpack.c.l.s4 1934713408
        %v1013 = vunpack.c.0.s8 %v1012
        %v1014 = vperm.slane %v1008, %v1013
        %v1016 = vunpack.c.l.s4 1934713408
        %v1017 = vunpack.c.0.s8 %v1016
        %v1018 = vperm.slane %v1010, %v1017
        %v1019 = vrot.slane %v1002, 4
        %v1020 = vsel %vm251, %v1019, %v978
        %v1021 = vrot.slane %v978, 4
        %v1022 = vsel %vm251, %v1002, %v1021
        %v1023 = vrot.slane %v1006, 4
        %v1024 = vsel %vm251, %v1023, %v982
        %v1025 = vrot.slane %v982, 4
        %v1026 = vsel %vm251, %v1006, %v1025
        %v1027 = vrot.slane %v1014, 4
        %v1028 = vsel %vm251, %v1027, %v990
        %v1029 = vrot.slane %v990, 4
        %v1030 = vsel %vm251, %v1014, %v1029
        %v1031 = vrot.slane %v1018, 4
        %v1032 = vsel %vm251, %v1031, %v994
        %v1033 = vrot.slane %v994, 4
        %v1034 = vsel %vm251, %v1018, %v1033
        %v1035 = vrot.slane %v688, 4
        %v1036 = vsel %vm251, %v1035, %v684
        %v1037 = vrot.slane %v684, 4
        %v1038 = vsel %vm251, %v688, %v1037
        %v1040 = vunpack.c.l.s4 1983009808
        %v1041 = vunpack.c.0.s8 %v1040
        %v1042 = vperm.slane %v1036, %v1041
        %v1044 = vunpack.c.l.s4 1983009808
        %v1045 = vunpack.c.0.s8 %v1044
        %v1046 = vperm.slane %v1038, %v1045
        %v1047 = vrot.slane %v690, 4
        %v1048 = vsel %vm251, %v1047, %v686
        %v1049 = vrot.slane %v686, 4
        %v1050 = vsel %vm251, %v690, %v1049
        %v1052 = vunpack.c.l.s4 1983009808
        %v1053 = vunpack.c.0.s8 %v1052
        %v1054 = vperm.slane %v1048, %v1053
        %v1056 = vunpack.c.l.s4 1983009808
        %v1057 = vunpack.c.0.s8 %v1056
        %v1058 = vperm.slane %v1050, %v1057
        %v1059 = vrot.slane %v696, 4
        %v1060 = vsel %vm251, %v1059, %v692
        %v1061 = vrot.slane %v692, 4
        %v1062 = vsel %vm251, %v696, %v1061
        %v1064 = vunpack.c.l.s4 1983009808
        %v1065 = vunpack.c.0.s8 %v1064
        %v1066 = vperm.slane %v1060, %v1065
        %v1068 = vunpack.c.l.s4 1983009808
        %v1069 = vunpack.c.0.s8 %v1068
        %v1070 = vperm.slane %v1062, %v1069
        %v1071 = vrot.slane %v698, 4
        %v1072 = vsel %vm251, %v1071, %v694
        %v1073 = vrot.slane %v694, 4
        %v1074 = vsel %vm251, %v698, %v1073
        %v1076 = vunpack.c.l.s4 1983009808
        %v1077 = vunpack.c.0.s8 %v1076
        %v1078 = vperm.slane %v1072, %v1077
        %v1080 = vunpack.c.l.s4 1983009808
        %v1081 = vunpack.c.0.s8 %v1080
        %v1082 = vperm.slane %v1074, %v1081
        %v1083 = vrot.slane %v1054, 4
        %v1084 = vsel %vm251, %v1083, %v1042
        %v1085 = vrot.slane %v1042, 4
        %v1086 = vsel %vm251, %v1054, %v1085
        %v1088 = vunpack.c.l.s4 1934713408
        %v1089 = vunpack.c.0.s8 %v1088
        %v1090 = vperm.slane %v1084, %v1089
        %v1092 = vunpack.c.l.s4 1934713408
        %v1093 = vunpack.c.0.s8 %v1092
        %v1094 = vperm.slane %v1086, %v1093
        %v1095 = vrot.slane %v1058, 4
        %v1096 = vsel %vm251, %v1095, %v1046
        %v1097 = vrot.slane %v1046, 4
        %v1098 = vsel %vm251, %v1058, %v1097
        %v1100 = vunpack.c.l.s4 1934713408
        %v1101 = vunpack.c.0.s8 %v1100
        %v1102 = vperm.slane %v1096, %v1101
        %v1104 = vunpack.c.l.s4 1934713408
        %v1105 = vunpack.c.0.s8 %v1104
        %v1106 = vperm.slane %v1098, %v1105
        %v1107 = vrot.slane %v1078, 4
        %v1108 = vsel %vm251, %v1107, %v1066
        %v1109 = vrot.slane %v1066, 4
        %v1110 = vsel %vm251, %v1078, %v1109
        %v1112 = vunpack.c.l.s4 1934713408
        %v1113 = vunpack.c.0.s8 %v1112
        %v1114 = vperm.slane %v1108, %v1113
        %v1116 = vunpack.c.l.s4 1934713408
        %v1117 = vunpack.c.0.s8 %v1116
        %v1118 = vperm.slane %v1110, %v1117
        %v1119 = vrot.slane %v1082, 4
        %v1120 = vsel %vm251, %v1119, %v1070
        %v1121 = vrot.slane %v1070, 4
        %v1122 = vsel %vm251, %v1082, %v1121
        %v1124 = vunpack.c.l.s4 1934713408
        %v1125 = vunpack.c.0.s8 %v1124
        %v1126 = vperm.slane %v1120, %v1125
        %v1128 = vunpack.c.l.s4 1934713408
        %v1129 = vunpack.c.0.s8 %v1128
        %v1130 = vperm.slane %v1122, %v1129
        %v1131 = vrot.slane %v1114, 4
        %v1132 = vsel %vm251, %v1131, %v1090
        %v1133 = vrot.slane %v1090, 4
        %v1134 = vsel %vm251, %v1114, %v1133
        %v1135 = vrot.slane %v1118, 4
        %v1136 = vsel %vm251, %v1135, %v1094
        %v1137 = vrot.slane %v1094, 4
        %v1138 = vsel %vm251, %v1118, %v1137
        %v1139 = vrot.slane %v1126, 4
        %v1140 = vsel %vm251, %v1139, %v1102
        %v1141 = vrot.slane %v1102, 4
        %v1142 = vsel %vm251, %v1126, %v1141
        %v1143 = vrot.slane %v1130, 4
        %v1144 = vsel %vm251, %v1143, %v1106
        %v1145 = vrot.slane %v1106, 4
        %v1146 = vsel %vm251, %v1130, %v1145
        %v1147 = vrot.slane %v800, 4
        %v1148 = vsel %vm251, %v1147, %v796
        %v1149 = vrot.slane %v796, 4
        %v1150 = vsel %vm251, %v800, %v1149
        %v1152 = vunpack.c.l.s4 1983009808
        %v1153 = vunpack.c.0.s8 %v1152
        %v1154 = vperm.slane %v1148, %v1153
        %v1156 = vunpack.c.l.s4 1983009808
        %v1157 = vunpack.c.0.s8 %v1156
        %v1158 = vperm.slane %v1150, %v1157
        %v1159 = vrot.slane %v802, 4
        %v1160 = vsel %vm251, %v1159, %v798
        %v1161 = vrot.slane %v798, 4
        %v1162 = vsel %vm251, %v802, %v1161
        %v1164 = vunpack.c.l.s4 1983009808
        %v1165 = vunpack.c.0.s8 %v1164
        %v1166 = vperm.slane %v1160, %v1165
        %v1168 = vunpack.c.l.s4 1983009808
        %v1169 = vunpack.c.0.s8 %v1168
        %v1170 = vperm.slane %v1162, %v1169
        %v1171 = vrot.slane %v808, 4
        %v1172 = vsel %vm251, %v1171, %v804
        %v1173 = vrot.slane %v804, 4
        %v1174 = vsel %vm251, %v808, %v1173
        %v1176 = vunpack.c.l.s4 1983009808
        %v1177 = vunpack.c.0.s8 %v1176
        %v1178 = vperm.slane %v1172, %v1177
        %v1180 = vunpack.c.l.s4 1983009808
        %v1181 = vunpack.c.0.s8 %v1180
        %v1182 = vperm.slane %v1174, %v1181
        %v1183 = vrot.slane %v810, 4
        %v1184 = vsel %vm251, %v1183, %v806
        %v1185 = vrot.slane %v806, 4
        %v1186 = vsel %vm251, %v810, %v1185
        %v1188 = vunpack.c.l.s4 1983009808
        %v1189 = vunpack.c.0.s8 %v1188
        %v1190 = vperm.slane %v1184, %v1189
        %v1192 = vunpack.c.l.s4 1983009808
        %v1193 = vunpack.c.0.s8 %v1192
        %v1194 = vperm.slane %v1186, %v1193
        %v1195 = vrot.slane %v1166, 4
        %v1196 = vsel %vm251, %v1195, %v1154
        %v1197 = vrot.slane %v1154, 4
        %v1198 = vsel %vm251, %v1166, %v1197
        %v1200 = vunpack.c.l.s4 1934713408
        %v1201 = vunpack.c.0.s8 %v1200
        %v1202 = vperm.slane %v1196, %v1201
        %v1204 = vunpack.c.l.s4 1934713408
        %v1205 = vunpack.c.0.s8 %v1204
        %v1206 = vperm.slane %v1198, %v1205
        %v1207 = vrot.slane %v1170, 4
        %v1208 = vsel %vm251, %v1207, %v1158
        %v1209 = vrot.slane %v1158, 4
        %v1210 = vsel %vm251, %v1170, %v1209
        %v1212 = vunpack.c.l.s4 1934713408
        %v1213 = vunpack.c.0.s8 %v1212
        %v1214 = vperm.slane %v1208, %v1213
        %v1216 = vunpack.c.l.s4 1934713408
        %v1217 = vunpack.c.0.s8 %v1216
        %v1218 = vperm.slane %v1210, %v1217
        %v1219 = vrot.slane %v1190, 4
        %v1220 = vsel %vm251, %v1219, %v1178
        %v1221 = vrot.slane %v1178, 4
        %v1222 = vsel %vm251, %v1190, %v1221
        %v1224 = vunpack.c.l.s4 1934713408
        %v1225 = vunpack.c.0.s8 %v1224
        %v1226 = vperm.slane %v1220, %v1225
        %v1228 = vunpack.c.l.s4 1934713408
        %v1229 = vunpack.c.0.s8 %v1228
        %v1230 = vperm.slane %v1222, %v1229
        %v1231 = vrot.slane %v1194, 4
        %v1232 = vsel %vm251, %v1231, %v1182
        %v1233 = vrot.slane %v1182, 4
        %v1234 = vsel %vm251, %v1194, %v1233
        %v1236 = vunpack.c.l.s4 1934713408
        %v1237 = vunpack.c.0.s8 %v1236
        %v1238 = vperm.slane %v1232, %v1237
        %v1240 = vunpack.c.l.s4 1934713408
        %v1241 = vunpack.c.0.s8 %v1240
        %v1242 = vperm.slane %v1234, %v1241
        %v1243 = vrot.slane %v1226, 4
        %v1244 = vsel %vm251, %v1243, %v1202
        %v1245 = vrot.slane %v1202, 4
        %v1246 = vsel %vm251, %v1226, %v1245
        %v1247 = vrot.slane %v1230, 4
        %v1248 = vsel %vm251, %v1247, %v1206
        %v1249 = vrot.slane %v1206, 4
        %v1250 = vsel %vm251, %v1230, %v1249
        %v1251 = vrot.slane %v1238, 4
        %v1252 = vsel %vm251, %v1251, %v1214
        %v1253 = vrot.slane %v1214, 4
        %v1254 = vsel %vm251, %v1238, %v1253
        %v1255 = vrot.slane %v1242, 4
        %v1256 = vsel %vm251, %v1255, %v1218
        %v1257 = vrot.slane %v1218, 4
        %v1258 = vsel %vm251, %v1242, %v1257
        %v1259 = vrot.slane %v1024, 4
        %v1260 = vsel %vm251, %v1259, %v1020
        %v1261 = vrot.slane %v1020, 4
        %v1262 = vsel %vm251, %v1024, %v1261
        %v1264 = vunpack.c.l.s4 1983009808
        %v1265 = vunpack.c.0.s8 %v1264
        %v1266 = vperm.slane %v1260, %v1265
        %v1268 = vunpack.c.l.s4 1983009808
        %v1269 = vunpack.c.0.s8 %v1268
        %v1270 = vperm.slane %v1262, %v1269
        %v1271 = vrot.slane %v1026, 4
        %v1272 = vsel %vm251, %v1271, %v1022
        %v1273 = vrot.slane %v1022, 4
        %v1274 = vsel %vm251, %v1026, %v1273
        %v1276 = vunpack.c.l.s4 1983009808
        %v1277 = vunpack.c.0.s8 %v1276
        %v1278 = vperm.slane %v1272, %v1277
        %v1280 = vunpack.c.l.s4 1983009808
        %v1281 = vunpack.c.0.s8 %v1280
        %v1282 = vperm.slane %v1274, %v1281
        %v1283 = vrot.slane %v1032, 4
        %v1284 = vsel %vm251, %v1283, %v1028
        %v1285 = vrot.slane %v1028, 4
        %v1286 = vsel %vm251, %v1032, %v1285
        %v1288 = vunpack.c.l.s4 1983009808
        %v1289 = vunpack.c.0.s8 %v1288
        %v1290 = vperm.slane %v1284, %v1289
        %v1292 = vunpack.c.l.s4 1983009808
        %v1293 = vunpack.c.0.s8 %v1292
        %v1294 = vperm.slane %v1286, %v1293
        %v1295 = vrot.slane %v1034, 4
        %v1296 = vsel %vm251, %v1295, %v1030
        %v1297 = vrot.slane %v1030, 4
        %v1298 = vsel %vm251, %v1034, %v1297
        %v1300 = vunpack.c.l.s4 1983009808
        %v1301 = vunpack.c.0.s8 %v1300
        %v1302 = vperm.slane %v1296, %v1301
        %v1304 = vunpack.c.l.s4 1983009808
        %v1305 = vunpack.c.0.s8 %v1304
        %v1306 = vperm.slane %v1298, %v1305
        %v1307 = vrot.slane %v1278, 4
        %v1308 = vsel %vm251, %v1307, %v1266
        %v1309 = vrot.slane %v1266, 4
        %v1310 = vsel %vm251, %v1278, %v1309
        %v1312 = vunpack.c.l.s4 1934713408
        %v1313 = vunpack.c.0.s8 %v1312
        %v1314 = vperm.slane %v1308, %v1313
        %v1316 = vunpack.c.l.s4 1934713408
        %v1317 = vunpack.c.0.s8 %v1316
        %v1318 = vperm.slane %v1310, %v1317
        %v1319 = vrot.slane %v1282, 4
        %v1320 = vsel %vm251, %v1319, %v1270
        %v1321 = vrot.slane %v1270, 4
        %v1322 = vsel %vm251, %v1282, %v1321
        %v1324 = vunpack.c.l.s4 1934713408
        %v1325 = vunpack.c.0.s8 %v1324
        %v1326 = vperm.slane %v1320, %v1325
        %v1328 = vunpack.c.l.s4 1934713408
        %v1329 = vunpack.c.0.s8 %v1328
        %v1330 = vperm.slane %v1322, %v1329
        %v1331 = vrot.slane %v1302, 4
        %v1332 = vsel %vm251, %v1331, %v1290
        %v1333 = vrot.slane %v1290, 4
        %v1334 = vsel %vm251, %v1302, %v1333
        %v1336 = vunpack.c.l.s4 1934713408
        %v1337 = vunpack.c.0.s8 %v1336
        %v1338 = vperm.slane %v1332, %v1337
        %v1340 = vunpack.c.l.s4 1934713408
        %v1341 = vunpack.c.0.s8 %v1340
        %v1342 = vperm.slane %v1334, %v1341
        %v1343 = vrot.slane %v1306, 4
        %v1344 = vsel %vm251, %v1343, %v1294
        %v1345 = vrot.slane %v1294, 4
        %v1346 = vsel %vm251, %v1306, %v1345
        %v1348 = vunpack.c.l.s4 1934713408
        %v1349 = vunpack.c.0.s8 %v1348
        %v1350 = vperm.slane %v1344, %v1349
        %v1352 = vunpack.c.l.s4 1934713408
        %v1353 = vunpack.c.0.s8 %v1352
        %v1354 = vperm.slane %v1346, %v1353
        %v1355 = vrot.slane %v1338, 4
        %v1356 = vsel %vm251, %v1355, %v1314
        %v1357 = vrot.slane %v1314, 4
        %v1358 = vsel %vm251, %v1338, %v1357
        %v1359 = vrot.slane %v1342, 4
        %v1360 = vsel %vm251, %v1359, %v1318
        %v1361 = vrot.slane %v1318, 4
        %v1362 = vsel %vm251, %v1342, %v1361
        %v1363 = vrot.slane %v1350, 4
        %v1364 = vsel %vm251, %v1363, %v1326
        %v1365 = vrot.slane %v1326, 4
        %v1366 = vsel %vm251, %v1350, %v1365
        %v1367 = vrot.slane %v1354, 4
        %v1368 = vsel %vm251, %v1367, %v1330
        %v1369 = vrot.slane %v1330, 4
        %v1370 = vsel %vm251, %v1354, %v1369
        %v1371 = vrot.slane %v912, 4
        %v1372 = vsel %vm251, %v1371, %v908
        %v1373 = vrot.slane %v908, 4
        %v1374 = vsel %vm251, %v912, %v1373
        %v1376 = vunpack.c.l.s4 1983009808
        %v1377 = vunpack.c.0.s8 %v1376
        %v1378 = vperm.slane %v1372, %v1377
        %v1380 = vunpack.c.l.s4 1983009808
        %v1381 = vunpack.c.0.s8 %v1380
        %v1382 = vperm.slane %v1374, %v1381
        %v1383 = vrot.slane %v914, 4
        %v1384 = vsel %vm251, %v1383, %v910
        %v1385 = vrot.slane %v910, 4
        %v1386 = vsel %vm251, %v914, %v1385
        %v1388 = vunpack.c.l.s4 1983009808
        %v1389 = vunpack.c.0.s8 %v1388
        %v1390 = vperm.slane %v1384, %v1389
        %v1392 = vunpack.c.l.s4 1983009808
        %v1393 = vunpack.c.0.s8 %v1392
        %v1394 = vperm.slane %v1386, %v1393
        %v1395 = vrot.slane %v920, 4
        %v1396 = vsel %vm251, %v1395, %v916
        %v1397 = vrot.slane %v916, 4
        %v1398 = vsel %vm251, %v920, %v1397
        %v1400 = vunpack.c.l.s4 1983009808
        %v1401 = vunpack.c.0.s8 %v1400
        %v1402 = vperm.slane %v1396, %v1401
        %v1404 = vunpack.c.l.s4 1983009808
        %v1405 = vunpack.c.0.s8 %v1404
        %v1406 = vperm.slane %v1398, %v1405
        %v1407 = vrot.slane %v922, 4
        %v1408 = vsel %vm251, %v1407, %v918
        %v1409 = vrot.slane %v918, 4
        %v1410 = vsel %vm251, %v922, %v1409
        %v1412 = vunpack.c.l.s4 1983009808
        %v1413 = vunpack.c.0.s8 %v1412
        %v1414 = vperm.slane %v1408, %v1413
        %v1416 = vunpack.c.l.s4 1983009808
        %v1417 = vunpack.c.0.s8 %v1416
        %v1418 = vperm.slane %v1410, %v1417
        %v1419 = vrot.slane %v1390, 4
        %v1420 = vsel %vm251, %v1419, %v1378
        %v1421 = vrot.slane %v1378, 4
        %v1422 = vsel %vm251, %v1390, %v1421
        %v1424 = vunpack.c.l.s4 1934713408
        %v1425 = vunpack.c.0.s8 %v1424
        %v1426 = vperm.slane %v1420, %v1425
        %v1428 = vunpack.c.l.s4 1934713408
        %v1429 = vunpack.c.0.s8 %v1428
        %v1430 = vperm.slane %v1422, %v1429
        %v1431 = vrot.slane %v1394, 4
        %v1432 = vsel %vm251, %v1431, %v1382
        %v1433 = vrot.slane %v1382, 4
        %v1434 = vsel %vm251, %v1394, %v1433
        %v1436 = vunpack.c.l.s4 1934713408
        %v1437 = vunpack.c.0.s8 %v1436
        %v1438 = vperm.slane %v1432, %v1437
        %v1440 = vunpack.c.l.s4 1934713408
        %v1441 = vunpack.c.0.s8 %v1440
        %v1442 = vperm.slane %v1434, %v1441
        %v1443 = vrot.slane %v1414, 4
        %v1444 = vsel %vm251, %v1443, %v1402
        %v1445 = vrot.slane %v1402, 4
        %v1446 = vsel %vm251, %v1414, %v1445
        %v1448 = vunpack.c.l.s4 1934713408
        %v1449 = vunpack.c.0.s8 %v1448
        %v1450 = vperm.slane %v1444, %v1449
        %v1452 = vunpack.c.l.s4 1934713408
        %v1453 = vunpack.c.0.s8 %v1452
        %v1454 = vperm.slane %v1446, %v1453
        %v1455 = vrot.slane %v1418, 4
        %v1456 = vsel %vm251, %v1455, %v1406
        %v1457 = vrot.slane %v1406, 4
        %v1458 = vsel %vm251, %v1418, %v1457
        %v1460 = vunpack.c.l.s4 1934713408
        %v1461 = vunpack.c.0.s8 %v1460
        %v1462 = vperm.slane %v1456, %v1461
        %v1464 = vunpack.c.l.s4 1934713408
        %v1465 = vunpack.c.0.s8 %v1464
        %v1466 = vperm.slane %v1458, %v1465
        %v1467 = vrot.slane %v1450, 4
        %v1468 = vsel %vm251, %v1467, %v1426
        %v1469 = vrot.slane %v1426, 4
        %v1470 = vsel %vm251, %v1450, %v1469
        %v1471 = vrot.slane %v1454, 4
        %v1472 = vsel %vm251, %v1471, %v1430
        %v1473 = vrot.slane %v1430, 4
        %v1474 = vsel %vm251, %v1454, %v1473
        %v1475 = vrot.slane %v1462, 4
        %v1476 = vsel %vm251, %v1475, %v1438
        %v1477 = vrot.slane %v1438, 4
        %v1478 = vsel %vm251, %v1462, %v1477
        %v1479 = vrot.slane %v1466, 4
        %v1480 = vsel %vm251, %v1479, %v1442
        %v1481 = vrot.slane %v1442, 4
        %v1482 = vsel %vm251, %v1466, %v1481
        %v1483 = vrot.slane %v1136, 4
        %v1484 = vsel %vm251, %v1483, %v1132
        %v1485 = vrot.slane %v1132, 4
        %v1486 = vsel %vm251, %v1136, %v1485
        %v1488 = vunpack.c.l.s4 1983009808
        %v1489 = vunpack.c.0.s8 %v1488
        %v1490 = vperm.slane %v1484, %v1489
        %v1492 = vunpack.c.l.s4 1983009808
        %v1493 = vunpack.c.0.s8 %v1492
        %v1494 = vperm.slane %v1486, %v1493
        %v1495 = vrot.slane %v1138, 4
        %v1496 = vsel %vm251, %v1495, %v1134
        %v1497 = vrot.slane %v1134, 4
        %v1498 = vsel %vm251, %v1138, %v1497
        %v1500 = vunpack.c.l.s4 1983009808
        %v1501 = vunpack.c.0.s8 %v1500
        %v1502 = vperm.slane %v1496, %v1501
        %v1504 = vunpack.c.l.s4 1983009808
        %v1505 = vunpack.c.0.s8 %v1504
        %v1506 = vperm.slane %v1498, %v1505
        %v1507 = vrot.slane %v1144, 4
        %v1508 = vsel %vm251, %v1507, %v1140
        %v1509 = vrot.slane %v1140, 4
        %v1510 = vsel %vm251, %v1144, %v1509
        %v1512 = vunpack.c.l.s4 1983009808
        %v1513 = vunpack.c.0.s8 %v1512
        %v1514 = vperm.slane %v1508, %v1513
        %v1516 = vunpack.c.l.s4 1983009808
        %v1517 = vunpack.c.0.s8 %v1516
        %v1518 = vperm.slane %v1510, %v1517
        %v1519 = vrot.slane %v1146, 4
        %v1520 = vsel %vm251, %v1519, %v1142
        %v1521 = vrot.slane %v1142, 4
        %v1522 = vsel %vm251, %v1146, %v1521
        %v1524 = vunpack.c.l.s4 1983009808
        %v1525 = vunpack.c.0.s8 %v1524
        %v1526 = vperm.slane %v1520, %v1525
        %v1528 = vunpack.c.l.s4 1983009808
        %v1529 = vunpack.c.0.s8 %v1528
        %v1530 = vperm.slane %v1522, %v1529
        %v1531 = vrot.slane %v1502, 4
        %v1532 = vsel %vm251, %v1531, %v1490
        %v1533 = vrot.slane %v1490, 4
        %v1534 = vsel %vm251, %v1502, %v1533
        %v1536 = vunpack.c.l.s4 1934713408
        %v1537 = vunpack.c.0.s8 %v1536
        %v1538 = vperm.slane %v1532, %v1537
        %v1540 = vunpack.c.l.s4 1934713408
        %v1541 = vunpack.c.0.s8 %v1540
        %v1542 = vperm.slane %v1534, %v1541
        %v1543 = vrot.slane %v1506, 4
        %v1544 = vsel %vm251, %v1543, %v1494
        %v1545 = vrot.slane %v1494, 4
        %v1546 = vsel %vm251, %v1506, %v1545
        %v1548 = vunpack.c.l.s4 1934713408
        %v1549 = vunpack.c.0.s8 %v1548
        %v1550 = vperm.slane %v1544, %v1549
        %v1552 = vunpack.c.l.s4 1934713408
        %v1553 = vunpack.c.0.s8 %v1552
        %v1554 = vperm.slane %v1546, %v1553
        %v1555 = vrot.slane %v1526, 4
        %v1556 = vsel %vm251, %v1555, %v1514
        %v1557 = vrot.slane %v1514, 4
        %v1558 = vsel %vm251, %v1526, %v1557
        %v1560 = vunpack.c.l.s4 1934713408
        %v1561 = vunpack.c.0.s8 %v1560
        %v1562 = vperm.slane %v1556, %v1561
        %v1564 = vunpack.c.l.s4 1934713408
        %v1565 = vunpack.c.0.s8 %v1564
        %v1566 = vperm.slane %v1558, %v1565
        %v1567 = vrot.slane %v1530, 4
        %v1568 = vsel %vm251, %v1567, %v1518
        %v1569 = vrot.slane %v1518, 4
        %v1570 = vsel %vm251, %v1530, %v1569
        %v1572 = vunpack.c.l.s4 1934713408
        %v1573 = vunpack.c.0.s8 %v1572
        %v1574 = vperm.slane %v1568, %v1573
        %v1576 = vunpack.c.l.s4 1934713408
        %v1577 = vunpack.c.0.s8 %v1576
        %v1578 = vperm.slane %v1570, %v1577
        %v1579 = vrot.slane %v1562, 4
        %v1580 = vsel %vm251, %v1579, %v1538
        %v1581 = vrot.slane %v1538, 4
        %v1582 = vsel %vm251, %v1562, %v1581
        %v1583 = vrot.slane %v1566, 4
        %v1584 = vsel %vm251, %v1583, %v1542
        %v1585 = vrot.slane %v1542, 4
        %v1586 = vsel %vm251, %v1566, %v1585
        %v1587 = vrot.slane %v1574, 4
        %v1588 = vsel %vm251, %v1587, %v1550
        %v1589 = vrot.slane %v1550, 4
        %v1590 = vsel %vm251, %v1574, %v1589
        %v1591 = vrot.slane %v1578, 4
        %v1592 = vsel %vm251, %v1591, %v1554
        %v1593 = vrot.slane %v1554, 4
        %v1594 = vsel %vm251, %v1578, %v1593
        %1597 = vrot.lane.b32.xlu0 %v1246, 16
        %v1598 = vpop.permute.xlu0 %1597
        %1599 = vrot.lane.b32.xlu0 %v1358, 16
        %v1600 = vpop.permute.xlu0 %1599
        %1605 = vrot.lane.b32.xlu0 %v1248, 32
        %v1606 = vpop.permute.xlu0 %1605
        %1607 = vrot.lane.b32.xlu0 %v1360, 32
        %v1608 = vpop.permute.xlu0 %1607
        %1613 = vrot.lane.b32.xlu0 %v1250, 48
        %v1614 = vpop.permute.xlu0 %1613
        %1615 = vrot.lane.b32.xlu0 %v1362, 48
        %v1616 = vpop.permute.xlu0 %1615
        %1621 = vrot.lane.b32.xlu0 %v1252, 64
        %v1622 = vpop.permute.xlu0 %1621
        %1623 = vrot.lane.b32.xlu0 %v1364, 64
        %v1624 = vpop.permute.xlu0 %1623
        %1629 = vrot.lane.b32.xlu0 %v1254, 80
        %v1630 = vpop.permute.xlu0 %1629
        %1631 = vrot.lane.b32.xlu0 %v1366, 80
        %v1632 = vpop.permute.xlu0 %1631
        %1637 = vrot.lane.b32.xlu0 %v1256, 96
        %v1638 = vpop.permute.xlu0 %1637
        %1639 = vrot.lane.b32.xlu0 %v1368, 96
        %v1640 = vpop.permute.xlu0 %1639
        %1645 = vrot.lane.b32.xlu0 %v1258, 112
        %v1646 = vpop.permute.xlu0 %1645
        %1647 = vrot.lane.b32.xlu0 %v1370, 112
        %v1648 = vpop.permute.xlu0 %1647
        %1653 = vrot.lane.b32.xlu0 %v1470, 16
        %v1654 = vpop.permute.xlu0 %1653
        %1655 = vrot.lane.b32.xlu0 %v1582, 16
        %v1656 = vpop.permute.xlu0 %1655
        %1661 = vrot.lane.b32.xlu0 %v1472, 32
        %v1662 = vpop.permute.xlu0 %1661
        %1663 = vrot.lane.b32.xlu0 %v1584, 32
        %v1664 = vpop.permute.xlu0 %1663
        %1669 = vrot.lane.b32.xlu0 %v1474, 48
        %v1670 = vpop.permute.xlu0 %1669
        %1671 = vrot.lane.b32.xlu0 %v1586, 48
        %v1672 = vpop.permute.xlu0 %1671
        %1677 = vrot.lane.b32.xlu0 %v1476, 64
        %v1678 = vpop.permute.xlu0 %1677
        %1679 = vrot.lane.b32.xlu0 %v1588, 64
        %v1680 = vpop.permute.xlu0 %1679
        %1685 = vrot.lane.b32.xlu0 %v1478, 80
        %v1686 = vpop.permute.xlu0 %1685
        %1687 = vrot.lane.b32.xlu0 %v1590, 80
        %v1688 = vpop.permute.xlu0 %1687
        %1693 = vrot.lane.b32.xlu0 %v1480, 96
        %v1694 = vpop.permute.xlu0 %1693
        %1695 = vrot.lane.b32.xlu0 %v1592, 96
        %v1696 = vpop.permute.xlu0 %1695
        %1701 = vrot.lane.b32.xlu0 %v1482, 112
        %v1702 = vpop.permute.xlu0 %1701
        %1703 = vrot.lane.b32.xlu0 %v1594, 112
        %v1704 = vpop.permute.xlu0 %1703
        %vm1707 = vcmask 130048
        %v1708 = vsel %vm1707, %v1244, %v1598
        %v1709 = vsel %vm1707, %v1356, %v1600
        %vm1710 = vcmask 261120
        %v1711 = vsel %vm1710, %v1708, %v1606
        %v1712 = vsel %vm1710, %v1709, %v1608
        %vm1713 = vcmask 392192
        %v1714 = vsel %vm1713, %v1711, %v1614
        %v1715 = vsel %vm1713, %v1712, %v1616
        %vm1716 = vcmask 523264
        %v1717 = vsel %vm1716, %v1714, %v1622
        %v1718 = vsel %vm1716, %v1715, %v1624
        %vm1719 = vcmask 654336
        %v1720 = vsel %vm1719, %v1717, %v1630
        %v1721 = vsel %vm1719, %v1718, %v1632
        %vm1722 = vcmask 785408
        %v1723 = vsel %vm1722, %v1720, %v1638
        %v1724 = vsel %vm1722, %v1721, %v1640
        %vm1725 = vcmask 916480
        %v1726 = vsel %vm1725, %v1723, %v1646
        %v1727 = vsel %vm1725, %v1724, %v1648
        %v1728 = vsel %vm1707, %v1468, %v1654
        %v1729 = vsel %vm1707, %v1580, %v1656
        %v1730 = vsel %vm1710, %v1728, %v1662
        %v1731 = vsel %vm1710, %v1729, %v1664
        %v1732 = vsel %vm1713, %v1730, %v1670
        %v1733 = vsel %vm1713, %v1731, %v1672
        %v1734 = vsel %vm1716, %v1732, %v1678
        %v1735 = vsel %vm1716, %v1733, %v1680
        %v1736 = vsel %vm1719, %v1734, %v1686
        %v1737 = vsel %vm1719, %v1735, %v1688
        %v1738 = vsel %vm1722, %v1736, %v1694
        %v1739 = vsel %vm1722, %v1737, %v1696
        %v1740 = vsel %vm1725, %v1738, %v1702
        %v1741 = vsel %vm1725, %v1739, %v1704
        %1742 = vst [vmem:[%s155] sm:$0xff] %v1726
        %1743 = vst [vmem:[%s155 + $0x8] sm:$0xff] %v1740
        %1744 = vst [vmem:[%s155 + $0x10] sm:$0xff] %v1727
        %1745 = vst [vmem:[%s155 + $0x18] sm:$0xff] %v1741
        %v1746 = vld [vmem:[%s136 + $0x20] sm:$0xff]
        %v1747 = vld [vmem:[%s136 + $0x28] sm:$0xff]
        %v1748 = vld [vmem:[%s136 + $0x30] sm:$0xff]
        %v1749 = vld [vmem:[%s136 + $0x38] sm:$0xff]
        %1752 = vrot.lane.b32.xlu0 %v1746, 112
        %v1753 = vpop.permute.xlu0 %1752
        %1754 = vrot.lane.b32.xlu0 %v1748, 112
        %v1755 = vpop.permute.xlu0 %1754
        %1758 = vrot.lane.b32.xlu0 %v1746, 96
        %v1759 = vpop.permute.xlu0 %1758
        %1760 = vrot.lane.b32.xlu0 %v1748, 96
        %v1761 = vpop.permute.xlu0 %1760
        %1764 = vrot.lane.b32.xlu0 %v1746, 80
        %v1765 = vpop.permute.xlu0 %1764
        %1766 = vrot.lane.b32.xlu0 %v1748, 80
        %v1767 = vpop.permute.xlu0 %1766
        %1770 = vrot.lane.b32.xlu0 %v1746, 64
        %v1771 = vpop.permute.xlu0 %1770
        %1772 = vrot.lane.b32.xlu0 %v1748, 64
        %v1773 = vpop.permute.xlu0 %1772
        %1776 = vrot.lane.b32.xlu0 %v1746, 48
        %v1777 = vpop.permute.xlu0 %1776
        %1778 = vrot.lane.b32.xlu0 %v1748, 48
        %v1779 = vpop.permute.xlu0 %1778
        %1782 = vrot.lane.b32.xlu0 %v1746, 32
        %v1783 = vpop.permute.xlu0 %1782
        %1784 = vrot.lane.b32.xlu0 %v1748, 32
        %v1785 = vpop.permute.xlu0 %1784
        %1788 = vrot.lane.b32.xlu0 %v1746, 16
        %v1789 = vpop.permute.xlu0 %1788
        %1790 = vrot.lane.b32.xlu0 %v1748, 16
        %v1791 = vpop.permute.xlu0 %1790
        %1796 = vrot.lane.b32.xlu0 %v1747, 112
        %v1797 = vpop.permute.xlu0 %1796
        %1798 = vrot.lane.b32.xlu0 %v1749, 112
        %v1799 = vpop.permute.xlu0 %1798
        %1802 = vrot.lane.b32.xlu0 %v1747, 96
        %v1803 = vpop.permute.xlu0 %1802
        %1804 = vrot.lane.b32.xlu0 %v1749, 96
        %v1805 = vpop.permute.xlu0 %1804
        %1808 = vrot.lane.b32.xlu0 %v1747, 80
        %v1809 = vpop.permute.xlu0 %1808
        %1810 = vrot.lane.b32.xlu0 %v1749, 80
        %v1811 = vpop.permute.xlu0 %1810
        %1814 = vrot.lane.b32.xlu0 %v1747, 64
        %v1815 = vpop.permute.xlu0 %1814
        %1816 = vrot.lane.b32.xlu0 %v1749, 64
        %v1817 = vpop.permute.xlu0 %1816
        %1820 = vrot.lane.b32.xlu0 %v1747, 48
        %v1821 = vpop.permute.xlu0 %1820
        %1822 = vrot.lane.b32.xlu0 %v1749, 48
        %v1823 = vpop.permute.xlu0 %1822
        %1826 = vrot.lane.b32.xlu0 %v1747, 32
        %v1827 = vpop.permute.xlu0 %1826
        %1828 = vrot.lane.b32.xlu0 %v1749, 32
        %v1829 = vpop.permute.xlu0 %1828
        %1832 = vrot.lane.b32.xlu0 %v1747, 16
        %v1833 = vpop.permute.xlu0 %1832
        %1834 = vrot.lane.b32.xlu0 %v1749, 16
        %v1835 = vpop.permute.xlu0 %1834
        %v1838 = vrot.slane %v1759, 4
        %v1839 = vsel %vm251, %v1838, %v1746
        %v1840 = vrot.slane %v1746, 4
        %v1841 = vsel %vm251, %v1759, %v1840
        %v1843 = vunpack.c.l.s4 1983009808
        %v1844 = vunpack.c.0.s8 %v1843
        %v1845 = vperm.slane %v1839, %v1844
        %v1847 = vunpack.c.l.s4 1983009808
        %v1848 = vunpack.c.0.s8 %v1847
        %v1849 = vperm.slane %v1841, %v1848
        %v1850 = vrot.slane %v1765, 4
        %v1851 = vsel %vm251, %v1850, %v1753
        %v1852 = vrot.slane %v1753, 4
        %v1853 = vsel %vm251, %v1765, %v1852
        %v1855 = vunpack.c.l.s4 1983009808
        %v1856 = vunpack.c.0.s8 %v1855
        %v1857 = vperm.slane %v1851, %v1856
        %v1859 = vunpack.c.l.s4 1983009808
        %v1860 = vunpack.c.0.s8 %v1859
        %v1861 = vperm.slane %v1853, %v1860
        %v1862 = vrot.slane %v1783, 4
        %v1863 = vsel %vm251, %v1862, %v1771
        %v1864 = vrot.slane %v1771, 4
        %v1865 = vsel %vm251, %v1783, %v1864
        %v1867 = vunpack.c.l.s4 1983009808
        %v1868 = vunpack.c.0.s8 %v1867
        %v1869 = vperm.slane %v1863, %v1868
        %v1871 = vunpack.c.l.s4 1983009808
        %v1872 = vunpack.c.0.s8 %v1871
        %v1873 = vperm.slane %v1865, %v1872
        %v1874 = vrot.slane %v1789, 4
        %v1875 = vsel %vm251, %v1874, %v1777
        %v1876 = vrot.slane %v1777, 4
        %v1877 = vsel %vm251, %v1789, %v1876
        %v1879 = vunpack.c.l.s4 1983009808
        %v1880 = vunpack.c.0.s8 %v1879
        %v1881 = vperm.slane %v1875, %v1880
        %v1883 = vunpack.c.l.s4 1983009808
        %v1884 = vunpack.c.0.s8 %v1883
        %v1885 = vperm.slane %v1877, %v1884
        %v1886 = vrot.slane %v1857, 4
        %v1887 = vsel %vm251, %v1886, %v1845
        %v1888 = vrot.slane %v1845, 4
        %v1889 = vsel %vm251, %v1857, %v1888
        %v1891 = vunpack.c.l.s4 1934713408
        %v1892 = vunpack.c.0.s8 %v1891
        %v1893 = vperm.slane %v1887, %v1892
        %v1895 = vunpack.c.l.s4 1934713408
        %v1896 = vunpack.c.0.s8 %v1895
        %v1897 = vperm.slane %v1889, %v1896
        %v1898 = vrot.slane %v1861, 4
        %v1899 = vsel %vm251, %v1898, %v1849
        %v1900 = vrot.slane %v1849, 4
        %v1901 = vsel %vm251, %v1861, %v1900
        %v1903 = vunpack.c.l.s4 1934713408
        %v1904 = vunpack.c.0.s8 %v1903
        %v1905 = vperm.slane %v1899, %v1904
        %v1907 = vunpack.c.l.s4 1934713408
        %v1908 = vunpack.c.0.s8 %v1907
        %v1909 = vperm.slane %v1901, %v1908
        %v1910 = vrot.slane %v1881, 4
        %v1911 = vsel %vm251, %v1910, %v1869
        %v1912 = vrot.slane %v1869, 4
        %v1913 = vsel %vm251, %v1881, %v1912
        %v1915 = vunpack.c.l.s4 1934713408
        %v1916 = vunpack.c.0.s8 %v1915
        %v1917 = vperm.slane %v1911, %v1916
        %v1919 = vunpack.c.l.s4 1934713408
        %v1920 = vunpack.c.0.s8 %v1919
        %v1921 = vperm.slane %v1913, %v1920
        %v1922 = vrot.slane %v1885, 4
        %v1923 = vsel %vm251, %v1922, %v1873
        %v1924 = vrot.slane %v1873, 4
        %v1925 = vsel %vm251, %v1885, %v1924
        %v1927 = vunpack.c.l.s4 1934713408
        %v1928 = vunpack.c.0.s8 %v1927
        %v1929 = vperm.slane %v1923, %v1928
        %v1931 = vunpack.c.l.s4 1934713408
        %v1932 = vunpack.c.0.s8 %v1931
        %v1933 = vperm.slane %v1925, %v1932
        %v1934 = vrot.slane %v1917, 4
        %v1935 = vsel %vm251, %v1934, %v1893
        %v1936 = vrot.slane %v1893, 4
        %v1937 = vsel %vm251, %v1917, %v1936
        %v1938 = vrot.slane %v1921, 4
        %v1939 = vsel %vm251, %v1938, %v1897
        %v1940 = vrot.slane %v1897, 4
        %v1941 = vsel %vm251, %v1921, %v1940
        %v1942 = vrot.slane %v1929, 4
        %v1943 = vsel %vm251, %v1942, %v1905
        %v1944 = vrot.slane %v1905, 4
        %v1945 = vsel %vm251, %v1929, %v1944
        %v1946 = vrot.slane %v1933, 4
        %v1947 = vsel %vm251, %v1946, %v1909
        %v1948 = vrot.slane %v1909, 4
        %v1949 = vsel %vm251, %v1933, %v1948
        %v1950 = vrot.slane %v1803, 4
        %v1951 = vsel %vm251, %v1950, %v1747
        %v1952 = vrot.slane %v1747, 4
        %v1953 = vsel %vm251, %v1803, %v1952
        %v1955 = vunpack.c.l.s4 1983009808
        %v1956 = vunpack.c.0.s8 %v1955
        %v1957 = vperm.slane %v1951, %v1956
        %v1959 = vunpack.c.l.s4 1983009808
        %v1960 = vunpack.c.0.s8 %v1959
        %v1961 = vperm.slane %v1953, %v1960
        %v1962 = vrot.slane %v1809, 4
        %v1963 = vsel %vm251, %v1962, %v1797
        %v1964 = vrot.slane %v1797, 4
        %v1965 = vsel %vm251, %v1809, %v1964
        %v1967 = vunpack.c.l.s4 1983009808
        %v1968 = vunpack.c.0.s8 %v1967
        %v1969 = vperm.slane %v1963, %v1968
        %v1971 = vunpack.c.l.s4 1983009808
        %v1972 = vunpack.c.0.s8 %v1971
        %v1973 = vperm.slane %v1965, %v1972
        %v1974 = vrot.slane %v1827, 4
        %v1975 = vsel %vm251, %v1974, %v1815
        %v1976 = vrot.slane %v1815, 4
        %v1977 = vsel %vm251, %v1827, %v1976
        %v1979 = vunpack.c.l.s4 1983009808
        %v1980 = vunpack.c.0.s8 %v1979
        %v1981 = vperm.slane %v1975, %v1980
        %v1983 = vunpack.c.l.s4 1983009808
        %v1984 = vunpack.c.0.s8 %v1983
        %v1985 = vperm.slane %v1977, %v1984
        %v1986 = vrot.slane %v1833, 4
        %v1987 = vsel %vm251, %v1986, %v1821
        %v1988 = vrot.slane %v1821, 4
        %v1989 = vsel %vm251, %v1833, %v1988
        %v1991 = vunpack.c.l.s4 1983009808
        %v1992 = vunpack.c.0.s8 %v1991
        %v1993 = vperm.slane %v1987, %v1992
        %v1995 = vunpack.c.l.s4 1983009808
        %v1996 = vunpack.c.0.s8 %v1995
        %v1997 = vperm.slane %v1989, %v1996
        %v1998 = vrot.slane %v1969, 4
        %v1999 = vsel %vm251, %v1998, %v1957
        %v2000 = vrot.slane %v1957, 4
        %v2001 = vsel %vm251, %v1969, %v2000
        %v2003 = vunpack.c.l.s4 1934713408
        %v2004 = vunpack.c.0.s8 %v2003
        %v2005 = vperm.slane %v1999, %v2004
        %v2007 = vunpack.c.l.s4 1934713408
        %v2008 = vunpack.c.0.s8 %v2007
        %v2009 = vperm.slane %v2001, %v2008
        %v2010 = vrot.slane %v1973, 4
        %v2011 = vsel %vm251, %v2010, %v1961
        %v2012 = vrot.slane %v1961, 4
        %v2013 = vsel %vm251, %v1973, %v2012
        %v2015 = vunpack.c.l.s4 1934713408
        %v2016 = vunpack.c.0.s8 %v2015
        %v2017 = vperm.slane %v2011, %v2016
        %v2019 = vunpack.c.l.s4 1934713408
        %v2020 = vunpack.c.0.s8 %v2019
        %v2021 = vperm.slane %v2013, %v2020
        %v2022 = vrot.slane %v1993, 4
        %v2023 = vsel %vm251, %v2022, %v1981
        %v2024 = vrot.slane %v1981, 4
        %v2025 = vsel %vm251, %v1993, %v2024
        %v2027 = vunpack.c.l.s4 1934713408
        %v2028 = vunpack.c.0.s8 %v2027
        %v2029 = vperm.slane %v2023, %v2028
        %v2031 = vunpack.c.l.s4 1934713408
        %v2032 = vunpack.c.0.s8 %v2031
        %v2033 = vperm.slane %v2025, %v2032
        %v2034 = vrot.slane %v1997, 4
        %v2035 = vsel %vm251, %v2034, %v1985
        %v2036 = vrot.slane %v1985, 4
        %v2037 = vsel %vm251, %v1997, %v2036
        %v2039 = vunpack.c.l.s4 1934713408
        %v2040 = vunpack.c.0.s8 %v2039
        %v2041 = vperm.slane %v2035, %v2040
        %v2043 = vunpack.c.l.s4 1934713408
        %v2044 = vunpack.c.0.s8 %v2043
        %v2045 = vperm.slane %v2037, %v2044
        %v2046 = vrot.slane %v2029, 4
        %v2047 = vsel %vm251, %v2046, %v2005
        %v2048 = vrot.slane %v2005, 4
        %v2049 = vsel %vm251, %v2029, %v2048
        %v2050 = vrot.slane %v2033, 4
        %v2051 = vsel %vm251, %v2050, %v2009
        %v2052 = vrot.slane %v2009, 4
        %v2053 = vsel %vm251, %v2033, %v2052
        %v2054 = vrot.slane %v2041, 4
        %v2055 = vsel %vm251, %v2054, %v2017
        %v2056 = vrot.slane %v2017, 4
        %v2057 = vsel %vm251, %v2041, %v2056
        %v2058 = vrot.slane %v2045, 4
        %v2059 = vsel %vm251, %v2058, %v2021
        %v2060 = vrot.slane %v2021, 4
        %v2061 = vsel %vm251, %v2045, %v2060
        %v2062 = vrot.slane %v1761, 4
        %v2063 = vsel %vm251, %v2062, %v1748
        %v2064 = vrot.slane %v1748, 4
        %v2065 = vsel %vm251, %v1761, %v2064
        %v2067 = vunpack.c.l.s4 1983009808
        %v2068 = vunpack.c.0.s8 %v2067
        %v2069 = vperm.slane %v2063, %v2068
        %v2071 = vunpack.c.l.s4 1983009808
        %v2072 = vunpack.c.0.s8 %v2071
        %v2073 = vperm.slane %v2065, %v2072
        %v2074 = vrot.slane %v1767, 4
        %v2075 = vsel %vm251, %v2074, %v1755
        %v2076 = vrot.slane %v1755, 4
        %v2077 = vsel %vm251, %v1767, %v2076
        %v2079 = vunpack.c.l.s4 1983009808
        %v2080 = vunpack.c.0.s8 %v2079
        %v2081 = vperm.slane %v2075, %v2080
        %v2083 = vunpack.c.l.s4 1983009808
        %v2084 = vunpack.c.0.s8 %v2083
        %v2085 = vperm.slane %v2077, %v2084
        %v2086 = vrot.slane %v1785, 4
        %v2087 = vsel %vm251, %v2086, %v1773
        %v2088 = vrot.slane %v1773, 4
        %v2089 = vsel %vm251, %v1785, %v2088
        %v2091 = vunpack.c.l.s4 1983009808
        %v2092 = vunpack.c.0.s8 %v2091
        %v2093 = vperm.slane %v2087, %v2092
        %v2095 = vunpack.c.l.s4 1983009808
        %v2096 = vunpack.c.0.s8 %v2095
        %v2097 = vperm.slane %v2089, %v2096
        %v2098 = vrot.slane %v1791, 4
        %v2099 = vsel %vm251, %v2098, %v1779
        %v2100 = vrot.slane %v1779, 4
        %v2101 = vsel %vm251, %v1791, %v2100
        %v2103 = vunpack.c.l.s4 1983009808
        %v2104 = vunpack.c.0.s8 %v2103
        %v2105 = vperm.slane %v2099, %v2104
        %v2107 = vunpack.c.l.s4 1983009808
        %v2108 = vunpack.c.0.s8 %v2107
        %v2109 = vperm.slane %v2101, %v2108
        %v2110 = vrot.slane %v2081, 4
        %v2111 = vsel %vm251, %v2110, %v2069
        %v2112 = vrot.slane %v2069, 4
        %v2113 = vsel %vm251, %v2081, %v2112
        %v2115 = vunpack.c.l.s4 1934713408
        %v2116 = vunpack.c.0.s8 %v2115
        %v2117 = vperm.slane %v2111, %v2116
        %v2119 = vunpack.c.l.s4 1934713408
        %v2120 = vunpack.c.0.s8 %v2119
        %v2121 = vperm.slane %v2113, %v2120
        %v2122 = vrot.slane %v2085, 4
        %v2123 = vsel %vm251, %v2122, %v2073
        %v2124 = vrot.slane %v2073, 4
        %v2125 = vsel %vm251, %v2085, %v2124
        %v2127 = vunpack.c.l.s4 1934713408
        %v2128 = vunpack.c.0.s8 %v2127
        %v2129 = vperm.slane %v2123, %v2128
        %v2131 = vunpack.c.l.s4 1934713408
        %v2132 = vunpack.c.0.s8 %v2131
        %v2133 = vperm.slane %v2125, %v2132
        %v2134 = vrot.slane %v2105, 4
        %v2135 = vsel %vm251, %v2134, %v2093
        %v2136 = vrot.slane %v2093, 4
        %v2137 = vsel %vm251, %v2105, %v2136
        %v2139 = vunpack.c.l.s4 1934713408
        %v2140 = vunpack.c.0.s8 %v2139
        %v2141 = vperm.slane %v2135, %v2140
        %v2143 = vunpack.c.l.s4 1934713408
        %v2144 = vunpack.c.0.s8 %v2143
        %v2145 = vperm.slane %v2137, %v2144
        %v2146 = vrot.slane %v2109, 4
        %v2147 = vsel %vm251, %v2146, %v2097
        %v2148 = vrot.slane %v2097, 4
        %v2149 = vsel %vm251, %v2109, %v2148
        %v2151 = vunpack.c.l.s4 1934713408
        %v2152 = vunpack.c.0.s8 %v2151
        %v2153 = vperm.slane %v2147, %v2152
        %v2155 = vunpack.c.l.s4 1934713408
        %v2156 = vunpack.c.0.s8 %v2155
        %v2157 = vperm.slane %v2149, %v2156
        %v2158 = vrot.slane %v2141, 4
        %v2159 = vsel %vm251, %v2158, %v2117
        %v2160 = vrot.slane %v2117, 4
        %v2161 = vsel %vm251, %v2141, %v2160
        %v2162 = vrot.slane %v2145, 4
        %v2163 = vsel %vm251, %v2162, %v2121
        %v2164 = vrot.slane %v2121, 4
        %v2165 = vsel %vm251, %v2145, %v2164
        %v2166 = vrot.slane %v2153, 4
        %v2167 = vsel %vm251, %v2166, %v2129
        %v2168 = vrot.slane %v2129, 4
        %v2169 = vsel %vm251, %v2153, %v2168
        %v2170 = vrot.slane %v2157, 4
        %v2171 = vsel %vm251, %v2170, %v2133
        %v2172 = vrot.slane %v2133, 4
        %v2173 = vsel %vm251, %v2157, %v2172
        %v2174 = vrot.slane %v1805, 4
        %v2175 = vsel %vm251, %v2174, %v1749
        %v2176 = vrot.slane %v1749, 4
        %v2177 = vsel %vm251, %v1805, %v2176
        %v2179 = vunpack.c.l.s4 1983009808
        %v2180 = vunpack.c.0.s8 %v2179
        %v2181 = vperm.slane %v2175, %v2180
        %v2183 = vunpack.c.l.s4 1983009808
        %v2184 = vunpack.c.0.s8 %v2183
        %v2185 = vperm.slane %v2177, %v2184
        %v2186 = vrot.slane %v1811, 4
        %v2187 = vsel %vm251, %v2186, %v1799
        %v2188 = vrot.slane %v1799, 4
        %v2189 = vsel %vm251, %v1811, %v2188
        %v2191 = vunpack.c.l.s4 1983009808
        %v2192 = vunpack.c.0.s8 %v2191
        %v2193 = vperm.slane %v2187, %v2192
        %v2195 = vunpack.c.l.s4 1983009808
        %v2196 = vunpack.c.0.s8 %v2195
        %v2197 = vperm.slane %v2189, %v2196
        %v2198 = vrot.slane %v1829, 4
        %v2199 = vsel %vm251, %v2198, %v1817
        %v2200 = vrot.slane %v1817, 4
        %v2201 = vsel %vm251, %v1829, %v2200
        %v2203 = vunpack.c.l.s4 1983009808
        %v2204 = vunpack.c.0.s8 %v2203
        %v2205 = vperm.slane %v2199, %v2204
        %v2207 = vunpack.c.l.s4 1983009808
        %v2208 = vunpack.c.0.s8 %v2207
        %v2209 = vperm.slane %v2201, %v2208
        %v2210 = vrot.slane %v1835, 4
        %v2211 = vsel %vm251, %v2210, %v1823
        %v2212 = vrot.slane %v1823, 4
        %v2213 = vsel %vm251, %v1835, %v2212
        %v2215 = vunpack.c.l.s4 1983009808
        %v2216 = vunpack.c.0.s8 %v2215
        %v2217 = vperm.slane %v2211, %v2216
        %v2219 = vunpack.c.l.s4 1983009808
        %v2220 = vunpack.c.0.s8 %v2219
        %v2221 = vperm.slane %v2213, %v2220
        %v2222 = vrot.slane %v2193, 4
        %v2223 = vsel %vm251, %v2222, %v2181
        %v2224 = vrot.slane %v2181, 4
        %v2225 = vsel %vm251, %v2193, %v2224
        %v2227 = vunpack.c.l.s4 1934713408
        %v2228 = vunpack.c.0.s8 %v2227
        %v2229 = vperm.slane %v2223, %v2228
        %v2231 = vunpack.c.l.s4 1934713408
        %v2232 = vunpack.c.0.s8 %v2231
        %v2233 = vperm.slane %v2225, %v2232
        %v2234 = vrot.slane %v2197, 4
        %v2235 = vsel %vm251, %v2234, %v2185
        %v2236 = vrot.slane %v2185, 4
        %v2237 = vsel %vm251, %v2197, %v2236
        %v2239 = vunpack.c.l.s4 1934713408
        %v2240 = vunpack.c.0.s8 %v2239
        %v2241 = vperm.slane %v2235, %v2240
        %v2243 = vunpack.c.l.s4 1934713408
        %v2244 = vunpack.c.0.s8 %v2243
        %v2245 = vperm.slane %v2237, %v2244
        %v2246 = vrot.slane %v2217, 4
        %v2247 = vsel %vm251, %v2246, %v2205
        %v2248 = vrot.slane %v2205, 4
        %v2249 = vsel %vm251, %v2217, %v2248
        %v2251 = vunpack.c.l.s4 1934713408
        %v2252 = vunpack.c.0.s8 %v2251
        %v2253 = vperm.slane %v2247, %v2252
        %v2255 = vunpack.c.l.s4 1934713408
        %v2256 = vunpack.c.0.s8 %v2255
        %v2257 = vperm.slane %v2249, %v2256
        %v2258 = vrot.slane %v2221, 4
        %v2259 = vsel %vm251, %v2258, %v2209
        %v2260 = vrot.slane %v2209, 4
        %v2261 = vsel %vm251, %v2221, %v2260
        %v2263 = vunpack.c.l.s4 1934713408
        %v2264 = vunpack.c.0.s8 %v2263
        %v2265 = vperm.slane %v2259, %v2264
        %v2267 = vunpack.c.l.s4 1934713408
        %v2268 = vunpack.c.0.s8 %v2267
        %v2269 = vperm.slane %v2261, %v2268
        %v2270 = vrot.slane %v2253, 4
        %v2271 = vsel %vm251, %v2270, %v2229
        %v2272 = vrot.slane %v2229, 4
        %v2273 = vsel %vm251, %v2253, %v2272
        %v2274 = vrot.slane %v2257, 4
        %v2275 = vsel %vm251, %v2274, %v2233
        %v2276 = vrot.slane %v2233, 4
        %v2277 = vsel %vm251, %v2257, %v2276
        %v2278 = vrot.slane %v2265, 4
        %v2279 = vsel %vm251, %v2278, %v2241
        %v2280 = vrot.slane %v2241, 4
        %v2281 = vsel %vm251, %v2265, %v2280
        %v2282 = vrot.slane %v2269, 4
        %v2283 = vsel %vm251, %v2282, %v2245
        %v2284 = vrot.slane %v2245, 4
        %v2285 = vsel %vm251, %v2269, %v2284
        %v2286 = vrot.slane %v1939, 4
        %v2287 = vsel %vm251, %v2286, %v1935
        %v2288 = vrot.slane %v1935, 4
        %v2289 = vsel %vm251, %v1939, %v2288
        %v2291 = vunpack.c.l.s4 1983009808
        %v2292 = vunpack.c.0.s8 %v2291
        %v2293 = vperm.slane %v2287, %v2292
        %v2295 = vunpack.c.l.s4 1983009808
        %v2296 = vunpack.c.0.s8 %v2295
        %v2297 = vperm.slane %v2289, %v2296
        %v2298 = vrot.slane %v1941, 4
        %v2299 = vsel %vm251, %v2298, %v1937
        %v2300 = vrot.slane %v1937, 4
        %v2301 = vsel %vm251, %v1941, %v2300
        %v2303 = vunpack.c.l.s4 1983009808
        %v2304 = vunpack.c.0.s8 %v2303
        %v2305 = vperm.slane %v2299, %v2304
        %v2307 = vunpack.c.l.s4 1983009808
        %v2308 = vunpack.c.0.s8 %v2307
        %v2309 = vperm.slane %v2301, %v2308
        %v2310 = vrot.slane %v1947, 4
        %v2311 = vsel %vm251, %v2310, %v1943
        %v2312 = vrot.slane %v1943, 4
        %v2313 = vsel %vm251, %v1947, %v2312
        %v2315 = vunpack.c.l.s4 1983009808
        %v2316 = vunpack.c.0.s8 %v2315
        %v2317 = vperm.slane %v2311, %v2316
        %v2319 = vunpack.c.l.s4 1983009808
        %v2320 = vunpack.c.0.s8 %v2319
        %v2321 = vperm.slane %v2313, %v2320
        %v2322 = vrot.slane %v1949, 4
        %v2323 = vsel %vm251, %v2322, %v1945
        %v2324 = vrot.slane %v1945, 4
        %v2325 = vsel %vm251, %v1949, %v2324
        %v2327 = vunpack.c.l.s4 1983009808
        %v2328 = vunpack.c.0.s8 %v2327
        %v2329 = vperm.slane %v2323, %v2328
        %v2331 = vunpack.c.l.s4 1983009808
        %v2332 = vunpack.c.0.s8 %v2331
        %v2333 = vperm.slane %v2325, %v2332
        %v2334 = vrot.slane %v2305, 4
        %v2335 = vsel %vm251, %v2334, %v2293
        %v2336 = vrot.slane %v2293, 4
        %v2337 = vsel %vm251, %v2305, %v2336
        %v2339 = vunpack.c.l.s4 1934713408
        %v2340 = vunpack.c.0.s8 %v2339
        %v2341 = vperm.slane %v2335, %v2340
        %v2343 = vunpack.c.l.s4 1934713408
        %v2344 = vunpack.c.0.s8 %v2343
        %v2345 = vperm.slane %v2337, %v2344
        %v2346 = vrot.slane %v2309, 4
        %v2347 = vsel %vm251, %v2346, %v2297
        %v2348 = vrot.slane %v2297, 4
        %v2349 = vsel %vm251, %v2309, %v2348
        %v2351 = vunpack.c.l.s4 1934713408
        %v2352 = vunpack.c.0.s8 %v2351
        %v2353 = vperm.slane %v2347, %v2352
        %v2355 = vunpack.c.l.s4 1934713408
        %v2356 = vunpack.c.0.s8 %v2355
        %v2357 = vperm.slane %v2349, %v2356
        %v2358 = vrot.slane %v2329, 4
        %v2359 = vsel %vm251, %v2358, %v2317
        %v2360 = vrot.slane %v2317, 4
        %v2361 = vsel %vm251, %v2329, %v2360
        %v2363 = vunpack.c.l.s4 1934713408
        %v2364 = vunpack.c.0.s8 %v2363
        %v2365 = vperm.slane %v2359, %v2364
        %v2367 = vunpack.c.l.s4 1934713408
        %v2368 = vunpack.c.0.s8 %v2367
        %v2369 = vperm.slane %v2361, %v2368
        %v2370 = vrot.slane %v2333, 4
        %v2371 = vsel %vm251, %v2370, %v2321
        %v2372 = vrot.slane %v2321, 4
        %v2373 = vsel %vm251, %v2333, %v2372
        %v2375 = vunpack.c.l.s4 1934713408
        %v2376 = vunpack.c.0.s8 %v2375
        %v2377 = vperm.slane %v2371, %v2376
        %v2379 = vunpack.c.l.s4 1934713408
        %v2380 = vunpack.c.0.s8 %v2379
        %v2381 = vperm.slane %v2373, %v2380
        %v2382 = vrot.slane %v2365, 4
        %v2383 = vsel %vm251, %v2382, %v2341
        %v2384 = vrot.slane %v2341, 4
        %v2385 = vsel %vm251, %v2365, %v2384
        %v2386 = vrot.slane %v2369, 4
        %v2387 = vsel %vm251, %v2386, %v2345
        %v2388 = vrot.slane %v2345, 4
        %v2389 = vsel %vm251, %v2369, %v2388
        %v2390 = vrot.slane %v2377, 4
        %v2391 = vsel %vm251, %v2390, %v2353
        %v2392 = vrot.slane %v2353, 4
        %v2393 = vsel %vm251, %v2377, %v2392
        %v2394 = vrot.slane %v2381, 4
        %v2395 = vsel %vm251, %v2394, %v2357
        %v2396 = vrot.slane %v2357, 4
        %v2397 = vsel %vm251, %v2381, %v2396
        %v2398 = vrot.slane %v2163, 4
        %v2399 = vsel %vm251, %v2398, %v2159
        %v2400 = vrot.slane %v2159, 4
        %v2401 = vsel %vm251, %v2163, %v2400
        %v2403 = vunpack.c.l.s4 1983009808
        %v2404 = vunpack.c.0.s8 %v2403
        %v2405 = vperm.slane %v2399, %v2404
        %v2407 = vunpack.c.l.s4 1983009808
        %v2408 = vunpack.c.0.s8 %v2407
        %v2409 = vperm.slane %v2401, %v2408
        %v2410 = vrot.slane %v2165, 4
        %v2411 = vsel %vm251, %v2410, %v2161
        %v2412 = vrot.slane %v2161, 4
        %v2413 = vsel %vm251, %v2165, %v2412
        %v2415 = vunpack.c.l.s4 1983009808
        %v2416 = vunpack.c.0.s8 %v2415
        %v2417 = vperm.slane %v2411, %v2416
        %v2419 = vunpack.c.l.s4 1983009808
        %v2420 = vunpack.c.0.s8 %v2419
        %v2421 = vperm.slane %v2413, %v2420
        %v2422 = vrot.slane %v2171, 4
        %v2423 = vsel %vm251, %v2422, %v2167
        %v2424 = vrot.slane %v2167, 4
        %v2425 = vsel %vm251, %v2171, %v2424
        %v2427 = vunpack.c.l.s4 1983009808
        %v2428 = vunpack.c.0.s8 %v2427
        %v2429 = vperm.slane %v2423, %v2428
        %v2431 = vunpack.c.l.s4 1983009808
        %v2432 = vunpack.c.0.s8 %v2431
        %v2433 = vperm.slane %v2425, %v2432
        %v2434 = vrot.slane %v2173, 4
        %v2435 = vsel %vm251, %v2434, %v2169
        %v2436 = vrot.slane %v2169, 4
        %v2437 = vsel %vm251, %v2173, %v2436
        %v2439 = vunpack.c.l.s4 1983009808
        %v2440 = vunpack.c.0.s8 %v2439
        %v2441 = vperm.slane %v2435, %v2440
        %v2443 = vunpack.c.l.s4 1983009808
        %v2444 = vunpack.c.0.s8 %v2443
        %v2445 = vperm.slane %v2437, %v2444
        %v2446 = vrot.slane %v2417, 4
        %v2447 = vsel %vm251, %v2446, %v2405
        %v2448 = vrot.slane %v2405, 4
        %v2449 = vsel %vm251, %v2417, %v2448
        %v2451 = vunpack.c.l.s4 1934713408
        %v2452 = vunpack.c.0.s8 %v2451
        %v2453 = vperm.slane %v2447, %v2452
        %v2455 = vunpack.c.l.s4 1934713408
        %v2456 = vunpack.c.0.s8 %v2455
        %v2457 = vperm.slane %v2449, %v2456
        %v2458 = vrot.slane %v2421, 4
        %v2459 = vsel %vm251, %v2458, %v2409
        %v2460 = vrot.slane %v2409, 4
        %v2461 = vsel %vm251, %v2421, %v2460
        %v2463 = vunpack.c.l.s4 1934713408
        %v2464 = vunpack.c.0.s8 %v2463
        %v2465 = vperm.slane %v2459, %v2464
        %v2467 = vunpack.c.l.s4 1934713408
        %v2468 = vunpack.c.0.s8 %v2467
        %v2469 = vperm.slane %v2461, %v2468
        %v2470 = vrot.slane %v2441, 4
        %v2471 = vsel %vm251, %v2470, %v2429
        %v2472 = vrot.slane %v2429, 4
        %v2473 = vsel %vm251, %v2441, %v2472
        %v2475 = vunpack.c.l.s4 1934713408
        %v2476 = vunpack.c.0.s8 %v2475
        %v2477 = vperm.slane %v2471, %v2476
        %v2479 = vunpack.c.l.s4 1934713408
        %v2480 = vunpack.c.0.s8 %v2479
        %v2481 = vperm.slane %v2473, %v2480
        %v2482 = vrot.slane %v2445, 4
        %v2483 = vsel %vm251, %v2482, %v2433
        %v2484 = vrot.slane %v2433, 4
        %v2485 = vsel %vm251, %v2445, %v2484
        %v2487 = vunpack.c.l.s4 1934713408
        %v2488 = vunpack.c.0.s8 %v2487
        %v2489 = vperm.slane %v2483, %v2488
        %v2491 = vunpack.c.l.s4 1934713408
        %v2492 = vunpack.c.0.s8 %v2491
        %v2493 = vperm.slane %v2485, %v2492
        %v2494 = vrot.slane %v2477, 4
        %v2495 = vsel %vm251, %v2494, %v2453
        %v2496 = vrot.slane %v2453, 4
        %v2497 = vsel %vm251, %v2477, %v2496
        %v2498 = vrot.slane %v2481, 4
        %v2499 = vsel %vm251, %v2498, %v2457
        %v2500 = vrot.slane %v2457, 4
        %v2501 = vsel %vm251, %v2481, %v2500
        %v2502 = vrot.slane %v2489, 4
        %v2503 = vsel %vm251, %v2502, %v2465
        %v2504 = vrot.slane %v2465, 4
        %v2505 = vsel %vm251, %v2489, %v2504
        %v2506 = vrot.slane %v2493, 4
        %v2507 = vsel %vm251, %v2506, %v2469
        %v2508 = vrot.slane %v2469, 4
        %v2509 = vsel %vm251, %v2493, %v2508
        %v2510 = vrot.slane %v2051, 4
        %v2511 = vsel %vm251, %v2510, %v2047
        %v2512 = vrot.slane %v2047, 4
        %v2513 = vsel %vm251, %v2051, %v2512
        %v2515 = vunpack.c.l.s4 1983009808
        %v2516 = vunpack.c.0.s8 %v2515
        %v2517 = vperm.slane %v2511, %v2516
        %v2519 = vunpack.c.l.s4 1983009808
        %v2520 = vunpack.c.0.s8 %v2519
        %v2521 = vperm.slane %v2513, %v2520
        %v2522 = vrot.slane %v2053, 4
        %v2523 = vsel %vm251, %v2522, %v2049
        %v2524 = vrot.slane %v2049, 4
        %v2525 = vsel %vm251, %v2053, %v2524
        %v2527 = vunpack.c.l.s4 1983009808
        %v2528 = vunpack.c.0.s8 %v2527
        %v2529 = vperm.slane %v2523, %v2528
        %v2531 = vunpack.c.l.s4 1983009808
        %v2532 = vunpack.c.0.s8 %v2531
        %v2533 = vperm.slane %v2525, %v2532
        %v2534 = vrot.slane %v2059, 4
        %v2535 = vsel %vm251, %v2534, %v2055
        %v2536 = vrot.slane %v2055, 4
        %v2537 = vsel %vm251, %v2059, %v2536
        %v2539 = vunpack.c.l.s4 1983009808
        %v2540 = vunpack.c.0.s8 %v2539
        %v2541 = vperm.slane %v2535, %v2540
        %v2543 = vunpack.c.l.s4 1983009808
        %v2544 = vunpack.c.0.s8 %v2543
        %v2545 = vperm.slane %v2537, %v2544
        %v2546 = vrot.slane %v2061, 4
        %v2547 = vsel %vm251, %v2546, %v2057
        %v2548 = vrot.slane %v2057, 4
        %v2549 = vsel %vm251, %v2061, %v2548
        %v2551 = vunpack.c.l.s4 1983009808
        %v2552 = vunpack.c.0.s8 %v2551
        %v2553 = vperm.slane %v2547, %v2552
        %v2555 = vunpack.c.l.s4 1983009808
        %v2556 = vunpack.c.0.s8 %v2555
        %v2557 = vperm.slane %v2549, %v2556
        %v2558 = vrot.slane %v2529, 4
        %v2559 = vsel %vm251, %v2558, %v2517
        %v2560 = vrot.slane %v2517, 4
        %v2561 = vsel %vm251, %v2529, %v2560
        %v2563 = vunpack.c.l.s4 1934713408
        %v2564 = vunpack.c.0.s8 %v2563
        %v2565 = vperm.slane %v2559, %v2564
        %v2567 = vunpack.c.l.s4 1934713408
        %v2568 = vunpack.c.0.s8 %v2567
        %v2569 = vperm.slane %v2561, %v2568
        %v2570 = vrot.slane %v2533, 4
        %v2571 = vsel %vm251, %v2570, %v2521
        %v2572 = vrot.slane %v2521, 4
        %v2573 = vsel %vm251, %v2533, %v2572
        %v2575 = vunpack.c.l.s4 1934713408
        %v2576 = vunpack.c.0.s8 %v2575
        %v2577 = vperm.slane %v2571, %v2576
        %v2579 = vunpack.c.l.s4 1934713408
        %v2580 = vunpack.c.0.s8 %v2579
        %v2581 = vperm.slane %v2573, %v2580
        %v2582 = vrot.slane %v2553, 4
        %v2583 = vsel %vm251, %v2582, %v2541
        %v2584 = vrot.slane %v2541, 4
        %v2585 = vsel %vm251, %v2553, %v2584
        %v2587 = vunpack.c.l.s4 1934713408
        %v2588 = vunpack.c.0.s8 %v2587
        %v2589 = vperm.slane %v2583, %v2588
        %v2591 = vunpack.c.l.s4 1934713408
        %v2592 = vunpack.c.0.s8 %v2591
        %v2593 = vperm.slane %v2585, %v2592
        %v2594 = vrot.slane %v2557, 4
        %v2595 = vsel %vm251, %v2594, %v2545
        %v2596 = vrot.slane %v2545, 4
        %v2597 = vsel %vm251, %v2557, %v2596
        %v2599 = vunpack.c.l.s4 1934713408
        %v2600 = vunpack.c.0.s8 %v2599
        %v2601 = vperm.slane %v2595, %v2600
        %v2603 = vunpack.c.l.s4 1934713408
        %v2604 = vunpack.c.0.s8 %v2603
        %v2605 = vperm.slane %v2597, %v2604
        %v2606 = vrot.slane %v2589, 4
        %v2607 = vsel %vm251, %v2606, %v2565
        %v2608 = vrot.slane %v2565, 4
        %v2609 = vsel %vm251, %v2589, %v2608
        %v2610 = vrot.slane %v2593, 4
        %v2611 = vsel %vm251, %v2610, %v2569
        %v2612 = vrot.slane %v2569, 4
        %v2613 = vsel %vm251, %v2593, %v2612
        %v2614 = vrot.slane %v2601, 4
        %v2615 = vsel %vm251, %v2614, %v2577
        %v2616 = vrot.slane %v2577, 4
        %v2617 = vsel %vm251, %v2601, %v2616
        %v2618 = vrot.slane %v2605, 4
        %v2619 = vsel %vm251, %v2618, %v2581
        %v2620 = vrot.slane %v2581, 4
        %v2621 = vsel %vm251, %v2605, %v2620
        %v2622 = vrot.slane %v2275, 4
        %v2623 = vsel %vm251, %v2622, %v2271
        %v2624 = vrot.slane %v2271, 4
        %v2625 = vsel %vm251, %v2275, %v2624
        %v2627 = vunpack.c.l.s4 1983009808
        %v2628 = vunpack.c.0.s8 %v2627
        %v2629 = vperm.slane %v2623, %v2628
        %v2631 = vunpack.c.l.s4 1983009808
        %v2632 = vunpack.c.0.s8 %v2631
        %v2633 = vperm.slane %v2625, %v2632
        %v2634 = vrot.slane %v2277, 4
        %v2635 = vsel %vm251, %v2634, %v2273
        %v2636 = vrot.slane %v2273, 4
        %v2637 = vsel %vm251, %v2277, %v2636
        %v2639 = vunpack.c.l.s4 1983009808
        %v2640 = vunpack.c.0.s8 %v2639
        %v2641 = vperm.slane %v2635, %v2640
        %v2643 = vunpack.c.l.s4 1983009808
        %v2644 = vunpack.c.0.s8 %v2643
        %v2645 = vperm.slane %v2637, %v2644
        %v2646 = vrot.slane %v2283, 4
        %v2647 = vsel %vm251, %v2646, %v2279
        %v2648 = vrot.slane %v2279, 4
        %v2649 = vsel %vm251, %v2283, %v2648
        %v2651 = vunpack.c.l.s4 1983009808
        %v2652 = vunpack.c.0.s8 %v2651
        %v2653 = vperm.slane %v2647, %v2652
        %v2655 = vunpack.c.l.s4 1983009808
        %v2656 = vunpack.c.0.s8 %v2655
        %v2657 = vperm.slane %v2649, %v2656
        %v2658 = vrot.slane %v2285, 4
        %v2659 = vsel %vm251, %v2658, %v2281
        %v2660 = vrot.slane %v2281, 4
        %v2661 = vsel %vm251, %v2285, %v2660
        %v2663 = vunpack.c.l.s4 1983009808
        %v2664 = vunpack.c.0.s8 %v2663
        %v2665 = vperm.slane %v2659, %v2664
        %v2667 = vunpack.c.l.s4 1983009808
        %v2668 = vunpack.c.0.s8 %v2667
        %v2669 = vperm.slane %v2661, %v2668
        %v2670 = vrot.slane %v2641, 4
        %v2671 = vsel %vm251, %v2670, %v2629
        %v2672 = vrot.slane %v2629, 4
        %v2673 = vsel %vm251, %v2641, %v2672
        %v2675 = vunpack.c.l.s4 1934713408
        %v2676 = vunpack.c.0.s8 %v2675
        %v2677 = vperm.slane %v2671, %v2676
        %v2679 = vunpack.c.l.s4 1934713408
        %v2680 = vunpack.c.0.s8 %v2679
        %v2681 = vperm.slane %v2673, %v2680
        %v2682 = vrot.slane %v2645, 4
        %v2683 = vsel %vm251, %v2682, %v2633
        %v2684 = vrot.slane %v2633, 4
        %v2685 = vsel %vm251, %v2645, %v2684
        %v2687 = vunpack.c.l.s4 1934713408
        %v2688 = vunpack.c.0.s8 %v2687
        %v2689 = vperm.slane %v2683, %v2688
        %v2691 = vunpack.c.l.s4 1934713408
        %v2692 = vunpack.c.0.s8 %v2691
        %v2693 = vperm.slane %v2685, %v2692
        %v2694 = vrot.slane %v2665, 4
        %v2695 = vsel %vm251, %v2694, %v2653
        %v2696 = vrot.slane %v2653, 4
        %v2697 = vsel %vm251, %v2665, %v2696
        %v2699 = vunpack.c.l.s4 1934713408
        %v2700 = vunpack.c.0.s8 %v2699
        %v2701 = vperm.slane %v2695, %v2700
        %v2703 = vunpack.c.l.s4 1934713408
        %v2704 = vunpack.c.0.s8 %v2703
        %v2705 = vperm.slane %v2697, %v2704
        %v2706 = vrot.slane %v2669, 4
        %v2707 = vsel %vm251, %v2706, %v2657
        %v2708 = vrot.slane %v2657, 4
        %v2709 = vsel %vm251, %v2669, %v2708
        %v2711 = vunpack.c.l.s4 1934713408
        %v2712 = vunpack.c.0.s8 %v2711
        %v2713 = vperm.slane %v2707, %v2712
        %v2715 = vunpack.c.l.s4 1934713408
        %v2716 = vunpack.c.0.s8 %v2715
        %v2717 = vperm.slane %v2709, %v2716
        %v2718 = vrot.slane %v2701, 4
        %v2719 = vsel %vm251, %v2718, %v2677
        %v2720 = vrot.slane %v2677, 4
        %v2721 = vsel %vm251, %v2701, %v2720
        %v2722 = vrot.slane %v2705, 4
        %v2723 = vsel %vm251, %v2722, %v2681
        %v2724 = vrot.slane %v2681, 4
        %v2725 = vsel %vm251, %v2705, %v2724
        %v2726 = vrot.slane %v2713, 4
        %v2727 = vsel %vm251, %v2726, %v2689
        %v2728 = vrot.slane %v2689, 4
        %v2729 = vsel %vm251, %v2713, %v2728
        %v2730 = vrot.slane %v2717, 4
        %v2731 = vsel %vm251, %v2730, %v2693
        %v2732 = vrot.slane %v2693, 4
        %v2733 = vsel %vm251, %v2717, %v2732
        %v2734 = vrot.slane %v2387, 4
        %v2735 = vsel %vm251, %v2734, %v2383
        %v2736 = vrot.slane %v2383, 4
        %v2737 = vsel %vm251, %v2387, %v2736
        %v2739 = vunpack.c.l.s4 1983009808
        %v2740 = vunpack.c.0.s8 %v2739
        %v2741 = vperm.slane %v2735, %v2740
        %v2743 = vunpack.c.l.s4 1983009808
        %v2744 = vunpack.c.0.s8 %v2743
        %v2745 = vperm.slane %v2737, %v2744
        %v2746 = vrot.slane %v2389, 4
        %v2747 = vsel %vm251, %v2746, %v2385
        %v2748 = vrot.slane %v2385, 4
        %v2749 = vsel %vm251, %v2389, %v2748
        %v2751 = vunpack.c.l.s4 1983009808
        %v2752 = vunpack.c.0.s8 %v2751
        %v2753 = vperm.slane %v2747, %v2752
        %v2755 = vunpack.c.l.s4 1983009808
        %v2756 = vunpack.c.0.s8 %v2755
        %v2757 = vperm.slane %v2749, %v2756
        %v2758 = vrot.slane %v2395, 4
        %v2759 = vsel %vm251, %v2758, %v2391
        %v2760 = vrot.slane %v2391, 4
        %v2761 = vsel %vm251, %v2395, %v2760
        %v2763 = vunpack.c.l.s4 1983009808
        %v2764 = vunpack.c.0.s8 %v2763
        %v2765 = vperm.slane %v2759, %v2764
        %v2767 = vunpack.c.l.s4 1983009808
        %v2768 = vunpack.c.0.s8 %v2767
        %v2769 = vperm.slane %v2761, %v2768
        %v2770 = vrot.slane %v2397, 4
        %v2771 = vsel %vm251, %v2770, %v2393
        %v2772 = vrot.slane %v2393, 4
        %v2773 = vsel %vm251, %v2397, %v2772
        %v2775 = vunpack.c.l.s4 1983009808
        %v2776 = vunpack.c.0.s8 %v2775
        %v2777 = vperm.slane %v2771, %v2776
        %v2779 = vunpack.c.l.s4 1983009808
        %v2780 = vunpack.c.0.s8 %v2779
        %v2781 = vperm.slane %v2773, %v2780
        %v2782 = vrot.slane %v2753, 4
        %v2783 = vsel %vm251, %v2782, %v2741
        %v2784 = vrot.slane %v2741, 4
        %v2785 = vsel %vm251, %v2753, %v2784
        %v2787 = vunpack.c.l.s4 1934713408
        %v2788 = vunpack.c.0.s8 %v2787
        %v2789 = vperm.slane %v2783, %v2788
        %v2791 = vunpack.c.l.s4 1934713408
        %v2792 = vunpack.c.0.s8 %v2791
        %v2793 = vperm.slane %v2785, %v2792
        %v2794 = vrot.slane %v2757, 4
        %v2795 = vsel %vm251, %v2794, %v2745
        %v2796 = vrot.slane %v2745, 4
        %v2797 = vsel %vm251, %v2757, %v2796
        %v2799 = vunpack.c.l.s4 1934713408
        %v2800 = vunpack.c.0.s8 %v2799
        %v2801 = vperm.slane %v2795, %v2800
        %v2803 = vunpack.c.l.s4 1934713408
        %v2804 = vunpack.c.0.s8 %v2803
        %v2805 = vperm.slane %v2797, %v2804
        %v2806 = vrot.slane %v2777, 4
        %v2807 = vsel %vm251, %v2806, %v2765
        %v2808 = vrot.slane %v2765, 4
        %v2809 = vsel %vm251, %v2777, %v2808
        %v2811 = vunpack.c.l.s4 1934713408
        %v2812 = vunpack.c.0.s8 %v2811
        %v2813 = vperm.slane %v2807, %v2812
        %v2815 = vunpack.c.l.s4 1934713408
        %v2816 = vunpack.c.0.s8 %v2815
        %v2817 = vperm.slane %v2809, %v2816
        %v2818 = vrot.slane %v2781, 4
        %v2819 = vsel %vm251, %v2818, %v2769
        %v2820 = vrot.slane %v2769, 4
        %v2821 = vsel %vm251, %v2781, %v2820
        %v2823 = vunpack.c.l.s4 1934713408
        %v2824 = vunpack.c.0.s8 %v2823
        %v2825 = vperm.slane %v2819, %v2824
        %v2827 = vunpack.c.l.s4 1934713408
        %v2828 = vunpack.c.0.s8 %v2827
        %v2829 = vperm.slane %v2821, %v2828
        %v2830 = vrot.slane %v2813, 4
        %v2831 = vsel %vm251, %v2830, %v2789
        %v2832 = vrot.slane %v2789, 4
        %v2833 = vsel %vm251, %v2813, %v2832
        %v2834 = vrot.slane %v2817, 4
        %v2835 = vsel %vm251, %v2834, %v2793
        %v2836 = vrot.slane %v2793, 4
        %v2837 = vsel %vm251, %v2817, %v2836
        %v2838 = vrot.slane %v2825, 4
        %v2839 = vsel %vm251, %v2838, %v2801
        %v2840 = vrot.slane %v2801, 4
        %v2841 = vsel %vm251, %v2825, %v2840
        %v2842 = vrot.slane %v2829, 4
        %v2843 = vsel %vm251, %v2842, %v2805
        %v2844 = vrot.slane %v2805, 4
        %v2845 = vsel %vm251, %v2829, %v2844
        %v2846 = vrot.slane %v2611, 4
        %v2847 = vsel %vm251, %v2846, %v2607
        %v2848 = vrot.slane %v2607, 4
        %v2849 = vsel %vm251, %v2611, %v2848
        %v2851 = vunpack.c.l.s4 1983009808
        %v2852 = vunpack.c.0.s8 %v2851
        %v2853 = vperm.slane %v2847, %v2852
        %v2855 = vunpack.c.l.s4 1983009808
        %v2856 = vunpack.c.0.s8 %v2855
        %v2857 = vperm.slane %v2849, %v2856
        %v2858 = vrot.slane %v2613, 4
        %v2859 = vsel %vm251, %v2858, %v2609
        %v2860 = vrot.slane %v2609, 4
        %v2861 = vsel %vm251, %v2613, %v2860
        %v2863 = vunpack.c.l.s4 1983009808
        %v2864 = vunpack.c.0.s8 %v2863
        %v2865 = vperm.slane %v2859, %v2864
        %v2867 = vunpack.c.l.s4 1983009808
        %v2868 = vunpack.c.0.s8 %v2867
        %v2869 = vperm.slane %v2861, %v2868
        %v2870 = vrot.slane %v2619, 4
        %v2871 = vsel %vm251, %v2870, %v2615
        %v2872 = vrot.slane %v2615, 4
        %v2873 = vsel %vm251, %v2619, %v2872
        %v2875 = vunpack.c.l.s4 1983009808
        %v2876 = vunpack.c.0.s8 %v2875
        %v2877 = vperm.slane %v2871, %v2876
        %v2879 = vunpack.c.l.s4 1983009808
        %v2880 = vunpack.c.0.s8 %v2879
        %v2881 = vperm.slane %v2873, %v2880
        %v2882 = vrot.slane %v2621, 4
        %v2883 = vsel %vm251, %v2882, %v2617
        %v2884 = vrot.slane %v2617, 4
        %v2885 = vsel %vm251, %v2621, %v2884
        %v2887 = vunpack.c.l.s4 1983009808
        %v2888 = vunpack.c.0.s8 %v2887
        %v2889 = vperm.slane %v2883, %v2888
        %v2891 = vunpack.c.l.s4 1983009808
        %v2892 = vunpack.c.0.s8 %v2891
        %v2893 = vperm.slane %v2885, %v2892
        %v2894 = vrot.slane %v2865, 4
        %v2895 = vsel %vm251, %v2894, %v2853
        %v2896 = vrot.slane %v2853, 4
        %v2897 = vsel %vm251, %v2865, %v2896
        %v2899 = vunpack.c.l.s4 1934713408
        %v2900 = vunpack.c.0.s8 %v2899
        %v2901 = vperm.slane %v2895, %v2900
        %v2903 = vunpack.c.l.s4 1934713408
        %v2904 = vunpack.c.0.s8 %v2903
        %v2905 = vperm.slane %v2897, %v2904
        %v2906 = vrot.slane %v2869, 4
        %v2907 = vsel %vm251, %v2906, %v2857
        %v2908 = vrot.slane %v2857, 4
        %v2909 = vsel %vm251, %v2869, %v2908
        %v2911 = vunpack.c.l.s4 1934713408
        %v2912 = vunpack.c.0.s8 %v2911
        %v2913 = vperm.slane %v2907, %v2912
        %v2915 = vunpack.c.l.s4 1934713408
        %v2916 = vunpack.c.0.s8 %v2915
        %v2917 = vperm.slane %v2909, %v2916
        %v2918 = vrot.slane %v2889, 4
        %v2919 = vsel %vm251, %v2918, %v2877
        %v2920 = vrot.slane %v2877, 4
        %v2921 = vsel %vm251, %v2889, %v2920
        %v2923 = vunpack.c.l.s4 1934713408
        %v2924 = vunpack.c.0.s8 %v2923
        %v2925 = vperm.slane %v2919, %v2924
        %v2927 = vunpack.c.l.s4 1934713408
        %v2928 = vunpack.c.0.s8 %v2927
        %v2929 = vperm.slane %v2921, %v2928
        %v2930 = vrot.slane %v2893, 4
        %v2931 = vsel %vm251, %v2930, %v2881
        %v2932 = vrot.slane %v2881, 4
        %v2933 = vsel %vm251, %v2893, %v2932
        %v2935 = vunpack.c.l.s4 1934713408
        %v2936 = vunpack.c.0.s8 %v2935
        %v2937 = vperm.slane %v2931, %v2936
        %v2939 = vunpack.c.l.s4 1934713408
        %v2940 = vunpack.c.0.s8 %v2939
        %v2941 = vperm.slane %v2933, %v2940
        %v2942 = vrot.slane %v2925, 4
        %v2943 = vsel %vm251, %v2942, %v2901
        %v2944 = vrot.slane %v2901, 4
        %v2945 = vsel %vm251, %v2925, %v2944
        %v2946 = vrot.slane %v2929, 4
        %v2947 = vsel %vm251, %v2946, %v2905
        %v2948 = vrot.slane %v2905, 4
        %v2949 = vsel %vm251, %v2929, %v2948
        %v2950 = vrot.slane %v2937, 4
        %v2951 = vsel %vm251, %v2950, %v2913
        %v2952 = vrot.slane %v2913, 4
        %v2953 = vsel %vm251, %v2937, %v2952
        %v2954 = vrot.slane %v2941, 4
        %v2955 = vsel %vm251, %v2954, %v2917
        %v2956 = vrot.slane %v2917, 4
        %v2957 = vsel %vm251, %v2941, %v2956
        %v2958 = vrot.slane %v2499, 4
        %v2959 = vsel %vm251, %v2958, %v2495
        %v2960 = vrot.slane %v2495, 4
        %v2961 = vsel %vm251, %v2499, %v2960
        %v2963 = vunpack.c.l.s4 1983009808
        %v2964 = vunpack.c.0.s8 %v2963
        %v2965 = vperm.slane %v2959, %v2964
        %v2967 = vunpack.c.l.s4 1983009808
        %v2968 = vunpack.c.0.s8 %v2967
        %v2969 = vperm.slane %v2961, %v2968
        %v2970 = vrot.slane %v2501, 4
        %v2971 = vsel %vm251, %v2970, %v2497
        %v2972 = vrot.slane %v2497, 4
        %v2973 = vsel %vm251, %v2501, %v2972
        %v2975 = vunpack.c.l.s4 1983009808
        %v2976 = vunpack.c.0.s8 %v2975
        %v2977 = vperm.slane %v2971, %v2976
        %v2979 = vunpack.c.l.s4 1983009808
        %v2980 = vunpack.c.0.s8 %v2979
        %v2981 = vperm.slane %v2973, %v2980
        %v2982 = vrot.slane %v2507, 4
        %v2983 = vsel %vm251, %v2982, %v2503
        %v2984 = vrot.slane %v2503, 4
        %v2985 = vsel %vm251, %v2507, %v2984
        %v2987 = vunpack.c.l.s4 1983009808
        %v2988 = vunpack.c.0.s8 %v2987
        %v2989 = vperm.slane %v2983, %v2988
        %v2991 = vunpack.c.l.s4 1983009808
        %v2992 = vunpack.c.0.s8 %v2991
        %v2993 = vperm.slane %v2985, %v2992
        %v2994 = vrot.slane %v2509, 4
        %v2995 = vsel %vm251, %v2994, %v2505
        %v2996 = vrot.slane %v2505, 4
        %v2997 = vsel %vm251, %v2509, %v2996
        %v2999 = vunpack.c.l.s4 1983009808
        %v3000 = vunpack.c.0.s8 %v2999
        %v3001 = vperm.slane %v2995, %v3000
        %v3003 = vunpack.c.l.s4 1983009808
        %v3004 = vunpack.c.0.s8 %v3003
        %v3005 = vperm.slane %v2997, %v3004
        %v3006 = vrot.slane %v2977, 4
        %v3007 = vsel %vm251, %v3006, %v2965
        %v3008 = vrot.slane %v2965, 4
        %v3009 = vsel %vm251, %v2977, %v3008
        %v3011 = vunpack.c.l.s4 1934713408
        %v3012 = vunpack.c.0.s8 %v3011
        %v3013 = vperm.slane %v3007, %v3012
        %v3015 = vunpack.c.l.s4 1934713408
        %v3016 = vunpack.c.0.s8 %v3015
        %v3017 = vperm.slane %v3009, %v3016
        %v3018 = vrot.slane %v2981, 4
        %v3019 = vsel %vm251, %v3018, %v2969
        %v3020 = vrot.slane %v2969, 4
        %v3021 = vsel %vm251, %v2981, %v3020
        %v3023 = vunpack.c.l.s4 1934713408
        %v3024 = vunpack.c.0.s8 %v3023
        %v3025 = vperm.slane %v3019, %v3024
        %v3027 = vunpack.c.l.s4 1934713408
        %v3028 = vunpack.c.0.s8 %v3027
        %v3029 = vperm.slane %v3021, %v3028
        %v3030 = vrot.slane %v3001, 4
        %v3031 = vsel %vm251, %v3030, %v2989
        %v3032 = vrot.slane %v2989, 4
        %v3033 = vsel %vm251, %v3001, %v3032
        %v3035 = vunpack.c.l.s4 1934713408
        %v3036 = vunpack.c.0.s8 %v3035
        %v3037 = vperm.slane %v3031, %v3036
        %v3039 = vunpack.c.l.s4 1934713408
        %v3040 = vunpack.c.0.s8 %v3039
        %v3041 = vperm.slane %v3033, %v3040
        %v3042 = vrot.slane %v3005, 4
        %v3043 = vsel %vm251, %v3042, %v2993
        %v3044 = vrot.slane %v2993, 4
        %v3045 = vsel %vm251, %v3005, %v3044
        %v3047 = vunpack.c.l.s4 1934713408
        %v3048 = vunpack.c.0.s8 %v3047
        %v3049 = vperm.slane %v3043, %v3048
        %v3051 = vunpack.c.l.s4 1934713408
        %v3052 = vunpack.c.0.s8 %v3051
        %v3053 = vperm.slane %v3045, %v3052
        %v3054 = vrot.slane %v3037, 4
        %v3055 = vsel %vm251, %v3054, %v3013
        %v3056 = vrot.slane %v3013, 4
        %v3057 = vsel %vm251, %v3037, %v3056
        %v3058 = vrot.slane %v3041, 4
        %v3059 = vsel %vm251, %v3058, %v3017
        %v3060 = vrot.slane %v3017, 4
        %v3061 = vsel %vm251, %v3041, %v3060
        %v3062 = vrot.slane %v3049, 4
        %v3063 = vsel %vm251, %v3062, %v3025
        %v3064 = vrot.slane %v3025, 4
        %v3065 = vsel %vm251, %v3049, %v3064
        %v3066 = vrot.slane %v3053, 4
        %v3067 = vsel %vm251, %v3066, %v3029
        %v3068 = vrot.slane %v3029, 4
        %v3069 = vsel %vm251, %v3053, %v3068
        %v3070 = vrot.slane %v2723, 4
        %v3071 = vsel %vm251, %v3070, %v2719
        %v3072 = vrot.slane %v2719, 4
        %v3073 = vsel %vm251, %v2723, %v3072
        %v3075 = vunpack.c.l.s4 1983009808
        %v3076 = vunpack.c.0.s8 %v3075
        %v3077 = vperm.slane %v3071, %v3076
        %v3079 = vunpack.c.l.s4 1983009808
        %v3080 = vunpack.c.0.s8 %v3079
        %v3081 = vperm.slane %v3073, %v3080
        %v3082 = vrot.slane %v2725, 4
        %v3083 = vsel %vm251, %v3082, %v2721
        %v3084 = vrot.slane %v2721, 4
        %v3085 = vsel %vm251, %v2725, %v3084
        %v3087 = vunpack.c.l.s4 1983009808
        %v3088 = vunpack.c.0.s8 %v3087
        %v3089 = vperm.slane %v3083, %v3088
        %v3091 = vunpack.c.l.s4 1983009808
        %v3092 = vunpack.c.0.s8 %v3091
        %v3093 = vperm.slane %v3085, %v3092
        %v3094 = vrot.slane %v2731, 4
        %v3095 = vsel %vm251, %v3094, %v2727
        %v3096 = vrot.slane %v2727, 4
        %v3097 = vsel %vm251, %v2731, %v3096
        %v3099 = vunpack.c.l.s4 1983009808
        %v3100 = vunpack.c.0.s8 %v3099
        %v3101 = vperm.slane %v3095, %v3100
        %v3103 = vunpack.c.l.s4 1983009808
        %v3104 = vunpack.c.0.s8 %v3103
        %v3105 = vperm.slane %v3097, %v3104
        %v3106 = vrot.slane %v2733, 4
        %v3107 = vsel %vm251, %v3106, %v2729
        %v3108 = vrot.slane %v2729, 4
        %v3109 = vsel %vm251, %v2733, %v3108
        %v3111 = vunpack.c.l.s4 1983009808
        %v3112 = vunpack.c.0.s8 %v3111
        %v3113 = vperm.slane %v3107, %v3112
        %v3115 = vunpack.c.l.s4 1983009808
        %v3116 = vunpack.c.0.s8 %v3115
        %v3117 = vperm.slane %v3109, %v3116
        %v3118 = vrot.slane %v3089, 4
        %v3119 = vsel %vm251, %v3118, %v3077
        %v3120 = vrot.slane %v3077, 4
        %v3121 = vsel %vm251, %v3089, %v3120
        %v3123 = vunpack.c.l.s4 1934713408
        %v3124 = vunpack.c.0.s8 %v3123
        %v3125 = vperm.slane %v3119, %v3124
        %v3127 = vunpack.c.l.s4 1934713408
        %v3128 = vunpack.c.0.s8 %v3127
        %v3129 = vperm.slane %v3121, %v3128
        %v3130 = vrot.slane %v3093, 4
        %v3131 = vsel %vm251, %v3130, %v3081
        %v3132 = vrot.slane %v3081, 4
        %v3133 = vsel %vm251, %v3093, %v3132
        %v3135 = vunpack.c.l.s4 1934713408
        %v3136 = vunpack.c.0.s8 %v3135
        %v3137 = vperm.slane %v3131, %v3136
        %v3139 = vunpack.c.l.s4 1934713408
        %v3140 = vunpack.c.0.s8 %v3139
        %v3141 = vperm.slane %v3133, %v3140
        %v3142 = vrot.slane %v3113, 4
        %v3143 = vsel %vm251, %v3142, %v3101
        %v3144 = vrot.slane %v3101, 4
        %v3145 = vsel %vm251, %v3113, %v3144
        %v3147 = vunpack.c.l.s4 1934713408
        %v3148 = vunpack.c.0.s8 %v3147
        %v3149 = vperm.slane %v3143, %v3148
        %v3151 = vunpack.c.l.s4 1934713408
        %v3152 = vunpack.c.0.s8 %v3151
        %v3153 = vperm.slane %v3145, %v3152
        %v3154 = vrot.slane %v3117, 4
        %v3155 = vsel %vm251, %v3154, %v3105
        %v3156 = vrot.slane %v3105, 4
        %v3157 = vsel %vm251, %v3117, %v3156
        %v3159 = vunpack.c.l.s4 1934713408
        %v3160 = vunpack.c.0.s8 %v3159
        %v3161 = vperm.slane %v3155, %v3160
        %v3163 = vunpack.c.l.s4 1934713408
        %v3164 = vunpack.c.0.s8 %v3163
        %v3165 = vperm.slane %v3157, %v3164
        %v3166 = vrot.slane %v3149, 4
        %v3167 = vsel %vm251, %v3166, %v3125
        %v3168 = vrot.slane %v3125, 4
        %v3169 = vsel %vm251, %v3149, %v3168
        %v3170 = vrot.slane %v3153, 4
        %v3171 = vsel %vm251, %v3170, %v3129
        %v3172 = vrot.slane %v3129, 4
        %v3173 = vsel %vm251, %v3153, %v3172
        %v3174 = vrot.slane %v3161, 4
        %v3175 = vsel %vm251, %v3174, %v3137
        %v3176 = vrot.slane %v3137, 4
        %v3177 = vsel %vm251, %v3161, %v3176
        %v3178 = vrot.slane %v3165, 4
        %v3179 = vsel %vm251, %v3178, %v3141
        %v3180 = vrot.slane %v3141, 4
        %v3181 = vsel %vm251, %v3165, %v3180
        %3184 = vrot.lane.b32.xlu0 %v2833, 16
        %v3185 = vpop.permute.xlu0 %3184
        %3186 = vrot.lane.b32.xlu0 %v2945, 16
        %v3187 = vpop.permute.xlu0 %3186
        %3192 = vrot.lane.b32.xlu0 %v2835, 32
        %v3193 = vpop.permute.xlu0 %3192
        %3194 = vrot.lane.b32.xlu0 %v2947, 32
        %v3195 = vpop.permute.xlu0 %3194
        %3200 = vrot.lane.b32.xlu0 %v2837, 48
        %v3201 = vpop.permute.xlu0 %3200
        %3202 = vrot.lane.b32.xlu0 %v2949, 48
        %v3203 = vpop.permute.xlu0 %3202
        %3208 = vrot.lane.b32.xlu0 %v2839, 64
        %v3209 = vpop.permute.xlu0 %3208
        %3210 = vrot.lane.b32.xlu0 %v2951, 64
        %v3211 = vpop.permute.xlu0 %3210
        %3216 = vrot.lane.b32.xlu0 %v2841, 80
        %v3217 = vpop.permute.xlu0 %3216
        %3218 = vrot.lane.b32.xlu0 %v2953, 80
        %v3219 = vpop.permute.xlu0 %3218
        %3224 = vrot.lane.b32.xlu0 %v2843, 96
        %v3225 = vpop.permute.xlu0 %3224
        %3226 = vrot.lane.b32.xlu0 %v2955, 96
        %v3227 = vpop.permute.xlu0 %3226
        %3232 = vrot.lane.b32.xlu0 %v2845, 112
        %v3233 = vpop.permute.xlu0 %3232
        %3234 = vrot.lane.b32.xlu0 %v2957, 112
        %v3235 = vpop.permute.xlu0 %3234
        %3240 = vrot.lane.b32.xlu0 %v3057, 16
        %v3241 = vpop.permute.xlu0 %3240
        %3242 = vrot.lane.b32.xlu0 %v3169, 16
        %v3243 = vpop.permute.xlu0 %3242
        %3248 = vrot.lane.b32.xlu0 %v3059, 32
        %v3249 = vpop.permute.xlu0 %3248
        %3250 = vrot.lane.b32.xlu0 %v3171, 32
        %v3251 = vpop.permute.xlu0 %3250
        %3256 = vrot.lane.b32.xlu0 %v3061, 48
        %v3257 = vpop.permute.xlu0 %3256
        %3258 = vrot.lane.b32.xlu0 %v3173, 48
        %v3259 = vpop.permute.xlu0 %3258
        %3264 = vrot.lane.b32.xlu0 %v3063, 64
        %v3265 = vpop.permute.xlu0 %3264
        %3266 = vrot.lane.b32.xlu0 %v3175, 64
        %v3267 = vpop.permute.xlu0 %3266
        %3272 = vrot.lane.b32.xlu0 %v3065, 80
        %v3273 = vpop.permute.xlu0 %3272
        %3274 = vrot.lane.b32.xlu0 %v3177, 80
        %v3275 = vpop.permute.xlu0 %3274
        %3280 = vrot.lane.b32.xlu0 %v3067, 96
        %v3281 = vpop.permute.xlu0 %3280
        %3282 = vrot.lane.b32.xlu0 %v3179, 96
        %v3283 = vpop.permute.xlu0 %3282
        %3288 = vrot.lane.b32.xlu0 %v3069, 112
        %v3289 = vpop.permute.xlu0 %3288
        %3290 = vrot.lane.b32.xlu0 %v3181, 112
        %v3291 = vpop.permute.xlu0 %3290
        %v3294 = vsel %vm1707, %v2831, %v3185
        %v3295 = vsel %vm1707, %v2943, %v3187
        %v3296 = vsel %vm1710, %v3294, %v3193
        %v3297 = vsel %vm1710, %v3295, %v3195
        %v3298 = vsel %vm1713, %v3296, %v3201
        %v3299 = vsel %vm1713, %v3297, %v3203
        %v3300 = vsel %vm1716, %v3298, %v3209
        %v3301 = vsel %vm1716, %v3299, %v3211
        %v3302 = vsel %vm1719, %v3300, %v3217
        %v3303 = vsel %vm1719, %v3301, %v3219
        %v3304 = vsel %vm1722, %v3302, %v3225
        %v3305 = vsel %vm1722, %v3303, %v3227
        %v3306 = vsel %vm1725, %v3304, %v3233
        %v3307 = vsel %vm1725, %v3305, %v3235
        %v3308 = vsel %vm1707, %v3055, %v3241
        %v3309 = vsel %vm1707, %v3167, %v3243
        %v3310 = vsel %vm1710, %v3308, %v3249
        %v3311 = vsel %vm1710, %v3309, %v3251
        %v3312 = vsel %vm1713, %v3310, %v3257
        %v3313 = vsel %vm1713, %v3311, %v3259
        %v3314 = vsel %vm1716, %v3312, %v3265
        %v3315 = vsel %vm1716, %v3313, %v3267
        %v3316 = vsel %vm1719, %v3314, %v3273
        %v3317 = vsel %vm1719, %v3315, %v3275
        %v3318 = vsel %vm1722, %v3316, %v3281
        %v3319 = vsel %vm1722, %v3317, %v3283
        %v3320 = vsel %vm1725, %v3318, %v3289
        %v3321 = vsel %vm1725, %v3319, %v3291
        %3322 = vst [vmem:[%s155 + $0x20] sm:$0xff] %v3306
        %3323 = vst [vmem:[%s155 + $0x28] sm:$0xff] %v3320
        %3324 = vst [vmem:[%s155 + $0x30] sm:$0xff] %v3307
        %3325 = vst [vmem:[%s155 + $0x38] sm:$0xff] %v3321
        %v3326 = vld [vmem:[%s136 + $0x40] sm:$0xff]
        %v3327 = vld [vmem:[%s136 + $0x48] sm:$0xff]
        %v3328 = vld [vmem:[%s136 + $0x50] sm:$0xff]
        %v3329 = vld [vmem:[%s136 + $0x58] sm:$0xff]
        %3332 = vrot.lane.b32.xlu0 %v3326, 112
        %v3333 = vpop.permute.xlu0 %3332
        %3334 = vrot.lane.b32.xlu0 %v3328, 112
        %v3335 = vpop.permute.xlu0 %3334
        %3338 = vrot.lane.b32.xlu0 %v3326, 96
        %v3339 = vpop.permute.xlu0 %3338
        %3340 = vrot.lane.b32.xlu0 %v3328, 96
        %v3341 = vpop.permute.xlu0 %3340
        %3344 = vrot.lane.b32.xlu0 %v3326, 80
        %v3345 = vpop.permute.xlu0 %3344
        %3346 = vrot.lane.b32.xlu0 %v3328, 80
        %v3347 = vpop.permute.xlu0 %3346
        %3350 = vrot.lane.b32.xlu0 %v3326, 64
        %v3351 = vpop.permute.xlu0 %3350
        %3352 = vrot.lane.b32.xlu0 %v3328, 64
        %v3353 = vpop.permute.xlu0 %3352
        %3356 = vrot.lane.b32.xlu0 %v3326, 48
        %v3357 = vpop.permute.xlu0 %3356
        %3358 = vrot.lane.b32.xlu0 %v3328, 48
        %v3359 = vpop.permute.xlu0 %3358
        %3362 = vrot.lane.b32.xlu0 %v3326, 32
        %v3363 = vpop.permute.xlu0 %3362
        %3364 = vrot.lane.b32.xlu0 %v3328, 32
        %v3365 = vpop.permute.xlu0 %3364
        %3368 = vrot.lane.b32.xlu0 %v3326, 16
        %v3369 = vpop.permute.xlu0 %3368
        %3370 = vrot.lane.b32.xlu0 %v3328, 16
        %v3371 = vpop.permute.xlu0 %3370
        %3376 = vrot.lane.b32.xlu0 %v3327, 112
        %v3377 = vpop.permute.xlu0 %3376
        %3378 = vrot.lane.b32.xlu0 %v3329, 112
        %v3379 = vpop.permute.xlu0 %3378
        %3382 = vrot.lane.b32.xlu0 %v3327, 96
        %v3383 = vpop.permute.xlu0 %3382
        %3384 = vrot.lane.b32.xlu0 %v3329, 96
        %v3385 = vpop.permute.xlu0 %3384
        %3388 = vrot.lane.b32.xlu0 %v3327, 80
        %v3389 = vpop.permute.xlu0 %3388
        %3390 = vrot.lane.b32.xlu0 %v3329, 80
        %v3391 = vpop.permute.xlu0 %3390
        %3394 = vrot.lane.b32.xlu0 %v3327, 64
        %v3395 = vpop.permute.xlu0 %3394
        %3396 = vrot.lane.b32.xlu0 %v3329, 64
        %v3397 = vpop.permute.xlu0 %3396
        %3400 = vrot.lane.b32.xlu0 %v3327, 48
        %v3401 = vpop.permute.xlu0 %3400
        %3402 = vrot.lane.b32.xlu0 %v3329, 48
        %v3403 = vpop.permute.xlu0 %3402
        %3406 = vrot.lane.b32.xlu0 %v3327, 32
        %v3407 = vpop.permute.xlu0 %3406
        %3408 = vrot.lane.b32.xlu0 %v3329, 32
        %v3409 = vpop.permute.xlu0 %3408
        %3412 = vrot.lane.b32.xlu0 %v3327, 16
        %v3413 = vpop.permute.xlu0 %3412
        %3414 = vrot.lane.b32.xlu0 %v3329, 16
        %v3415 = vpop.permute.xlu0 %3414
        %v3418 = vrot.slane %v3339, 4
        %v3419 = vsel %vm251, %v3418, %v3326
        %v3420 = vrot.slane %v3326, 4
        %v3421 = vsel %vm251, %v3339, %v3420
        %v3423 = vunpack.c.l.s4 1983009808
        %v3424 = vunpack.c.0.s8 %v3423
        %v3425 = vperm.slane %v3419, %v3424
        %v3427 = vunpack.c.l.s4 1983009808
        %v3428 = vunpack.c.0.s8 %v3427
        %v3429 = vperm.slane %v3421, %v3428
        %v3430 = vrot.slane %v3345, 4
        %v3431 = vsel %vm251, %v3430, %v3333
        %v3432 = vrot.slane %v3333, 4
        %v3433 = vsel %vm251, %v3345, %v3432
        %v3435 = vunpack.c.l.s4 1983009808
        %v3436 = vunpack.c.0.s8 %v3435
        %v3437 = vperm.slane %v3431, %v3436
        %v3439 = vunpack.c.l.s4 1983009808
        %v3440 = vunpack.c.0.s8 %v3439
        %v3441 = vperm.slane %v3433, %v3440
        %v3442 = vrot.slane %v3363, 4
        %v3443 = vsel %vm251, %v3442, %v3351
        %v3444 = vrot.slane %v3351, 4
        %v3445 = vsel %vm251, %v3363, %v3444
        %v3447 = vunpack.c.l.s4 1983009808
        %v3448 = vunpack.c.0.s8 %v3447
        %v3449 = vperm.slane %v3443, %v3448
        %v3451 = vunpack.c.l.s4 1983009808
        %v3452 = vunpack.c.0.s8 %v3451
        %v3453 = vperm.slane %v3445, %v3452
        %v3454 = vrot.slane %v3369, 4
        %v3455 = vsel %vm251, %v3454, %v3357
        %v3456 = vrot.slane %v3357, 4
        %v3457 = vsel %vm251, %v3369, %v3456
        %v3459 = vunpack.c.l.s4 1983009808
        %v3460 = vunpack.c.0.s8 %v3459
        %v3461 = vperm.slane %v3455, %v3460
        %v3463 = vunpack.c.l.s4 1983009808
        %v3464 = vunpack.c.0.s8 %v3463
        %v3465 = vperm.slane %v3457, %v3464
        %v3466 = vrot.slane %v3437, 4
        %v3467 = vsel %vm251, %v3466, %v3425
        %v3468 = vrot.slane %v3425, 4
        %v3469 = vsel %vm251, %v3437, %v3468
        %v3471 = vunpack.c.l.s4 1934713408
        %v3472 = vunpack.c.0.s8 %v3471
        %v3473 = vperm.slane %v3467, %v3472
        %v3475 = vunpack.c.l.s4 1934713408
        %v3476 = vunpack.c.0.s8 %v3475
        %v3477 = vperm.slane %v3469, %v3476
        %v3478 = vrot.slane %v3441, 4
        %v3479 = vsel %vm251, %v3478, %v3429
        %v3480 = vrot.slane %v3429, 4
        %v3481 = vsel %vm251, %v3441, %v3480
        %v3483 = vunpack.c.l.s4 1934713408
        %v3484 = vunpack.c.0.s8 %v3483
        %v3485 = vperm.slane %v3479, %v3484
        %v3487 = vunpack.c.l.s4 1934713408
        %v3488 = vunpack.c.0.s8 %v3487
        %v3489 = vperm.slane %v3481, %v3488
        %v3490 = vrot.slane %v3461, 4
        %v3491 = vsel %vm251, %v3490, %v3449
        %v3492 = vrot.slane %v3449, 4
        %v3493 = vsel %vm251, %v3461, %v3492
        %v3495 = vunpack.c.l.s4 1934713408
        %v3496 = vunpack.c.0.s8 %v3495
        %v3497 = vperm.slane %v3491, %v3496
        %v3499 = vunpack.c.l.s4 1934713408
        %v3500 = vunpack.c.0.s8 %v3499
        %v3501 = vperm.slane %v3493, %v3500
        %v3502 = vrot.slane %v3465, 4
        %v3503 = vsel %vm251, %v3502, %v3453
        %v3504 = vrot.slane %v3453, 4
        %v3505 = vsel %vm251, %v3465, %v3504
        %v3507 = vunpack.c.l.s4 1934713408
        %v3508 = vunpack.c.0.s8 %v3507
        %v3509 = vperm.slane %v3503, %v3508
        %v3511 = vunpack.c.l.s4 1934713408
        %v3512 = vunpack.c.0.s8 %v3511
        %v3513 = vperm.slane %v3505, %v3512
        %v3514 = vrot.slane %v3497, 4
        %v3515 = vsel %vm251, %v3514, %v3473
        %v3516 = vrot.slane %v3473, 4
        %v3517 = vsel %vm251, %v3497, %v3516
        %v3518 = vrot.slane %v3501, 4
        %v3519 = vsel %vm251, %v3518, %v3477
        %v3520 = vrot.slane %v3477, 4
        %v3521 = vsel %vm251, %v3501, %v3520
        %v3522 = vrot.slane %v3509, 4
        %v3523 = vsel %vm251, %v3522, %v3485
        %v3524 = vrot.slane %v3485, 4
        %v3525 = vsel %vm251, %v3509, %v3524
        %v3526 = vrot.slane %v3513, 4
        %v3527 = vsel %vm251, %v3526, %v3489
        %v3528 = vrot.slane %v3489, 4
        %v3529 = vsel %vm251, %v3513, %v3528
        %v3530 = vrot.slane %v3383, 4
        %v3531 = vsel %vm251, %v3530, %v3327
        %v3532 = vrot.slane %v3327, 4
        %v3533 = vsel %vm251, %v3383, %v3532
        %v3535 = vunpack.c.l.s4 1983009808
        %v3536 = vunpack.c.0.s8 %v3535
        %v3537 = vperm.slane %v3531, %v3536
        %v3539 = vunpack.c.l.s4 1983009808
        %v3540 = vunpack.c.0.s8 %v3539
        %v3541 = vperm.slane %v3533, %v3540
        %v3542 = vrot.slane %v3389, 4
        %v3543 = vsel %vm251, %v3542, %v3377
        %v3544 = vrot.slane %v3377, 4
        %v3545 = vsel %vm251, %v3389, %v3544
        %v3547 = vunpack.c.l.s4 1983009808
        %v3548 = vunpack.c.0.s8 %v3547
        %v3549 = vperm.slane %v3543, %v3548
        %v3551 = vunpack.c.l.s4 1983009808
        %v3552 = vunpack.c.0.s8 %v3551
        %v3553 = vperm.slane %v3545, %v3552
        %v3554 = vrot.slane %v3407, 4
        %v3555 = vsel %vm251, %v3554, %v3395
        %v3556 = vrot.slane %v3395, 4
        %v3557 = vsel %vm251, %v3407, %v3556
        %v3559 = vunpack.c.l.s4 1983009808
        %v3560 = vunpack.c.0.s8 %v3559
        %v3561 = vperm.slane %v3555, %v3560
        %v3563 = vunpack.c.l.s4 1983009808
        %v3564 = vunpack.c.0.s8 %v3563
        %v3565 = vperm.slane %v3557, %v3564
        %v3566 = vrot.slane %v3413, 4
        %v3567 = vsel %vm251, %v3566, %v3401
        %v3568 = vrot.slane %v3401, 4
        %v3569 = vsel %vm251, %v3413, %v3568
        %v3571 = vunpack.c.l.s4 1983009808
        %v3572 = vunpack.c.0.s8 %v3571
        %v3573 = vperm.slane %v3567, %v3572
        %v3575 = vunpack.c.l.s4 1983009808
        %v3576 = vunpack.c.0.s8 %v3575
        %v3577 = vperm.slane %v3569, %v3576
        %v3578 = vrot.slane %v3549, 4
        %v3579 = vsel %vm251, %v3578, %v3537
        %v3580 = vrot.slane %v3537, 4
        %v3581 = vsel %vm251, %v3549, %v3580
        %v3583 = vunpack.c.l.s4 1934713408
        %v3584 = vunpack.c.0.s8 %v3583
        %v3585 = vperm.slane %v3579, %v3584
        %v3587 = vunpack.c.l.s4 1934713408
        %v3588 = vunpack.c.0.s8 %v3587
        %v3589 = vperm.slane %v3581, %v3588
        %v3590 = vrot.slane %v3553, 4
        %v3591 = vsel %vm251, %v3590, %v3541
        %v3592 = vrot.slane %v3541, 4
        %v3593 = vsel %vm251, %v3553, %v3592
        %v3595 = vunpack.c.l.s4 1934713408
        %v3596 = vunpack.c.0.s8 %v3595
        %v3597 = vperm.slane %v3591, %v3596
        %v3599 = vunpack.c.l.s4 1934713408
        %v3600 = vunpack.c.0.s8 %v3599
        %v3601 = vperm.slane %v3593, %v3600
        %v3602 = vrot.slane %v3573, 4
        %v3603 = vsel %vm251, %v3602, %v3561
        %v3604 = vrot.slane %v3561, 4
        %v3605 = vsel %vm251, %v3573, %v3604
        %v3607 = vunpack.c.l.s4 1934713408
        %v3608 = vunpack.c.0.s8 %v3607
        %v3609 = vperm.slane %v3603, %v3608
        %v3611 = vunpack.c.l.s4 1934713408
        %v3612 = vunpack.c.0.s8 %v3611
        %v3613 = vperm.slane %v3605, %v3612
        %v3614 = vrot.slane %v3577, 4
        %v3615 = vsel %vm251, %v3614, %v3565
        %v3616 = vrot.slane %v3565, 4
        %v3617 = vsel %vm251, %v3577, %v3616
        %v3619 = vunpack.c.l.s4 1934713408
        %v3620 = vunpack.c.0.s8 %v3619
        %v3621 = vperm.slane %v3615, %v3620
        %v3623 = vunpack.c.l.s4 1934713408
        %v3624 = vunpack.c.0.s8 %v3623
        %v3625 = vperm.slane %v3617, %v3624
        %v3626 = vrot.slane %v3609, 4
        %v3627 = vsel %vm251, %v3626, %v3585
        %v3628 = vrot.slane %v3585, 4
        %v3629 = vsel %vm251, %v3609, %v3628
        %v3630 = vrot.slane %v3613, 4
        %v3631 = vsel %vm251, %v3630, %v3589
        %v3632 = vrot.slane %v3589, 4
        %v3633 = vsel %vm251, %v3613, %v3632
        %v3634 = vrot.slane %v3621, 4
        %v3635 = vsel %vm251, %v3634, %v3597
        %v3636 = vrot.slane %v3597, 4
        %v3637 = vsel %vm251, %v3621, %v3636
        %v3638 = vrot.slane %v3625, 4
        %v3639 = vsel %vm251, %v3638, %v3601
        %v3640 = vrot.slane %v3601, 4
        %v3641 = vsel %vm251, %v3625, %v3640
        %v3642 = vrot.slane %v3341, 4
        %v3643 = vsel %vm251, %v3642, %v3328
        %v3644 = vrot.slane %v3328, 4
        %v3645 = vsel %vm251, %v3341, %v3644
        %v3647 = vunpack.c.l.s4 1983009808
        %v3648 = vunpack.c.0.s8 %v3647
        %v3649 = vperm.slane %v3643, %v3648
        %v3651 = vunpack.c.l.s4 1983009808
        %v3652 = vunpack.c.0.s8 %v3651
        %v3653 = vperm.slane %v3645, %v3652
        %v3654 = vrot.slane %v3347, 4
        %v3655 = vsel %vm251, %v3654, %v3335
        %v3656 = vrot.slane %v3335, 4
        %v3657 = vsel %vm251, %v3347, %v3656
        %v3659 = vunpack.c.l.s4 1983009808
        %v3660 = vunpack.c.0.s8 %v3659
        %v3661 = vperm.slane %v3655, %v3660
        %v3663 = vunpack.c.l.s4 1983009808
        %v3664 = vunpack.c.0.s8 %v3663
        %v3665 = vperm.slane %v3657, %v3664
        %v3666 = vrot.slane %v3365, 4
        %v3667 = vsel %vm251, %v3666, %v3353
        %v3668 = vrot.slane %v3353, 4
        %v3669 = vsel %vm251, %v3365, %v3668
        %v3671 = vunpack.c.l.s4 1983009808
        %v3672 = vunpack.c.0.s8 %v3671
        %v3673 = vperm.slane %v3667, %v3672
        %v3675 = vunpack.c.l.s4 1983009808
        %v3676 = vunpack.c.0.s8 %v3675
        %v3677 = vperm.slane %v3669, %v3676
        %v3678 = vrot.slane %v3371, 4
        %v3679 = vsel %vm251, %v3678, %v3359
        %v3680 = vrot.slane %v3359, 4
        %v3681 = vsel %vm251, %v3371, %v3680
        %v3683 = vunpack.c.l.s4 1983009808
        %v3684 = vunpack.c.0.s8 %v3683
        %v3685 = vperm.slane %v3679, %v3684
        %v3687 = vunpack.c.l.s4 1983009808
        %v3688 = vunpack.c.0.s8 %v3687
        %v3689 = vperm.slane %v3681, %v3688
        %v3690 = vrot.slane %v3661, 4
        %v3691 = vsel %vm251, %v3690, %v3649
        %v3692 = vrot.slane %v3649, 4
        %v3693 = vsel %vm251, %v3661, %v3692
        %v3695 = vunpack.c.l.s4 1934713408
        %v3696 = vunpack.c.0.s8 %v3695
        %v3697 = vperm.slane %v3691, %v3696
        %v3699 = vunpack.c.l.s4 1934713408
        %v3700 = vunpack.c.0.s8 %v3699
        %v3701 = vperm.slane %v3693, %v3700
        %v3702 = vrot.slane %v3665, 4
        %v3703 = vsel %vm251, %v3702, %v3653
        %v3704 = vrot.slane %v3653, 4
        %v3705 = vsel %vm251, %v3665, %v3704
        %v3707 = vunpack.c.l.s4 1934713408
        %v3708 = vunpack.c.0.s8 %v3707
        %v3709 = vperm.slane %v3703, %v3708
        %v3711 = vunpack.c.l.s4 1934713408
        %v3712 = vunpack.c.0.s8 %v3711
        %v3713 = vperm.slane %v3705, %v3712
        %v3714 = vrot.slane %v3685, 4
        %v3715 = vsel %vm251, %v3714, %v3673
        %v3716 = vrot.slane %v3673, 4
        %v3717 = vsel %vm251, %v3685, %v3716
        %v3719 = vunpack.c.l.s4 1934713408
        %v3720 = vunpack.c.0.s8 %v3719
        %v3721 = vperm.slane %v3715, %v3720
        %v3723 = vunpack.c.l.s4 1934713408
        %v3724 = vunpack.c.0.s8 %v3723
        %v3725 = vperm.slane %v3717, %v3724
        %v3726 = vrot.slane %v3689, 4
        %v3727 = vsel %vm251, %v3726, %v3677
        %v3728 = vrot.slane %v3677, 4
        %v3729 = vsel %vm251, %v3689, %v3728
        %v3731 = vunpack.c.l.s4 1934713408
        %v3732 = vunpack.c.0.s8 %v3731
        %v3733 = vperm.slane %v3727, %v3732
        %v3735 = vunpack.c.l.s4 1934713408
        %v3736 = vunpack.c.0.s8 %v3735
        %v3737 = vperm.slane %v3729, %v3736
        %v3738 = vrot.slane %v3721, 4
        %v3739 = vsel %vm251, %v3738, %v3697
        %v3740 = vrot.slane %v3697, 4
        %v3741 = vsel %vm251, %v3721, %v3740
        %v3742 = vrot.slane %v3725, 4
        %v3743 = vsel %vm251, %v3742, %v3701
        %v3744 = vrot.slane %v3701, 4
        %v3745 = vsel %vm251, %v3725, %v3744
        %v3746 = vrot.slane %v3733, 4
        %v3747 = vsel %vm251, %v3746, %v3709
        %v3748 = vrot.slane %v3709, 4
        %v3749 = vsel %vm251, %v3733, %v3748
        %v3750 = vrot.slane %v3737, 4
        %v3751 = vsel %vm251, %v3750, %v3713
        %v3752 = vrot.slane %v3713, 4
        %v3753 = vsel %vm251, %v3737, %v3752
        %v3754 = vrot.slane %v3385, 4
        %v3755 = vsel %vm251, %v3754, %v3329
        %v3756 = vrot.slane %v3329, 4
        %v3757 = vsel %vm251, %v3385, %v3756
        %v3759 = vunpack.c.l.s4 1983009808
        %v3760 = vunpack.c.0.s8 %v3759
        %v3761 = vperm.slane %v3755, %v3760
        %v3763 = vunpack.c.l.s4 1983009808
        %v3764 = vunpack.c.0.s8 %v3763
        %v3765 = vperm.slane %v3757, %v3764
        %v3766 = vrot.slane %v3391, 4
        %v3767 = vsel %vm251, %v3766, %v3379
        %v3768 = vrot.slane %v3379, 4
        %v3769 = vsel %vm251, %v3391, %v3768
        %v3771 = vunpack.c.l.s4 1983009808
        %v3772 = vunpack.c.0.s8 %v3771
        %v3773 = vperm.slane %v3767, %v3772
        %v3775 = vunpack.c.l.s4 1983009808
        %v3776 = vunpack.c.0.s8 %v3775
        %v3777 = vperm.slane %v3769, %v3776
        %v3778 = vrot.slane %v3409, 4
        %v3779 = vsel %vm251, %v3778, %v3397
        %v3780 = vrot.slane %v3397, 4
        %v3781 = vsel %vm251, %v3409, %v3780
        %v3783 = vunpack.c.l.s4 1983009808
        %v3784 = vunpack.c.0.s8 %v3783
        %v3785 = vperm.slane %v3779, %v3784
        %v3787 = vunpack.c.l.s4 1983009808
        %v3788 = vunpack.c.0.s8 %v3787
        %v3789 = vperm.slane %v3781, %v3788
        %v3790 = vrot.slane %v3415, 4
        %v3791 = vsel %vm251, %v3790, %v3403
        %v3792 = vrot.slane %v3403, 4
        %v3793 = vsel %vm251, %v3415, %v3792
        %v3795 = vunpack.c.l.s4 1983009808
        %v3796 = vunpack.c.0.s8 %v3795
        %v3797 = vperm.slane %v3791, %v3796
        %v3799 = vunpack.c.l.s4 1983009808
        %v3800 = vunpack.c.0.s8 %v3799
        %v3801 = vperm.slane %v3793, %v3800
        %v3802 = vrot.slane %v3773, 4
        %v3803 = vsel %vm251, %v3802, %v3761
        %v3804 = vrot.slane %v3761, 4
        %v3805 = vsel %vm251, %v3773, %v3804
        %v3807 = vunpack.c.l.s4 1934713408
        %v3808 = vunpack.c.0.s8 %v3807
        %v3809 = vperm.slane %v3803, %v3808
        %v3811 = vunpack.c.l.s4 1934713408
        %v3812 = vunpack.c.0.s8 %v3811
        %v3813 = vperm.slane %v3805, %v3812
        %v3814 = vrot.slane %v3777, 4
        %v3815 = vsel %vm251, %v3814, %v3765
        %v3816 = vrot.slane %v3765, 4
        %v3817 = vsel %vm251, %v3777, %v3816
        %v3819 = vunpack.c.l.s4 1934713408
        %v3820 = vunpack.c.0.s8 %v3819
        %v3821 = vperm.slane %v3815, %v3820
        %v3823 = vunpack.c.l.s4 1934713408
        %v3824 = vunpack.c.0.s8 %v3823
        %v3825 = vperm.slane %v3817, %v3824
        %v3826 = vrot.slane %v3797, 4
        %v3827 = vsel %vm251, %v3826, %v3785
        %v3828 = vrot.slane %v3785, 4
        %v3829 = vsel %vm251, %v3797, %v3828
        %v3831 = vunpack.c.l.s4 1934713408
        %v3832 = vunpack.c.0.s8 %v3831
        %v3833 = vperm.slane %v3827, %v3832
        %v3835 = vunpack.c.l.s4 1934713408
        %v3836 = vunpack.c.0.s8 %v3835
        %v3837 = vperm.slane %v3829, %v3836
        %v3838 = vrot.slane %v3801, 4
        %v3839 = vsel %vm251, %v3838, %v3789
        %v3840 = vrot.slane %v3789, 4
        %v3841 = vsel %vm251, %v3801, %v3840
        %v3843 = vunpack.c.l.s4 1934713408
        %v3844 = vunpack.c.0.s8 %v3843
        %v3845 = vperm.slane %v3839, %v3844
        %v3847 = vunpack.c.l.s4 1934713408
        %v3848 = vunpack.c.0.s8 %v3847
        %v3849 = vperm.slane %v3841, %v3848
        %v3850 = vrot.slane %v3833, 4
        %v3851 = vsel %vm251, %v3850, %v3809
        %v3852 = vrot.slane %v3809, 4
        %v3853 = vsel %vm251, %v3833, %v3852
        %v3854 = vrot.slane %v3837, 4
        %v3855 = vsel %vm251, %v3854, %v3813
        %v3856 = vrot.slane %v3813, 4
        %v3857 = vsel %vm251, %v3837, %v3856
        %v3858 = vrot.slane %v3845, 4
        %v3859 = vsel %vm251, %v3858, %v3821
        %v3860 = vrot.slane %v3821, 4
        %v3861 = vsel %vm251, %v3845, %v3860
        %v3862 = vrot.slane %v3849, 4
        %v3863 = vsel %vm251, %v3862, %v3825
        %v3864 = vrot.slane %v3825, 4
        %v3865 = vsel %vm251, %v3849, %v3864
        %v3866 = vrot.slane %v3519, 4
        %v3867 = vsel %vm251, %v3866, %v3515
        %v3868 = vrot.slane %v3515, 4
        %v3869 = vsel %vm251, %v3519, %v3868
        %v3871 = vunpack.c.l.s4 1983009808
        %v3872 = vunpack.c.0.s8 %v3871
        %v3873 = vperm.slane %v3867, %v3872
        %v3875 = vunpack.c.l.s4 1983009808
        %v3876 = vunpack.c.0.s8 %v3875
        %v3877 = vperm.slane %v3869, %v3876
        %v3878 = vrot.slane %v3521, 4
        %v3879 = vsel %vm251, %v3878, %v3517
        %v3880 = vrot.slane %v3517, 4
        %v3881 = vsel %vm251, %v3521, %v3880
        %v3883 = vunpack.c.l.s4 1983009808
        %v3884 = vunpack.c.0.s8 %v3883
        %v3885 = vperm.slane %v3879, %v3884
        %v3887 = vunpack.c.l.s4 1983009808
        %v3888 = vunpack.c.0.s8 %v3887
        %v3889 = vperm.slane %v3881, %v3888
        %v3890 = vrot.slane %v3527, 4
        %v3891 = vsel %vm251, %v3890, %v3523
        %v3892 = vrot.slane %v3523, 4
        %v3893 = vsel %vm251, %v3527, %v3892
        %v3895 = vunpack.c.l.s4 1983009808
        %v3896 = vunpack.c.0.s8 %v3895
        %v3897 = vperm.slane %v3891, %v3896
        %v3899 = vunpack.c.l.s4 1983009808
        %v3900 = vunpack.c.0.s8 %v3899
        %v3901 = vperm.slane %v3893, %v3900
        %v3902 = vrot.slane %v3529, 4
        %v3903 = vsel %vm251, %v3902, %v3525
        %v3904 = vrot.slane %v3525, 4
        %v3905 = vsel %vm251, %v3529, %v3904
        %v3907 = vunpack.c.l.s4 1983009808
        %v3908 = vunpack.c.0.s8 %v3907
        %v3909 = vperm.slane %v3903, %v3908
        %v3911 = vunpack.c.l.s4 1983009808
        %v3912 = vunpack.c.0.s8 %v3911
        %v3913 = vperm.slane %v3905, %v3912
        %v3914 = vrot.slane %v3885, 4
        %v3915 = vsel %vm251, %v3914, %v3873
        %v3916 = vrot.slane %v3873, 4
        %v3917 = vsel %vm251, %v3885, %v3916
        %v3919 = vunpack.c.l.s4 1934713408
        %v3920 = vunpack.c.0.s8 %v3919
        %v3921 = vperm.slane %v3915, %v3920
        %v3923 = vunpack.c.l.s4 1934713408
        %v3924 = vunpack.c.0.s8 %v3923
        %v3925 = vperm.slane %v3917, %v3924
        %v3926 = vrot.slane %v3889, 4
        %v3927 = vsel %vm251, %v3926, %v3877
        %v3928 = vrot.slane %v3877, 4
        %v3929 = vsel %vm251, %v3889, %v3928
        %v3931 = vunpack.c.l.s4 1934713408
        %v3932 = vunpack.c.0.s8 %v3931
        %v3933 = vperm.slane %v3927, %v3932
        %v3935 = vunpack.c.l.s4 1934713408
        %v3936 = vunpack.c.0.s8 %v3935
        %v3937 = vperm.slane %v3929, %v3936
        %v3938 = vrot.slane %v3909, 4
        %v3939 = vsel %vm251, %v3938, %v3897
        %v3940 = vrot.slane %v3897, 4
        %v3941 = vsel %vm251, %v3909, %v3940
        %v3943 = vunpack.c.l.s4 1934713408
        %v3944 = vunpack.c.0.s8 %v3943
        %v3945 = vperm.slane %v3939, %v3944
        %v3947 = vunpack.c.l.s4 1934713408
        %v3948 = vunpack.c.0.s8 %v3947
        %v3949 = vperm.slane %v3941, %v3948
        %v3950 = vrot.slane %v3913, 4
        %v3951 = vsel %vm251, %v3950, %v3901
        %v3952 = vrot.slane %v3901, 4
        %v3953 = vsel %vm251, %v3913, %v3952
        %v3955 = vunpack.c.l.s4 1934713408
        %v3956 = vunpack.c.0.s8 %v3955
        %v3957 = vperm.slane %v3951, %v3956
        %v3959 = vunpack.c.l.s4 1934713408
        %v3960 = vunpack.c.0.s8 %v3959
        %v3961 = vperm.slane %v3953, %v3960
        %v3962 = vrot.slane %v3945, 4
        %v3963 = vsel %vm251, %v3962, %v3921
        %v3964 = vrot.slane %v3921, 4
        %v3965 = vsel %vm251, %v3945, %v3964
        %v3966 = vrot.slane %v3949, 4
        %v3967 = vsel %vm251, %v3966, %v3925
        %v3968 = vrot.slane %v3925, 4
        %v3969 = vsel %vm251, %v3949, %v3968
        %v3970 = vrot.slane %v3957, 4
        %v3971 = vsel %vm251, %v3970, %v3933
        %v3972 = vrot.slane %v3933, 4
        %v3973 = vsel %vm251, %v3957, %v3972
        %v3974 = vrot.slane %v3961, 4
        %v3975 = vsel %vm251, %v3974, %v3937
        %v3976 = vrot.slane %v3937, 4
        %v3977 = vsel %vm251, %v3961, %v3976
        %v3978 = vrot.slane %v3743, 4
        %v3979 = vsel %vm251, %v3978, %v3739
        %v3980 = vrot.slane %v3739, 4
        %v3981 = vsel %vm251, %v3743, %v3980
        %v3983 = vunpack.c.l.s4 1983009808
        %v3984 = vunpack.c.0.s8 %v3983
        %v3985 = vperm.slane %v3979, %v3984
        %v3987 = vunpack.c.l.s4 1983009808
        %v3988 = vunpack.c.0.s8 %v3987
        %v3989 = vperm.slane %v3981, %v3988
        %v3990 = vrot.slane %v3745, 4
        %v3991 = vsel %vm251, %v3990, %v3741
        %v3992 = vrot.slane %v3741, 4
        %v3993 = vsel %vm251, %v3745, %v3992
        %v3995 = vunpack.c.l.s4 1983009808
        %v3996 = vunpack.c.0.s8 %v3995
        %v3997 = vperm.slane %v3991, %v3996
        %v3999 = vunpack.c.l.s4 1983009808
        %v4000 = vunpack.c.0.s8 %v3999
        %v4001 = vperm.slane %v3993, %v4000
        %v4002 = vrot.slane %v3751, 4
        %v4003 = vsel %vm251, %v4002, %v3747
        %v4004 = vrot.slane %v3747, 4
        %v4005 = vsel %vm251, %v3751, %v4004
        %v4007 = vunpack.c.l.s4 1983009808
        %v4008 = vunpack.c.0.s8 %v4007
        %v4009 = vperm.slane %v4003, %v4008
        %v4011 = vunpack.c.l.s4 1983009808
        %v4012 = vunpack.c.0.s8 %v4011
        %v4013 = vperm.slane %v4005, %v4012
        %v4014 = vrot.slane %v3753, 4
        %v4015 = vsel %vm251, %v4014, %v3749
        %v4016 = vrot.slane %v3749, 4
        %v4017 = vsel %vm251, %v3753, %v4016
        %v4019 = vunpack.c.l.s4 1983009808
        %v4020 = vunpack.c.0.s8 %v4019
        %v4021 = vperm.slane %v4015, %v4020
        %v4023 = vunpack.c.l.s4 1983009808
        %v4024 = vunpack.c.0.s8 %v4023
        %v4025 = vperm.slane %v4017, %v4024
        %v4026 = vrot.slane %v3997, 4
        %v4027 = vsel %vm251, %v4026, %v3985
        %v4028 = vrot.slane %v3985, 4
        %v4029 = vsel %vm251, %v3997, %v4028
        %v4031 = vunpack.c.l.s4 1934713408
        %v4032 = vunpack.c.0.s8 %v4031
        %v4033 = vperm.slane %v4027, %v4032
        %v4035 = vunpack.c.l.s4 1934713408
        %v4036 = vunpack.c.0.s8 %v4035
        %v4037 = vperm.slane %v4029, %v4036
        %v4038 = vrot.slane %v4001, 4
        %v4039 = vsel %vm251, %v4038, %v3989
        %v4040 = vrot.slane %v3989, 4
        %v4041 = vsel %vm251, %v4001, %v4040
        %v4043 = vunpack.c.l.s4 1934713408
        %v4044 = vunpack.c.0.s8 %v4043
        %v4045 = vperm.slane %v4039, %v4044
        %v4047 = vunpack.c.l.s4 1934713408
        %v4048 = vunpack.c.0.s8 %v4047
        %v4049 = vperm.slane %v4041, %v4048
        %v4050 = vrot.slane %v4021, 4
        %v4051 = vsel %vm251, %v4050, %v4009
        %v4052 = vrot.slane %v4009, 4
        %v4053 = vsel %vm251, %v4021, %v4052
        %v4055 = vunpack.c.l.s4 1934713408
        %v4056 = vunpack.c.0.s8 %v4055
        %v4057 = vperm.slane %v4051, %v4056
        %v4059 = vunpack.c.l.s4 1934713408
        %v4060 = vunpack.c.0.s8 %v4059
        %v4061 = vperm.slane %v4053, %v4060
        %v4062 = vrot.slane %v4025, 4
        %v4063 = vsel %vm251, %v4062, %v4013
        %v4064 = vrot.slane %v4013, 4
        %v4065 = vsel %vm251, %v4025, %v4064
        %v4067 = vunpack.c.l.s4 1934713408
        %v4068 = vunpack.c.0.s8 %v4067
        %v4069 = vperm.slane %v4063, %v4068
        %v4071 = vunpack.c.l.s4 1934713408
        %v4072 = vunpack.c.0.s8 %v4071
        %v4073 = vperm.slane %v4065, %v4072
        %v4074 = vrot.slane %v4057, 4
        %v4075 = vsel %vm251, %v4074, %v4033
        %v4076 = vrot.slane %v4033, 4
        %v4077 = vsel %vm251, %v4057, %v4076
        %v4078 = vrot.slane %v4061, 4
        %v4079 = vsel %vm251, %v4078, %v4037
        %v4080 = vrot.slane %v4037, 4
        %v4081 = vsel %vm251, %v4061, %v4080
        %v4082 = vrot.slane %v4069, 4
        %v4083 = vsel %vm251, %v4082, %v4045
        %v4084 = vrot.slane %v4045, 4
        %v4085 = vsel %vm251, %v4069, %v4084
        %v4086 = vrot.slane %v4073, 4
        %v4087 = vsel %vm251, %v4086, %v4049
        %v4088 = vrot.slane %v4049, 4
        %v4089 = vsel %vm251, %v4073, %v4088
        %v4090 = vrot.slane %v3631, 4
        %v4091 = vsel %vm251, %v4090, %v3627
        %v4092 = vrot.slane %v3627, 4
        %v4093 = vsel %vm251, %v3631, %v4092
        %v4095 = vunpack.c.l.s4 1983009808
        %v4096 = vunpack.c.0.s8 %v4095
        %v4097 = vperm.slane %v4091, %v4096
        %v4099 = vunpack.c.l.s4 1983009808
        %v4100 = vunpack.c.0.s8 %v4099
        %v4101 = vperm.slane %v4093, %v4100
        %v4102 = vrot.slane %v3633, 4
        %v4103 = vsel %vm251, %v4102, %v3629
        %v4104 = vrot.slane %v3629, 4
        %v4105 = vsel %vm251, %v3633, %v4104
        %v4107 = vunpack.c.l.s4 1983009808
        %v4108 = vunpack.c.0.s8 %v4107
        %v4109 = vperm.slane %v4103, %v4108
        %v4111 = vunpack.c.l.s4 1983009808
        %v4112 = vunpack.c.0.s8 %v4111
        %v4113 = vperm.slane %v4105, %v4112
        %v4114 = vrot.slane %v3639, 4
        %v4115 = vsel %vm251, %v4114, %v3635
        %v4116 = vrot.slane %v3635, 4
        %v4117 = vsel %vm251, %v3639, %v4116
        %v4119 = vunpack.c.l.s4 1983009808
        %v4120 = vunpack.c.0.s8 %v4119
        %v4121 = vperm.slane %v4115, %v4120
        %v4123 = vunpack.c.l.s4 1983009808
        %v4124 = vunpack.c.0.s8 %v4123
        %v4125 = vperm.slane %v4117, %v4124
        %v4126 = vrot.slane %v3641, 4
        %v4127 = vsel %vm251, %v4126, %v3637
        %v4128 = vrot.slane %v3637, 4
        %v4129 = vsel %vm251, %v3641, %v4128
        %v4131 = vunpack.c.l.s4 1983009808
        %v4132 = vunpack.c.0.s8 %v4131
        %v4133 = vperm.slane %v4127, %v4132
        %v4135 = vunpack.c.l.s4 1983009808
        %v4136 = vunpack.c.0.s8 %v4135
        %v4137 = vperm.slane %v4129, %v4136
        %v4138 = vrot.slane %v4109, 4
        %v4139 = vsel %vm251, %v4138, %v4097
        %v4140 = vrot.slane %v4097, 4
        %v4141 = vsel %vm251, %v4109, %v4140
        %v4143 = vunpack.c.l.s4 1934713408
        %v4144 = vunpack.c.0.s8 %v4143
        %v4145 = vperm.slane %v4139, %v4144
        %v4147 = vunpack.c.l.s4 1934713408
        %v4148 = vunpack.c.0.s8 %v4147
        %v4149 = vperm.slane %v4141, %v4148
        %v4150 = vrot.slane %v4113, 4
        %v4151 = vsel %vm251, %v4150, %v4101
        %v4152 = vrot.slane %v4101, 4
        %v4153 = vsel %vm251, %v4113, %v4152
        %v4155 = vunpack.c.l.s4 1934713408
        %v4156 = vunpack.c.0.s8 %v4155
        %v4157 = vperm.slane %v4151, %v4156
        %v4159 = vunpack.c.l.s4 1934713408
        %v4160 = vunpack.c.0.s8 %v4159
        %v4161 = vperm.slane %v4153, %v4160
        %v4162 = vrot.slane %v4133, 4
        %v4163 = vsel %vm251, %v4162, %v4121
        %v4164 = vrot.slane %v4121, 4
        %v4165 = vsel %vm251, %v4133, %v4164
        %v4167 = vunpack.c.l.s4 1934713408
        %v4168 = vunpack.c.0.s8 %v4167
        %v4169 = vperm.slane %v4163, %v4168
        %v4171 = vunpack.c.l.s4 1934713408
        %v4172 = vunpack.c.0.s8 %v4171
        %v4173 = vperm.slane %v4165, %v4172
        %v4174 = vrot.slane %v4137, 4
        %v4175 = vsel %vm251, %v4174, %v4125
        %v4176 = vrot.slane %v4125, 4
        %v4177 = vsel %vm251, %v4137, %v4176
        %v4179 = vunpack.c.l.s4 1934713408
        %v4180 = vunpack.c.0.s8 %v4179
        %v4181 = vperm.slane %v4175, %v4180
        %v4183 = vunpack.c.l.s4 1934713408
        %v4184 = vunpack.c.0.s8 %v4183
        %v4185 = vperm.slane %v4177, %v4184
        %v4186 = vrot.slane %v4169, 4
        %v4187 = vsel %vm251, %v4186, %v4145
        %v4188 = vrot.slane %v4145, 4
        %v4189 = vsel %vm251, %v4169, %v4188
        %v4190 = vrot.slane %v4173, 4
        %v4191 = vsel %vm251, %v4190, %v4149
        %v4192 = vrot.slane %v4149, 4
        %v4193 = vsel %vm251, %v4173, %v4192
        %v4194 = vrot.slane %v4181, 4
        %v4195 = vsel %vm251, %v4194, %v4157
        %v4196 = vrot.slane %v4157, 4
        %v4197 = vsel %vm251, %v4181, %v4196
        %v4198 = vrot.slane %v4185, 4
        %v4199 = vsel %vm251, %v4198, %v4161
        %v4200 = vrot.slane %v4161, 4
        %v4201 = vsel %vm251, %v4185, %v4200
        %v4202 = vrot.slane %v3855, 4
        %v4203 = vsel %vm251, %v4202, %v3851
        %v4204 = vrot.slane %v3851, 4
        %v4205 = vsel %vm251, %v3855, %v4204
        %v4207 = vunpack.c.l.s4 1983009808
        %v4208 = vunpack.c.0.s8 %v4207
        %v4209 = vperm.slane %v4203, %v4208
        %v4211 = vunpack.c.l.s4 1983009808
        %v4212 = vunpack.c.0.s8 %v4211
        %v4213 = vperm.slane %v4205, %v4212
        %v4214 = vrot.slane %v3857, 4
        %v4215 = vsel %vm251, %v4214, %v3853
        %v4216 = vrot.slane %v3853, 4
        %v4217 = vsel %vm251, %v3857, %v4216
        %v4219 = vunpack.c.l.s4 1983009808
        %v4220 = vunpack.c.0.s8 %v4219
        %v4221 = vperm.slane %v4215, %v4220
        %v4223 = vunpack.c.l.s4 1983009808
        %v4224 = vunpack.c.0.s8 %v4223
        %v4225 = vperm.slane %v4217, %v4224
        %v4226 = vrot.slane %v3863, 4
        %v4227 = vsel %vm251, %v4226, %v3859
        %v4228 = vrot.slane %v3859, 4
        %v4229 = vsel %vm251, %v3863, %v4228
        %v4231 = vunpack.c.l.s4 1983009808
        %v4232 = vunpack.c.0.s8 %v4231
        %v4233 = vperm.slane %v4227, %v4232
        %v4235 = vunpack.c.l.s4 1983009808
        %v4236 = vunpack.c.0.s8 %v4235
        %v4237 = vperm.slane %v4229, %v4236
        %v4238 = vrot.slane %v3865, 4
        %v4239 = vsel %vm251, %v4238, %v3861
        %v4240 = vrot.slane %v3861, 4
        %v4241 = vsel %vm251, %v3865, %v4240
        %v4243 = vunpack.c.l.s4 1983009808
        %v4244 = vunpack.c.0.s8 %v4243
        %v4245 = vperm.slane %v4239, %v4244
        %v4247 = vunpack.c.l.s4 1983009808
        %v4248 = vunpack.c.0.s8 %v4247
        %v4249 = vperm.slane %v4241, %v4248
        %v4250 = vrot.slane %v4221, 4
        %v4251 = vsel %vm251, %v4250, %v4209
        %v4252 = vrot.slane %v4209, 4
        %v4253 = vsel %vm251, %v4221, %v4252
        %v4255 = vunpack.c.l.s4 1934713408
        %v4256 = vunpack.c.0.s8 %v4255
        %v4257 = vperm.slane %v4251, %v4256
        %v4259 = vunpack.c.l.s4 1934713408
        %v4260 = vunpack.c.0.s8 %v4259
        %v4261 = vperm.slane %v4253, %v4260
        %v4262 = vrot.slane %v4225, 4
        %v4263 = vsel %vm251, %v4262, %v4213
        %v4264 = vrot.slane %v4213, 4
        %v4265 = vsel %vm251, %v4225, %v4264
        %v4267 = vunpack.c.l.s4 1934713408
        %v4268 = vunpack.c.0.s8 %v4267
        %v4269 = vperm.slane %v4263, %v4268
        %v4271 = vunpack.c.l.s4 1934713408
        %v4272 = vunpack.c.0.s8 %v4271
        %v4273 = vperm.slane %v4265, %v4272
        %v4274 = vrot.slane %v4245, 4
        %v4275 = vsel %vm251, %v4274, %v4233
        %v4276 = vrot.slane %v4233, 4
        %v4277 = vsel %vm251, %v4245, %v4276
        %v4279 = vunpack.c.l.s4 1934713408
        %v4280 = vunpack.c.0.s8 %v4279
        %v4281 = vperm.slane %v4275, %v4280
        %v4283 = vunpack.c.l.s4 1934713408
        %v4284 = vunpack.c.0.s8 %v4283
        %v4285 = vperm.slane %v4277, %v4284
        %v4286 = vrot.slane %v4249, 4
        %v4287 = vsel %vm251, %v4286, %v4237
        %v4288 = vrot.slane %v4237, 4
        %v4289 = vsel %vm251, %v4249, %v4288
        %v4291 = vunpack.c.l.s4 1934713408
        %v4292 = vunpack.c.0.s8 %v4291
        %v4293 = vperm.slane %v4287, %v4292
        %v4295 = vunpack.c.l.s4 1934713408
        %v4296 = vunpack.c.0.s8 %v4295
        %v4297 = vperm.slane %v4289, %v4296
        %v4298 = vrot.slane %v4281, 4
        %v4299 = vsel %vm251, %v4298, %v4257
        %v4300 = vrot.slane %v4257, 4
        %v4301 = vsel %vm251, %v4281, %v4300
        %v4302 = vrot.slane %v4285, 4
        %v4303 = vsel %vm251, %v4302, %v4261
        %v4304 = vrot.slane %v4261, 4
        %v4305 = vsel %vm251, %v4285, %v4304
        %v4306 = vrot.slane %v4293, 4
        %v4307 = vsel %vm251, %v4306, %v4269
        %v4308 = vrot.slane %v4269, 4
        %v4309 = vsel %vm251, %v4293, %v4308
        %v4310 = vrot.slane %v4297, 4
        %v4311 = vsel %vm251, %v4310, %v4273
        %v4312 = vrot.slane %v4273, 4
        %v4313 = vsel %vm251, %v4297, %v4312
        %v4314 = vrot.slane %v3967, 4
        %v4315 = vsel %vm251, %v4314, %v3963
        %v4316 = vrot.slane %v3963, 4
        %v4317 = vsel %vm251, %v3967, %v4316
        %v4319 = vunpack.c.l.s4 1983009808
        %v4320 = vunpack.c.0.s8 %v4319
        %v4321 = vperm.slane %v4315, %v4320
        %v4323 = vunpack.c.l.s4 1983009808
        %v4324 = vunpack.c.0.s8 %v4323
        %v4325 = vperm.slane %v4317, %v4324
        %v4326 = vrot.slane %v3969, 4
        %v4327 = vsel %vm251, %v4326, %v3965
        %v4328 = vrot.slane %v3965, 4
        %v4329 = vsel %vm251, %v3969, %v4328
        %v4331 = vunpack.c.l.s4 1983009808
        %v4332 = vunpack.c.0.s8 %v4331
        %v4333 = vperm.slane %v4327, %v4332
        %v4335 = vunpack.c.l.s4 1983009808
        %v4336 = vunpack.c.0.s8 %v4335
        %v4337 = vperm.slane %v4329, %v4336
        %v4338 = vrot.slane %v3975, 4
        %v4339 = vsel %vm251, %v4338, %v3971
        %v4340 = vrot.slane %v3971, 4
        %v4341 = vsel %vm251, %v3975, %v4340
        %v4343 = vunpack.c.l.s4 1983009808
        %v4344 = vunpack.c.0.s8 %v4343
        %v4345 = vperm.slane %v4339, %v4344
        %v4347 = vunpack.c.l.s4 1983009808
        %v4348 = vunpack.c.0.s8 %v4347
        %v4349 = vperm.slane %v4341, %v4348
        %v4350 = vrot.slane %v3977, 4
        %v4351 = vsel %vm251, %v4350, %v3973
        %v4352 = vrot.slane %v3973, 4
        %v4353 = vsel %vm251, %v3977, %v4352
        %v4355 = vunpack.c.l.s4 1983009808
        %v4356 = vunpack.c.0.s8 %v4355
        %v4357 = vperm.slane %v4351, %v4356
        %v4359 = vunpack.c.l.s4 1983009808
        %v4360 = vunpack.c.0.s8 %v4359
        %v4361 = vperm.slane %v4353, %v4360
        %v4362 = vrot.slane %v4333, 4
        %v4363 = vsel %vm251, %v4362, %v4321
        %v4364 = vrot.slane %v4321, 4
        %v4365 = vsel %vm251, %v4333, %v4364
        %v4367 = vunpack.c.l.s4 1934713408
        %v4368 = vunpack.c.0.s8 %v4367
        %v4369 = vperm.slane %v4363, %v4368
        %v4371 = vunpack.c.l.s4 1934713408
        %v4372 = vunpack.c.0.s8 %v4371
        %v4373 = vperm.slane %v4365, %v4372
        %v4374 = vrot.slane %v4337, 4
        %v4375 = vsel %vm251, %v4374, %v4325
        %v4376 = vrot.slane %v4325, 4
        %v4377 = vsel %vm251, %v4337, %v4376
        %v4379 = vunpack.c.l.s4 1934713408
        %v4380 = vunpack.c.0.s8 %v4379
        %v4381 = vperm.slane %v4375, %v4380
        %v4383 = vunpack.c.l.s4 1934713408
        %v4384 = vunpack.c.0.s8 %v4383
        %v4385 = vperm.slane %v4377, %v4384
        %v4386 = vrot.slane %v4357, 4
        %v4387 = vsel %vm251, %v4386, %v4345
        %v4388 = vrot.slane %v4345, 4
        %v4389 = vsel %vm251, %v4357, %v4388
        %v4391 = vunpack.c.l.s4 1934713408
        %v4392 = vunpack.c.0.s8 %v4391
        %v4393 = vperm.slane %v4387, %v4392
        %v4395 = vunpack.c.l.s4 1934713408
        %v4396 = vunpack.c.0.s8 %v4395
        %v4397 = vperm.slane %v4389, %v4396
        %v4398 = vrot.slane %v4361, 4
        %v4399 = vsel %vm251, %v4398, %v4349
        %v4400 = vrot.slane %v4349, 4
        %v4401 = vsel %vm251, %v4361, %v4400
        %v4403 = vunpack.c.l.s4 1934713408
        %v4404 = vunpack.c.0.s8 %v4403
        %v4405 = vperm.slane %v4399, %v4404
        %v4407 = vunpack.c.l.s4 1934713408
        %v4408 = vunpack.c.0.s8 %v4407
        %v4409 = vperm.slane %v4401, %v4408
        %v4410 = vrot.slane %v4393, 4
        %v4411 = vsel %vm251, %v4410, %v4369
        %v4412 = vrot.slane %v4369, 4
        %v4413 = vsel %vm251, %v4393, %v4412
        %v4414 = vrot.slane %v4397, 4
        %v4415 = vsel %vm251, %v4414, %v4373
        %v4416 = vrot.slane %v4373, 4
        %v4417 = vsel %vm251, %v4397, %v4416
        %v4418 = vrot.slane %v4405, 4
        %v4419 = vsel %vm251, %v4418, %v4381
        %v4420 = vrot.slane %v4381, 4
        %v4421 = vsel %vm251, %v4405, %v4420
        %v4422 = vrot.slane %v4409, 4
        %v4423 = vsel %vm251, %v4422, %v4385
        %v4424 = vrot.slane %v4385, 4
        %v4425 = vsel %vm251, %v4409, %v4424
        %v4426 = vrot.slane %v4191, 4
        %v4427 = vsel %vm251, %v4426, %v4187
        %v4428 = vrot.slane %v4187, 4
        %v4429 = vsel %vm251, %v4191, %v4428
        %v4431 = vunpack.c.l.s4 1983009808
        %v4432 = vunpack.c.0.s8 %v4431
        %v4433 = vperm.slane %v4427, %v4432
        %v4435 = vunpack.c.l.s4 1983009808
        %v4436 = vunpack.c.0.s8 %v4435
        %v4437 = vperm.slane %v4429, %v4436
        %v4438 = vrot.slane %v4193, 4
        %v4439 = vsel %vm251, %v4438, %v4189
        %v4440 = vrot.slane %v4189, 4
        %v4441 = vsel %vm251, %v4193, %v4440
        %v4443 = vunpack.c.l.s4 1983009808
        %v4444 = vunpack.c.0.s8 %v4443
        %v4445 = vperm.slane %v4439, %v4444
        %v4447 = vunpack.c.l.s4 1983009808
        %v4448 = vunpack.c.0.s8 %v4447
        %v4449 = vperm.slane %v4441, %v4448
        %v4450 = vrot.slane %v4199, 4
        %v4451 = vsel %vm251, %v4450, %v4195
        %v4452 = vrot.slane %v4195, 4
        %v4453 = vsel %vm251, %v4199, %v4452
        %v4455 = vunpack.c.l.s4 1983009808
        %v4456 = vunpack.c.0.s8 %v4455
        %v4457 = vperm.slane %v4451, %v4456
        %v4459 = vunpack.c.l.s4 1983009808
        %v4460 = vunpack.c.0.s8 %v4459
        %v4461 = vperm.slane %v4453, %v4460
        %v4462 = vrot.slane %v4201, 4
        %v4463 = vsel %vm251, %v4462, %v4197
        %v4464 = vrot.slane %v4197, 4
        %v4465 = vsel %vm251, %v4201, %v4464
        %v4467 = vunpack.c.l.s4 1983009808
        %v4468 = vunpack.c.0.s8 %v4467
        %v4469 = vperm.slane %v4463, %v4468
        %v4471 = vunpack.c.l.s4 1983009808
        %v4472 = vunpack.c.0.s8 %v4471
        %v4473 = vperm.slane %v4465, %v4472
        %v4474 = vrot.slane %v4445, 4
        %v4475 = vsel %vm251, %v4474, %v4433
        %v4476 = vrot.slane %v4433, 4
        %v4477 = vsel %vm251, %v4445, %v4476
        %v4479 = vunpack.c.l.s4 1934713408
        %v4480 = vunpack.c.0.s8 %v4479
        %v4481 = vperm.slane %v4475, %v4480
        %v4483 = vunpack.c.l.s4 1934713408
        %v4484 = vunpack.c.0.s8 %v4483
        %v4485 = vperm.slane %v4477, %v4484
        %v4486 = vrot.slane %v4449, 4
        %v4487 = vsel %vm251, %v4486, %v4437
        %v4488 = vrot.slane %v4437, 4
        %v4489 = vsel %vm251, %v4449, %v4488
        %v4491 = vunpack.c.l.s4 1934713408
        %v4492 = vunpack.c.0.s8 %v4491
        %v4493 = vperm.slane %v4487, %v4492
        %v4495 = vunpack.c.l.s4 1934713408
        %v4496 = vunpack.c.0.s8 %v4495
        %v4497 = vperm.slane %v4489, %v4496
        %v4498 = vrot.slane %v4469, 4
        %v4499 = vsel %vm251, %v4498, %v4457
        %v4500 = vrot.slane %v4457, 4
        %v4501 = vsel %vm251, %v4469, %v4500
        %v4503 = vunpack.c.l.s4 1934713408
        %v4504 = vunpack.c.0.s8 %v4503
        %v4505 = vperm.slane %v4499, %v4504
        %v4507 = vunpack.c.l.s4 1934713408
        %v4508 = vunpack.c.0.s8 %v4507
        %v4509 = vperm.slane %v4501, %v4508
        %v4510 = vrot.slane %v4473, 4
        %v4511 = vsel %vm251, %v4510, %v4461
        %v4512 = vrot.slane %v4461, 4
        %v4513 = vsel %vm251, %v4473, %v4512
        %v4515 = vunpack.c.l.s4 1934713408
        %v4516 = vunpack.c.0.s8 %v4515
        %v4517 = vperm.slane %v4511, %v4516
        %v4519 = vunpack.c.l.s4 1934713408
        %v4520 = vunpack.c.0.s8 %v4519
        %v4521 = vperm.slane %v4513, %v4520
        %v4522 = vrot.slane %v4505, 4
        %v4523 = vsel %vm251, %v4522, %v4481
        %v4524 = vrot.slane %v4481, 4
        %v4525 = vsel %vm251, %v4505, %v4524
        %v4526 = vrot.slane %v4509, 4
        %v4527 = vsel %vm251, %v4526, %v4485
        %v4528 = vrot.slane %v4485, 4
        %v4529 = vsel %vm251, %v4509, %v4528
        %v4530 = vrot.slane %v4517, 4
        %v4531 = vsel %vm251, %v4530, %v4493
        %v4532 = vrot.slane %v4493, 4
        %v4533 = vsel %vm251, %v4517, %v4532
        %v4534 = vrot.slane %v4521, 4
        %v4535 = vsel %vm251, %v4534, %v4497
        %v4536 = vrot.slane %v4497, 4
        %v4537 = vsel %vm251, %v4521, %v4536
        %v4538 = vrot.slane %v4079, 4
        %v4539 = vsel %vm251, %v4538, %v4075
        %v4540 = vrot.slane %v4075, 4
        %v4541 = vsel %vm251, %v4079, %v4540
        %v4543 = vunpack.c.l.s4 1983009808
        %v4544 = vunpack.c.0.s8 %v4543
        %v4545 = vperm.slane %v4539, %v4544
        %v4547 = vunpack.c.l.s4 1983009808
        %v4548 = vunpack.c.0.s8 %v4547
        %v4549 = vperm.slane %v4541, %v4548
        %v4550 = vrot.slane %v4081, 4
        %v4551 = vsel %vm251, %v4550, %v4077
        %v4552 = vrot.slane %v4077, 4
        %v4553 = vsel %vm251, %v4081, %v4552
        %v4555 = vunpack.c.l.s4 1983009808
        %v4556 = vunpack.c.0.s8 %v4555
        %v4557 = vperm.slane %v4551, %v4556
        %v4559 = vunpack.c.l.s4 1983009808
        %v4560 = vunpack.c.0.s8 %v4559
        %v4561 = vperm.slane %v4553, %v4560
        %v4562 = vrot.slane %v4087, 4
        %v4563 = vsel %vm251, %v4562, %v4083
        %v4564 = vrot.slane %v4083, 4
        %v4565 = vsel %vm251, %v4087, %v4564
        %v4567 = vunpack.c.l.s4 1983009808
        %v4568 = vunpack.c.0.s8 %v4567
        %v4569 = vperm.slane %v4563, %v4568
        %v4571 = vunpack.c.l.s4 1983009808
        %v4572 = vunpack.c.0.s8 %v4571
        %v4573 = vperm.slane %v4565, %v4572
        %v4574 = vrot.slane %v4089, 4
        %v4575 = vsel %vm251, %v4574, %v4085
        %v4576 = vrot.slane %v4085, 4
        %v4577 = vsel %vm251, %v4089, %v4576
        %v4579 = vunpack.c.l.s4 1983009808
        %v4580 = vunpack.c.0.s8 %v4579
        %v4581 = vperm.slane %v4575, %v4580
        %v4583 = vunpack.c.l.s4 1983009808
        %v4584 = vunpack.c.0.s8 %v4583
        %v4585 = vperm.slane %v4577, %v4584
        %v4586 = vrot.slane %v4557, 4
        %v4587 = vsel %vm251, %v4586, %v4545
        %v4588 = vrot.slane %v4545, 4
        %v4589 = vsel %vm251, %v4557, %v4588
        %v4591 = vunpack.c.l.s4 1934713408
        %v4592 = vunpack.c.0.s8 %v4591
        %v4593 = vperm.slane %v4587, %v4592
        %v4595 = vunpack.c.l.s4 1934713408
        %v4596 = vunpack.c.0.s8 %v4595
        %v4597 = vperm.slane %v4589, %v4596
        %v4598 = vrot.slane %v4561, 4
        %v4599 = vsel %vm251, %v4598, %v4549
        %v4600 = vrot.slane %v4549, 4
        %v4601 = vsel %vm251, %v4561, %v4600
        %v4603 = vunpack.c.l.s4 1934713408
        %v4604 = vunpack.c.0.s8 %v4603
        %v4605 = vperm.slane %v4599, %v4604
        %v4607 = vunpack.c.l.s4 1934713408
        %v4608 = vunpack.c.0.s8 %v4607
        %v4609 = vperm.slane %v4601, %v4608
        %v4610 = vrot.slane %v4581, 4
        %v4611 = vsel %vm251, %v4610, %v4569
        %v4612 = vrot.slane %v4569, 4
        %v4613 = vsel %vm251, %v4581, %v4612
        %v4615 = vunpack.c.l.s4 1934713408
        %v4616 = vunpack.c.0.s8 %v4615
        %v4617 = vperm.slane %v4611, %v4616
        %v4619 = vunpack.c.l.s4 1934713408
        %v4620 = vunpack.c.0.s8 %v4619
        %v4621 = vperm.slane %v4613, %v4620
        %v4622 = vrot.slane %v4585, 4
        %v4623 = vsel %vm251, %v4622, %v4573
        %v4624 = vrot.slane %v4573, 4
        %v4625 = vsel %vm251, %v4585, %v4624
        %v4627 = vunpack.c.l.s4 1934713408
        %v4628 = vunpack.c.0.s8 %v4627
        %v4629 = vperm.slane %v4623, %v4628
        %v4631 = vunpack.c.l.s4 1934713408
        %v4632 = vunpack.c.0.s8 %v4631
        %v4633 = vperm.slane %v4625, %v4632
        %v4634 = vrot.slane %v4617, 4
        %v4635 = vsel %vm251, %v4634, %v4593
        %v4636 = vrot.slane %v4593, 4
        %v4637 = vsel %vm251, %v4617, %v4636
        %v4638 = vrot.slane %v4621, 4
        %v4639 = vsel %vm251, %v4638, %v4597
        %v4640 = vrot.slane %v4597, 4
        %v4641 = vsel %vm251, %v4621, %v4640
        %v4642 = vrot.slane %v4629, 4
        %v4643 = vsel %vm251, %v4642, %v4605
        %v4644 = vrot.slane %v4605, 4
        %v4645 = vsel %vm251, %v4629, %v4644
        %v4646 = vrot.slane %v4633, 4
        %v4647 = vsel %vm251, %v4646, %v4609
        %v4648 = vrot.slane %v4609, 4
        %v4649 = vsel %vm251, %v4633, %v4648
        %v4650 = vrot.slane %v4303, 4
        %v4651 = vsel %vm251, %v4650, %v4299
        %v4652 = vrot.slane %v4299, 4
        %v4653 = vsel %vm251, %v4303, %v4652
        %v4655 = vunpack.c.l.s4 1983009808
        %v4656 = vunpack.c.0.s8 %v4655
        %v4657 = vperm.slane %v4651, %v4656
        %v4659 = vunpack.c.l.s4 1983009808
        %v4660 = vunpack.c.0.s8 %v4659
        %v4661 = vperm.slane %v4653, %v4660
        %v4662 = vrot.slane %v4305, 4
        %v4663 = vsel %vm251, %v4662, %v4301
        %v4664 = vrot.slane %v4301, 4
        %v4665 = vsel %vm251, %v4305, %v4664
        %v4667 = vunpack.c.l.s4 1983009808
        %v4668 = vunpack.c.0.s8 %v4667
        %v4669 = vperm.slane %v4663, %v4668
        %v4671 = vunpack.c.l.s4 1983009808
        %v4672 = vunpack.c.0.s8 %v4671
        %v4673 = vperm.slane %v4665, %v4672
        %v4674 = vrot.slane %v4311, 4
        %v4675 = vsel %vm251, %v4674, %v4307
        %v4676 = vrot.slane %v4307, 4
        %v4677 = vsel %vm251, %v4311, %v4676
        %v4679 = vunpack.c.l.s4 1983009808
        %v4680 = vunpack.c.0.s8 %v4679
        %v4681 = vperm.slane %v4675, %v4680
        %v4683 = vunpack.c.l.s4 1983009808
        %v4684 = vunpack.c.0.s8 %v4683
        %v4685 = vperm.slane %v4677, %v4684
        %v4686 = vrot.slane %v4313, 4
        %v4687 = vsel %vm251, %v4686, %v4309
        %v4688 = vrot.slane %v4309, 4
        %v4689 = vsel %vm251, %v4313, %v4688
        %v4691 = vunpack.c.l.s4 1983009808
        %v4692 = vunpack.c.0.s8 %v4691
        %v4693 = vperm.slane %v4687, %v4692
        %v4695 = vunpack.c.l.s4 1983009808
        %v4696 = vunpack.c.0.s8 %v4695
        %v4697 = vperm.slane %v4689, %v4696
        %v4698 = vrot.slane %v4669, 4
        %v4699 = vsel %vm251, %v4698, %v4657
        %v4700 = vrot.slane %v4657, 4
        %v4701 = vsel %vm251, %v4669, %v4700
        %v4703 = vunpack.c.l.s4 1934713408
        %v4704 = vunpack.c.0.s8 %v4703
        %v4705 = vperm.slane %v4699, %v4704
        %v4707 = vunpack.c.l.s4 1934713408
        %v4708 = vunpack.c.0.s8 %v4707
        %v4709 = vperm.slane %v4701, %v4708
        %v4710 = vrot.slane %v4673, 4
        %v4711 = vsel %vm251, %v4710, %v4661
        %v4712 = vrot.slane %v4661, 4
        %v4713 = vsel %vm251, %v4673, %v4712
        %v4715 = vunpack.c.l.s4 1934713408
        %v4716 = vunpack.c.0.s8 %v4715
        %v4717 = vperm.slane %v4711, %v4716
        %v4719 = vunpack.c.l.s4 1934713408
        %v4720 = vunpack.c.0.s8 %v4719
        %v4721 = vperm.slane %v4713, %v4720
        %v4722 = vrot.slane %v4693, 4
        %v4723 = vsel %vm251, %v4722, %v4681
        %v4724 = vrot.slane %v4681, 4
        %v4725 = vsel %vm251, %v4693, %v4724
        %v4727 = vunpack.c.l.s4 1934713408
        %v4728 = vunpack.c.0.s8 %v4727
        %v4729 = vperm.slane %v4723, %v4728
        %v4731 = vunpack.c.l.s4 1934713408
        %v4732 = vunpack.c.0.s8 %v4731
        %v4733 = vperm.slane %v4725, %v4732
        %v4734 = vrot.slane %v4697, 4
        %v4735 = vsel %vm251, %v4734, %v4685
        %v4736 = vrot.slane %v4685, 4
        %v4737 = vsel %vm251, %v4697, %v4736
        %v4739 = vunpack.c.l.s4 1934713408
        %v4740 = vunpack.c.0.s8 %v4739
        %v4741 = vperm.slane %v4735, %v4740
        %v4743 = vunpack.c.l.s4 1934713408
        %v4744 = vunpack.c.0.s8 %v4743
        %v4745 = vperm.slane %v4737, %v4744
        %v4746 = vrot.slane %v4729, 4
        %v4747 = vsel %vm251, %v4746, %v4705
        %v4748 = vrot.slane %v4705, 4
        %v4749 = vsel %vm251, %v4729, %v4748
        %v4750 = vrot.slane %v4733, 4
        %v4751 = vsel %vm251, %v4750, %v4709
        %v4752 = vrot.slane %v4709, 4
        %v4753 = vsel %vm251, %v4733, %v4752
        %v4754 = vrot.slane %v4741, 4
        %v4755 = vsel %vm251, %v4754, %v4717
        %v4756 = vrot.slane %v4717, 4
        %v4757 = vsel %vm251, %v4741, %v4756
        %v4758 = vrot.slane %v4745, 4
        %v4759 = vsel %vm251, %v4758, %v4721
        %v4760 = vrot.slane %v4721, 4
        %v4761 = vsel %vm251, %v4745, %v4760
        %4764 = vrot.lane.b32.xlu0 %v4413, 16
        %v4765 = vpop.permute.xlu0 %4764
        %4766 = vrot.lane.b32.xlu0 %v4525, 16
        %v4767 = vpop.permute.xlu0 %4766
        %4772 = vrot.lane.b32.xlu0 %v4415, 32
        %v4773 = vpop.permute.xlu0 %4772
        %4774 = vrot.lane.b32.xlu0 %v4527, 32
        %v4775 = vpop.permute.xlu0 %4774
        %4780 = vrot.lane.b32.xlu0 %v4417, 48
        %v4781 = vpop.permute.xlu0 %4780
        %4782 = vrot.lane.b32.xlu0 %v4529, 48
        %v4783 = vpop.permute.xlu0 %4782
        %4788 = vrot.lane.b32.xlu0 %v4419, 64
        %v4789 = vpop.permute.xlu0 %4788
        %4790 = vrot.lane.b32.xlu0 %v4531, 64
        %v4791 = vpop.permute.xlu0 %4790
        %4796 = vrot.lane.b32.xlu0 %v4421, 80
        %v4797 = vpop.permute.xlu0 %4796
        %4798 = vrot.lane.b32.xlu0 %v4533, 80
        %v4799 = vpop.permute.xlu0 %4798
        %4804 = vrot.lane.b32.xlu0 %v4423, 96
        %v4805 = vpop.permute.xlu0 %4804
        %4806 = vrot.lane.b32.xlu0 %v4535, 96
        %v4807 = vpop.permute.xlu0 %4806
        %4812 = vrot.lane.b32.xlu0 %v4425, 112
        %v4813 = vpop.permute.xlu0 %4812
        %4814 = vrot.lane.b32.xlu0 %v4537, 112
        %v4815 = vpop.permute.xlu0 %4814
        %4820 = vrot.lane.b32.xlu0 %v4637, 16
        %v4821 = vpop.permute.xlu0 %4820
        %4822 = vrot.lane.b32.xlu0 %v4749, 16
        %v4823 = vpop.permute.xlu0 %4822
        %4828 = vrot.lane.b32.xlu0 %v4639, 32
        %v4829 = vpop.permute.xlu0 %4828
        %4830 = vrot.lane.b32.xlu0 %v4751, 32
        %v4831 = vpop.permute.xlu0 %4830
        %4836 = vrot.lane.b32.xlu0 %v4641, 48
        %v4837 = vpop.permute.xlu0 %4836
        %4838 = vrot.lane.b32.xlu0 %v4753, 48
        %v4839 = vpop.permute.xlu0 %4838
        %4844 = vrot.lane.b32.xlu0 %v4643, 64
        %v4845 = vpop.permute.xlu0 %4844
        %4846 = vrot.lane.b32.xlu0 %v4755, 64
        %v4847 = vpop.permute.xlu0 %4846
        %4852 = vrot.lane.b32.xlu0 %v4645, 80
        %v4853 = vpop.permute.xlu0 %4852
        %4854 = vrot.lane.b32.xlu0 %v4757, 80
        %v4855 = vpop.permute.xlu0 %4854
        %4860 = vrot.lane.b32.xlu0 %v4647, 96
        %v4861 = vpop.permute.xlu0 %4860
        %4862 = vrot.lane.b32.xlu0 %v4759, 96
        %v4863 = vpop.permute.xlu0 %4862
        %4868 = vrot.lane.b32.xlu0 %v4649, 112
        %v4869 = vpop.permute.xlu0 %4868
        %4870 = vrot.lane.b32.xlu0 %v4761, 112
        %v4871 = vpop.permute.xlu0 %4870
        %v4874 = vsel %vm1707, %v4411, %v4765
        %v4875 = vsel %vm1707, %v4523, %v4767
        %v4876 = vsel %vm1710, %v4874, %v4773
        %v4877 = vsel %vm1710, %v4875, %v4775
        %v4878 = vsel %vm1713, %v4876, %v4781
        %v4879 = vsel %vm1713, %v4877, %v4783
        %v4880 = vsel %vm1716, %v4878, %v4789
        %v4881 = vsel %vm1716, %v4879, %v4791
        %v4882 = vsel %vm1719, %v4880, %v4797
        %v4883 = vsel %vm1719, %v4881, %v4799
        %v4884 = vsel %vm1722, %v4882, %v4805
        %v4885 = vsel %vm1722, %v4883, %v4807
        %v4886 = vsel %vm1725, %v4884, %v4813
        %v4887 = vsel %vm1725, %v4885, %v4815
        %v4888 = vsel %vm1707, %v4635, %v4821
        %v4889 = vsel %vm1707, %v4747, %v4823
        %v4890 = vsel %vm1710, %v4888, %v4829
        %v4891 = vsel %vm1710, %v4889, %v4831
        %v4892 = vsel %vm1713, %v4890, %v4837
        %v4893 = vsel %vm1713, %v4891, %v4839
        %v4894 = vsel %vm1716, %v4892, %v4845
        %v4895 = vsel %vm1716, %v4893, %v4847
        %v4896 = vsel %vm1719, %v4894, %v4853
        %v4897 = vsel %vm1719, %v4895, %v4855
        %v4898 = vsel %vm1722, %v4896, %v4861
        %v4899 = vsel %vm1722, %v4897, %v4863
        %v4900 = vsel %vm1725, %v4898, %v4869
        %v4901 = vsel %vm1725, %v4899, %v4871
        %4902 = vst [vmem:[%s155 + $0x40] sm:$0xff] %v4886
        %4903 = vst [vmem:[%s155 + $0x48] sm:$0xff] %v4900
        %4904 = vst [vmem:[%s155 + $0x50] sm:$0xff] %v4887
        %4905 = vst [vmem:[%s155 + $0x58] sm:$0xff] %v4901
        %v4906 = vld [vmem:[%s136 + $0x60] sm:$0xff]
        %v4907 = vld [vmem:[%s136 + $0x68] sm:$0xff]
        %v4908 = vld [vmem:[%s136 + $0x70] sm:$0xff]
        %v4909 = vld [vmem:[%s136 + $0x78] sm:$0xff]
        %4912 = vrot.lane.b32.xlu0 %v4906, 112
        %v4913 = vpop.permute.xlu0 %4912
        %4914 = vrot.lane.b32.xlu0 %v4908, 112
        %v4915 = vpop.permute.xlu0 %4914
        %4918 = vrot.lane.b32.xlu0 %v4906, 96
        %v4919 = vpop.permute.xlu0 %4918
        %4920 = vrot.lane.b32.xlu0 %v4908, 96
        %v4921 = vpop.permute.xlu0 %4920
        %4924 = vrot.lane.b32.xlu0 %v4906, 80
        %v4925 = vpop.permute.xlu0 %4924
        %4926 = vrot.lane.b32.xlu0 %v4908, 80
        %v4927 = vpop.permute.xlu0 %4926
        %4930 = vrot.lane.b32.xlu0 %v4906, 64
        %v4931 = vpop.permute.xlu0 %4930
        %4932 = vrot.lane.b32.xlu0 %v4908, 64
        %v4933 = vpop.permute.xlu0 %4932
        %4936 = vrot.lane.b32.xlu0 %v4906, 48
        %v4937 = vpop.permute.xlu0 %4936
        %4938 = vrot.lane.b32.xlu0 %v4908, 48
        %v4939 = vpop.permute.xlu0 %4938
        %4942 = vrot.lane.b32.xlu0 %v4906, 32
        %v4943 = vpop.permute.xlu0 %4942
        %4944 = vrot.lane.b32.xlu0 %v4908, 32
        %v4945 = vpop.permute.xlu0 %4944
        %4948 = vrot.lane.b32.xlu0 %v4906, 16
        %v4949 = vpop.permute.xlu0 %4948
        %4950 = vrot.lane.b32.xlu0 %v4908, 16
        %v4951 = vpop.permute.xlu0 %4950
        %4956 = vrot.lane.b32.xlu0 %v4907, 112
        %v4957 = vpop.permute.xlu0 %4956
        %4958 = vrot.lane.b32.xlu0 %v4909, 112
        %v4959 = vpop.permute.xlu0 %4958
        %4962 = vrot.lane.b32.xlu0 %v4907, 96
        %v4963 = vpop.permute.xlu0 %4962
        %4964 = vrot.lane.b32.xlu0 %v4909, 96
        %v4965 = vpop.permute.xlu0 %4964
        %4968 = vrot.lane.b32.xlu0 %v4907, 80
        %v4969 = vpop.permute.xlu0 %4968
        %4970 = vrot.lane.b32.xlu0 %v4909, 80
        %v4971 = vpop.permute.xlu0 %4970
        %4974 = vrot.lane.b32.xlu0 %v4907, 64
        %v4975 = vpop.permute.xlu0 %4974
        %4976 = vrot.lane.b32.xlu0 %v4909, 64
        %v4977 = vpop.permute.xlu0 %4976
        %4980 = vrot.lane.b32.xlu0 %v4907, 48
        %v4981 = vpop.permute.xlu0 %4980
        %4982 = vrot.lane.b32.xlu0 %v4909, 48
        %v4983 = vpop.permute.xlu0 %4982
        %4986 = vrot.lane.b32.xlu0 %v4907, 32
        %v4987 = vpop.permute.xlu0 %4986
        %4988 = vrot.lane.b32.xlu0 %v4909, 32
        %v4989 = vpop.permute.xlu0 %4988
        %4992 = vrot.lane.b32.xlu0 %v4907, 16
        %v4993 = vpop.permute.xlu0 %4992
        %4994 = vrot.lane.b32.xlu0 %v4909, 16
        %v4995 = vpop.permute.xlu0 %4994
        %v4998 = vrot.slane %v4919, 4
        %v4999 = vsel %vm251, %v4998, %v4906
        %v5000 = vrot.slane %v4906, 4
        %v5001 = vsel %vm251, %v4919, %v5000
        %v5003 = vunpack.c.l.s4 1983009808
        %v5004 = vunpack.c.0.s8 %v5003
        %v5005 = vperm.slane %v4999, %v5004
        %v5007 = vunpack.c.l.s4 1983009808
        %v5008 = vunpack.c.0.s8 %v5007
        %v5009 = vperm.slane %v5001, %v5008
        %v5010 = vrot.slane %v4925, 4
        %v5011 = vsel %vm251, %v5010, %v4913
        %v5012 = vrot.slane %v4913, 4
        %v5013 = vsel %vm251, %v4925, %v5012
        %v5015 = vunpack.c.l.s4 1983009808
        %v5016 = vunpack.c.0.s8 %v5015
        %v5017 = vperm.slane %v5011, %v5016
        %v5019 = vunpack.c.l.s4 1983009808
        %v5020 = vunpack.c.0.s8 %v5019
        %v5021 = vperm.slane %v5013, %v5020
        %v5022 = vrot.slane %v4943, 4
        %v5023 = vsel %vm251, %v5022, %v4931
        %v5024 = vrot.slane %v4931, 4
        %v5025 = vsel %vm251, %v4943, %v5024
        %v5027 = vunpack.c.l.s4 1983009808
        %v5028 = vunpack.c.0.s8 %v5027
        %v5029 = vperm.slane %v5023, %v5028
        %v5031 = vunpack.c.l.s4 1983009808
        %v5032 = vunpack.c.0.s8 %v5031
        %v5033 = vperm.slane %v5025, %v5032
        %v5034 = vrot.slane %v4949, 4
        %v5035 = vsel %vm251, %v5034, %v4937
        %v5036 = vrot.slane %v4937, 4
        %v5037 = vsel %vm251, %v4949, %v5036
        %v5039 = vunpack.c.l.s4 1983009808
        %v5040 = vunpack.c.0.s8 %v5039
        %v5041 = vperm.slane %v5035, %v5040
        %v5043 = vunpack.c.l.s4 1983009808
        %v5044 = vunpack.c.0.s8 %v5043
        %v5045 = vperm.slane %v5037, %v5044
        %v5046 = vrot.slane %v5017, 4
        %v5047 = vsel %vm251, %v5046, %v5005
        %v5048 = vrot.slane %v5005, 4
        %v5049 = vsel %vm251, %v5017, %v5048
        %v5051 = vunpack.c.l.s4 1934713408
        %v5052 = vunpack.c.0.s8 %v5051
        %v5053 = vperm.slane %v5047, %v5052
        %v5055 = vunpack.c.l.s4 1934713408
        %v5056 = vunpack.c.0.s8 %v5055
        %v5057 = vperm.slane %v5049, %v5056
        %v5058 = vrot.slane %v5021, 4
        %v5059 = vsel %vm251, %v5058, %v5009
        %v5060 = vrot.slane %v5009, 4
        %v5061 = vsel %vm251, %v5021, %v5060
        %v5063 = vunpack.c.l.s4 1934713408
        %v5064 = vunpack.c.0.s8 %v5063
        %v5065 = vperm.slane %v5059, %v5064
        %v5067 = vunpack.c.l.s4 1934713408
        %v5068 = vunpack.c.0.s8 %v5067
        %v5069 = vperm.slane %v5061, %v5068
        %v5070 = vrot.slane %v5041, 4
        %v5071 = vsel %vm251, %v5070, %v5029
        %v5072 = vrot.slane %v5029, 4
        %v5073 = vsel %vm251, %v5041, %v5072
        %v5075 = vunpack.c.l.s4 1934713408
        %v5076 = vunpack.c.0.s8 %v5075
        %v5077 = vperm.slane %v5071, %v5076
        %v5079 = vunpack.c.l.s4 1934713408
        %v5080 = vunpack.c.0.s8 %v5079
        %v5081 = vperm.slane %v5073, %v5080
        %v5082 = vrot.slane %v5045, 4
        %v5083 = vsel %vm251, %v5082, %v5033
        %v5084 = vrot.slane %v5033, 4
        %v5085 = vsel %vm251, %v5045, %v5084
        %v5087 = vunpack.c.l.s4 1934713408
        %v5088 = vunpack.c.0.s8 %v5087
        %v5089 = vperm.slane %v5083, %v5088
        %v5091 = vunpack.c.l.s4 1934713408
        %v5092 = vunpack.c.0.s8 %v5091
        %v5093 = vperm.slane %v5085, %v5092
        %v5094 = vrot.slane %v5077, 4
        %v5095 = vsel %vm251, %v5094, %v5053
        %v5096 = vrot.slane %v5053, 4
        %v5097 = vsel %vm251, %v5077, %v5096
        %v5098 = vrot.slane %v5081, 4
        %v5099 = vsel %vm251, %v5098, %v5057
        %v5100 = vrot.slane %v5057, 4
        %v5101 = vsel %vm251, %v5081, %v5100
        %v5102 = vrot.slane %v5089, 4
        %v5103 = vsel %vm251, %v5102, %v5065
        %v5104 = vrot.slane %v5065, 4
        %v5105 = vsel %vm251, %v5089, %v5104
        %v5106 = vrot.slane %v5093, 4
        %v5107 = vsel %vm251, %v5106, %v5069
        %v5108 = vrot.slane %v5069, 4
        %v5109 = vsel %vm251, %v5093, %v5108
        %v5110 = vrot.slane %v4963, 4
        %v5111 = vsel %vm251, %v5110, %v4907
        %v5112 = vrot.slane %v4907, 4
        %v5113 = vsel %vm251, %v4963, %v5112
        %v5115 = vunpack.c.l.s4 1983009808
        %v5116 = vunpack.c.0.s8 %v5115
        %v5117 = vperm.slane %v5111, %v5116
        %v5119 = vunpack.c.l.s4 1983009808
        %v5120 = vunpack.c.0.s8 %v5119
        %v5121 = vperm.slane %v5113, %v5120
        %v5122 = vrot.slane %v4969, 4
        %v5123 = vsel %vm251, %v5122, %v4957
        %v5124 = vrot.slane %v4957, 4
        %v5125 = vsel %vm251, %v4969, %v5124
        %v5127 = vunpack.c.l.s4 1983009808
        %v5128 = vunpack.c.0.s8 %v5127
        %v5129 = vperm.slane %v5123, %v5128
        %v5131 = vunpack.c.l.s4 1983009808
        %v5132 = vunpack.c.0.s8 %v5131
        %v5133 = vperm.slane %v5125, %v5132
        %v5134 = vrot.slane %v4987, 4
        %v5135 = vsel %vm251, %v5134, %v4975
        %v5136 = vrot.slane %v4975, 4
        %v5137 = vsel %vm251, %v4987, %v5136
        %v5139 = vunpack.c.l.s4 1983009808
        %v5140 = vunpack.c.0.s8 %v5139
        %v5141 = vperm.slane %v5135, %v5140
        %v5143 = vunpack.c.l.s4 1983009808
        %v5144 = vunpack.c.0.s8 %v5143
        %v5145 = vperm.slane %v5137, %v5144
        %v5146 = vrot.slane %v4993, 4
        %v5147 = vsel %vm251, %v5146, %v4981
        %v5148 = vrot.slane %v4981, 4
        %v5149 = vsel %vm251, %v4993, %v5148
        %v5151 = vunpack.c.l.s4 1983009808
        %v5152 = vunpack.c.0.s8 %v5151
        %v5153 = vperm.slane %v5147, %v5152
        %v5155 = vunpack.c.l.s4 1983009808
        %v5156 = vunpack.c.0.s8 %v5155
        %v5157 = vperm.slane %v5149, %v5156
        %v5158 = vrot.slane %v5129, 4
        %v5159 = vsel %vm251, %v5158, %v5117
        %v5160 = vrot.slane %v5117, 4
        %v5161 = vsel %vm251, %v5129, %v5160
        %v5163 = vunpack.c.l.s4 1934713408
        %v5164 = vunpack.c.0.s8 %v5163
        %v5165 = vperm.slane %v5159, %v5164
        %v5167 = vunpack.c.l.s4 1934713408
        %v5168 = vunpack.c.0.s8 %v5167
        %v5169 = vperm.slane %v5161, %v5168
        %v5170 = vrot.slane %v5133, 4
        %v5171 = vsel %vm251, %v5170, %v5121
        %v5172 = vrot.slane %v5121, 4
        %v5173 = vsel %vm251, %v5133, %v5172
        %v5175 = vunpack.c.l.s4 1934713408
        %v5176 = vunpack.c.0.s8 %v5175
        %v5177 = vperm.slane %v5171, %v5176
        %v5179 = vunpack.c.l.s4 1934713408
        %v5180 = vunpack.c.0.s8 %v5179
        %v5181 = vperm.slane %v5173, %v5180
        %v5182 = vrot.slane %v5153, 4
        %v5183 = vsel %vm251, %v5182, %v5141
        %v5184 = vrot.slane %v5141, 4
        %v5185 = vsel %vm251, %v5153, %v5184
        %v5187 = vunpack.c.l.s4 1934713408
        %v5188 = vunpack.c.0.s8 %v5187
        %v5189 = vperm.slane %v5183, %v5188
        %v5191 = vunpack.c.l.s4 1934713408
        %v5192 = vunpack.c.0.s8 %v5191
        %v5193 = vperm.slane %v5185, %v5192
        %v5194 = vrot.slane %v5157, 4
        %v5195 = vsel %vm251, %v5194, %v5145
        %v5196 = vrot.slane %v5145, 4
        %v5197 = vsel %vm251, %v5157, %v5196
        %v5199 = vunpack.c.l.s4 1934713408
        %v5200 = vunpack.c.0.s8 %v5199
        %v5201 = vperm.slane %v5195, %v5200
        %v5203 = vunpack.c.l.s4 1934713408
        %v5204 = vunpack.c.0.s8 %v5203
        %v5205 = vperm.slane %v5197, %v5204
        %v5206 = vrot.slane %v5189, 4
        %v5207 = vsel %vm251, %v5206, %v5165
        %v5208 = vrot.slane %v5165, 4
        %v5209 = vsel %vm251, %v5189, %v5208
        %v5210 = vrot.slane %v5193, 4
        %v5211 = vsel %vm251, %v5210, %v5169
        %v5212 = vrot.slane %v5169, 4
        %v5213 = vsel %vm251, %v5193, %v5212
        %v5214 = vrot.slane %v5201, 4
        %v5215 = vsel %vm251, %v5214, %v5177
        %v5216 = vrot.slane %v5177, 4
        %v5217 = vsel %vm251, %v5201, %v5216
        %v5218 = vrot.slane %v5205, 4
        %v5219 = vsel %vm251, %v5218, %v5181
        %v5220 = vrot.slane %v5181, 4
        %v5221 = vsel %vm251, %v5205, %v5220
        %v5222 = vrot.slane %v4921, 4
        %v5223 = vsel %vm251, %v5222, %v4908
        %v5224 = vrot.slane %v4908, 4
        %v5225 = vsel %vm251, %v4921, %v5224
        %v5227 = vunpack.c.l.s4 1983009808
        %v5228 = vunpack.c.0.s8 %v5227
        %v5229 = vperm.slane %v5223, %v5228
        %v5231 = vunpack.c.l.s4 1983009808
        %v5232 = vunpack.c.0.s8 %v5231
        %v5233 = vperm.slane %v5225, %v5232
        %v5234 = vrot.slane %v4927, 4
        %v5235 = vsel %vm251, %v5234, %v4915
        %v5236 = vrot.slane %v4915, 4
        %v5237 = vsel %vm251, %v4927, %v5236
        %v5239 = vunpack.c.l.s4 1983009808
        %v5240 = vunpack.c.0.s8 %v5239
        %v5241 = vperm.slane %v5235, %v5240
        %v5243 = vunpack.c.l.s4 1983009808
        %v5244 = vunpack.c.0.s8 %v5243
        %v5245 = vperm.slane %v5237, %v5244
        %v5246 = vrot.slane %v4945, 4
        %v5247 = vsel %vm251, %v5246, %v4933
        %v5248 = vrot.slane %v4933, 4
        %v5249 = vsel %vm251, %v4945, %v5248
        %v5251 = vunpack.c.l.s4 1983009808
        %v5252 = vunpack.c.0.s8 %v5251
        %v5253 = vperm.slane %v5247, %v5252
        %v5255 = vunpack.c.l.s4 1983009808
        %v5256 = vunpack.c.0.s8 %v5255
        %v5257 = vperm.slane %v5249, %v5256
        %v5258 = vrot.slane %v4951, 4
        %v5259 = vsel %vm251, %v5258, %v4939
        %v5260 = vrot.slane %v4939, 4
        %v5261 = vsel %vm251, %v4951, %v5260
        %v5263 = vunpack.c.l.s4 1983009808
        %v5264 = vunpack.c.0.s8 %v5263
        %v5265 = vperm.slane %v5259, %v5264
        %v5267 = vunpack.c.l.s4 1983009808
        %v5268 = vunpack.c.0.s8 %v5267
        %v5269 = vperm.slane %v5261, %v5268
        %v5270 = vrot.slane %v5241, 4
        %v5271 = vsel %vm251, %v5270, %v5229
        %v5272 = vrot.slane %v5229, 4
        %v5273 = vsel %vm251, %v5241, %v5272
        %v5275 = vunpack.c.l.s4 1934713408
        %v5276 = vunpack.c.0.s8 %v5275
        %v5277 = vperm.slane %v5271, %v5276
        %v5279 = vunpack.c.l.s4 1934713408
        %v5280 = vunpack.c.0.s8 %v5279
        %v5281 = vperm.slane %v5273, %v5280
        %v5282 = vrot.slane %v5245, 4
        %v5283 = vsel %vm251, %v5282, %v5233
        %v5284 = vrot.slane %v5233, 4
        %v5285 = vsel %vm251, %v5245, %v5284
        %v5287 = vunpack.c.l.s4 1934713408
        %v5288 = vunpack.c.0.s8 %v5287
        %v5289 = vperm.slane %v5283, %v5288
        %v5291 = vunpack.c.l.s4 1934713408
        %v5292 = vunpack.c.0.s8 %v5291
        %v5293 = vperm.slane %v5285, %v5292
        %v5294 = vrot.slane %v5265, 4
        %v5295 = vsel %vm251, %v5294, %v5253
        %v5296 = vrot.slane %v5253, 4
        %v5297 = vsel %vm251, %v5265, %v5296
        %v5299 = vunpack.c.l.s4 1934713408
        %v5300 = vunpack.c.0.s8 %v5299
        %v5301 = vperm.slane %v5295, %v5300
        %v5303 = vunpack.c.l.s4 1934713408
        %v5304 = vunpack.c.0.s8 %v5303
        %v5305 = vperm.slane %v5297, %v5304
        %v5306 = vrot.slane %v5269, 4
        %v5307 = vsel %vm251, %v5306, %v5257
        %v5308 = vrot.slane %v5257, 4
        %v5309 = vsel %vm251, %v5269, %v5308
        %v5311 = vunpack.c.l.s4 1934713408
        %v5312 = vunpack.c.0.s8 %v5311
        %v5313 = vperm.slane %v5307, %v5312
        %v5315 = vunpack.c.l.s4 1934713408
        %v5316 = vunpack.c.0.s8 %v5315
        %v5317 = vperm.slane %v5309, %v5316
        %v5318 = vrot.slane %v5301, 4
        %v5319 = vsel %vm251, %v5318, %v5277
        %v5320 = vrot.slane %v5277, 4
        %v5321 = vsel %vm251, %v5301, %v5320
        %v5322 = vrot.slane %v5305, 4
        %v5323 = vsel %vm251, %v5322, %v5281
        %v5324 = vrot.slane %v5281, 4
        %v5325 = vsel %vm251, %v5305, %v5324
        %v5326 = vrot.slane %v5313, 4
        %v5327 = vsel %vm251, %v5326, %v5289
        %v5328 = vrot.slane %v5289, 4
        %v5329 = vsel %vm251, %v5313, %v5328
        %v5330 = vrot.slane %v5317, 4
        %v5331 = vsel %vm251, %v5330, %v5293
        %v5332 = vrot.slane %v5293, 4
        %v5333 = vsel %vm251, %v5317, %v5332
        %v5334 = vrot.slane %v4965, 4
        %v5335 = vsel %vm251, %v5334, %v4909
        %v5336 = vrot.slane %v4909, 4
        %v5337 = vsel %vm251, %v4965, %v5336
        %v5339 = vunpack.c.l.s4 1983009808
        %v5340 = vunpack.c.0.s8 %v5339
        %v5341 = vperm.slane %v5335, %v5340
        %v5343 = vunpack.c.l.s4 1983009808
        %v5344 = vunpack.c.0.s8 %v5343
        %v5345 = vperm.slane %v5337, %v5344
        %v5346 = vrot.slane %v4971, 4
        %v5347 = vsel %vm251, %v5346, %v4959
        %v5348 = vrot.slane %v4959, 4
        %v5349 = vsel %vm251, %v4971, %v5348
        %v5351 = vunpack.c.l.s4 1983009808
        %v5352 = vunpack.c.0.s8 %v5351
        %v5353 = vperm.slane %v5347, %v5352
        %v5355 = vunpack.c.l.s4 1983009808
        %v5356 = vunpack.c.0.s8 %v5355
        %v5357 = vperm.slane %v5349, %v5356
        %v5358 = vrot.slane %v4989, 4
        %v5359 = vsel %vm251, %v5358, %v4977
        %v5360 = vrot.slane %v4977, 4
        %v5361 = vsel %vm251, %v4989, %v5360
        %v5363 = vunpack.c.l.s4 1983009808
        %v5364 = vunpack.c.0.s8 %v5363
        %v5365 = vperm.slane %v5359, %v5364
        %v5367 = vunpack.c.l.s4 1983009808
        %v5368 = vunpack.c.0.s8 %v5367
        %v5369 = vperm.slane %v5361, %v5368
        %v5370 = vrot.slane %v4995, 4
        %v5371 = vsel %vm251, %v5370, %v4983
        %v5372 = vrot.slane %v4983, 4
        %v5373 = vsel %vm251, %v4995, %v5372
        %v5375 = vunpack.c.l.s4 1983009808
        %v5376 = vunpack.c.0.s8 %v5375
        %v5377 = vperm.slane %v5371, %v5376
        %v5379 = vunpack.c.l.s4 1983009808
        %v5380 = vunpack.c.0.s8 %v5379
        %v5381 = vperm.slane %v5373, %v5380
        %v5382 = vrot.slane %v5353, 4
        %v5383 = vsel %vm251, %v5382, %v5341
        %v5384 = vrot.slane %v5341, 4
        %v5385 = vsel %vm251, %v5353, %v5384
        %v5387 = vunpack.c.l.s4 1934713408
        %v5388 = vunpack.c.0.s8 %v5387
        %v5389 = vperm.slane %v5383, %v5388
        %v5391 = vunpack.c.l.s4 1934713408
        %v5392 = vunpack.c.0.s8 %v5391
        %v5393 = vperm.slane %v5385, %v5392
        %v5394 = vrot.slane %v5357, 4
        %v5395 = vsel %vm251, %v5394, %v5345
        %v5396 = vrot.slane %v5345, 4
        %v5397 = vsel %vm251, %v5357, %v5396
        %v5399 = vunpack.c.l.s4 1934713408
        %v5400 = vunpack.c.0.s8 %v5399
        %v5401 = vperm.slane %v5395, %v5400
        %v5403 = vunpack.c.l.s4 1934713408
        %v5404 = vunpack.c.0.s8 %v5403
        %v5405 = vperm.slane %v5397, %v5404
        %v5406 = vrot.slane %v5377, 4
        %v5407 = vsel %vm251, %v5406, %v5365
        %v5408 = vrot.slane %v5365, 4
        %v5409 = vsel %vm251, %v5377, %v5408
        %v5411 = vunpack.c.l.s4 1934713408
        %v5412 = vunpack.c.0.s8 %v5411
        %v5413 = vperm.slane %v5407, %v5412
        %v5415 = vunpack.c.l.s4 1934713408
        %v5416 = vunpack.c.0.s8 %v5415
        %v5417 = vperm.slane %v5409, %v5416
        %v5418 = vrot.slane %v5381, 4
        %v5419 = vsel %vm251, %v5418, %v5369
        %v5420 = vrot.slane %v5369, 4
        %v5421 = vsel %vm251, %v5381, %v5420
        %v5423 = vunpack.c.l.s4 1934713408
        %v5424 = vunpack.c.0.s8 %v5423
        %v5425 = vperm.slane %v5419, %v5424
        %v5427 = vunpack.c.l.s4 1934713408
        %v5428 = vunpack.c.0.s8 %v5427
        %v5429 = vperm.slane %v5421, %v5428
        %v5430 = vrot.slane %v5413, 4
        %v5431 = vsel %vm251, %v5430, %v5389
        %v5432 = vrot.slane %v5389, 4
        %v5433 = vsel %vm251, %v5413, %v5432
        %v5434 = vrot.slane %v5417, 4
        %v5435 = vsel %vm251, %v5434, %v5393
        %v5436 = vrot.slane %v5393, 4
        %v5437 = vsel %vm251, %v5417, %v5436
        %v5438 = vrot.slane %v5425, 4
        %v5439 = vsel %vm251, %v5438, %v5401
        %v5440 = vrot.slane %v5401, 4
        %v5441 = vsel %vm251, %v5425, %v5440
        %v5442 = vrot.slane %v5429, 4
        %v5443 = vsel %vm251, %v5442, %v5405
        %v5444 = vrot.slane %v5405, 4
        %v5445 = vsel %vm251, %v5429, %v5444
        %v5446 = vrot.slane %v5099, 4
        %v5447 = vsel %vm251, %v5446, %v5095
        %v5448 = vrot.slane %v5095, 4
        %v5449 = vsel %vm251, %v5099, %v5448
        %v5451 = vunpack.c.l.s4 1983009808
        %v5452 = vunpack.c.0.s8 %v5451
        %v5453 = vperm.slane %v5447, %v5452
        %v5455 = vunpack.c.l.s4 1983009808
        %v5456 = vunpack.c.0.s8 %v5455
        %v5457 = vperm.slane %v5449, %v5456
        %v5458 = vrot.slane %v5101, 4
        %v5459 = vsel %vm251, %v5458, %v5097
        %v5460 = vrot.slane %v5097, 4
        %v5461 = vsel %vm251, %v5101, %v5460
        %v5463 = vunpack.c.l.s4 1983009808
        %v5464 = vunpack.c.0.s8 %v5463
        %v5465 = vperm.slane %v5459, %v5464
        %v5467 = vunpack.c.l.s4 1983009808
        %v5468 = vunpack.c.0.s8 %v5467
        %v5469 = vperm.slane %v5461, %v5468
        %v5470 = vrot.slane %v5107, 4
        %v5471 = vsel %vm251, %v5470, %v5103
        %v5472 = vrot.slane %v5103, 4
        %v5473 = vsel %vm251, %v5107, %v5472
        %v5475 = vunpack.c.l.s4 1983009808
        %v5476 = vunpack.c.0.s8 %v5475
        %v5477 = vperm.slane %v5471, %v5476
        %v5479 = vunpack.c.l.s4 1983009808
        %v5480 = vunpack.c.0.s8 %v5479
        %v5481 = vperm.slane %v5473, %v5480
        %v5482 = vrot.slane %v5109, 4
        %v5483 = vsel %vm251, %v5482, %v5105
        %v5484 = vrot.slane %v5105, 4
        %v5485 = vsel %vm251, %v5109, %v5484
        %v5487 = vunpack.c.l.s4 1983009808
        %v5488 = vunpack.c.0.s8 %v5487
        %v5489 = vperm.slane %v5483, %v5488
        %v5491 = vunpack.c.l.s4 1983009808
        %v5492 = vunpack.c.0.s8 %v5491
        %v5493 = vperm.slane %v5485, %v5492
        %v5494 = vrot.slane %v5465, 4
        %v5495 = vsel %vm251, %v5494, %v5453
        %v5496 = vrot.slane %v5453, 4
        %v5497 = vsel %vm251, %v5465, %v5496
        %v5499 = vunpack.c.l.s4 1934713408
        %v5500 = vunpack.c.0.s8 %v5499
        %v5501 = vperm.slane %v5495, %v5500
        %v5503 = vunpack.c.l.s4 1934713408
        %v5504 = vunpack.c.0.s8 %v5503
        %v5505 = vperm.slane %v5497, %v5504
        %v5506 = vrot.slane %v5469, 4
        %v5507 = vsel %vm251, %v5506, %v5457
        %v5508 = vrot.slane %v5457, 4
        %v5509 = vsel %vm251, %v5469, %v5508
        %v5511 = vunpack.c.l.s4 1934713408
        %v5512 = vunpack.c.0.s8 %v5511
        %v5513 = vperm.slane %v5507, %v5512
        %v5515 = vunpack.c.l.s4 1934713408
        %v5516 = vunpack.c.0.s8 %v5515
        %v5517 = vperm.slane %v5509, %v5516
        %v5518 = vrot.slane %v5489, 4
        %v5519 = vsel %vm251, %v5518, %v5477
        %v5520 = vrot.slane %v5477, 4
        %v5521 = vsel %vm251, %v5489, %v5520
        %v5523 = vunpack.c.l.s4 1934713408
        %v5524 = vunpack.c.0.s8 %v5523
        %v5525 = vperm.slane %v5519, %v5524
        %v5527 = vunpack.c.l.s4 1934713408
        %v5528 = vunpack.c.0.s8 %v5527
        %v5529 = vperm.slane %v5521, %v5528
        %v5530 = vrot.slane %v5493, 4
        %v5531 = vsel %vm251, %v5530, %v5481
        %v5532 = vrot.slane %v5481, 4
        %v5533 = vsel %vm251, %v5493, %v5532
        %v5535 = vunpack.c.l.s4 1934713408
        %v5536 = vunpack.c.0.s8 %v5535
        %v5537 = vperm.slane %v5531, %v5536
        %v5539 = vunpack.c.l.s4 1934713408
        %v5540 = vunpack.c.0.s8 %v5539
        %v5541 = vperm.slane %v5533, %v5540
        %v5542 = vrot.slane %v5525, 4
        %v5543 = vsel %vm251, %v5542, %v5501
        %v5544 = vrot.slane %v5501, 4
        %v5545 = vsel %vm251, %v5525, %v5544
        %v5546 = vrot.slane %v5529, 4
        %v5547 = vsel %vm251, %v5546, %v5505
        %v5548 = vrot.slane %v5505, 4
        %v5549 = vsel %vm251, %v5529, %v5548
        %v5550 = vrot.slane %v5537, 4
        %v5551 = vsel %vm251, %v5550, %v5513
        %v5552 = vrot.slane %v5513, 4
        %v5553 = vsel %vm251, %v5537, %v5552
        %v5554 = vrot.slane %v5541, 4
        %v5555 = vsel %vm251, %v5554, %v5517
        %v5556 = vrot.slane %v5517, 4
        %v5557 = vsel %vm251, %v5541, %v5556
        %v5558 = vrot.slane %v5323, 4
        %v5559 = vsel %vm251, %v5558, %v5319
        %v5560 = vrot.slane %v5319, 4
        %v5561 = vsel %vm251, %v5323, %v5560
        %v5563 = vunpack.c.l.s4 1983009808
        %v5564 = vunpack.c.0.s8 %v5563
        %v5565 = vperm.slane %v5559, %v5564
        %v5567 = vunpack.c.l.s4 1983009808
        %v5568 = vunpack.c.0.s8 %v5567
        %v5569 = vperm.slane %v5561, %v5568
        %v5570 = vrot.slane %v5325, 4
        %v5571 = vsel %vm251, %v5570, %v5321
        %v5572 = vrot.slane %v5321, 4
        %v5573 = vsel %vm251, %v5325, %v5572
        %v5575 = vunpack.c.l.s4 1983009808
        %v5576 = vunpack.c.0.s8 %v5575
        %v5577 = vperm.slane %v5571, %v5576
        %v5579 = vunpack.c.l.s4 1983009808
        %v5580 = vunpack.c.0.s8 %v5579
        %v5581 = vperm.slane %v5573, %v5580
        %v5582 = vrot.slane %v5331, 4
        %v5583 = vsel %vm251, %v5582, %v5327
        %v5584 = vrot.slane %v5327, 4
        %v5585 = vsel %vm251, %v5331, %v5584
        %v5587 = vunpack.c.l.s4 1983009808
        %v5588 = vunpack.c.0.s8 %v5587
        %v5589 = vperm.slane %v5583, %v5588
        %v5591 = vunpack.c.l.s4 1983009808
        %v5592 = vunpack.c.0.s8 %v5591
        %v5593 = vperm.slane %v5585, %v5592
        %v5594 = vrot.slane %v5333, 4
        %v5595 = vsel %vm251, %v5594, %v5329
        %v5596 = vrot.slane %v5329, 4
        %v5597 = vsel %vm251, %v5333, %v5596
        %v5599 = vunpack.c.l.s4 1983009808
        %v5600 = vunpack.c.0.s8 %v5599
        %v5601 = vperm.slane %v5595, %v5600
        %v5603 = vunpack.c.l.s4 1983009808
        %v5604 = vunpack.c.0.s8 %v5603
        %v5605 = vperm.slane %v5597, %v5604
        %v5606 = vrot.slane %v5577, 4
        %v5607 = vsel %vm251, %v5606, %v5565
        %v5608 = vrot.slane %v5565, 4
        %v5609 = vsel %vm251, %v5577, %v5608
        %v5611 = vunpack.c.l.s4 1934713408
        %v5612 = vunpack.c.0.s8 %v5611
        %v5613 = vperm.slane %v5607, %v5612
        %v5615 = vunpack.c.l.s4 1934713408
        %v5616 = vunpack.c.0.s8 %v5615
        %v5617 = vperm.slane %v5609, %v5616
        %v5618 = vrot.slane %v5581, 4
        %v5619 = vsel %vm251, %v5618, %v5569
        %v5620 = vrot.slane %v5569, 4
        %v5621 = vsel %vm251, %v5581, %v5620
        %v5623 = vunpack.c.l.s4 1934713408
        %v5624 = vunpack.c.0.s8 %v5623
        %v5625 = vperm.slane %v5619, %v5624
        %v5627 = vunpack.c.l.s4 1934713408
        %v5628 = vunpack.c.0.s8 %v5627
        %v5629 = vperm.slane %v5621, %v5628
        %v5630 = vrot.slane %v5601, 4
        %v5631 = vsel %vm251, %v5630, %v5589
        %v5632 = vrot.slane %v5589, 4
        %v5633 = vsel %vm251, %v5601, %v5632
        %v5635 = vunpack.c.l.s4 1934713408
        %v5636 = vunpack.c.0.s8 %v5635
        %v5637 = vperm.slane %v5631, %v5636
        %v5639 = vunpack.c.l.s4 1934713408
        %v5640 = vunpack.c.0.s8 %v5639
        %v5641 = vperm.slane %v5633, %v5640
        %v5642 = vrot.slane %v5605, 4
        %v5643 = vsel %vm251, %v5642, %v5593
        %v5644 = vrot.slane %v5593, 4
        %v5645 = vsel %vm251, %v5605, %v5644
        %v5647 = vunpack.c.l.s4 1934713408
        %v5648 = vunpack.c.0.s8 %v5647
        %v5649 = vperm.slane %v5643, %v5648
        %v5651 = vunpack.c.l.s4 1934713408
        %v5652 = vunpack.c.0.s8 %v5651
        %v5653 = vperm.slane %v5645, %v5652
        %v5654 = vrot.slane %v5637, 4
        %v5655 = vsel %vm251, %v5654, %v5613
        %v5656 = vrot.slane %v5613, 4
        %v5657 = vsel %vm251, %v5637, %v5656
        %v5658 = vrot.slane %v5641, 4
        %v5659 = vsel %vm251, %v5658, %v5617
        %v5660 = vrot.slane %v5617, 4
        %v5661 = vsel %vm251, %v5641, %v5660
        %v5662 = vrot.slane %v5649, 4
        %v5663 = vsel %vm251, %v5662, %v5625
        %v5664 = vrot.slane %v5625, 4
        %v5665 = vsel %vm251, %v5649, %v5664
        %v5666 = vrot.slane %v5653, 4
        %v5667 = vsel %vm251, %v5666, %v5629
        %v5668 = vrot.slane %v5629, 4
        %v5669 = vsel %vm251, %v5653, %v5668
        %v5670 = vrot.slane %v5211, 4
        %v5671 = vsel %vm251, %v5670, %v5207
        %v5672 = vrot.slane %v5207, 4
        %v5673 = vsel %vm251, %v5211, %v5672
        %v5675 = vunpack.c.l.s4 1983009808
        %v5676 = vunpack.c.0.s8 %v5675
        %v5677 = vperm.slane %v5671, %v5676
        %v5679 = vunpack.c.l.s4 1983009808
        %v5680 = vunpack.c.0.s8 %v5679
        %v5681 = vperm.slane %v5673, %v5680
        %v5682 = vrot.slane %v5213, 4
        %v5683 = vsel %vm251, %v5682, %v5209
        %v5684 = vrot.slane %v5209, 4
        %v5685 = vsel %vm251, %v5213, %v5684
        %v5687 = vunpack.c.l.s4 1983009808
        %v5688 = vunpack.c.0.s8 %v5687
        %v5689 = vperm.slane %v5683, %v5688
        %v5691 = vunpack.c.l.s4 1983009808
        %v5692 = vunpack.c.0.s8 %v5691
        %v5693 = vperm.slane %v5685, %v5692
        %v5694 = vrot.slane %v5219, 4
        %v5695 = vsel %vm251, %v5694, %v5215
        %v5696 = vrot.slane %v5215, 4
        %v5697 = vsel %vm251, %v5219, %v5696
        %v5699 = vunpack.c.l.s4 1983009808
        %v5700 = vunpack.c.0.s8 %v5699
        %v5701 = vperm.slane %v5695, %v5700
        %v5703 = vunpack.c.l.s4 1983009808
        %v5704 = vunpack.c.0.s8 %v5703
        %v5705 = vperm.slane %v5697, %v5704
        %v5706 = vrot.slane %v5221, 4
        %v5707 = vsel %vm251, %v5706, %v5217
        %v5708 = vrot.slane %v5217, 4
        %v5709 = vsel %vm251, %v5221, %v5708
        %v5711 = vunpack.c.l.s4 1983009808
        %v5712 = vunpack.c.0.s8 %v5711
        %v5713 = vperm.slane %v5707, %v5712
        %v5715 = vunpack.c.l.s4 1983009808
        %v5716 = vunpack.c.0.s8 %v5715
        %v5717 = vperm.slane %v5709, %v5716
        %v5718 = vrot.slane %v5689, 4
        %v5719 = vsel %vm251, %v5718, %v5677
        %v5720 = vrot.slane %v5677, 4
        %v5721 = vsel %vm251, %v5689, %v5720
        %v5723 = vunpack.c.l.s4 1934713408
        %v5724 = vunpack.c.0.s8 %v5723
        %v5725 = vperm.slane %v5719, %v5724
        %v5727 = vunpack.c.l.s4 1934713408
        %v5728 = vunpack.c.0.s8 %v5727
        %v5729 = vperm.slane %v5721, %v5728
        %v5730 = vrot.slane %v5693, 4
        %v5731 = vsel %vm251, %v5730, %v5681
        %v5732 = vrot.slane %v5681, 4
        %v5733 = vsel %vm251, %v5693, %v5732
        %v5735 = vunpack.c.l.s4 1934713408
        %v5736 = vunpack.c.0.s8 %v5735
        %v5737 = vperm.slane %v5731, %v5736
        %v5739 = vunpack.c.l.s4 1934713408
        %v5740 = vunpack.c.0.s8 %v5739
        %v5741 = vperm.slane %v5733, %v5740
        %v5742 = vrot.slane %v5713, 4
        %v5743 = vsel %vm251, %v5742, %v5701
        %v5744 = vrot.slane %v5701, 4
        %v5745 = vsel %vm251, %v5713, %v5744
        %v5747 = vunpack.c.l.s4 1934713408
        %v5748 = vunpack.c.0.s8 %v5747
        %v5749 = vperm.slane %v5743, %v5748
        %v5751 = vunpack.c.l.s4 1934713408
        %v5752 = vunpack.c.0.s8 %v5751
        %v5753 = vperm.slane %v5745, %v5752
        %v5754 = vrot.slane %v5717, 4
        %v5755 = vsel %vm251, %v5754, %v5705
        %v5756 = vrot.slane %v5705, 4
        %v5757 = vsel %vm251, %v5717, %v5756
        %v5759 = vunpack.c.l.s4 1934713408
        %v5760 = vunpack.c.0.s8 %v5759
        %v5761 = vperm.slane %v5755, %v5760
        %v5763 = vunpack.c.l.s4 1934713408
        %v5764 = vunpack.c.0.s8 %v5763
        %v5765 = vperm.slane %v5757, %v5764
        %v5766 = vrot.slane %v5749, 4
        %v5767 = vsel %vm251, %v5766, %v5725
        %v5768 = vrot.slane %v5725, 4
        %v5769 = vsel %vm251, %v5749, %v5768
        %v5770 = vrot.slane %v5753, 4
        %v5771 = vsel %vm251, %v5770, %v5729
        %v5772 = vrot.slane %v5729, 4
        %v5773 = vsel %vm251, %v5753, %v5772
        %v5774 = vrot.slane %v5761, 4
        %v5775 = vsel %vm251, %v5774, %v5737
        %v5776 = vrot.slane %v5737, 4
        %v5777 = vsel %vm251, %v5761, %v5776
        %v5778 = vrot.slane %v5765, 4
        %v5779 = vsel %vm251, %v5778, %v5741
        %v5780 = vrot.slane %v5741, 4
        %v5781 = vsel %vm251, %v5765, %v5780
        %v5782 = vrot.slane %v5435, 4
        %v5783 = vsel %vm251, %v5782, %v5431
        %v5784 = vrot.slane %v5431, 4
        %v5785 = vsel %vm251, %v5435, %v5784
        %v5787 = vunpack.c.l.s4 1983009808
        %v5788 = vunpack.c.0.s8 %v5787
        %v5789 = vperm.slane %v5783, %v5788
        %v5791 = vunpack.c.l.s4 1983009808
        %v5792 = vunpack.c.0.s8 %v5791
        %v5793 = vperm.slane %v5785, %v5792
        %v5794 = vrot.slane %v5437, 4
        %v5795 = vsel %vm251, %v5794, %v5433
        %v5796 = vrot.slane %v5433, 4
        %v5797 = vsel %vm251, %v5437, %v5796
        %v5799 = vunpack.c.l.s4 1983009808
        %v5800 = vunpack.c.0.s8 %v5799
        %v5801 = vperm.slane %v5795, %v5800
        %v5803 = vunpack.c.l.s4 1983009808
        %v5804 = vunpack.c.0.s8 %v5803
        %v5805 = vperm.slane %v5797, %v5804
        %v5806 = vrot.slane %v5443, 4
        %v5807 = vsel %vm251, %v5806, %v5439
        %v5808 = vrot.slane %v5439, 4
        %v5809 = vsel %vm251, %v5443, %v5808
        %v5811 = vunpack.c.l.s4 1983009808
        %v5812 = vunpack.c.0.s8 %v5811
        %v5813 = vperm.slane %v5807, %v5812
        %v5815 = vunpack.c.l.s4 1983009808
        %v5816 = vunpack.c.0.s8 %v5815
        %v5817 = vperm.slane %v5809, %v5816
        %v5818 = vrot.slane %v5445, 4
        %v5819 = vsel %vm251, %v5818, %v5441
        %v5820 = vrot.slane %v5441, 4
        %v5821 = vsel %vm251, %v5445, %v5820
        %v5823 = vunpack.c.l.s4 1983009808
        %v5824 = vunpack.c.0.s8 %v5823
        %v5825 = vperm.slane %v5819, %v5824
        %v5827 = vunpack.c.l.s4 1983009808
        %v5828 = vunpack.c.0.s8 %v5827
        %v5829 = vperm.slane %v5821, %v5828
        %v5830 = vrot.slane %v5801, 4
        %v5831 = vsel %vm251, %v5830, %v5789
        %v5832 = vrot.slane %v5789, 4
        %v5833 = vsel %vm251, %v5801, %v5832
        %v5835 = vunpack.c.l.s4 1934713408
        %v5836 = vunpack.c.0.s8 %v5835
        %v5837 = vperm.slane %v5831, %v5836
        %v5839 = vunpack.c.l.s4 1934713408
        %v5840 = vunpack.c.0.s8 %v5839
        %v5841 = vperm.slane %v5833, %v5840
        %v5842 = vrot.slane %v5805, 4
        %v5843 = vsel %vm251, %v5842, %v5793
        %v5844 = vrot.slane %v5793, 4
        %v5845 = vsel %vm251, %v5805, %v5844
        %v5847 = vunpack.c.l.s4 1934713408
        %v5848 = vunpack.c.0.s8 %v5847
        %v5849 = vperm.slane %v5843, %v5848
        %v5851 = vunpack.c.l.s4 1934713408
        %v5852 = vunpack.c.0.s8 %v5851
        %v5853 = vperm.slane %v5845, %v5852
        %v5854 = vrot.slane %v5825, 4
        %v5855 = vsel %vm251, %v5854, %v5813
        %v5856 = vrot.slane %v5813, 4
        %v5857 = vsel %vm251, %v5825, %v5856
        %v5859 = vunpack.c.l.s4 1934713408
        %v5860 = vunpack.c.0.s8 %v5859
        %v5861 = vperm.slane %v5855, %v5860
        %v5863 = vunpack.c.l.s4 1934713408
        %v5864 = vunpack.c.0.s8 %v5863
        %v5865 = vperm.slane %v5857, %v5864
        %v5866 = vrot.slane %v5829, 4
        %v5867 = vsel %vm251, %v5866, %v5817
        %v5868 = vrot.slane %v5817, 4
        %v5869 = vsel %vm251, %v5829, %v5868
        %v5871 = vunpack.c.l.s4 1934713408
        %v5872 = vunpack.c.0.s8 %v5871
        %v5873 = vperm.slane %v5867, %v5872
        %v5875 = vunpack.c.l.s4 1934713408
        %v5876 = vunpack.c.0.s8 %v5875
        %v5877 = vperm.slane %v5869, %v5876
        %v5878 = vrot.slane %v5861, 4
        %v5879 = vsel %vm251, %v5878, %v5837
        %v5880 = vrot.slane %v5837, 4
        %v5881 = vsel %vm251, %v5861, %v5880
        %v5882 = vrot.slane %v5865, 4
        %v5883 = vsel %vm251, %v5882, %v5841
        %v5884 = vrot.slane %v5841, 4
        %v5885 = vsel %vm251, %v5865, %v5884
        %v5886 = vrot.slane %v5873, 4
        %v5887 = vsel %vm251, %v5886, %v5849
        %v5888 = vrot.slane %v5849, 4
        %v5889 = vsel %vm251, %v5873, %v5888
        %v5890 = vrot.slane %v5877, 4
        %v5891 = vsel %vm251, %v5890, %v5853
        %v5892 = vrot.slane %v5853, 4
        %v5893 = vsel %vm251, %v5877, %v5892
        %v5894 = vrot.slane %v5547, 4
        %v5895 = vsel %vm251, %v5894, %v5543
        %v5896 = vrot.slane %v5543, 4
        %v5897 = vsel %vm251, %v5547, %v5896
        %v5899 = vunpack.c.l.s4 1983009808
        %v5900 = vunpack.c.0.s8 %v5899
        %v5901 = vperm.slane %v5895, %v5900
        %v5903 = vunpack.c.l.s4 1983009808
        %v5904 = vunpack.c.0.s8 %v5903
        %v5905 = vperm.slane %v5897, %v5904
        %v5906 = vrot.slane %v5549, 4
        %v5907 = vsel %vm251, %v5906, %v5545
        %v5908 = vrot.slane %v5545, 4
        %v5909 = vsel %vm251, %v5549, %v5908
        %v5911 = vunpack.c.l.s4 1983009808
        %v5912 = vunpack.c.0.s8 %v5911
        %v5913 = vperm.slane %v5907, %v5912
        %v5915 = vunpack.c.l.s4 1983009808
        %v5916 = vunpack.c.0.s8 %v5915
        %v5917 = vperm.slane %v5909, %v5916
        %v5918 = vrot.slane %v5555, 4
        %v5919 = vsel %vm251, %v5918, %v5551
        %v5920 = vrot.slane %v5551, 4
        %v5921 = vsel %vm251, %v5555, %v5920
        %v5923 = vunpack.c.l.s4 1983009808
        %v5924 = vunpack.c.0.s8 %v5923
        %v5925 = vperm.slane %v5919, %v5924
        %v5927 = vunpack.c.l.s4 1983009808
        %v5928 = vunpack.c.0.s8 %v5927
        %v5929 = vperm.slane %v5921, %v5928
        %v5930 = vrot.slane %v5557, 4
        %v5931 = vsel %vm251, %v5930, %v5553
        %v5932 = vrot.slane %v5553, 4
        %v5933 = vsel %vm251, %v5557, %v5932
        %v5935 = vunpack.c.l.s4 1983009808
        %v5936 = vunpack.c.0.s8 %v5935
        %v5937 = vperm.slane %v5931, %v5936
        %v5939 = vunpack.c.l.s4 1983009808
        %v5940 = vunpack.c.0.s8 %v5939
        %v5941 = vperm.slane %v5933, %v5940
        %v5942 = vrot.slane %v5913, 4
        %v5943 = vsel %vm251, %v5942, %v5901
        %v5944 = vrot.slane %v5901, 4
        %v5945 = vsel %vm251, %v5913, %v5944
        %v5947 = vunpack.c.l.s4 1934713408
        %v5948 = vunpack.c.0.s8 %v5947
        %v5949 = vperm.slane %v5943, %v5948
        %v5951 = vunpack.c.l.s4 1934713408
        %v5952 = vunpack.c.0.s8 %v5951
        %v5953 = vperm.slane %v5945, %v5952
        %v5954 = vrot.slane %v5917, 4
        %v5955 = vsel %vm251, %v5954, %v5905
        %v5956 = vrot.slane %v5905, 4
        %v5957 = vsel %vm251, %v5917, %v5956
        %v5959 = vunpack.c.l.s4 1934713408
        %v5960 = vunpack.c.0.s8 %v5959
        %v5961 = vperm.slane %v5955, %v5960
        %v5963 = vunpack.c.l.s4 1934713408
        %v5964 = vunpack.c.0.s8 %v5963
        %v5965 = vperm.slane %v5957, %v5964
        %v5966 = vrot.slane %v5937, 4
        %v5967 = vsel %vm251, %v5966, %v5925
        %v5968 = vrot.slane %v5925, 4
        %v5969 = vsel %vm251, %v5937, %v5968
        %v5971 = vunpack.c.l.s4 1934713408
        %v5972 = vunpack.c.0.s8 %v5971
        %v5973 = vperm.slane %v5967, %v5972
        %v5975 = vunpack.c.l.s4 1934713408
        %v5976 = vunpack.c.0.s8 %v5975
        %v5977 = vperm.slane %v5969, %v5976
        %v5978 = vrot.slane %v5941, 4
        %v5979 = vsel %vm251, %v5978, %v5929
        %v5980 = vrot.slane %v5929, 4
        %v5981 = vsel %vm251, %v5941, %v5980
        %v5983 = vunpack.c.l.s4 1934713408
        %v5984 = vunpack.c.0.s8 %v5983
        %v5985 = vperm.slane %v5979, %v5984
        %v5987 = vunpack.c.l.s4 1934713408
        %v5988 = vunpack.c.0.s8 %v5987
        %v5989 = vperm.slane %v5981, %v5988
        %v5990 = vrot.slane %v5973, 4
        %v5991 = vsel %vm251, %v5990, %v5949
        %v5992 = vrot.slane %v5949, 4
        %v5993 = vsel %vm251, %v5973, %v5992
        %v5994 = vrot.slane %v5977, 4
        %v5995 = vsel %vm251, %v5994, %v5953
        %v5996 = vrot.slane %v5953, 4
        %v5997 = vsel %vm251, %v5977, %v5996
        %v5998 = vrot.slane %v5985, 4
        %v5999 = vsel %vm251, %v5998, %v5961
        %v6000 = vrot.slane %v5961, 4
        %v6001 = vsel %vm251, %v5985, %v6000
        %v6002 = vrot.slane %v5989, 4
        %v6003 = vsel %vm251, %v6002, %v5965
        %v6004 = vrot.slane %v5965, 4
        %v6005 = vsel %vm251, %v5989, %v6004
        %v6006 = vrot.slane %v5771, 4
        %v6007 = vsel %vm251, %v6006, %v5767
        %v6008 = vrot.slane %v5767, 4
        %v6009 = vsel %vm251, %v5771, %v6008
        %v6011 = vunpack.c.l.s4 1983009808
        %v6012 = vunpack.c.0.s8 %v6011
        %v6013 = vperm.slane %v6007, %v6012
        %v6015 = vunpack.c.l.s4 1983009808
        %v6016 = vunpack.c.0.s8 %v6015
        %v6017 = vperm.slane %v6009, %v6016
        %v6018 = vrot.slane %v5773, 4
        %v6019 = vsel %vm251, %v6018, %v5769
        %v6020 = vrot.slane %v5769, 4
        %v6021 = vsel %vm251, %v5773, %v6020
        %v6023 = vunpack.c.l.s4 1983009808
        %v6024 = vunpack.c.0.s8 %v6023
        %v6025 = vperm.slane %v6019, %v6024
        %v6027 = vunpack.c.l.s4 1983009808
        %v6028 = vunpack.c.0.s8 %v6027
        %v6029 = vperm.slane %v6021, %v6028
        %v6030 = vrot.slane %v5779, 4
        %v6031 = vsel %vm251, %v6030, %v5775
        %v6032 = vrot.slane %v5775, 4
        %v6033 = vsel %vm251, %v5779, %v6032
        %v6035 = vunpack.c.l.s4 1983009808
        %v6036 = vunpack.c.0.s8 %v6035
        %v6037 = vperm.slane %v6031, %v6036
        %v6039 = vunpack.c.l.s4 1983009808
        %v6040 = vunpack.c.0.s8 %v6039
        %v6041 = vperm.slane %v6033, %v6040
        %v6042 = vrot.slane %v5781, 4
        %v6043 = vsel %vm251, %v6042, %v5777
        %v6044 = vrot.slane %v5777, 4
        %v6045 = vsel %vm251, %v5781, %v6044
        %v6047 = vunpack.c.l.s4 1983009808
        %v6048 = vunpack.c.0.s8 %v6047
        %v6049 = vperm.slane %v6043, %v6048
        %v6051 = vunpack.c.l.s4 1983009808
        %v6052 = vunpack.c.0.s8 %v6051
        %v6053 = vperm.slane %v6045, %v6052
        %v6054 = vrot.slane %v6025, 4
        %v6055 = vsel %vm251, %v6054, %v6013
        %v6056 = vrot.slane %v6013, 4
        %v6057 = vsel %vm251, %v6025, %v6056
        %v6059 = vunpack.c.l.s4 1934713408
        %v6060 = vunpack.c.0.s8 %v6059
        %v6061 = vperm.slane %v6055, %v6060
        %v6063 = vunpack.c.l.s4 1934713408
        %v6064 = vunpack.c.0.s8 %v6063
        %v6065 = vperm.slane %v6057, %v6064
        %v6066 = vrot.slane %v6029, 4
        %v6067 = vsel %vm251, %v6066, %v6017
        %v6068 = vrot.slane %v6017, 4
        %v6069 = vsel %vm251, %v6029, %v6068
        %v6071 = vunpack.c.l.s4 1934713408
        %v6072 = vunpack.c.0.s8 %v6071
        %v6073 = vperm.slane %v6067, %v6072
        %v6075 = vunpack.c.l.s4 1934713408
        %v6076 = vunpack.c.0.s8 %v6075
        %v6077 = vperm.slane %v6069, %v6076
        %v6078 = vrot.slane %v6049, 4
        %v6079 = vsel %vm251, %v6078, %v6037
        %v6080 = vrot.slane %v6037, 4
        %v6081 = vsel %vm251, %v6049, %v6080
        %v6083 = vunpack.c.l.s4 1934713408
        %v6084 = vunpack.c.0.s8 %v6083
        %v6085 = vperm.slane %v6079, %v6084
        %v6087 = vunpack.c.l.s4 1934713408
        %v6088 = vunpack.c.0.s8 %v6087
        %v6089 = vperm.slane %v6081, %v6088
        %v6090 = vrot.slane %v6053, 4
        %v6091 = vsel %vm251, %v6090, %v6041
        %v6092 = vrot.slane %v6041, 4
        %v6093 = vsel %vm251, %v6053, %v6092
        %v6095 = vunpack.c.l.s4 1934713408
        %v6096 = vunpack.c.0.s8 %v6095
        %v6097 = vperm.slane %v6091, %v6096
        %v6099 = vunpack.c.l.s4 1934713408
        %v6100 = vunpack.c.0.s8 %v6099
        %v6101 = vperm.slane %v6093, %v6100
        %v6102 = vrot.slane %v6085, 4
        %v6103 = vsel %vm251, %v6102, %v6061
        %v6104 = vrot.slane %v6061, 4
        %v6105 = vsel %vm251, %v6085, %v6104
        %v6106 = vrot.slane %v6089, 4
        %v6107 = vsel %vm251, %v6106, %v6065
        %v6108 = vrot.slane %v6065, 4
        %v6109 = vsel %vm251, %v6089, %v6108
        %v6110 = vrot.slane %v6097, 4
        %v6111 = vsel %vm251, %v6110, %v6073
        %v6112 = vrot.slane %v6073, 4
        %v6113 = vsel %vm251, %v6097, %v6112
        %v6114 = vrot.slane %v6101, 4
        %v6115 = vsel %vm251, %v6114, %v6077
        %v6116 = vrot.slane %v6077, 4
        %v6117 = vsel %vm251, %v6101, %v6116
        %v6118 = vrot.slane %v5659, 4
        %v6119 = vsel %vm251, %v6118, %v5655
        %v6120 = vrot.slane %v5655, 4
        %v6121 = vsel %vm251, %v5659, %v6120
        %v6123 = vunpack.c.l.s4 1983009808
        %v6124 = vunpack.c.0.s8 %v6123
        %v6125 = vperm.slane %v6119, %v6124
        %v6127 = vunpack.c.l.s4 1983009808
        %v6128 = vunpack.c.0.s8 %v6127
        %v6129 = vperm.slane %v6121, %v6128
        %v6130 = vrot.slane %v5661, 4
        %v6131 = vsel %vm251, %v6130, %v5657
        %v6132 = vrot.slane %v5657, 4
        %v6133 = vsel %vm251, %v5661, %v6132
        %v6135 = vunpack.c.l.s4 1983009808
        %v6136 = vunpack.c.0.s8 %v6135
        %v6137 = vperm.slane %v6131, %v6136
        %v6139 = vunpack.c.l.s4 1983009808
        %v6140 = vunpack.c.0.s8 %v6139
        %v6141 = vperm.slane %v6133, %v6140
        %v6142 = vrot.slane %v5667, 4
        %v6143 = vsel %vm251, %v6142, %v5663
        %v6144 = vrot.slane %v5663, 4
        %v6145 = vsel %vm251, %v5667, %v6144
        %v6147 = vunpack.c.l.s4 1983009808
        %v6148 = vunpack.c.0.s8 %v6147
        %v6149 = vperm.slane %v6143, %v6148
        %v6151 = vunpack.c.l.s4 1983009808
        %v6152 = vunpack.c.0.s8 %v6151
        %v6153 = vperm.slane %v6145, %v6152
        %v6154 = vrot.slane %v5669, 4
        %v6155 = vsel %vm251, %v6154, %v5665
        %v6156 = vrot.slane %v5665, 4
        %v6157 = vsel %vm251, %v5669, %v6156
        %v6159 = vunpack.c.l.s4 1983009808
        %v6160 = vunpack.c.0.s8 %v6159
        %v6161 = vperm.slane %v6155, %v6160
        %v6163 = vunpack.c.l.s4 1983009808
        %v6164 = vunpack.c.0.s8 %v6163
        %v6165 = vperm.slane %v6157, %v6164
        %v6166 = vrot.slane %v6137, 4
        %v6167 = vsel %vm251, %v6166, %v6125
        %v6168 = vrot.slane %v6125, 4
        %v6169 = vsel %vm251, %v6137, %v6168
        %v6171 = vunpack.c.l.s4 1934713408
        %v6172 = vunpack.c.0.s8 %v6171
        %v6173 = vperm.slane %v6167, %v6172
        %v6175 = vunpack.c.l.s4 1934713408
        %v6176 = vunpack.c.0.s8 %v6175
        %v6177 = vperm.slane %v6169, %v6176
        %v6178 = vrot.slane %v6141, 4
        %v6179 = vsel %vm251, %v6178, %v6129
        %v6180 = vrot.slane %v6129, 4
        %v6181 = vsel %vm251, %v6141, %v6180
        %v6183 = vunpack.c.l.s4 1934713408
        %v6184 = vunpack.c.0.s8 %v6183
        %v6185 = vperm.slane %v6179, %v6184
        %v6187 = vunpack.c.l.s4 1934713408
        %v6188 = vunpack.c.0.s8 %v6187
        %v6189 = vperm.slane %v6181, %v6188
        %v6190 = vrot.slane %v6161, 4
        %v6191 = vsel %vm251, %v6190, %v6149
        %v6192 = vrot.slane %v6149, 4
        %v6193 = vsel %vm251, %v6161, %v6192
        %v6195 = vunpack.c.l.s4 1934713408
        %v6196 = vunpack.c.0.s8 %v6195
        %v6197 = vperm.slane %v6191, %v6196
        %v6199 = vunpack.c.l.s4 1934713408
        %v6200 = vunpack.c.0.s8 %v6199
        %v6201 = vperm.slane %v6193, %v6200
        %v6202 = vrot.slane %v6165, 4
        %v6203 = vsel %vm251, %v6202, %v6153
        %v6204 = vrot.slane %v6153, 4
        %v6205 = vsel %vm251, %v6165, %v6204
        %v6207 = vunpack.c.l.s4 1934713408
        %v6208 = vunpack.c.0.s8 %v6207
        %v6209 = vperm.slane %v6203, %v6208
        %v6211 = vunpack.c.l.s4 1934713408
        %v6212 = vunpack.c.0.s8 %v6211
        %v6213 = vperm.slane %v6205, %v6212
        %v6214 = vrot.slane %v6197, 4
        %v6215 = vsel %vm251, %v6214, %v6173
        %v6216 = vrot.slane %v6173, 4
        %v6217 = vsel %vm251, %v6197, %v6216
        %v6218 = vrot.slane %v6201, 4
        %v6219 = vsel %vm251, %v6218, %v6177
        %v6220 = vrot.slane %v6177, 4
        %v6221 = vsel %vm251, %v6201, %v6220
        %v6222 = vrot.slane %v6209, 4
        %v6223 = vsel %vm251, %v6222, %v6185
        %v6224 = vrot.slane %v6185, 4
        %v6225 = vsel %vm251, %v6209, %v6224
        %v6226 = vrot.slane %v6213, 4
        %v6227 = vsel %vm251, %v6226, %v6189
        %v6228 = vrot.slane %v6189, 4
        %v6229 = vsel %vm251, %v6213, %v6228
        %v6230 = vrot.slane %v5883, 4
        %v6231 = vsel %vm251, %v6230, %v5879
        %v6232 = vrot.slane %v5879, 4
        %v6233 = vsel %vm251, %v5883, %v6232
        %v6235 = vunpack.c.l.s4 1983009808
        %v6236 = vunpack.c.0.s8 %v6235
        %v6237 = vperm.slane %v6231, %v6236
        %v6239 = vunpack.c.l.s4 1983009808
        %v6240 = vunpack.c.0.s8 %v6239
        %v6241 = vperm.slane %v6233, %v6240
        %v6242 = vrot.slane %v5885, 4
        %v6243 = vsel %vm251, %v6242, %v5881
        %v6244 = vrot.slane %v5881, 4
        %v6245 = vsel %vm251, %v5885, %v6244
        %v6247 = vunpack.c.l.s4 1983009808
        %v6248 = vunpack.c.0.s8 %v6247
        %v6249 = vperm.slane %v6243, %v6248
        %v6251 = vunpack.c.l.s4 1983009808
        %v6252 = vunpack.c.0.s8 %v6251
        %v6253 = vperm.slane %v6245, %v6252
        %v6254 = vrot.slane %v5891, 4
        %v6255 = vsel %vm251, %v6254, %v5887
        %v6256 = vrot.slane %v5887, 4
        %v6257 = vsel %vm251, %v5891, %v6256
        %v6259 = vunpack.c.l.s4 1983009808
        %v6260 = vunpack.c.0.s8 %v6259
        %v6261 = vperm.slane %v6255, %v6260
        %v6263 = vunpack.c.l.s4 1983009808
        %v6264 = vunpack.c.0.s8 %v6263
        %v6265 = vperm.slane %v6257, %v6264
        %v6266 = vrot.slane %v5893, 4
        %v6267 = vsel %vm251, %v6266, %v5889
        %v6268 = vrot.slane %v5889, 4
        %v6269 = vsel %vm251, %v5893, %v6268
        %v6271 = vunpack.c.l.s4 1983009808
        %v6272 = vunpack.c.0.s8 %v6271
        %v6273 = vperm.slane %v6267, %v6272
        %v6275 = vunpack.c.l.s4 1983009808
        %v6276 = vunpack.c.0.s8 %v6275
        %v6277 = vperm.slane %v6269, %v6276
        %v6278 = vrot.slane %v6249, 4
        %v6279 = vsel %vm251, %v6278, %v6237
        %v6280 = vrot.slane %v6237, 4
        %v6281 = vsel %vm251, %v6249, %v6280
        %v6283 = vunpack.c.l.s4 1934713408
        %v6284 = vunpack.c.0.s8 %v6283
        %v6285 = vperm.slane %v6279, %v6284
        %v6287 = vunpack.c.l.s4 1934713408
        %v6288 = vunpack.c.0.s8 %v6287
        %v6289 = vperm.slane %v6281, %v6288
        %v6290 = vrot.slane %v6253, 4
        %v6291 = vsel %vm251, %v6290, %v6241
        %v6292 = vrot.slane %v6241, 4
        %v6293 = vsel %vm251, %v6253, %v6292
        %v6295 = vunpack.c.l.s4 1934713408
        %v6296 = vunpack.c.0.s8 %v6295
        %v6297 = vperm.slane %v6291, %v6296
        %v6299 = vunpack.c.l.s4 1934713408
        %v6300 = vunpack.c.0.s8 %v6299
        %v6301 = vperm.slane %v6293, %v6300
        %v6302 = vrot.slane %v6273, 4
        %v6303 = vsel %vm251, %v6302, %v6261
        %v6304 = vrot.slane %v6261, 4
        %v6305 = vsel %vm251, %v6273, %v6304
        %v6307 = vunpack.c.l.s4 1934713408
        %v6308 = vunpack.c.0.s8 %v6307
        %v6309 = vperm.slane %v6303, %v6308
        %v6311 = vunpack.c.l.s4 1934713408
        %v6312 = vunpack.c.0.s8 %v6311
        %v6313 = vperm.slane %v6305, %v6312
        %v6314 = vrot.slane %v6277, 4
        %v6315 = vsel %vm251, %v6314, %v6265
        %v6316 = vrot.slane %v6265, 4
        %v6317 = vsel %vm251, %v6277, %v6316
        %v6319 = vunpack.c.l.s4 1934713408
        %v6320 = vunpack.c.0.s8 %v6319
        %v6321 = vperm.slane %v6315, %v6320
        %v6323 = vunpack.c.l.s4 1934713408
        %v6324 = vunpack.c.0.s8 %v6323
        %v6325 = vperm.slane %v6317, %v6324
        %v6326 = vrot.slane %v6309, 4
        %v6327 = vsel %vm251, %v6326, %v6285
        %v6328 = vrot.slane %v6285, 4
        %v6329 = vsel %vm251, %v6309, %v6328
        %v6330 = vrot.slane %v6313, 4
        %v6331 = vsel %vm251, %v6330, %v6289
        %v6332 = vrot.slane %v6289, 4
        %v6333 = vsel %vm251, %v6313, %v6332
        %v6334 = vrot.slane %v6321, 4
        %v6335 = vsel %vm251, %v6334, %v6297
        %v6336 = vrot.slane %v6297, 4
        %v6337 = vsel %vm251, %v6321, %v6336
        %v6338 = vrot.slane %v6325, 4
        %v6339 = vsel %vm251, %v6338, %v6301
        %v6340 = vrot.slane %v6301, 4
        %v6341 = vsel %vm251, %v6325, %v6340
        %6344 = vrot.lane.b32.xlu0 %v5993, 16
        %v6345 = vpop.permute.xlu0 %6344
        %6346 = vrot.lane.b32.xlu0 %v6105, 16
        %v6347 = vpop.permute.xlu0 %6346
        %6352 = vrot.lane.b32.xlu0 %v5995, 32
        %v6353 = vpop.permute.xlu0 %6352
        %6354 = vrot.lane.b32.xlu0 %v6107, 32
        %v6355 = vpop.permute.xlu0 %6354
        %6360 = vrot.lane.b32.xlu0 %v5997, 48
        %v6361 = vpop.permute.xlu0 %6360
        %6362 = vrot.lane.b32.xlu0 %v6109, 48
        %v6363 = vpop.permute.xlu0 %6362
        %6368 = vrot.lane.b32.xlu0 %v5999, 64
        %v6369 = vpop.permute.xlu0 %6368
        %6370 = vrot.lane.b32.xlu0 %v6111, 64
        %v6371 = vpop.permute.xlu0 %6370
        %6376 = vrot.lane.b32.xlu0 %v6001, 80
        %v6377 = vpop.permute.xlu0 %6376
        %6378 = vrot.lane.b32.xlu0 %v6113, 80
        %v6379 = vpop.permute.xlu0 %6378
        %6384 = vrot.lane.b32.xlu0 %v6003, 96
        %v6385 = vpop.permute.xlu0 %6384
        %6386 = vrot.lane.b32.xlu0 %v6115, 96
        %v6387 = vpop.permute.xlu0 %6386
        %6392 = vrot.lane.b32.xlu0 %v6005, 112
        %v6393 = vpop.permute.xlu0 %6392
        %6394 = vrot.lane.b32.xlu0 %v6117, 112
        %v6395 = vpop.permute.xlu0 %6394
        %6400 = vrot.lane.b32.xlu0 %v6217, 16
        %v6401 = vpop.permute.xlu0 %6400
        %6402 = vrot.lane.b32.xlu0 %v6329, 16
        %v6403 = vpop.permute.xlu0 %6402
        %6408 = vrot.lane.b32.xlu0 %v6219, 32
        %v6409 = vpop.permute.xlu0 %6408
        %6410 = vrot.lane.b32.xlu0 %v6331, 32
        %v6411 = vpop.permute.xlu0 %6410
        %6416 = vrot.lane.b32.xlu0 %v6221, 48
        %v6417 = vpop.permute.xlu0 %6416
        %6418 = vrot.lane.b32.xlu0 %v6333, 48
        %v6419 = vpop.permute.xlu0 %6418
        %6424 = vrot.lane.b32.xlu0 %v6223, 64
        %v6425 = vpop.permute.xlu0 %6424
        %6426 = vrot.lane.b32.xlu0 %v6335, 64
        %v6427 = vpop.permute.xlu0 %6426
        %6432 = vrot.lane.b32.xlu0 %v6225, 80
        %v6433 = vpop.permute.xlu0 %6432
        %6434 = vrot.lane.b32.xlu0 %v6337, 80
        %v6435 = vpop.permute.xlu0 %6434
        %6440 = vrot.lane.b32.xlu0 %v6227, 96
        %v6441 = vpop.permute.xlu0 %6440
        %6442 = vrot.lane.b32.xlu0 %v6339, 96
        %v6443 = vpop.permute.xlu0 %6442
        %6448 = vrot.lane.b32.xlu0 %v6229, 112
        %v6449 = vpop.permute.xlu0 %6448
        %6450 = vrot.lane.b32.xlu0 %v6341, 112
        %v6451 = vpop.permute.xlu0 %6450
        %v6454 = vsel %vm1707, %v5991, %v6345
        %v6455 = vsel %vm1707, %v6103, %v6347
        %v6456 = vsel %vm1710, %v6454, %v6353
        %v6457 = vsel %vm1710, %v6455, %v6355
        %v6458 = vsel %vm1713, %v6456, %v6361
        %v6459 = vsel %vm1713, %v6457, %v6363
        %v6460 = vsel %vm1716, %v6458, %v6369
        %v6461 = vsel %vm1716, %v6459, %v6371
        %v6462 = vsel %vm1719, %v6460, %v6377
        %v6463 = vsel %vm1719, %v6461, %v6379
        %v6464 = vsel %vm1722, %v6462, %v6385
        %v6465 = vsel %vm1722, %v6463, %v6387
        %v6466 = vsel %vm1725, %v6464, %v6393
        %v6467 = vsel %vm1725, %v6465, %v6395
        %v6468 = vsel %vm1707, %v6215, %v6401
        %v6469 = vsel %vm1707, %v6327, %v6403
        %v6470 = vsel %vm1710, %v6468, %v6409
        %v6471 = vsel %vm1710, %v6469, %v6411
        %v6472 = vsel %vm1713, %v6470, %v6417
        %v6473 = vsel %vm1713, %v6471, %v6419
        %v6474 = vsel %vm1716, %v6472, %v6425
        %v6475 = vsel %vm1716, %v6473, %v6427
        %v6476 = vsel %vm1719, %v6474, %v6433
        %v6477 = vsel %vm1719, %v6475, %v6435
        %v6478 = vsel %vm1722, %v6476, %v6441
        %v6479 = vsel %vm1722, %v6477, %v6443
        %v6480 = vsel %vm1725, %v6478, %v6449
        %v6481 = vsel %vm1725, %v6479, %v6451
        %6482 = vst [vmem:[%s155 + $0x60] sm:$0xff] %v6466
        %6483 = vst [vmem:[%s155 + $0x68] sm:$0xff] %v6480
        %6484 = vst [vmem:[%s155 + $0x70] sm:$0xff] %v6467
        %6485 = vst [vmem:[%s155 + $0x78] sm:$0xff] %v6481
        %v6486 = vld [vmem:[%s136 + $0x80] sm:$0xff]
        %v6487 = vld [vmem:[%s136 + $0x88] sm:$0xff]
        %v6488 = vld [vmem:[%s136 + $0x90] sm:$0xff]
        %v6489 = vld [vmem:[%s136 + $0x98] sm:$0xff]
        %6492 = vrot.lane.b32.xlu0 %v6486, 112
        %v6493 = vpop.permute.xlu0 %6492
        %6494 = vrot.lane.b32.xlu0 %v6488, 112
        %v6495 = vpop.permute.xlu0 %6494
        %6498 = vrot.lane.b32.xlu0 %v6486, 96
        %v6499 = vpop.permute.xlu0 %6498
        %6500 = vrot.lane.b32.xlu0 %v6488, 96
        %v6501 = vpop.permute.xlu0 %6500
        %6504 = vrot.lane.b32.xlu0 %v6486, 80
        %v6505 = vpop.permute.xlu0 %6504
        %6506 = vrot.lane.b32.xlu0 %v6488, 80
        %v6507 = vpop.permute.xlu0 %6506
        %6510 = vrot.lane.b32.xlu0 %v6486, 64
        %v6511 = vpop.permute.xlu0 %6510
        %6512 = vrot.lane.b32.xlu0 %v6488, 64
        %v6513 = vpop.permute.xlu0 %6512
        %6516 = vrot.lane.b32.xlu0 %v6486, 48
        %v6517 = vpop.permute.xlu0 %6516
        %6518 = vrot.lane.b32.xlu0 %v6488, 48
        %v6519 = vpop.permute.xlu0 %6518
        %6522 = vrot.lane.b32.xlu0 %v6486, 32
        %v6523 = vpop.permute.xlu0 %6522
        %6524 = vrot.lane.b32.xlu0 %v6488, 32
        %v6525 = vpop.permute.xlu0 %6524
        %6528 = vrot.lane.b32.xlu0 %v6486, 16
        %v6529 = vpop.permute.xlu0 %6528
        %6530 = vrot.lane.b32.xlu0 %v6488, 16
        %v6531 = vpop.permute.xlu0 %6530
        %6536 = vrot.lane.b32.xlu0 %v6487, 112
        %v6537 = vpop.permute.xlu0 %6536
        %6538 = vrot.lane.b32.xlu0 %v6489, 112
        %v6539 = vpop.permute.xlu0 %6538
        %6542 = vrot.lane.b32.xlu0 %v6487, 96
        %v6543 = vpop.permute.xlu0 %6542
        %6544 = vrot.lane.b32.xlu0 %v6489, 96
        %v6545 = vpop.permute.xlu0 %6544
        %6548 = vrot.lane.b32.xlu0 %v6487, 80
        %v6549 = vpop.permute.xlu0 %6548
        %6550 = vrot.lane.b32.xlu0 %v6489, 80
        %v6551 = vpop.permute.xlu0 %6550
        %6554 = vrot.lane.b32.xlu0 %v6487, 64
        %v6555 = vpop.permute.xlu0 %6554
        %6556 = vrot.lane.b32.xlu0 %v6489, 64
        %v6557 = vpop.permute.xlu0 %6556
        %6560 = vrot.lane.b32.xlu0 %v6487, 48
        %v6561 = vpop.permute.xlu0 %6560
        %6562 = vrot.lane.b32.xlu0 %v6489, 48
        %v6563 = vpop.permute.xlu0 %6562
        %6566 = vrot.lane.b32.xlu0 %v6487, 32
        %v6567 = vpop.permute.xlu0 %6566
        %6568 = vrot.lane.b32.xlu0 %v6489, 32
        %v6569 = vpop.permute.xlu0 %6568
        %6572 = vrot.lane.b32.xlu0 %v6487, 16
        %v6573 = vpop.permute.xlu0 %6572
        %6574 = vrot.lane.b32.xlu0 %v6489, 16
        %v6575 = vpop.permute.xlu0 %6574
        %v6578 = vrot.slane %v6499, 4
        %v6579 = vsel %vm251, %v6578, %v6486
        %v6580 = vrot.slane %v6486, 4
        %v6581 = vsel %vm251, %v6499, %v6580
        %v6583 = vunpack.c.l.s4 1983009808
        %v6584 = vunpack.c.0.s8 %v6583
        %v6585 = vperm.slane %v6579, %v6584
        %v6587 = vunpack.c.l.s4 1983009808
        %v6588 = vunpack.c.0.s8 %v6587
        %v6589 = vperm.slane %v6581, %v6588
        %v6590 = vrot.slane %v6505, 4
        %v6591 = vsel %vm251, %v6590, %v6493
        %v6592 = vrot.slane %v6493, 4
        %v6593 = vsel %vm251, %v6505, %v6592
        %v6595 = vunpack.c.l.s4 1983009808
        %v6596 = vunpack.c.0.s8 %v6595
        %v6597 = vperm.slane %v6591, %v6596
        %v6599 = vunpack.c.l.s4 1983009808
        %v6600 = vunpack.c.0.s8 %v6599
        %v6601 = vperm.slane %v6593, %v6600
        %v6602 = vrot.slane %v6523, 4
        %v6603 = vsel %vm251, %v6602, %v6511
        %v6604 = vrot.slane %v6511, 4
        %v6605 = vsel %vm251, %v6523, %v6604
        %v6607 = vunpack.c.l.s4 1983009808
        %v6608 = vunpack.c.0.s8 %v6607
        %v6609 = vperm.slane %v6603, %v6608
        %v6611 = vunpack.c.l.s4 1983009808
        %v6612 = vunpack.c.0.s8 %v6611
        %v6613 = vperm.slane %v6605, %v6612
        %v6614 = vrot.slane %v6529, 4
        %v6615 = vsel %vm251, %v6614, %v6517
        %v6616 = vrot.slane %v6517, 4
        %v6617 = vsel %vm251, %v6529, %v6616
        %v6619 = vunpack.c.l.s4 1983009808
        %v6620 = vunpack.c.0.s8 %v6619
        %v6621 = vperm.slane %v6615, %v6620
        %v6623 = vunpack.c.l.s4 1983009808
        %v6624 = vunpack.c.0.s8 %v6623
        %v6625 = vperm.slane %v6617, %v6624
        %v6626 = vrot.slane %v6597, 4
        %v6627 = vsel %vm251, %v6626, %v6585
        %v6628 = vrot.slane %v6585, 4
        %v6629 = vsel %vm251, %v6597, %v6628
        %v6631 = vunpack.c.l.s4 1934713408
        %v6632 = vunpack.c.0.s8 %v6631
        %v6633 = vperm.slane %v6627, %v6632
        %v6635 = vunpack.c.l.s4 1934713408
        %v6636 = vunpack.c.0.s8 %v6635
        %v6637 = vperm.slane %v6629, %v6636
        %v6638 = vrot.slane %v6601, 4
        %v6639 = vsel %vm251, %v6638, %v6589
        %v6640 = vrot.slane %v6589, 4
        %v6641 = vsel %vm251, %v6601, %v6640
        %v6643 = vunpack.c.l.s4 1934713408
        %v6644 = vunpack.c.0.s8 %v6643
        %v6645 = vperm.slane %v6639, %v6644
        %v6647 = vunpack.c.l.s4 1934713408
        %v6648 = vunpack.c.0.s8 %v6647
        %v6649 = vperm.slane %v6641, %v6648
        %v6650 = vrot.slane %v6621, 4
        %v6651 = vsel %vm251, %v6650, %v6609
        %v6652 = vrot.slane %v6609, 4
        %v6653 = vsel %vm251, %v6621, %v6652
        %v6655 = vunpack.c.l.s4 1934713408
        %v6656 = vunpack.c.0.s8 %v6655
        %v6657 = vperm.slane %v6651, %v6656
        %v6659 = vunpack.c.l.s4 1934713408
        %v6660 = vunpack.c.0.s8 %v6659
        %v6661 = vperm.slane %v6653, %v6660
        %v6662 = vrot.slane %v6625, 4
        %v6663 = vsel %vm251, %v6662, %v6613
        %v6664 = vrot.slane %v6613, 4
        %v6665 = vsel %vm251, %v6625, %v6664
        %v6667 = vunpack.c.l.s4 1934713408
        %v6668 = vunpack.c.0.s8 %v6667
        %v6669 = vperm.slane %v6663, %v6668
        %v6671 = vunpack.c.l.s4 1934713408
        %v6672 = vunpack.c.0.s8 %v6671
        %v6673 = vperm.slane %v6665, %v6672
        %v6674 = vrot.slane %v6657, 4
        %v6675 = vsel %vm251, %v6674, %v6633
        %v6676 = vrot.slane %v6633, 4
        %v6677 = vsel %vm251, %v6657, %v6676
        %v6678 = vrot.slane %v6661, 4
        %v6679 = vsel %vm251, %v6678, %v6637
        %v6680 = vrot.slane %v6637, 4
        %v6681 = vsel %vm251, %v6661, %v6680
        %v6682 = vrot.slane %v6669, 4
        %v6683 = vsel %vm251, %v6682, %v6645
        %v6684 = vrot.slane %v6645, 4
        %v6685 = vsel %vm251, %v6669, %v6684
        %v6686 = vrot.slane %v6673, 4
        %v6687 = vsel %vm251, %v6686, %v6649
        %v6688 = vrot.slane %v6649, 4
        %v6689 = vsel %vm251, %v6673, %v6688
        %v6690 = vrot.slane %v6543, 4
        %v6691 = vsel %vm251, %v6690, %v6487
        %v6692 = vrot.slane %v6487, 4
        %v6693 = vsel %vm251, %v6543, %v6692
        %v6695 = vunpack.c.l.s4 1983009808
        %v6696 = vunpack.c.0.s8 %v6695
        %v6697 = vperm.slane %v6691, %v6696
        %v6699 = vunpack.c.l.s4 1983009808
        %v6700 = vunpack.c.0.s8 %v6699
        %v6701 = vperm.slane %v6693, %v6700
        %v6702 = vrot.slane %v6549, 4
        %v6703 = vsel %vm251, %v6702, %v6537
        %v6704 = vrot.slane %v6537, 4
        %v6705 = vsel %vm251, %v6549, %v6704
        %v6707 = vunpack.c.l.s4 1983009808
        %v6708 = vunpack.c.0.s8 %v6707
        %v6709 = vperm.slane %v6703, %v6708
        %v6711 = vunpack.c.l.s4 1983009808
        %v6712 = vunpack.c.0.s8 %v6711
        %v6713 = vperm.slane %v6705, %v6712
        %v6714 = vrot.slane %v6567, 4
        %v6715 = vsel %vm251, %v6714, %v6555
        %v6716 = vrot.slane %v6555, 4
        %v6717 = vsel %vm251, %v6567, %v6716
        %v6719 = vunpack.c.l.s4 1983009808
        %v6720 = vunpack.c.0.s8 %v6719
        %v6721 = vperm.slane %v6715, %v6720
        %v6723 = vunpack.c.l.s4 1983009808
        %v6724 = vunpack.c.0.s8 %v6723
        %v6725 = vperm.slane %v6717, %v6724
        %v6726 = vrot.slane %v6573, 4
        %v6727 = vsel %vm251, %v6726, %v6561
        %v6728 = vrot.slane %v6561, 4
        %v6729 = vsel %vm251, %v6573, %v6728
        %v6731 = vunpack.c.l.s4 1983009808
        %v6732 = vunpack.c.0.s8 %v6731
        %v6733 = vperm.slane %v6727, %v6732
        %v6735 = vunpack.c.l.s4 1983009808
        %v6736 = vunpack.c.0.s8 %v6735
        %v6737 = vperm.slane %v6729, %v6736
        %v6738 = vrot.slane %v6709, 4
        %v6739 = vsel %vm251, %v6738, %v6697
        %v6740 = vrot.slane %v6697, 4
        %v6741 = vsel %vm251, %v6709, %v6740
        %v6743 = vunpack.c.l.s4 1934713408
        %v6744 = vunpack.c.0.s8 %v6743
        %v6745 = vperm.slane %v6739, %v6744
        %v6747 = vunpack.c.l.s4 1934713408
        %v6748 = vunpack.c.0.s8 %v6747
        %v6749 = vperm.slane %v6741, %v6748
        %v6750 = vrot.slane %v6713, 4
        %v6751 = vsel %vm251, %v6750, %v6701
        %v6752 = vrot.slane %v6701, 4
        %v6753 = vsel %vm251, %v6713, %v6752
        %v6755 = vunpack.c.l.s4 1934713408
        %v6756 = vunpack.c.0.s8 %v6755
        %v6757 = vperm.slane %v6751, %v6756
        %v6759 = vunpack.c.l.s4 1934713408
        %v6760 = vunpack.c.0.s8 %v6759
        %v6761 = vperm.slane %v6753, %v6760
        %v6762 = vrot.slane %v6733, 4
        %v6763 = vsel %vm251, %v6762, %v6721
        %v6764 = vrot.slane %v6721, 4
        %v6765 = vsel %vm251, %v6733, %v6764
        %v6767 = vunpack.c.l.s4 1934713408
        %v6768 = vunpack.c.0.s8 %v6767
        %v6769 = vperm.slane %v6763, %v6768
        %v6771 = vunpack.c.l.s4 1934713408
        %v6772 = vunpack.c.0.s8 %v6771
        %v6773 = vperm.slane %v6765, %v6772
        %v6774 = vrot.slane %v6737, 4
        %v6775 = vsel %vm251, %v6774, %v6725
        %v6776 = vrot.slane %v6725, 4
        %v6777 = vsel %vm251, %v6737, %v6776
        %v6779 = vunpack.c.l.s4 1934713408
        %v6780 = vunpack.c.0.s8 %v6779
        %v6781 = vperm.slane %v6775, %v6780
        %v6783 = vunpack.c.l.s4 1934713408
        %v6784 = vunpack.c.0.s8 %v6783
        %v6785 = vperm.slane %v6777, %v6784
        %v6786 = vrot.slane %v6769, 4
        %v6787 = vsel %vm251, %v6786, %v6745
        %v6788 = vrot.slane %v6745, 4
        %v6789 = vsel %vm251, %v6769, %v6788
        %v6790 = vrot.slane %v6773, 4
        %v6791 = vsel %vm251, %v6790, %v6749
        %v6792 = vrot.slane %v6749, 4
        %v6793 = vsel %vm251, %v6773, %v6792
        %v6794 = vrot.slane %v6781, 4
        %v6795 = vsel %vm251, %v6794, %v6757
        %v6796 = vrot.slane %v6757, 4
        %v6797 = vsel %vm251, %v6781, %v6796
        %v6798 = vrot.slane %v6785, 4
        %v6799 = vsel %vm251, %v6798, %v6761
        %v6800 = vrot.slane %v6761, 4
        %v6801 = vsel %vm251, %v6785, %v6800
        %v6802 = vrot.slane %v6501, 4
        %v6803 = vsel %vm251, %v6802, %v6488
        %v6804 = vrot.slane %v6488, 4
        %v6805 = vsel %vm251, %v6501, %v6804
        %v6807 = vunpack.c.l.s4 1983009808
        %v6808 = vunpack.c.0.s8 %v6807
        %v6809 = vperm.slane %v6803, %v6808
        %v6811 = vunpack.c.l.s4 1983009808
        %v6812 = vunpack.c.0.s8 %v6811
        %v6813 = vperm.slane %v6805, %v6812
        %v6814 = vrot.slane %v6507, 4
        %v6815 = vsel %vm251, %v6814, %v6495
        %v6816 = vrot.slane %v6495, 4
        %v6817 = vsel %vm251, %v6507, %v6816
        %v6819 = vunpack.c.l.s4 1983009808
        %v6820 = vunpack.c.0.s8 %v6819
        %v6821 = vperm.slane %v6815, %v6820
        %v6823 = vunpack.c.l.s4 1983009808
        %v6824 = vunpack.c.0.s8 %v6823
        %v6825 = vperm.slane %v6817, %v6824
        %v6826 = vrot.slane %v6525, 4
        %v6827 = vsel %vm251, %v6826, %v6513
        %v6828 = vrot.slane %v6513, 4
        %v6829 = vsel %vm251, %v6525, %v6828
        %v6831 = vunpack.c.l.s4 1983009808
        %v6832 = vunpack.c.0.s8 %v6831
        %v6833 = vperm.slane %v6827, %v6832
        %v6835 = vunpack.c.l.s4 1983009808
        %v6836 = vunpack.c.0.s8 %v6835
        %v6837 = vperm.slane %v6829, %v6836
        %v6838 = vrot.slane %v6531, 4
        %v6839 = vsel %vm251, %v6838, %v6519
        %v6840 = vrot.slane %v6519, 4
        %v6841 = vsel %vm251, %v6531, %v6840
        %v6843 = vunpack.c.l.s4 1983009808
        %v6844 = vunpack.c.0.s8 %v6843
        %v6845 = vperm.slane %v6839, %v6844
        %v6847 = vunpack.c.l.s4 1983009808
        %v6848 = vunpack.c.0.s8 %v6847
        %v6849 = vperm.slane %v6841, %v6848
        %v6850 = vrot.slane %v6821, 4
        %v6851 = vsel %vm251, %v6850, %v6809
        %v6852 = vrot.slane %v6809, 4
        %v6853 = vsel %vm251, %v6821, %v6852
        %v6855 = vunpack.c.l.s4 1934713408
        %v6856 = vunpack.c.0.s8 %v6855
        %v6857 = vperm.slane %v6851, %v6856
        %v6859 = vunpack.c.l.s4 1934713408
        %v6860 = vunpack.c.0.s8 %v6859
        %v6861 = vperm.slane %v6853, %v6860
        %v6862 = vrot.slane %v6825, 4
        %v6863 = vsel %vm251, %v6862, %v6813
        %v6864 = vrot.slane %v6813, 4
        %v6865 = vsel %vm251, %v6825, %v6864
        %v6867 = vunpack.c.l.s4 1934713408
        %v6868 = vunpack.c.0.s8 %v6867
        %v6869 = vperm.slane %v6863, %v6868
        %v6871 = vunpack.c.l.s4 1934713408
        %v6872 = vunpack.c.0.s8 %v6871
        %v6873 = vperm.slane %v6865, %v6872
        %v6874 = vrot.slane %v6845, 4
        %v6875 = vsel %vm251, %v6874, %v6833
        %v6876 = vrot.slane %v6833, 4
        %v6877 = vsel %vm251, %v6845, %v6876
        %v6879 = vunpack.c.l.s4 1934713408
        %v6880 = vunpack.c.0.s8 %v6879
        %v6881 = vperm.slane %v6875, %v6880
        %v6883 = vunpack.c.l.s4 1934713408
        %v6884 = vunpack.c.0.s8 %v6883
        %v6885 = vperm.slane %v6877, %v6884
        %v6886 = vrot.slane %v6849, 4
        %v6887 = vsel %vm251, %v6886, %v6837
        %v6888 = vrot.slane %v6837, 4
        %v6889 = vsel %vm251, %v6849, %v6888
        %v6891 = vunpack.c.l.s4 1934713408
        %v6892 = vunpack.c.0.s8 %v6891
        %v6893 = vperm.slane %v6887, %v6892
        %v6895 = vunpack.c.l.s4 1934713408
        %v6896 = vunpack.c.0.s8 %v6895
        %v6897 = vperm.slane %v6889, %v6896
        %v6898 = vrot.slane %v6881, 4
        %v6899 = vsel %vm251, %v6898, %v6857
        %v6900 = vrot.slane %v6857, 4
        %v6901 = vsel %vm251, %v6881, %v6900
        %v6902 = vrot.slane %v6885, 4
        %v6903 = vsel %vm251, %v6902, %v6861
        %v6904 = vrot.slane %v6861, 4
        %v6905 = vsel %vm251, %v6885, %v6904
        %v6906 = vrot.slane %v6893, 4
        %v6907 = vsel %vm251, %v6906, %v6869
        %v6908 = vrot.slane %v6869, 4
        %v6909 = vsel %vm251, %v6893, %v6908
        %v6910 = vrot.slane %v6897, 4
        %v6911 = vsel %vm251, %v6910, %v6873
        %v6912 = vrot.slane %v6873, 4
        %v6913 = vsel %vm251, %v6897, %v6912
        %v6914 = vrot.slane %v6545, 4
        %v6915 = vsel %vm251, %v6914, %v6489
        %v6916 = vrot.slane %v6489, 4
        %v6917 = vsel %vm251, %v6545, %v6916
        %v6919 = vunpack.c.l.s4 1983009808
        %v6920 = vunpack.c.0.s8 %v6919
        %v6921 = vperm.slane %v6915, %v6920
        %v6923 = vunpack.c.l.s4 1983009808
        %v6924 = vunpack.c.0.s8 %v6923
        %v6925 = vperm.slane %v6917, %v6924
        %v6926 = vrot.slane %v6551, 4
        %v6927 = vsel %vm251, %v6926, %v6539
        %v6928 = vrot.slane %v6539, 4
        %v6929 = vsel %vm251, %v6551, %v6928
        %v6931 = vunpack.c.l.s4 1983009808
        %v6932 = vunpack.c.0.s8 %v6931
        %v6933 = vperm.slane %v6927, %v6932
        %v6935 = vunpack.c.l.s4 1983009808
        %v6936 = vunpack.c.0.s8 %v6935
        %v6937 = vperm.slane %v6929, %v6936
        %v6938 = vrot.slane %v6569, 4
        %v6939 = vsel %vm251, %v6938, %v6557
        %v6940 = vrot.slane %v6557, 4
        %v6941 = vsel %vm251, %v6569, %v6940
        %v6943 = vunpack.c.l.s4 1983009808
        %v6944 = vunpack.c.0.s8 %v6943
        %v6945 = vperm.slane %v6939, %v6944
        %v6947 = vunpack.c.l.s4 1983009808
        %v6948 = vunpack.c.0.s8 %v6947
        %v6949 = vperm.slane %v6941, %v6948
        %v6950 = vrot.slane %v6575, 4
        %v6951 = vsel %vm251, %v6950, %v6563
        %v6952 = vrot.slane %v6563, 4
        %v6953 = vsel %vm251, %v6575, %v6952
        %v6955 = vunpack.c.l.s4 1983009808
        %v6956 = vunpack.c.0.s8 %v6955
        %v6957 = vperm.slane %v6951, %v6956
        %v6959 = vunpack.c.l.s4 1983009808
        %v6960 = vunpack.c.0.s8 %v6959
        %v6961 = vperm.slane %v6953, %v6960
        %v6962 = vrot.slane %v6933, 4
        %v6963 = vsel %vm251, %v6962, %v6921
        %v6964 = vrot.slane %v6921, 4
        %v6965 = vsel %vm251, %v6933, %v6964
        %v6967 = vunpack.c.l.s4 1934713408
        %v6968 = vunpack.c.0.s8 %v6967
        %v6969 = vperm.slane %v6963, %v6968
        %v6971 = vunpack.c.l.s4 1934713408
        %v6972 = vunpack.c.0.s8 %v6971
        %v6973 = vperm.slane %v6965, %v6972
        %v6974 = vrot.slane %v6937, 4
        %v6975 = vsel %vm251, %v6974, %v6925
        %v6976 = vrot.slane %v6925, 4
        %v6977 = vsel %vm251, %v6937, %v6976
        %v6979 = vunpack.c.l.s4 1934713408
        %v6980 = vunpack.c.0.s8 %v6979
        %v6981 = vperm.slane %v6975, %v6980
        %v6983 = vunpack.c.l.s4 1934713408
        %v6984 = vunpack.c.0.s8 %v6983
        %v6985 = vperm.slane %v6977, %v6984
        %v6986 = vrot.slane %v6957, 4
        %v6987 = vsel %vm251, %v6986, %v6945
        %v6988 = vrot.slane %v6945, 4
        %v6989 = vsel %vm251, %v6957, %v6988
        %v6991 = vunpack.c.l.s4 1934713408
        %v6992 = vunpack.c.0.s8 %v6991
        %v6993 = vperm.slane %v6987, %v6992
        %v6995 = vunpack.c.l.s4 1934713408
        %v6996 = vunpack.c.0.s8 %v6995
        %v6997 = vperm.slane %v6989, %v6996
        %v6998 = vrot.slane %v6961, 4
        %v6999 = vsel %vm251, %v6998, %v6949
        %v7000 = vrot.slane %v6949, 4
        %v7001 = vsel %vm251, %v6961, %v7000
        %v7003 = vunpack.c.l.s4 1934713408
        %v7004 = vunpack.c.0.s8 %v7003
        %v7005 = vperm.slane %v6999, %v7004
        %v7007 = vunpack.c.l.s4 1934713408
        %v7008 = vunpack.c.0.s8 %v7007
        %v7009 = vperm.slane %v7001, %v7008
        %v7010 = vrot.slane %v6993, 4
        %v7011 = vsel %vm251, %v7010, %v6969
        %v7012 = vrot.slane %v6969, 4
        %v7013 = vsel %vm251, %v6993, %v7012
        %v7014 = vrot.slane %v6997, 4
        %v7015 = vsel %vm251, %v7014, %v6973
        %v7016 = vrot.slane %v6973, 4
        %v7017 = vsel %vm251, %v6997, %v7016
        %v7018 = vrot.slane %v7005, 4
        %v7019 = vsel %vm251, %v7018, %v6981
        %v7020 = vrot.slane %v6981, 4
        %v7021 = vsel %vm251, %v7005, %v7020
        %v7022 = vrot.slane %v7009, 4
        %v7023 = vsel %vm251, %v7022, %v6985
        %v7024 = vrot.slane %v6985, 4
        %v7025 = vsel %vm251, %v7009, %v7024
        %v7026 = vrot.slane %v6679, 4
        %v7027 = vsel %vm251, %v7026, %v6675
        %v7028 = vrot.slane %v6675, 4
        %v7029 = vsel %vm251, %v6679, %v7028
        %v7031 = vunpack.c.l.s4 1983009808
        %v7032 = vunpack.c.0.s8 %v7031
        %v7033 = vperm.slane %v7027, %v7032
        %v7035 = vunpack.c.l.s4 1983009808
        %v7036 = vunpack.c.0.s8 %v7035
        %v7037 = vperm.slane %v7029, %v7036
        %v7038 = vrot.slane %v6681, 4
        %v7039 = vsel %vm251, %v7038, %v6677
        %v7040 = vrot.slane %v6677, 4
        %v7041 = vsel %vm251, %v6681, %v7040
        %v7043 = vunpack.c.l.s4 1983009808
        %v7044 = vunpack.c.0.s8 %v7043
        %v7045 = vperm.slane %v7039, %v7044
        %v7047 = vunpack.c.l.s4 1983009808
        %v7048 = vunpack.c.0.s8 %v7047
        %v7049 = vperm.slane %v7041, %v7048
        %v7050 = vrot.slane %v6687, 4
        %v7051 = vsel %vm251, %v7050, %v6683
        %v7052 = vrot.slane %v6683, 4
        %v7053 = vsel %vm251, %v6687, %v7052
        %v7055 = vunpack.c.l.s4 1983009808
        %v7056 = vunpack.c.0.s8 %v7055
        %v7057 = vperm.slane %v7051, %v7056
        %v7059 = vunpack.c.l.s4 1983009808
        %v7060 = vunpack.c.0.s8 %v7059
        %v7061 = vperm.slane %v7053, %v7060
        %v7062 = vrot.slane %v6689, 4
        %v7063 = vsel %vm251, %v7062, %v6685
        %v7064 = vrot.slane %v6685, 4
        %v7065 = vsel %vm251, %v6689, %v7064
        %v7067 = vunpack.c.l.s4 1983009808
        %v7068 = vunpack.c.0.s8 %v7067
        %v7069 = vperm.slane %v7063, %v7068
        %v7071 = vunpack.c.l.s4 1983009808
        %v7072 = vunpack.c.0.s8 %v7071
        %v7073 = vperm.slane %v7065, %v7072
        %v7074 = vrot.slane %v7045, 4
        %v7075 = vsel %vm251, %v7074, %v7033
        %v7076 = vrot.slane %v7033, 4
        %v7077 = vsel %vm251, %v7045, %v7076
        %v7079 = vunpack.c.l.s4 1934713408
        %v7080 = vunpack.c.0.s8 %v7079
        %v7081 = vperm.slane %v7075, %v7080
        %v7083 = vunpack.c.l.s4 1934713408
        %v7084 = vunpack.c.0.s8 %v7083
        %v7085 = vperm.slane %v7077, %v7084
        %v7086 = vrot.slane %v7049, 4
        %v7087 = vsel %vm251, %v7086, %v7037
        %v7088 = vrot.slane %v7037, 4
        %v7089 = vsel %vm251, %v7049, %v7088
        %v7091 = vunpack.c.l.s4 1934713408
        %v7092 = vunpack.c.0.s8 %v7091
        %v7093 = vperm.slane %v7087, %v7092
        %v7095 = vunpack.c.l.s4 1934713408
        %v7096 = vunpack.c.0.s8 %v7095
        %v7097 = vperm.slane %v7089, %v7096
        %v7098 = vrot.slane %v7069, 4
        %v7099 = vsel %vm251, %v7098, %v7057
        %v7100 = vrot.slane %v7057, 4
        %v7101 = vsel %vm251, %v7069, %v7100
        %v7103 = vunpack.c.l.s4 1934713408
        %v7104 = vunpack.c.0.s8 %v7103
        %v7105 = vperm.slane %v7099, %v7104
        %v7107 = vunpack.c.l.s4 1934713408
        %v7108 = vunpack.c.0.s8 %v7107
        %v7109 = vperm.slane %v7101, %v7108
        %v7110 = vrot.slane %v7073, 4
        %v7111 = vsel %vm251, %v7110, %v7061
        %v7112 = vrot.slane %v7061, 4
        %v7113 = vsel %vm251, %v7073, %v7112
        %v7115 = vunpack.c.l.s4 1934713408
        %v7116 = vunpack.c.0.s8 %v7115
        %v7117 = vperm.slane %v7111, %v7116
        %v7119 = vunpack.c.l.s4 1934713408
        %v7120 = vunpack.c.0.s8 %v7119
        %v7121 = vperm.slane %v7113, %v7120
        %v7122 = vrot.slane %v7105, 4
        %v7123 = vsel %vm251, %v7122, %v7081
        %v7124 = vrot.slane %v7081, 4
        %v7125 = vsel %vm251, %v7105, %v7124
        %v7126 = vrot.slane %v7109, 4
        %v7127 = vsel %vm251, %v7126, %v7085
        %v7128 = vrot.slane %v7085, 4
        %v7129 = vsel %vm251, %v7109, %v7128
        %v7130 = vrot.slane %v7117, 4
        %v7131 = vsel %vm251, %v7130, %v7093
        %v7132 = vrot.slane %v7093, 4
        %v7133 = vsel %vm251, %v7117, %v7132
        %v7134 = vrot.slane %v7121, 4
        %v7135 = vsel %vm251, %v7134, %v7097
        %v7136 = vrot.slane %v7097, 4
        %v7137 = vsel %vm251, %v7121, %v7136
        %v7138 = vrot.slane %v6903, 4
        %v7139 = vsel %vm251, %v7138, %v6899
        %v7140 = vrot.slane %v6899, 4
        %v7141 = vsel %vm251, %v6903, %v7140
        %v7143 = vunpack.c.l.s4 1983009808
        %v7144 = vunpack.c.0.s8 %v7143
        %v7145 = vperm.slane %v7139, %v7144
        %v7147 = vunpack.c.l.s4 1983009808
        %v7148 = vunpack.c.0.s8 %v7147
        %v7149 = vperm.slane %v7141, %v7148
        %v7150 = vrot.slane %v6905, 4
        %v7151 = vsel %vm251, %v7150, %v6901
        %v7152 = vrot.slane %v6901, 4
        %v7153 = vsel %vm251, %v6905, %v7152
        %v7155 = vunpack.c.l.s4 1983009808
        %v7156 = vunpack.c.0.s8 %v7155
        %v7157 = vperm.slane %v7151, %v7156
        %v7159 = vunpack.c.l.s4 1983009808
        %v7160 = vunpack.c.0.s8 %v7159
        %v7161 = vperm.slane %v7153, %v7160
        %v7162 = vrot.slane %v6911, 4
        %v7163 = vsel %vm251, %v7162, %v6907
        %v7164 = vrot.slane %v6907, 4
        %v7165 = vsel %vm251, %v6911, %v7164
        %v7167 = vunpack.c.l.s4 1983009808
        %v7168 = vunpack.c.0.s8 %v7167
        %v7169 = vperm.slane %v7163, %v7168
        %v7171 = vunpack.c.l.s4 1983009808
        %v7172 = vunpack.c.0.s8 %v7171
        %v7173 = vperm.slane %v7165, %v7172
        %v7174 = vrot.slane %v6913, 4
        %v7175 = vsel %vm251, %v7174, %v6909
        %v7176 = vrot.slane %v6909, 4
        %v7177 = vsel %vm251, %v6913, %v7176
        %v7179 = vunpack.c.l.s4 1983009808
        %v7180 = vunpack.c.0.s8 %v7179
        %v7181 = vperm.slane %v7175, %v7180
        %v7183 = vunpack.c.l.s4 1983009808
        %v7184 = vunpack.c.0.s8 %v7183
        %v7185 = vperm.slane %v7177, %v7184
        %v7186 = vrot.slane %v7157, 4
        %v7187 = vsel %vm251, %v7186, %v7145
        %v7188 = vrot.slane %v7145, 4
        %v7189 = vsel %vm251, %v7157, %v7188
        %v7191 = vunpack.c.l.s4 1934713408
        %v7192 = vunpack.c.0.s8 %v7191
        %v7193 = vperm.slane %v7187, %v7192
        %v7195 = vunpack.c.l.s4 1934713408
        %v7196 = vunpack.c.0.s8 %v7195
        %v7197 = vperm.slane %v7189, %v7196
        %v7198 = vrot.slane %v7161, 4
        %v7199 = vsel %vm251, %v7198, %v7149
        %v7200 = vrot.slane %v7149, 4
        %v7201 = vsel %vm251, %v7161, %v7200
        %v7203 = vunpack.c.l.s4 1934713408
        %v7204 = vunpack.c.0.s8 %v7203
        %v7205 = vperm.slane %v7199, %v7204
        %v7207 = vunpack.c.l.s4 1934713408
        %v7208 = vunpack.c.0.s8 %v7207
        %v7209 = vperm.slane %v7201, %v7208
        %v7210 = vrot.slane %v7181, 4
        %v7211 = vsel %vm251, %v7210, %v7169
        %v7212 = vrot.slane %v7169, 4
        %v7213 = vsel %vm251, %v7181, %v7212
        %v7215 = vunpack.c.l.s4 1934713408
        %v7216 = vunpack.c.0.s8 %v7215
        %v7217 = vperm.slane %v7211, %v7216
        %v7219 = vunpack.c.l.s4 1934713408
        %v7220 = vunpack.c.0.s8 %v7219
        %v7221 = vperm.slane %v7213, %v7220
        %v7222 = vrot.slane %v7185, 4
        %v7223 = vsel %vm251, %v7222, %v7173
        %v7224 = vrot.slane %v7173, 4
        %v7225 = vsel %vm251, %v7185, %v7224
        %v7227 = vunpack.c.l.s4 1934713408
        %v7228 = vunpack.c.0.s8 %v7227
        %v7229 = vperm.slane %v7223, %v7228
        %v7231 = vunpack.c.l.s4 1934713408
        %v7232 = vunpack.c.0.s8 %v7231
        %v7233 = vperm.slane %v7225, %v7232
        %v7234 = vrot.slane %v7217, 4
        %v7235 = vsel %vm251, %v7234, %v7193
        %v7236 = vrot.slane %v7193, 4
        %v7237 = vsel %vm251, %v7217, %v7236
        %v7238 = vrot.slane %v7221, 4
        %v7239 = vsel %vm251, %v7238, %v7197
        %v7240 = vrot.slane %v7197, 4
        %v7241 = vsel %vm251, %v7221, %v7240
        %v7242 = vrot.slane %v7229, 4
        %v7243 = vsel %vm251, %v7242, %v7205
        %v7244 = vrot.slane %v7205, 4
        %v7245 = vsel %vm251, %v7229, %v7244
        %v7246 = vrot.slane %v7233, 4
        %v7247 = vsel %vm251, %v7246, %v7209
        %v7248 = vrot.slane %v7209, 4
        %v7249 = vsel %vm251, %v7233, %v7248
        %v7250 = vrot.slane %v6791, 4
        %v7251 = vsel %vm251, %v7250, %v6787
        %v7252 = vrot.slane %v6787, 4
        %v7253 = vsel %vm251, %v6791, %v7252
        %v7255 = vunpack.c.l.s4 1983009808
        %v7256 = vunpack.c.0.s8 %v7255
        %v7257 = vperm.slane %v7251, %v7256
        %v7259 = vunpack.c.l.s4 1983009808
        %v7260 = vunpack.c.0.s8 %v7259
        %v7261 = vperm.slane %v7253, %v7260
        %v7262 = vrot.slane %v6793, 4
        %v7263 = vsel %vm251, %v7262, %v6789
        %v7264 = vrot.slane %v6789, 4
        %v7265 = vsel %vm251, %v6793, %v7264
        %v7267 = vunpack.c.l.s4 1983009808
        %v7268 = vunpack.c.0.s8 %v7267
        %v7269 = vperm.slane %v7263, %v7268
        %v7271 = vunpack.c.l.s4 1983009808
        %v7272 = vunpack.c.0.s8 %v7271
        %v7273 = vperm.slane %v7265, %v7272
        %v7274 = vrot.slane %v6799, 4
        %v7275 = vsel %vm251, %v7274, %v6795
        %v7276 = vrot.slane %v6795, 4
        %v7277 = vsel %vm251, %v6799, %v7276
        %v7279 = vunpack.c.l.s4 1983009808
        %v7280 = vunpack.c.0.s8 %v7279
        %v7281 = vperm.slane %v7275, %v7280
        %v7283 = vunpack.c.l.s4 1983009808
        %v7284 = vunpack.c.0.s8 %v7283
        %v7285 = vperm.slane %v7277, %v7284
        %v7286 = vrot.slane %v6801, 4
        %v7287 = vsel %vm251, %v7286, %v6797
        %v7288 = vrot.slane %v6797, 4
        %v7289 = vsel %vm251, %v6801, %v7288
        %v7291 = vunpack.c.l.s4 1983009808
        %v7292 = vunpack.c.0.s8 %v7291
        %v7293 = vperm.slane %v7287, %v7292
        %v7295 = vunpack.c.l.s4 1983009808
        %v7296 = vunpack.c.0.s8 %v7295
        %v7297 = vperm.slane %v7289, %v7296
        %v7298 = vrot.slane %v7269, 4
        %v7299 = vsel %vm251, %v7298, %v7257
        %v7300 = vrot.slane %v7257, 4
        %v7301 = vsel %vm251, %v7269, %v7300
        %v7303 = vunpack.c.l.s4 1934713408
        %v7304 = vunpack.c.0.s8 %v7303
        %v7305 = vperm.slane %v7299, %v7304
        %v7307 = vunpack.c.l.s4 1934713408
        %v7308 = vunpack.c.0.s8 %v7307
        %v7309 = vperm.slane %v7301, %v7308
        %v7310 = vrot.slane %v7273, 4
        %v7311 = vsel %vm251, %v7310, %v7261
        %v7312 = vrot.slane %v7261, 4
        %v7313 = vsel %vm251, %v7273, %v7312
        %v7315 = vunpack.c.l.s4 1934713408
        %v7316 = vunpack.c.0.s8 %v7315
        %v7317 = vperm.slane %v7311, %v7316
        %v7319 = vunpack.c.l.s4 1934713408
        %v7320 = vunpack.c.0.s8 %v7319
        %v7321 = vperm.slane %v7313, %v7320
        %v7322 = vrot.slane %v7293, 4
        %v7323 = vsel %vm251, %v7322, %v7281
        %v7324 = vrot.slane %v7281, 4
        %v7325 = vsel %vm251, %v7293, %v7324
        %v7327 = vunpack.c.l.s4 1934713408
        %v7328 = vunpack.c.0.s8 %v7327
        %v7329 = vperm.slane %v7323, %v7328
        %v7331 = vunpack.c.l.s4 1934713408
        %v7332 = vunpack.c.0.s8 %v7331
        %v7333 = vperm.slane %v7325, %v7332
        %v7334 = vrot.slane %v7297, 4
        %v7335 = vsel %vm251, %v7334, %v7285
        %v7336 = vrot.slane %v7285, 4
        %v7337 = vsel %vm251, %v7297, %v7336
        %v7339 = vunpack.c.l.s4 1934713408
        %v7340 = vunpack.c.0.s8 %v7339
        %v7341 = vperm.slane %v7335, %v7340
        %v7343 = vunpack.c.l.s4 1934713408
        %v7344 = vunpack.c.0.s8 %v7343
        %v7345 = vperm.slane %v7337, %v7344
        %v7346 = vrot.slane %v7329, 4
        %v7347 = vsel %vm251, %v7346, %v7305
        %v7348 = vrot.slane %v7305, 4
        %v7349 = vsel %vm251, %v7329, %v7348
        %v7350 = vrot.slane %v7333, 4
        %v7351 = vsel %vm251, %v7350, %v7309
        %v7352 = vrot.slane %v7309, 4
        %v7353 = vsel %vm251, %v7333, %v7352
        %v7354 = vrot.slane %v7341, 4
        %v7355 = vsel %vm251, %v7354, %v7317
        %v7356 = vrot.slane %v7317, 4
        %v7357 = vsel %vm251, %v7341, %v7356
        %v7358 = vrot.slane %v7345, 4
        %v7359 = vsel %vm251, %v7358, %v7321
        %v7360 = vrot.slane %v7321, 4
        %v7361 = vsel %vm251, %v7345, %v7360
        %v7362 = vrot.slane %v7015, 4
        %v7363 = vsel %vm251, %v7362, %v7011
        %v7364 = vrot.slane %v7011, 4
        %v7365 = vsel %vm251, %v7015, %v7364
        %v7367 = vunpack.c.l.s4 1983009808
        %v7368 = vunpack.c.0.s8 %v7367
        %v7369 = vperm.slane %v7363, %v7368
        %v7371 = vunpack.c.l.s4 1983009808
        %v7372 = vunpack.c.0.s8 %v7371
        %v7373 = vperm.slane %v7365, %v7372
        %v7374 = vrot.slane %v7017, 4
        %v7375 = vsel %vm251, %v7374, %v7013
        %v7376 = vrot.slane %v7013, 4
        %v7377 = vsel %vm251, %v7017, %v7376
        %v7379 = vunpack.c.l.s4 1983009808
        %v7380 = vunpack.c.0.s8 %v7379
        %v7381 = vperm.slane %v7375, %v7380
        %v7383 = vunpack.c.l.s4 1983009808
        %v7384 = vunpack.c.0.s8 %v7383
        %v7385 = vperm.slane %v7377, %v7384
        %v7386 = vrot.slane %v7023, 4
        %v7387 = vsel %vm251, %v7386, %v7019
        %v7388 = vrot.slane %v7019, 4
        %v7389 = vsel %vm251, %v7023, %v7388
        %v7391 = vunpack.c.l.s4 1983009808
        %v7392 = vunpack.c.0.s8 %v7391
        %v7393 = vperm.slane %v7387, %v7392
        %v7395 = vunpack.c.l.s4 1983009808
        %v7396 = vunpack.c.0.s8 %v7395
        %v7397 = vperm.slane %v7389, %v7396
        %v7398 = vrot.slane %v7025, 4
        %v7399 = vsel %vm251, %v7398, %v7021
        %v7400 = vrot.slane %v7021, 4
        %v7401 = vsel %vm251, %v7025, %v7400
        %v7403 = vunpack.c.l.s4 1983009808
        %v7404 = vunpack.c.0.s8 %v7403
        %v7405 = vperm.slane %v7399, %v7404
        %v7407 = vunpack.c.l.s4 1983009808
        %v7408 = vunpack.c.0.s8 %v7407
        %v7409 = vperm.slane %v7401, %v7408
        %v7410 = vrot.slane %v7381, 4
        %v7411 = vsel %vm251, %v7410, %v7369
        %v7412 = vrot.slane %v7369, 4
        %v7413 = vsel %vm251, %v7381, %v7412
        %v7415 = vunpack.c.l.s4 1934713408
        %v7416 = vunpack.c.0.s8 %v7415
        %v7417 = vperm.slane %v7411, %v7416
        %v7419 = vunpack.c.l.s4 1934713408
        %v7420 = vunpack.c.0.s8 %v7419
        %v7421 = vperm.slane %v7413, %v7420
        %v7422 = vrot.slane %v7385, 4
        %v7423 = vsel %vm251, %v7422, %v7373
        %v7424 = vrot.slane %v7373, 4
        %v7425 = vsel %vm251, %v7385, %v7424
        %v7427 = vunpack.c.l.s4 1934713408
        %v7428 = vunpack.c.0.s8 %v7427
        %v7429 = vperm.slane %v7423, %v7428
        %v7431 = vunpack.c.l.s4 1934713408
        %v7432 = vunpack.c.0.s8 %v7431
        %v7433 = vperm.slane %v7425, %v7432
        %v7434 = vrot.slane %v7405, 4
        %v7435 = vsel %vm251, %v7434, %v7393
        %v7436 = vrot.slane %v7393, 4
        %v7437 = vsel %vm251, %v7405, %v7436
        %v7439 = vunpack.c.l.s4 1934713408
        %v7440 = vunpack.c.0.s8 %v7439
        %v7441 = vperm.slane %v7435, %v7440
        %v7443 = vunpack.c.l.s4 1934713408
        %v7444 = vunpack.c.0.s8 %v7443
        %v7445 = vperm.slane %v7437, %v7444
        %v7446 = vrot.slane %v7409, 4
        %v7447 = vsel %vm251, %v7446, %v7397
        %v7448 = vrot.slane %v7397, 4
        %v7449 = vsel %vm251, %v7409, %v7448
        %v7451 = vunpack.c.l.s4 1934713408
        %v7452 = vunpack.c.0.s8 %v7451
        %v7453 = vperm.slane %v7447, %v7452
        %v7455 = vunpack.c.l.s4 1934713408
        %v7456 = vunpack.c.0.s8 %v7455
        %v7457 = vperm.slane %v7449, %v7456
        %v7458 = vrot.slane %v7441, 4
        %v7459 = vsel %vm251, %v7458, %v7417
        %v7460 = vrot.slane %v7417, 4
        %v7461 = vsel %vm251, %v7441, %v7460
        %v7462 = vrot.slane %v7445, 4
        %v7463 = vsel %vm251, %v7462, %v7421
        %v7464 = vrot.slane %v7421, 4
        %v7465 = vsel %vm251, %v7445, %v7464
        %v7466 = vrot.slane %v7453, 4
        %v7467 = vsel %vm251, %v7466, %v7429
        %v7468 = vrot.slane %v7429, 4
        %v7469 = vsel %vm251, %v7453, %v7468
        %v7470 = vrot.slane %v7457, 4
        %v7471 = vsel %vm251, %v7470, %v7433
        %v7472 = vrot.slane %v7433, 4
        %v7473 = vsel %vm251, %v7457, %v7472
        %v7474 = vrot.slane %v7127, 4
        %v7475 = vsel %vm251, %v7474, %v7123
        %v7476 = vrot.slane %v7123, 4
        %v7477 = vsel %vm251, %v7127, %v7476
        %v7479 = vunpack.c.l.s4 1983009808
        %v7480 = vunpack.c.0.s8 %v7479
        %v7481 = vperm.slane %v7475, %v7480
        %v7483 = vunpack.c.l.s4 1983009808
        %v7484 = vunpack.c.0.s8 %v7483
        %v7485 = vperm.slane %v7477, %v7484
        %v7486 = vrot.slane %v7129, 4
        %v7487 = vsel %vm251, %v7486, %v7125
        %v7488 = vrot.slane %v7125, 4
        %v7489 = vsel %vm251, %v7129, %v7488
        %v7491 = vunpack.c.l.s4 1983009808
        %v7492 = vunpack.c.0.s8 %v7491
        %v7493 = vperm.slane %v7487, %v7492
        %v7495 = vunpack.c.l.s4 1983009808
        %v7496 = vunpack.c.0.s8 %v7495
        %v7497 = vperm.slane %v7489, %v7496
        %v7498 = vrot.slane %v7135, 4
        %v7499 = vsel %vm251, %v7498, %v7131
        %v7500 = vrot.slane %v7131, 4
        %v7501 = vsel %vm251, %v7135, %v7500
        %v7503 = vunpack.c.l.s4 1983009808
        %v7504 = vunpack.c.0.s8 %v7503
        %v7505 = vperm.slane %v7499, %v7504
        %v7507 = vunpack.c.l.s4 1983009808
        %v7508 = vunpack.c.0.s8 %v7507
        %v7509 = vperm.slane %v7501, %v7508
        %v7510 = vrot.slane %v7137, 4
        %v7511 = vsel %vm251, %v7510, %v7133
        %v7512 = vrot.slane %v7133, 4
        %v7513 = vsel %vm251, %v7137, %v7512
        %v7515 = vunpack.c.l.s4 1983009808
        %v7516 = vunpack.c.0.s8 %v7515
        %v7517 = vperm.slane %v7511, %v7516
        %v7519 = vunpack.c.l.s4 1983009808
        %v7520 = vunpack.c.0.s8 %v7519
        %v7521 = vperm.slane %v7513, %v7520
        %v7522 = vrot.slane %v7493, 4
        %v7523 = vsel %vm251, %v7522, %v7481
        %v7524 = vrot.slane %v7481, 4
        %v7525 = vsel %vm251, %v7493, %v7524
        %v7527 = vunpack.c.l.s4 1934713408
        %v7528 = vunpack.c.0.s8 %v7527
        %v7529 = vperm.slane %v7523, %v7528
        %v7531 = vunpack.c.l.s4 1934713408
        %v7532 = vunpack.c.0.s8 %v7531
        %v7533 = vperm.slane %v7525, %v7532
        %v7534 = vrot.slane %v7497, 4
        %v7535 = vsel %vm251, %v7534, %v7485
        %v7536 = vrot.slane %v7485, 4
        %v7537 = vsel %vm251, %v7497, %v7536
        %v7539 = vunpack.c.l.s4 1934713408
        %v7540 = vunpack.c.0.s8 %v7539
        %v7541 = vperm.slane %v7535, %v7540
        %v7543 = vunpack.c.l.s4 1934713408
        %v7544 = vunpack.c.0.s8 %v7543
        %v7545 = vperm.slane %v7537, %v7544
        %v7546 = vrot.slane %v7517, 4
        %v7547 = vsel %vm251, %v7546, %v7505
        %v7548 = vrot.slane %v7505, 4
        %v7549 = vsel %vm251, %v7517, %v7548
        %v7551 = vunpack.c.l.s4 1934713408
        %v7552 = vunpack.c.0.s8 %v7551
        %v7553 = vperm.slane %v7547, %v7552
        %v7555 = vunpack.c.l.s4 1934713408
        %v7556 = vunpack.c.0.s8 %v7555
        %v7557 = vperm.slane %v7549, %v7556
        %v7558 = vrot.slane %v7521, 4
        %v7559 = vsel %vm251, %v7558, %v7509
        %v7560 = vrot.slane %v7509, 4
        %v7561 = vsel %vm251, %v7521, %v7560
        %v7563 = vunpack.c.l.s4 1934713408
        %v7564 = vunpack.c.0.s8 %v7563
        %v7565 = vperm.slane %v7559, %v7564
        %v7567 = vunpack.c.l.s4 1934713408
        %v7568 = vunpack.c.0.s8 %v7567
        %v7569 = vperm.slane %v7561, %v7568
        %v7570 = vrot.slane %v7553, 4
        %v7571 = vsel %vm251, %v7570, %v7529
        %v7572 = vrot.slane %v7529, 4
        %v7573 = vsel %vm251, %v7553, %v7572
        %v7574 = vrot.slane %v7557, 4
        %v7575 = vsel %vm251, %v7574, %v7533
        %v7576 = vrot.slane %v7533, 4
        %v7577 = vsel %vm251, %v7557, %v7576
        %v7578 = vrot.slane %v7565, 4
        %v7579 = vsel %vm251, %v7578, %v7541
        %v7580 = vrot.slane %v7541, 4
        %v7581 = vsel %vm251, %v7565, %v7580
        %v7582 = vrot.slane %v7569, 4
        %v7583 = vsel %vm251, %v7582, %v7545
        %v7584 = vrot.slane %v7545, 4
        %v7585 = vsel %vm251, %v7569, %v7584
        %v7586 = vrot.slane %v7351, 4
        %v7587 = vsel %vm251, %v7586, %v7347
        %v7588 = vrot.slane %v7347, 4
        %v7589 = vsel %vm251, %v7351, %v7588
        %v7591 = vunpack.c.l.s4 1983009808
        %v7592 = vunpack.c.0.s8 %v7591
        %v7593 = vperm.slane %v7587, %v7592
        %v7595 = vunpack.c.l.s4 1983009808
        %v7596 = vunpack.c.0.s8 %v7595
        %v7597 = vperm.slane %v7589, %v7596
        %v7598 = vrot.slane %v7353, 4
        %v7599 = vsel %vm251, %v7598, %v7349
        %v7600 = vrot.slane %v7349, 4
        %v7601 = vsel %vm251, %v7353, %v7600
        %v7603 = vunpack.c.l.s4 1983009808
        %v7604 = vunpack.c.0.s8 %v7603
        %v7605 = vperm.slane %v7599, %v7604
        %v7607 = vunpack.c.l.s4 1983009808
        %v7608 = vunpack.c.0.s8 %v7607
        %v7609 = vperm.slane %v7601, %v7608
        %v7610 = vrot.slane %v7359, 4
        %v7611 = vsel %vm251, %v7610, %v7355
        %v7612 = vrot.slane %v7355, 4
        %v7613 = vsel %vm251, %v7359, %v7612
        %v7615 = vunpack.c.l.s4 1983009808
        %v7616 = vunpack.c.0.s8 %v7615
        %v7617 = vperm.slane %v7611, %v7616
        %v7619 = vunpack.c.l.s4 1983009808
        %v7620 = vunpack.c.0.s8 %v7619
        %v7621 = vperm.slane %v7613, %v7620
        %v7622 = vrot.slane %v7361, 4
        %v7623 = vsel %vm251, %v7622, %v7357
        %v7624 = vrot.slane %v7357, 4
        %v7625 = vsel %vm251, %v7361, %v7624
        %v7627 = vunpack.c.l.s4 1983009808
        %v7628 = vunpack.c.0.s8 %v7627
        %v7629 = vperm.slane %v7623, %v7628
        %v7631 = vunpack.c.l.s4 1983009808
        %v7632 = vunpack.c.0.s8 %v7631
        %v7633 = vperm.slane %v7625, %v7632
        %v7634 = vrot.slane %v7605, 4
        %v7635 = vsel %vm251, %v7634, %v7593
        %v7636 = vrot.slane %v7593, 4
        %v7637 = vsel %vm251, %v7605, %v7636
        %v7639 = vunpack.c.l.s4 1934713408
        %v7640 = vunpack.c.0.s8 %v7639
        %v7641 = vperm.slane %v7635, %v7640
        %v7643 = vunpack.c.l.s4 1934713408
        %v7644 = vunpack.c.0.s8 %v7643
        %v7645 = vperm.slane %v7637, %v7644
        %v7646 = vrot.slane %v7609, 4
        %v7647 = vsel %vm251, %v7646, %v7597
        %v7648 = vrot.slane %v7597, 4
        %v7649 = vsel %vm251, %v7609, %v7648
        %v7651 = vunpack.c.l.s4 1934713408
        %v7652 = vunpack.c.0.s8 %v7651
        %v7653 = vperm.slane %v7647, %v7652
        %v7655 = vunpack.c.l.s4 1934713408
        %v7656 = vunpack.c.0.s8 %v7655
        %v7657 = vperm.slane %v7649, %v7656
        %v7658 = vrot.slane %v7629, 4
        %v7659 = vsel %vm251, %v7658, %v7617
        %v7660 = vrot.slane %v7617, 4
        %v7661 = vsel %vm251, %v7629, %v7660
        %v7663 = vunpack.c.l.s4 1934713408
        %v7664 = vunpack.c.0.s8 %v7663
        %v7665 = vperm.slane %v7659, %v7664
        %v7667 = vunpack.c.l.s4 1934713408
        %v7668 = vunpack.c.0.s8 %v7667
        %v7669 = vperm.slane %v7661, %v7668
        %v7670 = vrot.slane %v7633, 4
        %v7671 = vsel %vm251, %v7670, %v7621
        %v7672 = vrot.slane %v7621, 4
        %v7673 = vsel %vm251, %v7633, %v7672
        %v7675 = vunpack.c.l.s4 1934713408
        %v7676 = vunpack.c.0.s8 %v7675
        %v7677 = vperm.slane %v7671, %v7676
        %v7679 = vunpack.c.l.s4 1934713408
        %v7680 = vunpack.c.0.s8 %v7679
        %v7681 = vperm.slane %v7673, %v7680
        %v7682 = vrot.slane %v7665, 4
        %v7683 = vsel %vm251, %v7682, %v7641
        %v7684 = vrot.slane %v7641, 4
        %v7685 = vsel %vm251, %v7665, %v7684
        %v7686 = vrot.slane %v7669, 4
        %v7687 = vsel %vm251, %v7686, %v7645
        %v7688 = vrot.slane %v7645, 4
        %v7689 = vsel %vm251, %v7669, %v7688
        %v7690 = vrot.slane %v7677, 4
        %v7691 = vsel %vm251, %v7690, %v7653
        %v7692 = vrot.slane %v7653, 4
        %v7693 = vsel %vm251, %v7677, %v7692
        %v7694 = vrot.slane %v7681, 4
        %v7695 = vsel %vm251, %v7694, %v7657
        %v7696 = vrot.slane %v7657, 4
        %v7697 = vsel %vm251, %v7681, %v7696
        %v7698 = vrot.slane %v7239, 4
        %v7699 = vsel %vm251, %v7698, %v7235
        %v7700 = vrot.slane %v7235, 4
        %v7701 = vsel %vm251, %v7239, %v7700
        %v7703 = vunpack.c.l.s4 1983009808
        %v7704 = vunpack.c.0.s8 %v7703
        %v7705 = vperm.slane %v7699, %v7704
        %v7707 = vunpack.c.l.s4 1983009808
        %v7708 = vunpack.c.0.s8 %v7707
        %v7709 = vperm.slane %v7701, %v7708
        %v7710 = vrot.slane %v7241, 4
        %v7711 = vsel %vm251, %v7710, %v7237
        %v7712 = vrot.slane %v7237, 4
        %v7713 = vsel %vm251, %v7241, %v7712
        %v7715 = vunpack.c.l.s4 1983009808
        %v7716 = vunpack.c.0.s8 %v7715
        %v7717 = vperm.slane %v7711, %v7716
        %v7719 = vunpack.c.l.s4 1983009808
        %v7720 = vunpack.c.0.s8 %v7719
        %v7721 = vperm.slane %v7713, %v7720
        %v7722 = vrot.slane %v7247, 4
        %v7723 = vsel %vm251, %v7722, %v7243
        %v7724 = vrot.slane %v7243, 4
        %v7725 = vsel %vm251, %v7247, %v7724
        %v7727 = vunpack.c.l.s4 1983009808
        %v7728 = vunpack.c.0.s8 %v7727
        %v7729 = vperm.slane %v7723, %v7728
        %v7731 = vunpack.c.l.s4 1983009808
        %v7732 = vunpack.c.0.s8 %v7731
        %v7733 = vperm.slane %v7725, %v7732
        %v7734 = vrot.slane %v7249, 4
        %v7735 = vsel %vm251, %v7734, %v7245
        %v7736 = vrot.slane %v7245, 4
        %v7737 = vsel %vm251, %v7249, %v7736
        %v7739 = vunpack.c.l.s4 1983009808
        %v7740 = vunpack.c.0.s8 %v7739
        %v7741 = vperm.slane %v7735, %v7740
        %v7743 = vunpack.c.l.s4 1983009808
        %v7744 = vunpack.c.0.s8 %v7743
        %v7745 = vperm.slane %v7737, %v7744
        %v7746 = vrot.slane %v7717, 4
        %v7747 = vsel %vm251, %v7746, %v7705
        %v7748 = vrot.slane %v7705, 4
        %v7749 = vsel %vm251, %v7717, %v7748
        %v7751 = vunpack.c.l.s4 1934713408
        %v7752 = vunpack.c.0.s8 %v7751
        %v7753 = vperm.slane %v7747, %v7752
        %v7755 = vunpack.c.l.s4 1934713408
        %v7756 = vunpack.c.0.s8 %v7755
        %v7757 = vperm.slane %v7749, %v7756
        %v7758 = vrot.slane %v7721, 4
        %v7759 = vsel %vm251, %v7758, %v7709
        %v7760 = vrot.slane %v7709, 4
        %v7761 = vsel %vm251, %v7721, %v7760
        %v7763 = vunpack.c.l.s4 1934713408
        %v7764 = vunpack.c.0.s8 %v7763
        %v7765 = vperm.slane %v7759, %v7764
        %v7767 = vunpack.c.l.s4 1934713408
        %v7768 = vunpack.c.0.s8 %v7767
        %v7769 = vperm.slane %v7761, %v7768
        %v7770 = vrot.slane %v7741, 4
        %v7771 = vsel %vm251, %v7770, %v7729
        %v7772 = vrot.slane %v7729, 4
        %v7773 = vsel %vm251, %v7741, %v7772
        %v7775 = vunpack.c.l.s4 1934713408
        %v7776 = vunpack.c.0.s8 %v7775
        %v7777 = vperm.slane %v7771, %v7776
        %v7779 = vunpack.c.l.s4 1934713408
        %v7780 = vunpack.c.0.s8 %v7779
        %v7781 = vperm.slane %v7773, %v7780
        %v7782 = vrot.slane %v7745, 4
        %v7783 = vsel %vm251, %v7782, %v7733
        %v7784 = vrot.slane %v7733, 4
        %v7785 = vsel %vm251, %v7745, %v7784
        %v7787 = vunpack.c.l.s4 1934713408
        %v7788 = vunpack.c.0.s8 %v7787
        %v7789 = vperm.slane %v7783, %v7788
        %v7791 = vunpack.c.l.s4 1934713408
        %v7792 = vunpack.c.0.s8 %v7791
        %v7793 = vperm.slane %v7785, %v7792
        %v7794 = vrot.slane %v7777, 4
        %v7795 = vsel %vm251, %v7794, %v7753
        %v7796 = vrot.slane %v7753, 4
        %v7797 = vsel %vm251, %v7777, %v7796
        %v7798 = vrot.slane %v7781, 4
        %v7799 = vsel %vm251, %v7798, %v7757
        %v7800 = vrot.slane %v7757, 4
        %v7801 = vsel %vm251, %v7781, %v7800
        %v7802 = vrot.slane %v7789, 4
        %v7803 = vsel %vm251, %v7802, %v7765
        %v7804 = vrot.slane %v7765, 4
        %v7805 = vsel %vm251, %v7789, %v7804
        %v7806 = vrot.slane %v7793, 4
        %v7807 = vsel %vm251, %v7806, %v7769
        %v7808 = vrot.slane %v7769, 4
        %v7809 = vsel %vm251, %v7793, %v7808
        %v7810 = vrot.slane %v7463, 4
        %v7811 = vsel %vm251, %v7810, %v7459
        %v7812 = vrot.slane %v7459, 4
        %v7813 = vsel %vm251, %v7463, %v7812
        %v7815 = vunpack.c.l.s4 1983009808
        %v7816 = vunpack.c.0.s8 %v7815
        %v7817 = vperm.slane %v7811, %v7816
        %v7819 = vunpack.c.l.s4 1983009808
        %v7820 = vunpack.c.0.s8 %v7819
        %v7821 = vperm.slane %v7813, %v7820
        %v7822 = vrot.slane %v7465, 4
        %v7823 = vsel %vm251, %v7822, %v7461
        %v7824 = vrot.slane %v7461, 4
        %v7825 = vsel %vm251, %v7465, %v7824
        %v7827 = vunpack.c.l.s4 1983009808
        %v7828 = vunpack.c.0.s8 %v7827
        %v7829 = vperm.slane %v7823, %v7828
        %v7831 = vunpack.c.l.s4 1983009808
        %v7832 = vunpack.c.0.s8 %v7831
        %v7833 = vperm.slane %v7825, %v7832
        %v7834 = vrot.slane %v7471, 4
        %v7835 = vsel %vm251, %v7834, %v7467
        %v7836 = vrot.slane %v7467, 4
        %v7837 = vsel %vm251, %v7471, %v7836
        %v7839 = vunpack.c.l.s4 1983009808
        %v7840 = vunpack.c.0.s8 %v7839
        %v7841 = vperm.slane %v7835, %v7840
        %v7843 = vunpack.c.l.s4 1983009808
        %v7844 = vunpack.c.0.s8 %v7843
        %v7845 = vperm.slane %v7837, %v7844
        %v7846 = vrot.slane %v7473, 4
        %v7847 = vsel %vm251, %v7846, %v7469
        %v7848 = vrot.slane %v7469, 4
        %v7849 = vsel %vm251, %v7473, %v7848
        %v7851 = vunpack.c.l.s4 1983009808
        %v7852 = vunpack.c.0.s8 %v7851
        %v7853 = vperm.slane %v7847, %v7852
        %v7855 = vunpack.c.l.s4 1983009808
        %v7856 = vunpack.c.0.s8 %v7855
        %v7857 = vperm.slane %v7849, %v7856
        %v7858 = vrot.slane %v7829, 4
        %v7859 = vsel %vm251, %v7858, %v7817
        %v7860 = vrot.slane %v7817, 4
        %v7861 = vsel %vm251, %v7829, %v7860
        %v7863 = vunpack.c.l.s4 1934713408
        %v7864 = vunpack.c.0.s8 %v7863
        %v7865 = vperm.slane %v7859, %v7864
        %v7867 = vunpack.c.l.s4 1934713408
        %v7868 = vunpack.c.0.s8 %v7867
        %v7869 = vperm.slane %v7861, %v7868
        %v7870 = vrot.slane %v7833, 4
        %v7871 = vsel %vm251, %v7870, %v7821
        %v7872 = vrot.slane %v7821, 4
        %v7873 = vsel %vm251, %v7833, %v7872
        %v7875 = vunpack.c.l.s4 1934713408
        %v7876 = vunpack.c.0.s8 %v7875
        %v7877 = vperm.slane %v7871, %v7876
        %v7879 = vunpack.c.l.s4 1934713408
        %v7880 = vunpack.c.0.s8 %v7879
        %v7881 = vperm.slane %v7873, %v7880
        %v7882 = vrot.slane %v7853, 4
        %v7883 = vsel %vm251, %v7882, %v7841
        %v7884 = vrot.slane %v7841, 4
        %v7885 = vsel %vm251, %v7853, %v7884
        %v7887 = vunpack.c.l.s4 1934713408
        %v7888 = vunpack.c.0.s8 %v7887
        %v7889 = vperm.slane %v7883, %v7888
        %v7891 = vunpack.c.l.s4 1934713408
        %v7892 = vunpack.c.0.s8 %v7891
        %v7893 = vperm.slane %v7885, %v7892
        %v7894 = vrot.slane %v7857, 4
        %v7895 = vsel %vm251, %v7894, %v7845
        %v7896 = vrot.slane %v7845, 4
        %v7897 = vsel %vm251, %v7857, %v7896
        %v7899 = vunpack.c.l.s4 1934713408
        %v7900 = vunpack.c.0.s8 %v7899
        %v7901 = vperm.slane %v7895, %v7900
        %v7903 = vunpack.c.l.s4 1934713408
        %v7904 = vunpack.c.0.s8 %v7903
        %v7905 = vperm.slane %v7897, %v7904
        %v7906 = vrot.slane %v7889, 4
        %v7907 = vsel %vm251, %v7906, %v7865
        %v7908 = vrot.slane %v7865, 4
        %v7909 = vsel %vm251, %v7889, %v7908
        %v7910 = vrot.slane %v7893, 4
        %v7911 = vsel %vm251, %v7910, %v7869
        %v7912 = vrot.slane %v7869, 4
        %v7913 = vsel %vm251, %v7893, %v7912
        %v7914 = vrot.slane %v7901, 4
        %v7915 = vsel %vm251, %v7914, %v7877
        %v7916 = vrot.slane %v7877, 4
        %v7917 = vsel %vm251, %v7901, %v7916
        %v7918 = vrot.slane %v7905, 4
        %v7919 = vsel %vm251, %v7918, %v7881
        %v7920 = vrot.slane %v7881, 4
        %v7921 = vsel %vm251, %v7905, %v7920
        %7924 = vrot.lane.b32.xlu0 %v7573, 16
        %v7925 = vpop.permute.xlu0 %7924
        %7926 = vrot.lane.b32.xlu0 %v7685, 16
        %v7927 = vpop.permute.xlu0 %7926
        %7932 = vrot.lane.b32.xlu0 %v7575, 32
        %v7933 = vpop.permute.xlu0 %7932
        %7934 = vrot.lane.b32.xlu0 %v7687, 32
        %v7935 = vpop.permute.xlu0 %7934
        %7940 = vrot.lane.b32.xlu0 %v7577, 48
        %v7941 = vpop.permute.xlu0 %7940
        %7942 = vrot.lane.b32.xlu0 %v7689, 48
        %v7943 = vpop.permute.xlu0 %7942
        %7948 = vrot.lane.b32.xlu0 %v7579, 64
        %v7949 = vpop.permute.xlu0 %7948
        %7950 = vrot.lane.b32.xlu0 %v7691, 64
        %v7951 = vpop.permute.xlu0 %7950
        %7956 = vrot.lane.b32.xlu0 %v7581, 80
        %v7957 = vpop.permute.xlu0 %7956
        %7958 = vrot.lane.b32.xlu0 %v7693, 80
        %v7959 = vpop.permute.xlu0 %7958
        %7964 = vrot.lane.b32.xlu0 %v7583, 96
        %v7965 = vpop.permute.xlu0 %7964
        %7966 = vrot.lane.b32.xlu0 %v7695, 96
        %v7967 = vpop.permute.xlu0 %7966
        %7972 = vrot.lane.b32.xlu0 %v7585, 112
        %v7973 = vpop.permute.xlu0 %7972
        %7974 = vrot.lane.b32.xlu0 %v7697, 112
        %v7975 = vpop.permute.xlu0 %7974
        %7980 = vrot.lane.b32.xlu0 %v7797, 16
        %v7981 = vpop.permute.xlu0 %7980
        %7982 = vrot.lane.b32.xlu0 %v7909, 16
        %v7983 = vpop.permute.xlu0 %7982
        %7988 = vrot.lane.b32.xlu0 %v7799, 32
        %v7989 = vpop.permute.xlu0 %7988
        %7990 = vrot.lane.b32.xlu0 %v7911, 32
        %v7991 = vpop.permute.xlu0 %7990
        %7996 = vrot.lane.b32.xlu0 %v7801, 48
        %v7997 = vpop.permute.xlu0 %7996
        %7998 = vrot.lane.b32.xlu0 %v7913, 48
        %v7999 = vpop.permute.xlu0 %7998
        %8004 = vrot.lane.b32.xlu0 %v7803, 64
        %v8005 = vpop.permute.xlu0 %8004
        %8006 = vrot.lane.b32.xlu0 %v7915, 64
        %v8007 = vpop.permute.xlu0 %8006
        %8012 = vrot.lane.b32.xlu0 %v7805, 80
        %v8013 = vpop.permute.xlu0 %8012
        %8014 = vrot.lane.b32.xlu0 %v7917, 80
        %v8015 = vpop.permute.xlu0 %8014
        %8020 = vrot.lane.b32.xlu0 %v7807, 96
        %v8021 = vpop.permute.xlu0 %8020
        %8022 = vrot.lane.b32.xlu0 %v7919, 96
        %v8023 = vpop.permute.xlu0 %8022
        %8028 = vrot.lane.b32.xlu0 %v7809, 112
        %v8029 = vpop.permute.xlu0 %8028
        %8030 = vrot.lane.b32.xlu0 %v7921, 112
        %v8031 = vpop.permute.xlu0 %8030
        %v8034 = vsel %vm1707, %v7571, %v7925
        %v8035 = vsel %vm1707, %v7683, %v7927
        %v8036 = vsel %vm1710, %v8034, %v7933
        %v8037 = vsel %vm1710, %v8035, %v7935
        %v8038 = vsel %vm1713, %v8036, %v7941
        %v8039 = vsel %vm1713, %v8037, %v7943
        %v8040 = vsel %vm1716, %v8038, %v7949
        %v8041 = vsel %vm1716, %v8039, %v7951
        %v8042 = vsel %vm1719, %v8040, %v7957
        %v8043 = vsel %vm1719, %v8041, %v7959
        %v8044 = vsel %vm1722, %v8042, %v7965
        %v8045 = vsel %vm1722, %v8043, %v7967
        %v8046 = vsel %vm1725, %v8044, %v7973
        %v8047 = vsel %vm1725, %v8045, %v7975
        %v8048 = vsel %vm1707, %v7795, %v7981
        %v8049 = vsel %vm1707, %v7907, %v7983
        %v8050 = vsel %vm1710, %v8048, %v7989
        %v8051 = vsel %vm1710, %v8049, %v7991
        %v8052 = vsel %vm1713, %v8050, %v7997
        %v8053 = vsel %vm1713, %v8051, %v7999
        %v8054 = vsel %vm1716, %v8052, %v8005
        %v8055 = vsel %vm1716, %v8053, %v8007
        %v8056 = vsel %vm1719, %v8054, %v8013
        %v8057 = vsel %vm1719, %v8055, %v8015
        %v8058 = vsel %vm1722, %v8056, %v8021
        %v8059 = vsel %vm1722, %v8057, %v8023
        %v8060 = vsel %vm1725, %v8058, %v8029
        %v8061 = vsel %vm1725, %v8059, %v8031
        %8062 = vst [vmem:[%s155 + $0x80] sm:$0xff] %v8046
        %8063 = vst [vmem:[%s155 + $0x88] sm:$0xff] %v8060
        %8064 = vst [vmem:[%s155 + $0x90] sm:$0xff] %v8047
        %8065 = vst [vmem:[%s155 + $0x98] sm:$0xff] %v8061
        %v8066 = vld [vmem:[%s136 + $0xa0] sm:$0xff]
        %v8067 = vld [vmem:[%s136 + $0xa8] sm:$0xff]
        %v8068 = vld [vmem:[%s136 + $0xb0] sm:$0xff]
        %v8069 = vld [vmem:[%s136 + $0xb8] sm:$0xff]
        %8072 = vrot.lane.b32.xlu0 %v8066, 112
        %v8073 = vpop.permute.xlu0 %8072
        %8074 = vrot.lane.b32.xlu0 %v8068, 112
        %v8075 = vpop.permute.xlu0 %8074
        %8078 = vrot.lane.b32.xlu0 %v8066, 96
        %v8079 = vpop.permute.xlu0 %8078
        %8080 = vrot.lane.b32.xlu0 %v8068, 96
        %v8081 = vpop.permute.xlu0 %8080
        %8084 = vrot.lane.b32.xlu0 %v8066, 80
        %v8085 = vpop.permute.xlu0 %8084
        %8086 = vrot.lane.b32.xlu0 %v8068, 80
        %v8087 = vpop.permute.xlu0 %8086
        %8090 = vrot.lane.b32.xlu0 %v8066, 64
        %v8091 = vpop.permute.xlu0 %8090
        %8092 = vrot.lane.b32.xlu0 %v8068, 64
        %v8093 = vpop.permute.xlu0 %8092
        %8096 = vrot.lane.b32.xlu0 %v8066, 48
        %v8097 = vpop.permute.xlu0 %8096
        %8098 = vrot.lane.b32.xlu0 %v8068, 48
        %v8099 = vpop.permute.xlu0 %8098
        %8102 = vrot.lane.b32.xlu0 %v8066, 32
        %v8103 = vpop.permute.xlu0 %8102
        %8104 = vrot.lane.b32.xlu0 %v8068, 32
        %v8105 = vpop.permute.xlu0 %8104
        %8108 = vrot.lane.b32.xlu0 %v8066, 16
        %v8109 = vpop.permute.xlu0 %8108
        %8110 = vrot.lane.b32.xlu0 %v8068, 16
        %v8111 = vpop.permute.xlu0 %8110
        %8116 = vrot.lane.b32.xlu0 %v8067, 112
        %v8117 = vpop.permute.xlu0 %8116
        %8118 = vrot.lane.b32.xlu0 %v8069, 112
        %v8119 = vpop.permute.xlu0 %8118
        %8122 = vrot.lane.b32.xlu0 %v8067, 96
        %v8123 = vpop.permute.xlu0 %8122
        %8124 = vrot.lane.b32.xlu0 %v8069, 96
        %v8125 = vpop.permute.xlu0 %8124
        %8128 = vrot.lane.b32.xlu0 %v8067, 80
        %v8129 = vpop.permute.xlu0 %8128
        %8130 = vrot.lane.b32.xlu0 %v8069, 80
        %v8131 = vpop.permute.xlu0 %8130
        %8134 = vrot.lane.b32.xlu0 %v8067, 64
        %v8135 = vpop.permute.xlu0 %8134
        %8136 = vrot.lane.b32.xlu0 %v8069, 64
        %v8137 = vpop.permute.xlu0 %8136
        %8140 = vrot.lane.b32.xlu0 %v8067, 48
        %v8141 = vpop.permute.xlu0 %8140
        %8142 = vrot.lane.b32.xlu0 %v8069, 48
        %v8143 = vpop.permute.xlu0 %8142
        %8146 = vrot.lane.b32.xlu0 %v8067, 32
        %v8147 = vpop.permute.xlu0 %8146
        %8148 = vrot.lane.b32.xlu0 %v8069, 32
        %v8149 = vpop.permute.xlu0 %8148
        %8152 = vrot.lane.b32.xlu0 %v8067, 16
        %v8153 = vpop.permute.xlu0 %8152
        %8154 = vrot.lane.b32.xlu0 %v8069, 16
        %v8155 = vpop.permute.xlu0 %8154
        %v8158 = vrot.slane %v8079, 4
        %v8159 = vsel %vm251, %v8158, %v8066
        %v8160 = vrot.slane %v8066, 4
        %v8161 = vsel %vm251, %v8079, %v8160
        %v8163 = vunpack.c.l.s4 1983009808
        %v8164 = vunpack.c.0.s8 %v8163
        %v8165 = vperm.slane %v8159, %v8164
        %v8167 = vunpack.c.l.s4 1983009808
        %v8168 = vunpack.c.0.s8 %v8167
        %v8169 = vperm.slane %v8161, %v8168
        %v8170 = vrot.slane %v8085, 4
        %v8171 = vsel %vm251, %v8170, %v8073
        %v8172 = vrot.slane %v8073, 4
        %v8173 = vsel %vm251, %v8085, %v8172
        %v8175 = vunpack.c.l.s4 1983009808
        %v8176 = vunpack.c.0.s8 %v8175
        %v8177 = vperm.slane %v8171, %v8176
        %v8179 = vunpack.c.l.s4 1983009808
        %v8180 = vunpack.c.0.s8 %v8179
        %v8181 = vperm.slane %v8173, %v8180
        %v8182 = vrot.slane %v8103, 4
        %v8183 = vsel %vm251, %v8182, %v8091
        %v8184 = vrot.slane %v8091, 4
        %v8185 = vsel %vm251, %v8103, %v8184
        %v8187 = vunpack.c.l.s4 1983009808
        %v8188 = vunpack.c.0.s8 %v8187
        %v8189 = vperm.slane %v8183, %v8188
        %v8191 = vunpack.c.l.s4 1983009808
        %v8192 = vunpack.c.0.s8 %v8191
        %v8193 = vperm.slane %v8185, %v8192
        %v8194 = vrot.slane %v8109, 4
        %v8195 = vsel %vm251, %v8194, %v8097
        %v8196 = vrot.slane %v8097, 4
        %v8197 = vsel %vm251, %v8109, %v8196
        %v8199 = vunpack.c.l.s4 1983009808
        %v8200 = vunpack.c.0.s8 %v8199
        %v8201 = vperm.slane %v8195, %v8200
        %v8203 = vunpack.c.l.s4 1983009808
        %v8204 = vunpack.c.0.s8 %v8203
        %v8205 = vperm.slane %v8197, %v8204
        %v8206 = vrot.slane %v8177, 4
        %v8207 = vsel %vm251, %v8206, %v8165
        %v8208 = vrot.slane %v8165, 4
        %v8209 = vsel %vm251, %v8177, %v8208
        %v8211 = vunpack.c.l.s4 1934713408
        %v8212 = vunpack.c.0.s8 %v8211
        %v8213 = vperm.slane %v8207, %v8212
        %v8215 = vunpack.c.l.s4 1934713408
        %v8216 = vunpack.c.0.s8 %v8215
        %v8217 = vperm.slane %v8209, %v8216
        %v8218 = vrot.slane %v8181, 4
        %v8219 = vsel %vm251, %v8218, %v8169
        %v8220 = vrot.slane %v8169, 4
        %v8221 = vsel %vm251, %v8181, %v8220
        %v8223 = vunpack.c.l.s4 1934713408
        %v8224 = vunpack.c.0.s8 %v8223
        %v8225 = vperm.slane %v8219, %v8224
        %v8227 = vunpack.c.l.s4 1934713408
        %v8228 = vunpack.c.0.s8 %v8227
        %v8229 = vperm.slane %v8221, %v8228
        %v8230 = vrot.slane %v8201, 4
        %v8231 = vsel %vm251, %v8230, %v8189
        %v8232 = vrot.slane %v8189, 4
        %v8233 = vsel %vm251, %v8201, %v8232
        %v8235 = vunpack.c.l.s4 1934713408
        %v8236 = vunpack.c.0.s8 %v8235
        %v8237 = vperm.slane %v8231, %v8236
        %v8239 = vunpack.c.l.s4 1934713408
        %v8240 = vunpack.c.0.s8 %v8239
        %v8241 = vperm.slane %v8233, %v8240
        %v8242 = vrot.slane %v8205, 4
        %v8243 = vsel %vm251, %v8242, %v8193
        %v8244 = vrot.slane %v8193, 4
        %v8245 = vsel %vm251, %v8205, %v8244
        %v8247 = vunpack.c.l.s4 1934713408
        %v8248 = vunpack.c.0.s8 %v8247
        %v8249 = vperm.slane %v8243, %v8248
        %v8251 = vunpack.c.l.s4 1934713408
        %v8252 = vunpack.c.0.s8 %v8251
        %v8253 = vperm.slane %v8245, %v8252
        %v8254 = vrot.slane %v8237, 4
        %v8255 = vsel %vm251, %v8254, %v8213
        %v8256 = vrot.slane %v8213, 4
        %v8257 = vsel %vm251, %v8237, %v8256
        %v8258 = vrot.slane %v8241, 4
        %v8259 = vsel %vm251, %v8258, %v8217
        %v8260 = vrot.slane %v8217, 4
        %v8261 = vsel %vm251, %v8241, %v8260
        %v8262 = vrot.slane %v8249, 4
        %v8263 = vsel %vm251, %v8262, %v8225
        %v8264 = vrot.slane %v8225, 4
        %v8265 = vsel %vm251, %v8249, %v8264
        %v8266 = vrot.slane %v8253, 4
        %v8267 = vsel %vm251, %v8266, %v8229
        %v8268 = vrot.slane %v8229, 4
        %v8269 = vsel %vm251, %v8253, %v8268
        %v8270 = vrot.slane %v8123, 4
        %v8271 = vsel %vm251, %v8270, %v8067
        %v8272 = vrot.slane %v8067, 4
        %v8273 = vsel %vm251, %v8123, %v8272
        %v8275 = vunpack.c.l.s4 1983009808
        %v8276 = vunpack.c.0.s8 %v8275
        %v8277 = vperm.slane %v8271, %v8276
        %v8279 = vunpack.c.l.s4 1983009808
        %v8280 = vunpack.c.0.s8 %v8279
        %v8281 = vperm.slane %v8273, %v8280
        %v8282 = vrot.slane %v8129, 4
        %v8283 = vsel %vm251, %v8282, %v8117
        %v8284 = vrot.slane %v8117, 4
        %v8285 = vsel %vm251, %v8129, %v8284
        %v8287 = vunpack.c.l.s4 1983009808
        %v8288 = vunpack.c.0.s8 %v8287
        %v8289 = vperm.slane %v8283, %v8288
        %v8291 = vunpack.c.l.s4 1983009808
        %v8292 = vunpack.c.0.s8 %v8291
        %v8293 = vperm.slane %v8285, %v8292
        %v8294 = vrot.slane %v8147, 4
        %v8295 = vsel %vm251, %v8294, %v8135
        %v8296 = vrot.slane %v8135, 4
        %v8297 = vsel %vm251, %v8147, %v8296
        %v8299 = vunpack.c.l.s4 1983009808
        %v8300 = vunpack.c.0.s8 %v8299
        %v8301 = vperm.slane %v8295, %v8300
        %v8303 = vunpack.c.l.s4 1983009808
        %v8304 = vunpack.c.0.s8 %v8303
        %v8305 = vperm.slane %v8297, %v8304
        %v8306 = vrot.slane %v8153, 4
        %v8307 = vsel %vm251, %v8306, %v8141
        %v8308 = vrot.slane %v8141, 4
        %v8309 = vsel %vm251, %v8153, %v8308
        %v8311 = vunpack.c.l.s4 1983009808
        %v8312 = vunpack.c.0.s8 %v8311
        %v8313 = vperm.slane %v8307, %v8312
        %v8315 = vunpack.c.l.s4 1983009808
        %v8316 = vunpack.c.0.s8 %v8315
        %v8317 = vperm.slane %v8309, %v8316
        %v8318 = vrot.slane %v8289, 4
        %v8319 = vsel %vm251, %v8318, %v8277
        %v8320 = vrot.slane %v8277, 4
        %v8321 = vsel %vm251, %v8289, %v8320
        %v8323 = vunpack.c.l.s4 1934713408
        %v8324 = vunpack.c.0.s8 %v8323
        %v8325 = vperm.slane %v8319, %v8324
        %v8327 = vunpack.c.l.s4 1934713408
        %v8328 = vunpack.c.0.s8 %v8327
        %v8329 = vperm.slane %v8321, %v8328
        %v8330 = vrot.slane %v8293, 4
        %v8331 = vsel %vm251, %v8330, %v8281
        %v8332 = vrot.slane %v8281, 4
        %v8333 = vsel %vm251, %v8293, %v8332
        %v8335 = vunpack.c.l.s4 1934713408
        %v8336 = vunpack.c.0.s8 %v8335
        %v8337 = vperm.slane %v8331, %v8336
        %v8339 = vunpack.c.l.s4 1934713408
        %v8340 = vunpack.c.0.s8 %v8339
        %v8341 = vperm.slane %v8333, %v8340
        %v8342 = vrot.slane %v8313, 4
        %v8343 = vsel %vm251, %v8342, %v8301
        %v8344 = vrot.slane %v8301, 4
        %v8345 = vsel %vm251, %v8313, %v8344
        %v8347 = vunpack.c.l.s4 1934713408
        %v8348 = vunpack.c.0.s8 %v8347
        %v8349 = vperm.slane %v8343, %v8348
        %v8351 = vunpack.c.l.s4 1934713408
        %v8352 = vunpack.c.0.s8 %v8351
        %v8353 = vperm.slane %v8345, %v8352
        %v8354 = vrot.slane %v8317, 4
        %v8355 = vsel %vm251, %v8354, %v8305
        %v8356 = vrot.slane %v8305, 4
        %v8357 = vsel %vm251, %v8317, %v8356
        %v8359 = vunpack.c.l.s4 1934713408
        %v8360 = vunpack.c.0.s8 %v8359
        %v8361 = vperm.slane %v8355, %v8360
        %v8363 = vunpack.c.l.s4 1934713408
        %v8364 = vunpack.c.0.s8 %v8363
        %v8365 = vperm.slane %v8357, %v8364
        %v8366 = vrot.slane %v8349, 4
        %v8367 = vsel %vm251, %v8366, %v8325
        %v8368 = vrot.slane %v8325, 4
        %v8369 = vsel %vm251, %v8349, %v8368
        %v8370 = vrot.slane %v8353, 4
        %v8371 = vsel %vm251, %v8370, %v8329
        %v8372 = vrot.slane %v8329, 4
        %v8373 = vsel %vm251, %v8353, %v8372
        %v8374 = vrot.slane %v8361, 4
        %v8375 = vsel %vm251, %v8374, %v8337
        %v8376 = vrot.slane %v8337, 4
        %v8377 = vsel %vm251, %v8361, %v8376
        %v8378 = vrot.slane %v8365, 4
        %v8379 = vsel %vm251, %v8378, %v8341
        %v8380 = vrot.slane %v8341, 4
        %v8381 = vsel %vm251, %v8365, %v8380
        %v8382 = vrot.slane %v8081, 4
        %v8383 = vsel %vm251, %v8382, %v8068
        %v8384 = vrot.slane %v8068, 4
        %v8385 = vsel %vm251, %v8081, %v8384
        %v8387 = vunpack.c.l.s4 1983009808
        %v8388 = vunpack.c.0.s8 %v8387
        %v8389 = vperm.slane %v8383, %v8388
        %v8391 = vunpack.c.l.s4 1983009808
        %v8392 = vunpack.c.0.s8 %v8391
        %v8393 = vperm.slane %v8385, %v8392
        %v8394 = vrot.slane %v8087, 4
        %v8395 = vsel %vm251, %v8394, %v8075
        %v8396 = vrot.slane %v8075, 4
        %v8397 = vsel %vm251, %v8087, %v8396
        %v8399 = vunpack.c.l.s4 1983009808
        %v8400 = vunpack.c.0.s8 %v8399
        %v8401 = vperm.slane %v8395, %v8400
        %v8403 = vunpack.c.l.s4 1983009808
        %v8404 = vunpack.c.0.s8 %v8403
        %v8405 = vperm.slane %v8397, %v8404
        %v8406 = vrot.slane %v8105, 4
        %v8407 = vsel %vm251, %v8406, %v8093
        %v8408 = vrot.slane %v8093, 4
        %v8409 = vsel %vm251, %v8105, %v8408
        %v8411 = vunpack.c.l.s4 1983009808
        %v8412 = vunpack.c.0.s8 %v8411
        %v8413 = vperm.slane %v8407, %v8412
        %v8415 = vunpack.c.l.s4 1983009808
        %v8416 = vunpack.c.0.s8 %v8415
        %v8417 = vperm.slane %v8409, %v8416
        %v8418 = vrot.slane %v8111, 4
        %v8419 = vsel %vm251, %v8418, %v8099
        %v8420 = vrot.slane %v8099, 4
        %v8421 = vsel %vm251, %v8111, %v8420
        %v8423 = vunpack.c.l.s4 1983009808
        %v8424 = vunpack.c.0.s8 %v8423
        %v8425 = vperm.slane %v8419, %v8424
        %v8427 = vunpack.c.l.s4 1983009808
        %v8428 = vunpack.c.0.s8 %v8427
        %v8429 = vperm.slane %v8421, %v8428
        %v8430 = vrot.slane %v8401, 4
        %v8431 = vsel %vm251, %v8430, %v8389
        %v8432 = vrot.slane %v8389, 4
        %v8433 = vsel %vm251, %v8401, %v8432
        %v8435 = vunpack.c.l.s4 1934713408
        %v8436 = vunpack.c.0.s8 %v8435
        %v8437 = vperm.slane %v8431, %v8436
        %v8439 = vunpack.c.l.s4 1934713408
        %v8440 = vunpack.c.0.s8 %v8439
        %v8441 = vperm.slane %v8433, %v8440
        %v8442 = vrot.slane %v8405, 4
        %v8443 = vsel %vm251, %v8442, %v8393
        %v8444 = vrot.slane %v8393, 4
        %v8445 = vsel %vm251, %v8405, %v8444
        %v8447 = vunpack.c.l.s4 1934713408
        %v8448 = vunpack.c.0.s8 %v8447
        %v8449 = vperm.slane %v8443, %v8448
        %v8451 = vunpack.c.l.s4 1934713408
        %v8452 = vunpack.c.0.s8 %v8451
        %v8453 = vperm.slane %v8445, %v8452
        %v8454 = vrot.slane %v8425, 4
        %v8455 = vsel %vm251, %v8454, %v8413
        %v8456 = vrot.slane %v8413, 4
        %v8457 = vsel %vm251, %v8425, %v8456
        %v8459 = vunpack.c.l.s4 1934713408
        %v8460 = vunpack.c.0.s8 %v8459
        %v8461 = vperm.slane %v8455, %v8460
        %v8463 = vunpack.c.l.s4 1934713408
        %v8464 = vunpack.c.0.s8 %v8463
        %v8465 = vperm.slane %v8457, %v8464
        %v8466 = vrot.slane %v8429, 4
        %v8467 = vsel %vm251, %v8466, %v8417
        %v8468 = vrot.slane %v8417, 4
        %v8469 = vsel %vm251, %v8429, %v8468
        %v8471 = vunpack.c.l.s4 1934713408
        %v8472 = vunpack.c.0.s8 %v8471
        %v8473 = vperm.slane %v8467, %v8472
        %v8475 = vunpack.c.l.s4 1934713408
        %v8476 = vunpack.c.0.s8 %v8475
        %v8477 = vperm.slane %v8469, %v8476
        %v8478 = vrot.slane %v8461, 4
        %v8479 = vsel %vm251, %v8478, %v8437
        %v8480 = vrot.slane %v8437, 4
        %v8481 = vsel %vm251, %v8461, %v8480
        %v8482 = vrot.slane %v8465, 4
        %v8483 = vsel %vm251, %v8482, %v8441
        %v8484 = vrot.slane %v8441, 4
        %v8485 = vsel %vm251, %v8465, %v8484
        %v8486 = vrot.slane %v8473, 4
        %v8487 = vsel %vm251, %v8486, %v8449
        %v8488 = vrot.slane %v8449, 4
        %v8489 = vsel %vm251, %v8473, %v8488
        %v8490 = vrot.slane %v8477, 4
        %v8491 = vsel %vm251, %v8490, %v8453
        %v8492 = vrot.slane %v8453, 4
        %v8493 = vsel %vm251, %v8477, %v8492
        %v8494 = vrot.slane %v8125, 4
        %v8495 = vsel %vm251, %v8494, %v8069
        %v8496 = vrot.slane %v8069, 4
        %v8497 = vsel %vm251, %v8125, %v8496
        %v8499 = vunpack.c.l.s4 1983009808
        %v8500 = vunpack.c.0.s8 %v8499
        %v8501 = vperm.slane %v8495, %v8500
        %v8503 = vunpack.c.l.s4 1983009808
        %v8504 = vunpack.c.0.s8 %v8503
        %v8505 = vperm.slane %v8497, %v8504
        %v8506 = vrot.slane %v8131, 4
        %v8507 = vsel %vm251, %v8506, %v8119
        %v8508 = vrot.slane %v8119, 4
        %v8509 = vsel %vm251, %v8131, %v8508
        %v8511 = vunpack.c.l.s4 1983009808
        %v8512 = vunpack.c.0.s8 %v8511
        %v8513 = vperm.slane %v8507, %v8512
        %v8515 = vunpack.c.l.s4 1983009808
        %v8516 = vunpack.c.0.s8 %v8515
        %v8517 = vperm.slane %v8509, %v8516
        %v8518 = vrot.slane %v8149, 4
        %v8519 = vsel %vm251, %v8518, %v8137
        %v8520 = vrot.slane %v8137, 4
        %v8521 = vsel %vm251, %v8149, %v8520
        %v8523 = vunpack.c.l.s4 1983009808
        %v8524 = vunpack.c.0.s8 %v8523
        %v8525 = vperm.slane %v8519, %v8524
        %v8527 = vunpack.c.l.s4 1983009808
        %v8528 = vunpack.c.0.s8 %v8527
        %v8529 = vperm.slane %v8521, %v8528
        %v8530 = vrot.slane %v8155, 4
        %v8531 = vsel %vm251, %v8530, %v8143
        %v8532 = vrot.slane %v8143, 4
        %v8533 = vsel %vm251, %v8155, %v8532
        %v8535 = vunpack.c.l.s4 1983009808
        %v8536 = vunpack.c.0.s8 %v8535
        %v8537 = vperm.slane %v8531, %v8536
        %v8539 = vunpack.c.l.s4 1983009808
        %v8540 = vunpack.c.0.s8 %v8539
        %v8541 = vperm.slane %v8533, %v8540
        %v8542 = vrot.slane %v8513, 4
        %v8543 = vsel %vm251, %v8542, %v8501
        %v8544 = vrot.slane %v8501, 4
        %v8545 = vsel %vm251, %v8513, %v8544
        %v8547 = vunpack.c.l.s4 1934713408
        %v8548 = vunpack.c.0.s8 %v8547
        %v8549 = vperm.slane %v8543, %v8548
        %v8551 = vunpack.c.l.s4 1934713408
        %v8552 = vunpack.c.0.s8 %v8551
        %v8553 = vperm.slane %v8545, %v8552
        %v8554 = vrot.slane %v8517, 4
        %v8555 = vsel %vm251, %v8554, %v8505
        %v8556 = vrot.slane %v8505, 4
        %v8557 = vsel %vm251, %v8517, %v8556
        %v8559 = vunpack.c.l.s4 1934713408
        %v8560 = vunpack.c.0.s8 %v8559
        %v8561 = vperm.slane %v8555, %v8560
        %v8563 = vunpack.c.l.s4 1934713408
        %v8564 = vunpack.c.0.s8 %v8563
        %v8565 = vperm.slane %v8557, %v8564
        %v8566 = vrot.slane %v8537, 4
        %v8567 = vsel %vm251, %v8566, %v8525
        %v8568 = vrot.slane %v8525, 4
        %v8569 = vsel %vm251, %v8537, %v8568
        %v8571 = vunpack.c.l.s4 1934713408
        %v8572 = vunpack.c.0.s8 %v8571
        %v8573 = vperm.slane %v8567, %v8572
        %v8575 = vunpack.c.l.s4 1934713408
        %v8576 = vunpack.c.0.s8 %v8575
        %v8577 = vperm.slane %v8569, %v8576
        %v8578 = vrot.slane %v8541, 4
        %v8579 = vsel %vm251, %v8578, %v8529
        %v8580 = vrot.slane %v8529, 4
        %v8581 = vsel %vm251, %v8541, %v8580
        %v8583 = vunpack.c.l.s4 1934713408
        %v8584 = vunpack.c.0.s8 %v8583
        %v8585 = vperm.slane %v8579, %v8584
        %v8587 = vunpack.c.l.s4 1934713408
        %v8588 = vunpack.c.0.s8 %v8587
        %v8589 = vperm.slane %v8581, %v8588
        %v8590 = vrot.slane %v8573, 4
        %v8591 = vsel %vm251, %v8590, %v8549
        %v8592 = vrot.slane %v8549, 4
        %v8593 = vsel %vm251, %v8573, %v8592
        %v8594 = vrot.slane %v8577, 4
        %v8595 = vsel %vm251, %v8594, %v8553
        %v8596 = vrot.slane %v8553, 4
        %v8597 = vsel %vm251, %v8577, %v8596
        %v8598 = vrot.slane %v8585, 4
        %v8599 = vsel %vm251, %v8598, %v8561
        %v8600 = vrot.slane %v8561, 4
        %v8601 = vsel %vm251, %v8585, %v8600
        %v8602 = vrot.slane %v8589, 4
        %v8603 = vsel %vm251, %v8602, %v8565
        %v8604 = vrot.slane %v8565, 4
        %v8605 = vsel %vm251, %v8589, %v8604
        %v8606 = vrot.slane %v8259, 4
        %v8607 = vsel %vm251, %v8606, %v8255
        %v8608 = vrot.slane %v8255, 4
        %v8609 = vsel %vm251, %v8259, %v8608
        %v8611 = vunpack.c.l.s4 1983009808
        %v8612 = vunpack.c.0.s8 %v8611
        %v8613 = vperm.slane %v8607, %v8612
        %v8615 = vunpack.c.l.s4 1983009808
        %v8616 = vunpack.c.0.s8 %v8615
        %v8617 = vperm.slane %v8609, %v8616
        %v8618 = vrot.slane %v8261, 4
        %v8619 = vsel %vm251, %v8618, %v8257
        %v8620 = vrot.slane %v8257, 4
        %v8621 = vsel %vm251, %v8261, %v8620
        %v8623 = vunpack.c.l.s4 1983009808
        %v8624 = vunpack.c.0.s8 %v8623
        %v8625 = vperm.slane %v8619, %v8624
        %v8627 = vunpack.c.l.s4 1983009808
        %v8628 = vunpack.c.0.s8 %v8627
        %v8629 = vperm.slane %v8621, %v8628
        %v8630 = vrot.slane %v8267, 4
        %v8631 = vsel %vm251, %v8630, %v8263
        %v8632 = vrot.slane %v8263, 4
        %v8633 = vsel %vm251, %v8267, %v8632
        %v8635 = vunpack.c.l.s4 1983009808
        %v8636 = vunpack.c.0.s8 %v8635
        %v8637 = vperm.slane %v8631, %v8636
        %v8639 = vunpack.c.l.s4 1983009808
        %v8640 = vunpack.c.0.s8 %v8639
        %v8641 = vperm.slane %v8633, %v8640
        %v8642 = vrot.slane %v8269, 4
        %v8643 = vsel %vm251, %v8642, %v8265
        %v8644 = vrot.slane %v8265, 4
        %v8645 = vsel %vm251, %v8269, %v8644
        %v8647 = vunpack.c.l.s4 1983009808
        %v8648 = vunpack.c.0.s8 %v8647
        %v8649 = vperm.slane %v8643, %v8648
        %v8651 = vunpack.c.l.s4 1983009808
        %v8652 = vunpack.c.0.s8 %v8651
        %v8653 = vperm.slane %v8645, %v8652
        %v8654 = vrot.slane %v8625, 4
        %v8655 = vsel %vm251, %v8654, %v8613
        %v8656 = vrot.slane %v8613, 4
        %v8657 = vsel %vm251, %v8625, %v8656
        %v8659 = vunpack.c.l.s4 1934713408
        %v8660 = vunpack.c.0.s8 %v8659
        %v8661 = vperm.slane %v8655, %v8660
        %v8663 = vunpack.c.l.s4 1934713408
        %v8664 = vunpack.c.0.s8 %v8663
        %v8665 = vperm.slane %v8657, %v8664
        %v8666 = vrot.slane %v8629, 4
        %v8667 = vsel %vm251, %v8666, %v8617
        %v8668 = vrot.slane %v8617, 4
        %v8669 = vsel %vm251, %v8629, %v8668
        %v8671 = vunpack.c.l.s4 1934713408
        %v8672 = vunpack.c.0.s8 %v8671
        %v8673 = vperm.slane %v8667, %v8672
        %v8675 = vunpack.c.l.s4 1934713408
        %v8676 = vunpack.c.0.s8 %v8675
        %v8677 = vperm.slane %v8669, %v8676
        %v8678 = vrot.slane %v8649, 4
        %v8679 = vsel %vm251, %v8678, %v8637
        %v8680 = vrot.slane %v8637, 4
        %v8681 = vsel %vm251, %v8649, %v8680
        %v8683 = vunpack.c.l.s4 1934713408
        %v8684 = vunpack.c.0.s8 %v8683
        %v8685 = vperm.slane %v8679, %v8684
        %v8687 = vunpack.c.l.s4 1934713408
        %v8688 = vunpack.c.0.s8 %v8687
        %v8689 = vperm.slane %v8681, %v8688
        %v8690 = vrot.slane %v8653, 4
        %v8691 = vsel %vm251, %v8690, %v8641
        %v8692 = vrot.slane %v8641, 4
        %v8693 = vsel %vm251, %v8653, %v8692
        %v8695 = vunpack.c.l.s4 1934713408
        %v8696 = vunpack.c.0.s8 %v8695
        %v8697 = vperm.slane %v8691, %v8696
        %v8699 = vunpack.c.l.s4 1934713408
        %v8700 = vunpack.c.0.s8 %v8699
        %v8701 = vperm.slane %v8693, %v8700
        %v8702 = vrot.slane %v8685, 4
        %v8703 = vsel %vm251, %v8702, %v8661
        %v8704 = vrot.slane %v8661, 4
        %v8705 = vsel %vm251, %v8685, %v8704
        %v8706 = vrot.slane %v8689, 4
        %v8707 = vsel %vm251, %v8706, %v8665
        %v8708 = vrot.slane %v8665, 4
        %v8709 = vsel %vm251, %v8689, %v8708
        %v8710 = vrot.slane %v8697, 4
        %v8711 = vsel %vm251, %v8710, %v8673
        %v8712 = vrot.slane %v8673, 4
        %v8713 = vsel %vm251, %v8697, %v8712
        %v8714 = vrot.slane %v8701, 4
        %v8715 = vsel %vm251, %v8714, %v8677
        %v8716 = vrot.slane %v8677, 4
        %v8717 = vsel %vm251, %v8701, %v8716
        %v8718 = vrot.slane %v8483, 4
        %v8719 = vsel %vm251, %v8718, %v8479
        %v8720 = vrot.slane %v8479, 4
        %v8721 = vsel %vm251, %v8483, %v8720
        %v8723 = vunpack.c.l.s4 1983009808
        %v8724 = vunpack.c.0.s8 %v8723
        %v8725 = vperm.slane %v8719, %v8724
        %v8727 = vunpack.c.l.s4 1983009808
        %v8728 = vunpack.c.0.s8 %v8727
        %v8729 = vperm.slane %v8721, %v8728
        %v8730 = vrot.slane %v8485, 4
        %v8731 = vsel %vm251, %v8730, %v8481
        %v8732 = vrot.slane %v8481, 4
        %v8733 = vsel %vm251, %v8485, %v8732
        %v8735 = vunpack.c.l.s4 1983009808
        %v8736 = vunpack.c.0.s8 %v8735
        %v8737 = vperm.slane %v8731, %v8736
        %v8739 = vunpack.c.l.s4 1983009808
        %v8740 = vunpack.c.0.s8 %v8739
        %v8741 = vperm.slane %v8733, %v8740
        %v8742 = vrot.slane %v8491, 4
        %v8743 = vsel %vm251, %v8742, %v8487
        %v8744 = vrot.slane %v8487, 4
        %v8745 = vsel %vm251, %v8491, %v8744
        %v8747 = vunpack.c.l.s4 1983009808
        %v8748 = vunpack.c.0.s8 %v8747
        %v8749 = vperm.slane %v8743, %v8748
        %v8751 = vunpack.c.l.s4 1983009808
        %v8752 = vunpack.c.0.s8 %v8751
        %v8753 = vperm.slane %v8745, %v8752
        %v8754 = vrot.slane %v8493, 4
        %v8755 = vsel %vm251, %v8754, %v8489
        %v8756 = vrot.slane %v8489, 4
        %v8757 = vsel %vm251, %v8493, %v8756
        %v8759 = vunpack.c.l.s4 1983009808
        %v8760 = vunpack.c.0.s8 %v8759
        %v8761 = vperm.slane %v8755, %v8760
        %v8763 = vunpack.c.l.s4 1983009808
        %v8764 = vunpack.c.0.s8 %v8763
        %v8765 = vperm.slane %v8757, %v8764
        %v8766 = vrot.slane %v8737, 4
        %v8767 = vsel %vm251, %v8766, %v8725
        %v8768 = vrot.slane %v8725, 4
        %v8769 = vsel %vm251, %v8737, %v8768
        %v8771 = vunpack.c.l.s4 1934713408
        %v8772 = vunpack.c.0.s8 %v8771
        %v8773 = vperm.slane %v8767, %v8772
        %v8775 = vunpack.c.l.s4 1934713408
        %v8776 = vunpack.c.0.s8 %v8775
        %v8777 = vperm.slane %v8769, %v8776
        %v8778 = vrot.slane %v8741, 4
        %v8779 = vsel %vm251, %v8778, %v8729
        %v8780 = vrot.slane %v8729, 4
        %v8781 = vsel %vm251, %v8741, %v8780
        %v8783 = vunpack.c.l.s4 1934713408
        %v8784 = vunpack.c.0.s8 %v8783
        %v8785 = vperm.slane %v8779, %v8784
        %v8787 = vunpack.c.l.s4 1934713408
        %v8788 = vunpack.c.0.s8 %v8787
        %v8789 = vperm.slane %v8781, %v8788
        %v8790 = vrot.slane %v8761, 4
        %v8791 = vsel %vm251, %v8790, %v8749
        %v8792 = vrot.slane %v8749, 4
        %v8793 = vsel %vm251, %v8761, %v8792
        %v8795 = vunpack.c.l.s4 1934713408
        %v8796 = vunpack.c.0.s8 %v8795
        %v8797 = vperm.slane %v8791, %v8796
        %v8799 = vunpack.c.l.s4 1934713408
        %v8800 = vunpack.c.0.s8 %v8799
        %v8801 = vperm.slane %v8793, %v8800
        %v8802 = vrot.slane %v8765, 4
        %v8803 = vsel %vm251, %v8802, %v8753
        %v8804 = vrot.slane %v8753, 4
        %v8805 = vsel %vm251, %v8765, %v8804
        %v8807 = vunpack.c.l.s4 1934713408
        %v8808 = vunpack.c.0.s8 %v8807
        %v8809 = vperm.slane %v8803, %v8808
        %v8811 = vunpack.c.l.s4 1934713408
        %v8812 = vunpack.c.0.s8 %v8811
        %v8813 = vperm.slane %v8805, %v8812
        %v8814 = vrot.slane %v8797, 4
        %v8815 = vsel %vm251, %v8814, %v8773
        %v8816 = vrot.slane %v8773, 4
        %v8817 = vsel %vm251, %v8797, %v8816
        %v8818 = vrot.slane %v8801, 4
        %v8819 = vsel %vm251, %v8818, %v8777
        %v8820 = vrot.slane %v8777, 4
        %v8821 = vsel %vm251, %v8801, %v8820
        %v8822 = vrot.slane %v8809, 4
        %v8823 = vsel %vm251, %v8822, %v8785
        %v8824 = vrot.slane %v8785, 4
        %v8825 = vsel %vm251, %v8809, %v8824
        %v8826 = vrot.slane %v8813, 4
        %v8827 = vsel %vm251, %v8826, %v8789
        %v8828 = vrot.slane %v8789, 4
        %v8829 = vsel %vm251, %v8813, %v8828
        %v8830 = vrot.slane %v8371, 4
        %v8831 = vsel %vm251, %v8830, %v8367
        %v8832 = vrot.slane %v8367, 4
        %v8833 = vsel %vm251, %v8371, %v8832
        %v8835 = vunpack.c.l.s4 1983009808
        %v8836 = vunpack.c.0.s8 %v8835
        %v8837 = vperm.slane %v8831, %v8836
        %v8839 = vunpack.c.l.s4 1983009808
        %v8840 = vunpack.c.0.s8 %v8839
        %v8841 = vperm.slane %v8833, %v8840
        %v8842 = vrot.slane %v8373, 4
        %v8843 = vsel %vm251, %v8842, %v8369
        %v8844 = vrot.slane %v8369, 4
        %v8845 = vsel %vm251, %v8373, %v8844
        %v8847 = vunpack.c.l.s4 1983009808
        %v8848 = vunpack.c.0.s8 %v8847
        %v8849 = vperm.slane %v8843, %v8848
        %v8851 = vunpack.c.l.s4 1983009808
        %v8852 = vunpack.c.0.s8 %v8851
        %v8853 = vperm.slane %v8845, %v8852
        %v8854 = vrot.slane %v8379, 4
        %v8855 = vsel %vm251, %v8854, %v8375
        %v8856 = vrot.slane %v8375, 4
        %v8857 = vsel %vm251, %v8379, %v8856
        %v8859 = vunpack.c.l.s4 1983009808
        %v8860 = vunpack.c.0.s8 %v8859
        %v8861 = vperm.slane %v8855, %v8860
        %v8863 = vunpack.c.l.s4 1983009808
        %v8864 = vunpack.c.0.s8 %v8863
        %v8865 = vperm.slane %v8857, %v8864
        %v8866 = vrot.slane %v8381, 4
        %v8867 = vsel %vm251, %v8866, %v8377
        %v8868 = vrot.slane %v8377, 4
        %v8869 = vsel %vm251, %v8381, %v8868
        %v8871 = vunpack.c.l.s4 1983009808
        %v8872 = vunpack.c.0.s8 %v8871
        %v8873 = vperm.slane %v8867, %v8872
        %v8875 = vunpack.c.l.s4 1983009808
        %v8876 = vunpack.c.0.s8 %v8875
        %v8877 = vperm.slane %v8869, %v8876
        %v8878 = vrot.slane %v8849, 4
        %v8879 = vsel %vm251, %v8878, %v8837
        %v8880 = vrot.slane %v8837, 4
        %v8881 = vsel %vm251, %v8849, %v8880
        %v8883 = vunpack.c.l.s4 1934713408
        %v8884 = vunpack.c.0.s8 %v8883
        %v8885 = vperm.slane %v8879, %v8884
        %v8887 = vunpack.c.l.s4 1934713408
        %v8888 = vunpack.c.0.s8 %v8887
        %v8889 = vperm.slane %v8881, %v8888
        %v8890 = vrot.slane %v8853, 4
        %v8891 = vsel %vm251, %v8890, %v8841
        %v8892 = vrot.slane %v8841, 4
        %v8893 = vsel %vm251, %v8853, %v8892
        %v8895 = vunpack.c.l.s4 1934713408
        %v8896 = vunpack.c.0.s8 %v8895
        %v8897 = vperm.slane %v8891, %v8896
        %v8899 = vunpack.c.l.s4 1934713408
        %v8900 = vunpack.c.0.s8 %v8899
        %v8901 = vperm.slane %v8893, %v8900
        %v8902 = vrot.slane %v8873, 4
        %v8903 = vsel %vm251, %v8902, %v8861
        %v8904 = vrot.slane %v8861, 4
        %v8905 = vsel %vm251, %v8873, %v8904
        %v8907 = vunpack.c.l.s4 1934713408
        %v8908 = vunpack.c.0.s8 %v8907
        %v8909 = vperm.slane %v8903, %v8908
        %v8911 = vunpack.c.l.s4 1934713408
        %v8912 = vunpack.c.0.s8 %v8911
        %v8913 = vperm.slane %v8905, %v8912
        %v8914 = vrot.slane %v8877, 4
        %v8915 = vsel %vm251, %v8914, %v8865
        %v8916 = vrot.slane %v8865, 4
        %v8917 = vsel %vm251, %v8877, %v8916
        %v8919 = vunpack.c.l.s4 1934713408
        %v8920 = vunpack.c.0.s8 %v8919
        %v8921 = vperm.slane %v8915, %v8920
        %v8923 = vunpack.c.l.s4 1934713408
        %v8924 = vunpack.c.0.s8 %v8923
        %v8925 = vperm.slane %v8917, %v8924
        %v8926 = vrot.slane %v8909, 4
        %v8927 = vsel %vm251, %v8926, %v8885
        %v8928 = vrot.slane %v8885, 4
        %v8929 = vsel %vm251, %v8909, %v8928
        %v8930 = vrot.slane %v8913, 4
        %v8931 = vsel %vm251, %v8930, %v8889
        %v8932 = vrot.slane %v8889, 4
        %v8933 = vsel %vm251, %v8913, %v8932
        %v8934 = vrot.slane %v8921, 4
        %v8935 = vsel %vm251, %v8934, %v8897
        %v8936 = vrot.slane %v8897, 4
        %v8937 = vsel %vm251, %v8921, %v8936
        %v8938 = vrot.slane %v8925, 4
        %v8939 = vsel %vm251, %v8938, %v8901
        %v8940 = vrot.slane %v8901, 4
        %v8941 = vsel %vm251, %v8925, %v8940
        %v8942 = vrot.slane %v8595, 4
        %v8943 = vsel %vm251, %v8942, %v8591
        %v8944 = vrot.slane %v8591, 4
        %v8945 = vsel %vm251, %v8595, %v8944
        %v8947 = vunpack.c.l.s4 1983009808
        %v8948 = vunpack.c.0.s8 %v8947
        %v8949 = vperm.slane %v8943, %v8948
        %v8951 = vunpack.c.l.s4 1983009808
        %v8952 = vunpack.c.0.s8 %v8951
        %v8953 = vperm.slane %v8945, %v8952
        %v8954 = vrot.slane %v8597, 4
        %v8955 = vsel %vm251, %v8954, %v8593
        %v8956 = vrot.slane %v8593, 4
        %v8957 = vsel %vm251, %v8597, %v8956
        %v8959 = vunpack.c.l.s4 1983009808
        %v8960 = vunpack.c.0.s8 %v8959
        %v8961 = vperm.slane %v8955, %v8960
        %v8963 = vunpack.c.l.s4 1983009808
        %v8964 = vunpack.c.0.s8 %v8963
        %v8965 = vperm.slane %v8957, %v8964
        %v8966 = vrot.slane %v8603, 4
        %v8967 = vsel %vm251, %v8966, %v8599
        %v8968 = vrot.slane %v8599, 4
        %v8969 = vsel %vm251, %v8603, %v8968
        %v8971 = vunpack.c.l.s4 1983009808
        %v8972 = vunpack.c.0.s8 %v8971
        %v8973 = vperm.slane %v8967, %v8972
        %v8975 = vunpack.c.l.s4 1983009808
        %v8976 = vunpack.c.0.s8 %v8975
        %v8977 = vperm.slane %v8969, %v8976
        %v8978 = vrot.slane %v8605, 4
        %v8979 = vsel %vm251, %v8978, %v8601
        %v8980 = vrot.slane %v8601, 4
        %v8981 = vsel %vm251, %v8605, %v8980
        %v8983 = vunpack.c.l.s4 1983009808
        %v8984 = vunpack.c.0.s8 %v8983
        %v8985 = vperm.slane %v8979, %v8984
        %v8987 = vunpack.c.l.s4 1983009808
        %v8988 = vunpack.c.0.s8 %v8987
        %v8989 = vperm.slane %v8981, %v8988
        %v8990 = vrot.slane %v8961, 4
        %v8991 = vsel %vm251, %v8990, %v8949
        %v8992 = vrot.slane %v8949, 4
        %v8993 = vsel %vm251, %v8961, %v8992
        %v8995 = vunpack.c.l.s4 1934713408
        %v8996 = vunpack.c.0.s8 %v8995
        %v8997 = vperm.slane %v8991, %v8996
        %v8999 = vunpack.c.l.s4 1934713408
        %v9000 = vunpack.c.0.s8 %v8999
        %v9001 = vperm.slane %v8993, %v9000
        %v9002 = vrot.slane %v8965, 4
        %v9003 = vsel %vm251, %v9002, %v8953
        %v9004 = vrot.slane %v8953, 4
        %v9005 = vsel %vm251, %v8965, %v9004
        %v9007 = vunpack.c.l.s4 1934713408
        %v9008 = vunpack.c.0.s8 %v9007
        %v9009 = vperm.slane %v9003, %v9008
        %v9011 = vunpack.c.l.s4 1934713408
        %v9012 = vunpack.c.0.s8 %v9011
        %v9013 = vperm.slane %v9005, %v9012
        %v9014 = vrot.slane %v8985, 4
        %v9015 = vsel %vm251, %v9014, %v8973
        %v9016 = vrot.slane %v8973, 4
        %v9017 = vsel %vm251, %v8985, %v9016
        %v9019 = vunpack.c.l.s4 1934713408
        %v9020 = vunpack.c.0.s8 %v9019
        %v9021 = vperm.slane %v9015, %v9020
        %v9023 = vunpack.c.l.s4 1934713408
        %v9024 = vunpack.c.0.s8 %v9023
        %v9025 = vperm.slane %v9017, %v9024
        %v9026 = vrot.slane %v8989, 4
        %v9027 = vsel %vm251, %v9026, %v8977
        %v9028 = vrot.slane %v8977, 4
        %v9029 = vsel %vm251, %v8989, %v9028
        %v9031 = vunpack.c.l.s4 1934713408
        %v9032 = vunpack.c.0.s8 %v9031
        %v9033 = vperm.slane %v9027, %v9032
        %v9035 = vunpack.c.l.s4 1934713408
        %v9036 = vunpack.c.0.s8 %v9035
        %v9037 = vperm.slane %v9029, %v9036
        %v9038 = vrot.slane %v9021, 4
        %v9039 = vsel %vm251, %v9038, %v8997
        %v9040 = vrot.slane %v8997, 4
        %v9041 = vsel %vm251, %v9021, %v9040
        %v9042 = vrot.slane %v9025, 4
        %v9043 = vsel %vm251, %v9042, %v9001
        %v9044 = vrot.slane %v9001, 4
        %v9045 = vsel %vm251, %v9025, %v9044
        %v9046 = vrot.slane %v9033, 4
        %v9047 = vsel %vm251, %v9046, %v9009
        %v9048 = vrot.slane %v9009, 4
        %v9049 = vsel %vm251, %v9033, %v9048
        %v9050 = vrot.slane %v9037, 4
        %v9051 = vsel %vm251, %v9050, %v9013
        %v9052 = vrot.slane %v9013, 4
        %v9053 = vsel %vm251, %v9037, %v9052
        %v9054 = vrot.slane %v8707, 4
        %v9055 = vsel %vm251, %v9054, %v8703
        %v9056 = vrot.slane %v8703, 4
        %v9057 = vsel %vm251, %v8707, %v9056
        %v9059 = vunpack.c.l.s4 1983009808
        %v9060 = vunpack.c.0.s8 %v9059
        %v9061 = vperm.slane %v9055, %v9060
        %v9063 = vunpack.c.l.s4 1983009808
        %v9064 = vunpack.c.0.s8 %v9063
        %v9065 = vperm.slane %v9057, %v9064
        %v9066 = vrot.slane %v8709, 4
        %v9067 = vsel %vm251, %v9066, %v8705
        %v9068 = vrot.slane %v8705, 4
        %v9069 = vsel %vm251, %v8709, %v9068
        %v9071 = vunpack.c.l.s4 1983009808
        %v9072 = vunpack.c.0.s8 %v9071
        %v9073 = vperm.slane %v9067, %v9072
        %v9075 = vunpack.c.l.s4 1983009808
        %v9076 = vunpack.c.0.s8 %v9075
        %v9077 = vperm.slane %v9069, %v9076
        %v9078 = vrot.slane %v8715, 4
        %v9079 = vsel %vm251, %v9078, %v8711
        %v9080 = vrot.slane %v8711, 4
        %v9081 = vsel %vm251, %v8715, %v9080
        %v9083 = vunpack.c.l.s4 1983009808
        %v9084 = vunpack.c.0.s8 %v9083
        %v9085 = vperm.slane %v9079, %v9084
        %v9087 = vunpack.c.l.s4 1983009808
        %v9088 = vunpack.c.0.s8 %v9087
        %v9089 = vperm.slane %v9081, %v9088
        %v9090 = vrot.slane %v8717, 4
        %v9091 = vsel %vm251, %v9090, %v8713
        %v9092 = vrot.slane %v8713, 4
        %v9093 = vsel %vm251, %v8717, %v9092
        %v9095 = vunpack.c.l.s4 1983009808
        %v9096 = vunpack.c.0.s8 %v9095
        %v9097 = vperm.slane %v9091, %v9096
        %v9099 = vunpack.c.l.s4 1983009808
        %v9100 = vunpack.c.0.s8 %v9099
        %v9101 = vperm.slane %v9093, %v9100
        %v9102 = vrot.slane %v9073, 4
        %v9103 = vsel %vm251, %v9102, %v9061
        %v9104 = vrot.slane %v9061, 4
        %v9105 = vsel %vm251, %v9073, %v9104
        %v9107 = vunpack.c.l.s4 1934713408
        %v9108 = vunpack.c.0.s8 %v9107
        %v9109 = vperm.slane %v9103, %v9108
        %v9111 = vunpack.c.l.s4 1934713408
        %v9112 = vunpack.c.0.s8 %v9111
        %v9113 = vperm.slane %v9105, %v9112
        %v9114 = vrot.slane %v9077, 4
        %v9115 = vsel %vm251, %v9114, %v9065
        %v9116 = vrot.slane %v9065, 4
        %v9117 = vsel %vm251, %v9077, %v9116
        %v9119 = vunpack.c.l.s4 1934713408
        %v9120 = vunpack.c.0.s8 %v9119
        %v9121 = vperm.slane %v9115, %v9120
        %v9123 = vunpack.c.l.s4 1934713408
        %v9124 = vunpack.c.0.s8 %v9123
        %v9125 = vperm.slane %v9117, %v9124
        %v9126 = vrot.slane %v9097, 4
        %v9127 = vsel %vm251, %v9126, %v9085
        %v9128 = vrot.slane %v9085, 4
        %v9129 = vsel %vm251, %v9097, %v9128
        %v9131 = vunpack.c.l.s4 1934713408
        %v9132 = vunpack.c.0.s8 %v9131
        %v9133 = vperm.slane %v9127, %v9132
        %v9135 = vunpack.c.l.s4 1934713408
        %v9136 = vunpack.c.0.s8 %v9135
        %v9137 = vperm.slane %v9129, %v9136
        %v9138 = vrot.slane %v9101, 4
        %v9139 = vsel %vm251, %v9138, %v9089
        %v9140 = vrot.slane %v9089, 4
        %v9141 = vsel %vm251, %v9101, %v9140
        %v9143 = vunpack.c.l.s4 1934713408
        %v9144 = vunpack.c.0.s8 %v9143
        %v9145 = vperm.slane %v9139, %v9144
        %v9147 = vunpack.c.l.s4 1934713408
        %v9148 = vunpack.c.0.s8 %v9147
        %v9149 = vperm.slane %v9141, %v9148
        %v9150 = vrot.slane %v9133, 4
        %v9151 = vsel %vm251, %v9150, %v9109
        %v9152 = vrot.slane %v9109, 4
        %v9153 = vsel %vm251, %v9133, %v9152
        %v9154 = vrot.slane %v9137, 4
        %v9155 = vsel %vm251, %v9154, %v9113
        %v9156 = vrot.slane %v9113, 4
        %v9157 = vsel %vm251, %v9137, %v9156
        %v9158 = vrot.slane %v9145, 4
        %v9159 = vsel %vm251, %v9158, %v9121
        %v9160 = vrot.slane %v9121, 4
        %v9161 = vsel %vm251, %v9145, %v9160
        %v9162 = vrot.slane %v9149, 4
        %v9163 = vsel %vm251, %v9162, %v9125
        %v9164 = vrot.slane %v9125, 4
        %v9165 = vsel %vm251, %v9149, %v9164
        %v9166 = vrot.slane %v8931, 4
        %v9167 = vsel %vm251, %v9166, %v8927
        %v9168 = vrot.slane %v8927, 4
        %v9169 = vsel %vm251, %v8931, %v9168
        %v9171 = vunpack.c.l.s4 1983009808
        %v9172 = vunpack.c.0.s8 %v9171
        %v9173 = vperm.slane %v9167, %v9172
        %v9175 = vunpack.c.l.s4 1983009808
        %v9176 = vunpack.c.0.s8 %v9175
        %v9177 = vperm.slane %v9169, %v9176
        %v9178 = vrot.slane %v8933, 4
        %v9179 = vsel %vm251, %v9178, %v8929
        %v9180 = vrot.slane %v8929, 4
        %v9181 = vsel %vm251, %v8933, %v9180
        %v9183 = vunpack.c.l.s4 1983009808
        %v9184 = vunpack.c.0.s8 %v9183
        %v9185 = vperm.slane %v9179, %v9184
        %v9187 = vunpack.c.l.s4 1983009808
        %v9188 = vunpack.c.0.s8 %v9187
        %v9189 = vperm.slane %v9181, %v9188
        %v9190 = vrot.slane %v8939, 4
        %v9191 = vsel %vm251, %v9190, %v8935
        %v9192 = vrot.slane %v8935, 4
        %v9193 = vsel %vm251, %v8939, %v9192
        %v9195 = vunpack.c.l.s4 1983009808
        %v9196 = vunpack.c.0.s8 %v9195
        %v9197 = vperm.slane %v9191, %v9196
        %v9199 = vunpack.c.l.s4 1983009808
        %v9200 = vunpack.c.0.s8 %v9199
        %v9201 = vperm.slane %v9193, %v9200
        %v9202 = vrot.slane %v8941, 4
        %v9203 = vsel %vm251, %v9202, %v8937
        %v9204 = vrot.slane %v8937, 4
        %v9205 = vsel %vm251, %v8941, %v9204
        %v9207 = vunpack.c.l.s4 1983009808
        %v9208 = vunpack.c.0.s8 %v9207
        %v9209 = vperm.slane %v9203, %v9208
        %v9211 = vunpack.c.l.s4 1983009808
        %v9212 = vunpack.c.0.s8 %v9211
        %v9213 = vperm.slane %v9205, %v9212
        %v9214 = vrot.slane %v9185, 4
        %v9215 = vsel %vm251, %v9214, %v9173
        %v9216 = vrot.slane %v9173, 4
        %v9217 = vsel %vm251, %v9185, %v9216
        %v9219 = vunpack.c.l.s4 1934713408
        %v9220 = vunpack.c.0.s8 %v9219
        %v9221 = vperm.slane %v9215, %v9220
        %v9223 = vunpack.c.l.s4 1934713408
        %v9224 = vunpack.c.0.s8 %v9223
        %v9225 = vperm.slane %v9217, %v9224
        %v9226 = vrot.slane %v9189, 4
        %v9227 = vsel %vm251, %v9226, %v9177
        %v9228 = vrot.slane %v9177, 4
        %v9229 = vsel %vm251, %v9189, %v9228
        %v9231 = vunpack.c.l.s4 1934713408
        %v9232 = vunpack.c.0.s8 %v9231
        %v9233 = vperm.slane %v9227, %v9232
        %v9235 = vunpack.c.l.s4 1934713408
        %v9236 = vunpack.c.0.s8 %v9235
        %v9237 = vperm.slane %v9229, %v9236
        %v9238 = vrot.slane %v9209, 4
        %v9239 = vsel %vm251, %v9238, %v9197
        %v9240 = vrot.slane %v9197, 4
        %v9241 = vsel %vm251, %v9209, %v9240
        %v9243 = vunpack.c.l.s4 1934713408
        %v9244 = vunpack.c.0.s8 %v9243
        %v9245 = vperm.slane %v9239, %v9244
        %v9247 = vunpack.c.l.s4 1934713408
        %v9248 = vunpack.c.0.s8 %v9247
        %v9249 = vperm.slane %v9241, %v9248
        %v9250 = vrot.slane %v9213, 4
        %v9251 = vsel %vm251, %v9250, %v9201
        %v9252 = vrot.slane %v9201, 4
        %v9253 = vsel %vm251, %v9213, %v9252
        %v9255 = vunpack.c.l.s4 1934713408
        %v9256 = vunpack.c.0.s8 %v9255
        %v9257 = vperm.slane %v9251, %v9256
        %v9259 = vunpack.c.l.s4 1934713408
        %v9260 = vunpack.c.0.s8 %v9259
        %v9261 = vperm.slane %v9253, %v9260
        %v9262 = vrot.slane %v9245, 4
        %v9263 = vsel %vm251, %v9262, %v9221
        %v9264 = vrot.slane %v9221, 4
        %v9265 = vsel %vm251, %v9245, %v9264
        %v9266 = vrot.slane %v9249, 4
        %v9267 = vsel %vm251, %v9266, %v9225
        %v9268 = vrot.slane %v9225, 4
        %v9269 = vsel %vm251, %v9249, %v9268
        %v9270 = vrot.slane %v9257, 4
        %v9271 = vsel %vm251, %v9270, %v9233
        %v9272 = vrot.slane %v9233, 4
        %v9273 = vsel %vm251, %v9257, %v9272
        %v9274 = vrot.slane %v9261, 4
        %v9275 = vsel %vm251, %v9274, %v9237
        %v9276 = vrot.slane %v9237, 4
        %v9277 = vsel %vm251, %v9261, %v9276
        %v9278 = vrot.slane %v8819, 4
        %v9279 = vsel %vm251, %v9278, %v8815
        %v9280 = vrot.slane %v8815, 4
        %v9281 = vsel %vm251, %v8819, %v9280
        %v9283 = vunpack.c.l.s4 1983009808
        %v9284 = vunpack.c.0.s8 %v9283
        %v9285 = vperm.slane %v9279, %v9284
        %v9287 = vunpack.c.l.s4 1983009808
        %v9288 = vunpack.c.0.s8 %v9287
        %v9289 = vperm.slane %v9281, %v9288
        %v9290 = vrot.slane %v8821, 4
        %v9291 = vsel %vm251, %v9290, %v8817
        %v9292 = vrot.slane %v8817, 4
        %v9293 = vsel %vm251, %v8821, %v9292
        %v9295 = vunpack.c.l.s4 1983009808
        %v9296 = vunpack.c.0.s8 %v9295
        %v9297 = vperm.slane %v9291, %v9296
        %v9299 = vunpack.c.l.s4 1983009808
        %v9300 = vunpack.c.0.s8 %v9299
        %v9301 = vperm.slane %v9293, %v9300
        %v9302 = vrot.slane %v8827, 4
        %v9303 = vsel %vm251, %v9302, %v8823
        %v9304 = vrot.slane %v8823, 4
        %v9305 = vsel %vm251, %v8827, %v9304
        %v9307 = vunpack.c.l.s4 1983009808
        %v9308 = vunpack.c.0.s8 %v9307
        %v9309 = vperm.slane %v9303, %v9308
        %v9311 = vunpack.c.l.s4 1983009808
        %v9312 = vunpack.c.0.s8 %v9311
        %v9313 = vperm.slane %v9305, %v9312
        %v9314 = vrot.slane %v8829, 4
        %v9315 = vsel %vm251, %v9314, %v8825
        %v9316 = vrot.slane %v8825, 4
        %v9317 = vsel %vm251, %v8829, %v9316
        %v9319 = vunpack.c.l.s4 1983009808
        %v9320 = vunpack.c.0.s8 %v9319
        %v9321 = vperm.slane %v9315, %v9320
        %v9323 = vunpack.c.l.s4 1983009808
        %v9324 = vunpack.c.0.s8 %v9323
        %v9325 = vperm.slane %v9317, %v9324
        %v9326 = vrot.slane %v9297, 4
        %v9327 = vsel %vm251, %v9326, %v9285
        %v9328 = vrot.slane %v9285, 4
        %v9329 = vsel %vm251, %v9297, %v9328
        %v9331 = vunpack.c.l.s4 1934713408
        %v9332 = vunpack.c.0.s8 %v9331
        %v9333 = vperm.slane %v9327, %v9332
        %v9335 = vunpack.c.l.s4 1934713408
        %v9336 = vunpack.c.0.s8 %v9335
        %v9337 = vperm.slane %v9329, %v9336
        %v9338 = vrot.slane %v9301, 4
        %v9339 = vsel %vm251, %v9338, %v9289
        %v9340 = vrot.slane %v9289, 4
        %v9341 = vsel %vm251, %v9301, %v9340
        %v9343 = vunpack.c.l.s4 1934713408
        %v9344 = vunpack.c.0.s8 %v9343
        %v9345 = vperm.slane %v9339, %v9344
        %v9347 = vunpack.c.l.s4 1934713408
        %v9348 = vunpack.c.0.s8 %v9347
        %v9349 = vperm.slane %v9341, %v9348
        %v9350 = vrot.slane %v9321, 4
        %v9351 = vsel %vm251, %v9350, %v9309
        %v9352 = vrot.slane %v9309, 4
        %v9353 = vsel %vm251, %v9321, %v9352
        %v9355 = vunpack.c.l.s4 1934713408
        %v9356 = vunpack.c.0.s8 %v9355
        %v9357 = vperm.slane %v9351, %v9356
        %v9359 = vunpack.c.l.s4 1934713408
        %v9360 = vunpack.c.0.s8 %v9359
        %v9361 = vperm.slane %v9353, %v9360
        %v9362 = vrot.slane %v9325, 4
        %v9363 = vsel %vm251, %v9362, %v9313
        %v9364 = vrot.slane %v9313, 4
        %v9365 = vsel %vm251, %v9325, %v9364
        %v9367 = vunpack.c.l.s4 1934713408
        %v9368 = vunpack.c.0.s8 %v9367
        %v9369 = vperm.slane %v9363, %v9368
        %v9371 = vunpack.c.l.s4 1934713408
        %v9372 = vunpack.c.0.s8 %v9371
        %v9373 = vperm.slane %v9365, %v9372
        %v9374 = vrot.slane %v9357, 4
        %v9375 = vsel %vm251, %v9374, %v9333
        %v9376 = vrot.slane %v9333, 4
        %v9377 = vsel %vm251, %v9357, %v9376
        %v9378 = vrot.slane %v9361, 4
        %v9379 = vsel %vm251, %v9378, %v9337
        %v9380 = vrot.slane %v9337, 4
        %v9381 = vsel %vm251, %v9361, %v9380
        %v9382 = vrot.slane %v9369, 4
        %v9383 = vsel %vm251, %v9382, %v9345
        %v9384 = vrot.slane %v9345, 4
        %v9385 = vsel %vm251, %v9369, %v9384
        %v9386 = vrot.slane %v9373, 4
        %v9387 = vsel %vm251, %v9386, %v9349
        %v9388 = vrot.slane %v9349, 4
        %v9389 = vsel %vm251, %v9373, %v9388
        %v9390 = vrot.slane %v9043, 4
        %v9391 = vsel %vm251, %v9390, %v9039
        %v9392 = vrot.slane %v9039, 4
        %v9393 = vsel %vm251, %v9043, %v9392
        %v9395 = vunpack.c.l.s4 1983009808
        %v9396 = vunpack.c.0.s8 %v9395
        %v9397 = vperm.slane %v9391, %v9396
        %v9399 = vunpack.c.l.s4 1983009808
        %v9400 = vunpack.c.0.s8 %v9399
        %v9401 = vperm.slane %v9393, %v9400
        %v9402 = vrot.slane %v9045, 4
        %v9403 = vsel %vm251, %v9402, %v9041
        %v9404 = vrot.slane %v9041, 4
        %v9405 = vsel %vm251, %v9045, %v9404
        %v9407 = vunpack.c.l.s4 1983009808
        %v9408 = vunpack.c.0.s8 %v9407
        %v9409 = vperm.slane %v9403, %v9408
        %v9411 = vunpack.c.l.s4 1983009808
        %v9412 = vunpack.c.0.s8 %v9411
        %v9413 = vperm.slane %v9405, %v9412
        %v9414 = vrot.slane %v9051, 4
        %v9415 = vsel %vm251, %v9414, %v9047
        %v9416 = vrot.slane %v9047, 4
        %v9417 = vsel %vm251, %v9051, %v9416
        %v9419 = vunpack.c.l.s4 1983009808
        %v9420 = vunpack.c.0.s8 %v9419
        %v9421 = vperm.slane %v9415, %v9420
        %v9423 = vunpack.c.l.s4 1983009808
        %v9424 = vunpack.c.0.s8 %v9423
        %v9425 = vperm.slane %v9417, %v9424
        %v9426 = vrot.slane %v9053, 4
        %v9427 = vsel %vm251, %v9426, %v9049
        %v9428 = vrot.slane %v9049, 4
        %v9429 = vsel %vm251, %v9053, %v9428
        %v9431 = vunpack.c.l.s4 1983009808
        %v9432 = vunpack.c.0.s8 %v9431
        %v9433 = vperm.slane %v9427, %v9432
        %v9435 = vunpack.c.l.s4 1983009808
        %v9436 = vunpack.c.0.s8 %v9435
        %v9437 = vperm.slane %v9429, %v9436
        %v9438 = vrot.slane %v9409, 4
        %v9439 = vsel %vm251, %v9438, %v9397
        %v9440 = vrot.slane %v9397, 4
        %v9441 = vsel %vm251, %v9409, %v9440
        %v9443 = vunpack.c.l.s4 1934713408
        %v9444 = vunpack.c.0.s8 %v9443
        %v9445 = vperm.slane %v9439, %v9444
        %v9447 = vunpack.c.l.s4 1934713408
        %v9448 = vunpack.c.0.s8 %v9447
        %v9449 = vperm.slane %v9441, %v9448
        %v9450 = vrot.slane %v9413, 4
        %v9451 = vsel %vm251, %v9450, %v9401
        %v9452 = vrot.slane %v9401, 4
        %v9453 = vsel %vm251, %v9413, %v9452
        %v9455 = vunpack.c.l.s4 1934713408
        %v9456 = vunpack.c.0.s8 %v9455
        %v9457 = vperm.slane %v9451, %v9456
        %v9459 = vunpack.c.l.s4 1934713408
        %v9460 = vunpack.c.0.s8 %v9459
        %v9461 = vperm.slane %v9453, %v9460
        %v9462 = vrot.slane %v9433, 4
        %v9463 = vsel %vm251, %v9462, %v9421
        %v9464 = vrot.slane %v9421, 4
        %v9465 = vsel %vm251, %v9433, %v9464
        %v9467 = vunpack.c.l.s4 1934713408
        %v9468 = vunpack.c.0.s8 %v9467
        %v9469 = vperm.slane %v9463, %v9468
        %v9471 = vunpack.c.l.s4 1934713408
        %v9472 = vunpack.c.0.s8 %v9471
        %v9473 = vperm.slane %v9465, %v9472
        %v9474 = vrot.slane %v9437, 4
        %v9475 = vsel %vm251, %v9474, %v9425
        %v9476 = vrot.slane %v9425, 4
        %v9477 = vsel %vm251, %v9437, %v9476
        %v9479 = vunpack.c.l.s4 1934713408
        %v9480 = vunpack.c.0.s8 %v9479
        %v9481 = vperm.slane %v9475, %v9480
        %v9483 = vunpack.c.l.s4 1934713408
        %v9484 = vunpack.c.0.s8 %v9483
        %v9485 = vperm.slane %v9477, %v9484
        %v9486 = vrot.slane %v9469, 4
        %v9487 = vsel %vm251, %v9486, %v9445
        %v9488 = vrot.slane %v9445, 4
        %v9489 = vsel %vm251, %v9469, %v9488
        %v9490 = vrot.slane %v9473, 4
        %v9491 = vsel %vm251, %v9490, %v9449
        %v9492 = vrot.slane %v9449, 4
        %v9493 = vsel %vm251, %v9473, %v9492
        %v9494 = vrot.slane %v9481, 4
        %v9495 = vsel %vm251, %v9494, %v9457
        %v9496 = vrot.slane %v9457, 4
        %v9497 = vsel %vm251, %v9481, %v9496
        %v9498 = vrot.slane %v9485, 4
        %v9499 = vsel %vm251, %v9498, %v9461
        %v9500 = vrot.slane %v9461, 4
        %v9501 = vsel %vm251, %v9485, %v9500
        %9504 = vrot.lane.b32.xlu0 %v9153, 16
        %v9505 = vpop.permute.xlu0 %9504
        %9506 = vrot.lane.b32.xlu0 %v9265, 16
        %v9507 = vpop.permute.xlu0 %9506
        %9512 = vrot.lane.b32.xlu0 %v9155, 32
        %v9513 = vpop.permute.xlu0 %9512
        %9514 = vrot.lane.b32.xlu0 %v9267, 32
        %v9515 = vpop.permute.xlu0 %9514
        %9520 = vrot.lane.b32.xlu0 %v9157, 48
        %v9521 = vpop.permute.xlu0 %9520
        %9522 = vrot.lane.b32.xlu0 %v9269, 48
        %v9523 = vpop.permute.xlu0 %9522
        %9528 = vrot.lane.b32.xlu0 %v9159, 64
        %v9529 = vpop.permute.xlu0 %9528
        %9530 = vrot.lane.b32.xlu0 %v9271, 64
        %v9531 = vpop.permute.xlu0 %9530
        %9536 = vrot.lane.b32.xlu0 %v9161, 80
        %v9537 = vpop.permute.xlu0 %9536
        %9538 = vrot.lane.b32.xlu0 %v9273, 80
        %v9539 = vpop.permute.xlu0 %9538
        %9544 = vrot.lane.b32.xlu0 %v9163, 96
        %v9545 = vpop.permute.xlu0 %9544
        %9546 = vrot.lane.b32.xlu0 %v9275, 96
        %v9547 = vpop.permute.xlu0 %9546
        %9552 = vrot.lane.b32.xlu0 %v9165, 112
        %v9553 = vpop.permute.xlu0 %9552
        %9554 = vrot.lane.b32.xlu0 %v9277, 112
        %v9555 = vpop.permute.xlu0 %9554
        %9560 = vrot.lane.b32.xlu0 %v9377, 16
        %v9561 = vpop.permute.xlu0 %9560
        %9562 = vrot.lane.b32.xlu0 %v9489, 16
        %v9563 = vpop.permute.xlu0 %9562
        %9568 = vrot.lane.b32.xlu0 %v9379, 32
        %v9569 = vpop.permute.xlu0 %9568
        %9570 = vrot.lane.b32.xlu0 %v9491, 32
        %v9571 = vpop.permute.xlu0 %9570
        %9576 = vrot.lane.b32.xlu0 %v9381, 48
        %v9577 = vpop.permute.xlu0 %9576
        %9578 = vrot.lane.b32.xlu0 %v9493, 48
        %v9579 = vpop.permute.xlu0 %9578
        %9584 = vrot.lane.b32.xlu0 %v9383, 64
        %v9585 = vpop.permute.xlu0 %9584
        %9586 = vrot.lane.b32.xlu0 %v9495, 64
        %v9587 = vpop.permute.xlu0 %9586
        %9592 = vrot.lane.b32.xlu0 %v9385, 80
        %v9593 = vpop.permute.xlu0 %9592
        %9594 = vrot.lane.b32.xlu0 %v9497, 80
        %v9595 = vpop.permute.xlu0 %9594
        %9600 = vrot.lane.b32.xlu0 %v9387, 96
        %v9601 = vpop.permute.xlu0 %9600
        %9602 = vrot.lane.b32.xlu0 %v9499, 96
        %v9603 = vpop.permute.xlu0 %9602
        %9608 = vrot.lane.b32.xlu0 %v9389, 112
        %v9609 = vpop.permute.xlu0 %9608
        %9610 = vrot.lane.b32.xlu0 %v9501, 112
        %v9611 = vpop.permute.xlu0 %9610
        %v9614 = vsel %vm1707, %v9151, %v9505
        %v9615 = vsel %vm1707, %v9263, %v9507
        %v9616 = vsel %vm1710, %v9614, %v9513
        %v9617 = vsel %vm1710, %v9615, %v9515
        %v9618 = vsel %vm1713, %v9616, %v9521
        %v9619 = vsel %vm1713, %v9617, %v9523
        %v9620 = vsel %vm1716, %v9618, %v9529
        %v9621 = vsel %vm1716, %v9619, %v9531
        %v9622 = vsel %vm1719, %v9620, %v9537
        %v9623 = vsel %vm1719, %v9621, %v9539
        %v9624 = vsel %vm1722, %v9622, %v9545
        %v9625 = vsel %vm1722, %v9623, %v9547
        %v9626 = vsel %vm1725, %v9624, %v9553
        %v9627 = vsel %vm1725, %v9625, %v9555
        %v9628 = vsel %vm1707, %v9375, %v9561
        %v9629 = vsel %vm1707, %v9487, %v9563
        %v9630 = vsel %vm1710, %v9628, %v9569
        %v9631 = vsel %vm1710, %v9629, %v9571
        %v9632 = vsel %vm1713, %v9630, %v9577
        %v9633 = vsel %vm1713, %v9631, %v9579
        %v9634 = vsel %vm1716, %v9632, %v9585
        %v9635 = vsel %vm1716, %v9633, %v9587
        %v9636 = vsel %vm1719, %v9634, %v9593
        %v9637 = vsel %vm1719, %v9635, %v9595
        %v9638 = vsel %vm1722, %v9636, %v9601
        %v9639 = vsel %vm1722, %v9637, %v9603
        %v9640 = vsel %vm1725, %v9638, %v9609
        %v9641 = vsel %vm1725, %v9639, %v9611
        %9642 = vst [vmem:[%s155 + $0xa0] sm:$0xff] %v9626
        %9643 = vst [vmem:[%s155 + $0xa8] sm:$0xff] %v9640
        %9644 = vst [vmem:[%s155 + $0xb0] sm:$0xff] %v9627
        %9645 = vst [vmem:[%s155 + $0xb8] sm:$0xff] %v9641
        %v9646 = vld [vmem:[%s136 + $0xc0] sm:$0xff]
        %v9647 = vld [vmem:[%s136 + $0xc8] sm:$0xff]
        %v9648 = vld [vmem:[%s136 + $0xd0] sm:$0xff]
        %v9649 = vld [vmem:[%s136 + $0xd8] sm:$0xff]
        %9652 = vrot.lane.b32.xlu0 %v9646, 112
        %v9653 = vpop.permute.xlu0 %9652
        %9654 = vrot.lane.b32.xlu0 %v9648, 112
        %v9655 = vpop.permute.xlu0 %9654
        %9658 = vrot.lane.b32.xlu0 %v9646, 96
        %v9659 = vpop.permute.xlu0 %9658
        %9660 = vrot.lane.b32.xlu0 %v9648, 96
        %v9661 = vpop.permute.xlu0 %9660
        %9664 = vrot.lane.b32.xlu0 %v9646, 80
        %v9665 = vpop.permute.xlu0 %9664
        %9666 = vrot.lane.b32.xlu0 %v9648, 80
        %v9667 = vpop.permute.xlu0 %9666
        %9670 = vrot.lane.b32.xlu0 %v9646, 64
        %v9671 = vpop.permute.xlu0 %9670
        %9672 = vrot.lane.b32.xlu0 %v9648, 64
        %v9673 = vpop.permute.xlu0 %9672
        %9676 = vrot.lane.b32.xlu0 %v9646, 48
        %v9677 = vpop.permute.xlu0 %9676
        %9678 = vrot.lane.b32.xlu0 %v9648, 48
        %v9679 = vpop.permute.xlu0 %9678
        %9682 = vrot.lane.b32.xlu0 %v9646, 32
        %v9683 = vpop.permute.xlu0 %9682
        %9684 = vrot.lane.b32.xlu0 %v9648, 32
        %v9685 = vpop.permute.xlu0 %9684
        %9688 = vrot.lane.b32.xlu0 %v9646, 16
        %v9689 = vpop.permute.xlu0 %9688
        %9690 = vrot.lane.b32.xlu0 %v9648, 16
        %v9691 = vpop.permute.xlu0 %9690
        %9696 = vrot.lane.b32.xlu0 %v9647, 112
        %v9697 = vpop.permute.xlu0 %9696
        %9698 = vrot.lane.b32.xlu0 %v9649, 112
        %v9699 = vpop.permute.xlu0 %9698
        %9702 = vrot.lane.b32.xlu0 %v9647, 96
        %v9703 = vpop.permute.xlu0 %9702
        %9704 = vrot.lane.b32.xlu0 %v9649, 96
        %v9705 = vpop.permute.xlu0 %9704
        %9708 = vrot.lane.b32.xlu0 %v9647, 80
        %v9709 = vpop.permute.xlu0 %9708
        %9710 = vrot.lane.b32.xlu0 %v9649, 80
        %v9711 = vpop.permute.xlu0 %9710
        %9714 = vrot.lane.b32.xlu0 %v9647, 64
        %v9715 = vpop.permute.xlu0 %9714
        %9716 = vrot.lane.b32.xlu0 %v9649, 64
        %v9717 = vpop.permute.xlu0 %9716
        %9720 = vrot.lane.b32.xlu0 %v9647, 48
        %v9721 = vpop.permute.xlu0 %9720
        %9722 = vrot.lane.b32.xlu0 %v9649, 48
        %v9723 = vpop.permute.xlu0 %9722
        %9726 = vrot.lane.b32.xlu0 %v9647, 32
        %v9727 = vpop.permute.xlu0 %9726
        %9728 = vrot.lane.b32.xlu0 %v9649, 32
        %v9729 = vpop.permute.xlu0 %9728
        %9732 = vrot.lane.b32.xlu0 %v9647, 16
        %v9733 = vpop.permute.xlu0 %9732
        %9734 = vrot.lane.b32.xlu0 %v9649, 16
        %v9735 = vpop.permute.xlu0 %9734
        %v9738 = vrot.slane %v9659, 4
        %v9739 = vsel %vm251, %v9738, %v9646
        %v9740 = vrot.slane %v9646, 4
        %v9741 = vsel %vm251, %v9659, %v9740
        %v9743 = vunpack.c.l.s4 1983009808
        %v9744 = vunpack.c.0.s8 %v9743
        %v9745 = vperm.slane %v9739, %v9744
        %v9747 = vunpack.c.l.s4 1983009808
        %v9748 = vunpack.c.0.s8 %v9747
        %v9749 = vperm.slane %v9741, %v9748
        %v9750 = vrot.slane %v9665, 4
        %v9751 = vsel %vm251, %v9750, %v9653
        %v9752 = vrot.slane %v9653, 4
        %v9753 = vsel %vm251, %v9665, %v9752
        %v9755 = vunpack.c.l.s4 1983009808
        %v9756 = vunpack.c.0.s8 %v9755
        %v9757 = vperm.slane %v9751, %v9756
        %v9759 = vunpack.c.l.s4 1983009808
        %v9760 = vunpack.c.0.s8 %v9759
        %v9761 = vperm.slane %v9753, %v9760
        %v9762 = vrot.slane %v9683, 4
        %v9763 = vsel %vm251, %v9762, %v9671
        %v9764 = vrot.slane %v9671, 4
        %v9765 = vsel %vm251, %v9683, %v9764
        %v9767 = vunpack.c.l.s4 1983009808
        %v9768 = vunpack.c.0.s8 %v9767
        %v9769 = vperm.slane %v9763, %v9768
        %v9771 = vunpack.c.l.s4 1983009808
        %v9772 = vunpack.c.0.s8 %v9771
        %v9773 = vperm.slane %v9765, %v9772
        %v9774 = vrot.slane %v9689, 4
        %v9775 = vsel %vm251, %v9774, %v9677
        %v9776 = vrot.slane %v9677, 4
        %v9777 = vsel %vm251, %v9689, %v9776
        %v9779 = vunpack.c.l.s4 1983009808
        %v9780 = vunpack.c.0.s8 %v9779
        %v9781 = vperm.slane %v9775, %v9780
        %v9783 = vunpack.c.l.s4 1983009808
        %v9784 = vunpack.c.0.s8 %v9783
        %v9785 = vperm.slane %v9777, %v9784
        %v9786 = vrot.slane %v9757, 4
        %v9787 = vsel %vm251, %v9786, %v9745
        %v9788 = vrot.slane %v9745, 4
        %v9789 = vsel %vm251, %v9757, %v9788
        %v9791 = vunpack.c.l.s4 1934713408
        %v9792 = vunpack.c.0.s8 %v9791
        %v9793 = vperm.slane %v9787, %v9792
        %v9795 = vunpack.c.l.s4 1934713408
        %v9796 = vunpack.c.0.s8 %v9795
        %v9797 = vperm.slane %v9789, %v9796
        %v9798 = vrot.slane %v9761, 4
        %v9799 = vsel %vm251, %v9798, %v9749
        %v9800 = vrot.slane %v9749, 4
        %v9801 = vsel %vm251, %v9761, %v9800
        %v9803 = vunpack.c.l.s4 1934713408
        %v9804 = vunpack.c.0.s8 %v9803
        %v9805 = vperm.slane %v9799, %v9804
        %v9807 = vunpack.c.l.s4 1934713408
        %v9808 = vunpack.c.0.s8 %v9807
        %v9809 = vperm.slane %v9801, %v9808
        %v9810 = vrot.slane %v9781, 4
        %v9811 = vsel %vm251, %v9810, %v9769
        %v9812 = vrot.slane %v9769, 4
        %v9813 = vsel %vm251, %v9781, %v9812
        %v9815 = vunpack.c.l.s4 1934713408
        %v9816 = vunpack.c.0.s8 %v9815
        %v9817 = vperm.slane %v9811, %v9816
        %v9819 = vunpack.c.l.s4 1934713408
        %v9820 = vunpack.c.0.s8 %v9819
        %v9821 = vperm.slane %v9813, %v9820
        %v9822 = vrot.slane %v9785, 4
        %v9823 = vsel %vm251, %v9822, %v9773
        %v9824 = vrot.slane %v9773, 4
        %v9825 = vsel %vm251, %v9785, %v9824
        %v9827 = vunpack.c.l.s4 1934713408
        %v9828 = vunpack.c.0.s8 %v9827
        %v9829 = vperm.slane %v9823, %v9828
        %v9831 = vunpack.c.l.s4 1934713408
        %v9832 = vunpack.c.0.s8 %v9831
        %v9833 = vperm.slane %v9825, %v9832
        %v9834 = vrot.slane %v9817, 4
        %v9835 = vsel %vm251, %v9834, %v9793
        %v9836 = vrot.slane %v9793, 4
        %v9837 = vsel %vm251, %v9817, %v9836
        %v9838 = vrot.slane %v9821, 4
        %v9839 = vsel %vm251, %v9838, %v9797
        %v9840 = vrot.slane %v9797, 4
        %v9841 = vsel %vm251, %v9821, %v9840
        %v9842 = vrot.slane %v9829, 4
        %v9843 = vsel %vm251, %v9842, %v9805
        %v9844 = vrot.slane %v9805, 4
        %v9845 = vsel %vm251, %v9829, %v9844
        %v9846 = vrot.slane %v9833, 4
        %v9847 = vsel %vm251, %v9846, %v9809
        %v9848 = vrot.slane %v9809, 4
        %v9849 = vsel %vm251, %v9833, %v9848
        %v9850 = vrot.slane %v9703, 4
        %v9851 = vsel %vm251, %v9850, %v9647
        %v9852 = vrot.slane %v9647, 4
        %v9853 = vsel %vm251, %v9703, %v9852
        %v9855 = vunpack.c.l.s4 1983009808
        %v9856 = vunpack.c.0.s8 %v9855
        %v9857 = vperm.slane %v9851, %v9856
        %v9859 = vunpack.c.l.s4 1983009808
        %v9860 = vunpack.c.0.s8 %v9859
        %v9861 = vperm.slane %v9853, %v9860
        %v9862 = vrot.slane %v9709, 4
        %v9863 = vsel %vm251, %v9862, %v9697
        %v9864 = vrot.slane %v9697, 4
        %v9865 = vsel %vm251, %v9709, %v9864
        %v9867 = vunpack.c.l.s4 1983009808
        %v9868 = vunpack.c.0.s8 %v9867
        %v9869 = vperm.slane %v9863, %v9868
        %v9871 = vunpack.c.l.s4 1983009808
        %v9872 = vunpack.c.0.s8 %v9871
        %v9873 = vperm.slane %v9865, %v9872
        %v9874 = vrot.slane %v9727, 4
        %v9875 = vsel %vm251, %v9874, %v9715
        %v9876 = vrot.slane %v9715, 4
        %v9877 = vsel %vm251, %v9727, %v9876
        %v9879 = vunpack.c.l.s4 1983009808
        %v9880 = vunpack.c.0.s8 %v9879
        %v9881 = vperm.slane %v9875, %v9880
        %v9883 = vunpack.c.l.s4 1983009808
        %v9884 = vunpack.c.0.s8 %v9883
        %v9885 = vperm.slane %v9877, %v9884
        %v9886 = vrot.slane %v9733, 4
        %v9887 = vsel %vm251, %v9886, %v9721
        %v9888 = vrot.slane %v9721, 4
        %v9889 = vsel %vm251, %v9733, %v9888
        %v9891 = vunpack.c.l.s4 1983009808
        %v9892 = vunpack.c.0.s8 %v9891
        %v9893 = vperm.slane %v9887, %v9892
        %v9895 = vunpack.c.l.s4 1983009808
        %v9896 = vunpack.c.0.s8 %v9895
        %v9897 = vperm.slane %v9889, %v9896
        %v9898 = vrot.slane %v9869, 4
        %v9899 = vsel %vm251, %v9898, %v9857
        %v9900 = vrot.slane %v9857, 4
        %v9901 = vsel %vm251, %v9869, %v9900
        %v9903 = vunpack.c.l.s4 1934713408
        %v9904 = vunpack.c.0.s8 %v9903
        %v9905 = vperm.slane %v9899, %v9904
        %v9907 = vunpack.c.l.s4 1934713408
        %v9908 = vunpack.c.0.s8 %v9907
        %v9909 = vperm.slane %v9901, %v9908
        %v9910 = vrot.slane %v9873, 4
        %v9911 = vsel %vm251, %v9910, %v9861
        %v9912 = vrot.slane %v9861, 4
        %v9913 = vsel %vm251, %v9873, %v9912
        %v9915 = vunpack.c.l.s4 1934713408
        %v9916 = vunpack.c.0.s8 %v9915
        %v9917 = vperm.slane %v9911, %v9916
        %v9919 = vunpack.c.l.s4 1934713408
        %v9920 = vunpack.c.0.s8 %v9919
        %v9921 = vperm.slane %v9913, %v9920
        %v9922 = vrot.slane %v9893, 4
        %v9923 = vsel %vm251, %v9922, %v9881
        %v9924 = vrot.slane %v9881, 4
        %v9925 = vsel %vm251, %v9893, %v9924
        %v9927 = vunpack.c.l.s4 1934713408
        %v9928 = vunpack.c.0.s8 %v9927
        %v9929 = vperm.slane %v9923, %v9928
        %v9931 = vunpack.c.l.s4 1934713408
        %v9932 = vunpack.c.0.s8 %v9931
        %v9933 = vperm.slane %v9925, %v9932
        %v9934 = vrot.slane %v9897, 4
        %v9935 = vsel %vm251, %v9934, %v9885
        %v9936 = vrot.slane %v9885, 4
        %v9937 = vsel %vm251, %v9897, %v9936
        %v9939 = vunpack.c.l.s4 1934713408
        %v9940 = vunpack.c.0.s8 %v9939
        %v9941 = vperm.slane %v9935, %v9940
        %v9943 = vunpack.c.l.s4 1934713408
        %v9944 = vunpack.c.0.s8 %v9943
        %v9945 = vperm.slane %v9937, %v9944
        %v9946 = vrot.slane %v9929, 4
        %v9947 = vsel %vm251, %v9946, %v9905
        %v9948 = vrot.slane %v9905, 4
        %v9949 = vsel %vm251, %v9929, %v9948
        %v9950 = vrot.slane %v9933, 4
        %v9951 = vsel %vm251, %v9950, %v9909
        %v9952 = vrot.slane %v9909, 4
        %v9953 = vsel %vm251, %v9933, %v9952
        %v9954 = vrot.slane %v9941, 4
        %v9955 = vsel %vm251, %v9954, %v9917
        %v9956 = vrot.slane %v9917, 4
        %v9957 = vsel %vm251, %v9941, %v9956
        %v9958 = vrot.slane %v9945, 4
        %v9959 = vsel %vm251, %v9958, %v9921
        %v9960 = vrot.slane %v9921, 4
        %v9961 = vsel %vm251, %v9945, %v9960
        %v9962 = vrot.slane %v9661, 4
        %v9963 = vsel %vm251, %v9962, %v9648
        %v9964 = vrot.slane %v9648, 4
        %v9965 = vsel %vm251, %v9661, %v9964
        %v9967 = vunpack.c.l.s4 1983009808
        %v9968 = vunpack.c.0.s8 %v9967
        %v9969 = vperm.slane %v9963, %v9968
        %v9971 = vunpack.c.l.s4 1983009808
        %v9972 = vunpack.c.0.s8 %v9971
        %v9973 = vperm.slane %v9965, %v9972
        %v9974 = vrot.slane %v9667, 4
        %v9975 = vsel %vm251, %v9974, %v9655
        %v9976 = vrot.slane %v9655, 4
        %v9977 = vsel %vm251, %v9667, %v9976
        %v9979 = vunpack.c.l.s4 1983009808
        %v9980 = vunpack.c.0.s8 %v9979
        %v9981 = vperm.slane %v9975, %v9980
        %v9983 = vunpack.c.l.s4 1983009808
        %v9984 = vunpack.c.0.s8 %v9983
        %v9985 = vperm.slane %v9977, %v9984
        %v9986 = vrot.slane %v9685, 4
        %v9987 = vsel %vm251, %v9986, %v9673
        %v9988 = vrot.slane %v9673, 4
        %v9989 = vsel %vm251, %v9685, %v9988
        %v9991 = vunpack.c.l.s4 1983009808
        %v9992 = vunpack.c.0.s8 %v9991
        %v9993 = vperm.slane %v9987, %v9992
        %v9995 = vunpack.c.l.s4 1983009808
        %v9996 = vunpack.c.0.s8 %v9995
        %v9997 = vperm.slane %v9989, %v9996
        %v9998 = vrot.slane %v9691, 4
        %v9999 = vsel %vm251, %v9998, %v9679
        %v10000 = vrot.slane %v9679, 4
        %v10001 = vsel %vm251, %v9691, %v10000
        %v10003 = vunpack.c.l.s4 1983009808
        %v10004 = vunpack.c.0.s8 %v10003
        %v10005 = vperm.slane %v9999, %v10004
        %v10007 = vunpack.c.l.s4 1983009808
        %v10008 = vunpack.c.0.s8 %v10007
        %v10009 = vperm.slane %v10001, %v10008
        %v10010 = vrot.slane %v9981, 4
        %v10011 = vsel %vm251, %v10010, %v9969
        %v10012 = vrot.slane %v9969, 4
        %v10013 = vsel %vm251, %v9981, %v10012
        %v10015 = vunpack.c.l.s4 1934713408
        %v10016 = vunpack.c.0.s8 %v10015
        %v10017 = vperm.slane %v10011, %v10016
        %v10019 = vunpack.c.l.s4 1934713408
        %v10020 = vunpack.c.0.s8 %v10019
        %v10021 = vperm.slane %v10013, %v10020
        %v10022 = vrot.slane %v9985, 4
        %v10023 = vsel %vm251, %v10022, %v9973
        %v10024 = vrot.slane %v9973, 4
        %v10025 = vsel %vm251, %v9985, %v10024
        %v10027 = vunpack.c.l.s4 1934713408
        %v10028 = vunpack.c.0.s8 %v10027
        %v10029 = vperm.slane %v10023, %v10028
        %v10031 = vunpack.c.l.s4 1934713408
        %v10032 = vunpack.c.0.s8 %v10031
        %v10033 = vperm.slane %v10025, %v10032
        %v10034 = vrot.slane %v10005, 4
        %v10035 = vsel %vm251, %v10034, %v9993
        %v10036 = vrot.slane %v9993, 4
        %v10037 = vsel %vm251, %v10005, %v10036
        %v10039 = vunpack.c.l.s4 1934713408
        %v10040 = vunpack.c.0.s8 %v10039
        %v10041 = vperm.slane %v10035, %v10040
        %v10043 = vunpack.c.l.s4 1934713408
        %v10044 = vunpack.c.0.s8 %v10043
        %v10045 = vperm.slane %v10037, %v10044
        %v10046 = vrot.slane %v10009, 4
        %v10047 = vsel %vm251, %v10046, %v9997
        %v10048 = vrot.slane %v9997, 4
        %v10049 = vsel %vm251, %v10009, %v10048
        %v10051 = vunpack.c.l.s4 1934713408
        %v10052 = vunpack.c.0.s8 %v10051
        %v10053 = vperm.slane %v10047, %v10052
        %v10055 = vunpack.c.l.s4 1934713408
        %v10056 = vunpack.c.0.s8 %v10055
        %v10057 = vperm.slane %v10049, %v10056
        %v10058 = vrot.slane %v10041, 4
        %v10059 = vsel %vm251, %v10058, %v10017
        %v10060 = vrot.slane %v10017, 4
        %v10061 = vsel %vm251, %v10041, %v10060
        %v10062 = vrot.slane %v10045, 4
        %v10063 = vsel %vm251, %v10062, %v10021
        %v10064 = vrot.slane %v10021, 4
        %v10065 = vsel %vm251, %v10045, %v10064
        %v10066 = vrot.slane %v10053, 4
        %v10067 = vsel %vm251, %v10066, %v10029
        %v10068 = vrot.slane %v10029, 4
        %v10069 = vsel %vm251, %v10053, %v10068
        %v10070 = vrot.slane %v10057, 4
        %v10071 = vsel %vm251, %v10070, %v10033
        %v10072 = vrot.slane %v10033, 4
        %v10073 = vsel %vm251, %v10057, %v10072
        %v10074 = vrot.slane %v9705, 4
        %v10075 = vsel %vm251, %v10074, %v9649
        %v10076 = vrot.slane %v9649, 4
        %v10077 = vsel %vm251, %v9705, %v10076
        %v10079 = vunpack.c.l.s4 1983009808
        %v10080 = vunpack.c.0.s8 %v10079
        %v10081 = vperm.slane %v10075, %v10080
        %v10083 = vunpack.c.l.s4 1983009808
        %v10084 = vunpack.c.0.s8 %v10083
        %v10085 = vperm.slane %v10077, %v10084
        %v10086 = vrot.slane %v9711, 4
        %v10087 = vsel %vm251, %v10086, %v9699
        %v10088 = vrot.slane %v9699, 4
        %v10089 = vsel %vm251, %v9711, %v10088
        %v10091 = vunpack.c.l.s4 1983009808
        %v10092 = vunpack.c.0.s8 %v10091
        %v10093 = vperm.slane %v10087, %v10092
        %v10095 = vunpack.c.l.s4 1983009808
        %v10096 = vunpack.c.0.s8 %v10095
        %v10097 = vperm.slane %v10089, %v10096
        %v10098 = vrot.slane %v9729, 4
        %v10099 = vsel %vm251, %v10098, %v9717
        %v10100 = vrot.slane %v9717, 4
        %v10101 = vsel %vm251, %v9729, %v10100
        %v10103 = vunpack.c.l.s4 1983009808
        %v10104 = vunpack.c.0.s8 %v10103
        %v10105 = vperm.slane %v10099, %v10104
        %v10107 = vunpack.c.l.s4 1983009808
        %v10108 = vunpack.c.0.s8 %v10107
        %v10109 = vperm.slane %v10101, %v10108
        %v10110 = vrot.slane %v9735, 4
        %v10111 = vsel %vm251, %v10110, %v9723
        %v10112 = vrot.slane %v9723, 4
        %v10113 = vsel %vm251, %v9735, %v10112
        %v10115 = vunpack.c.l.s4 1983009808
        %v10116 = vunpack.c.0.s8 %v10115
        %v10117 = vperm.slane %v10111, %v10116
        %v10119 = vunpack.c.l.s4 1983009808
        %v10120 = vunpack.c.0.s8 %v10119
        %v10121 = vperm.slane %v10113, %v10120
        %v10122 = vrot.slane %v10093, 4
        %v10123 = vsel %vm251, %v10122, %v10081
        %v10124 = vrot.slane %v10081, 4
        %v10125 = vsel %vm251, %v10093, %v10124
        %v10127 = vunpack.c.l.s4 1934713408
        %v10128 = vunpack.c.0.s8 %v10127
        %v10129 = vperm.slane %v10123, %v10128
        %v10131 = vunpack.c.l.s4 1934713408
        %v10132 = vunpack.c.0.s8 %v10131
        %v10133 = vperm.slane %v10125, %v10132
        %v10134 = vrot.slane %v10097, 4
        %v10135 = vsel %vm251, %v10134, %v10085
        %v10136 = vrot.slane %v10085, 4
        %v10137 = vsel %vm251, %v10097, %v10136
        %v10139 = vunpack.c.l.s4 1934713408
        %v10140 = vunpack.c.0.s8 %v10139
        %v10141 = vperm.slane %v10135, %v10140
        %v10143 = vunpack.c.l.s4 1934713408
        %v10144 = vunpack.c.0.s8 %v10143
        %v10145 = vperm.slane %v10137, %v10144
        %v10146 = vrot.slane %v10117, 4
        %v10147 = vsel %vm251, %v10146, %v10105
        %v10148 = vrot.slane %v10105, 4
        %v10149 = vsel %vm251, %v10117, %v10148
        %v10151 = vunpack.c.l.s4 1934713408
        %v10152 = vunpack.c.0.s8 %v10151
        %v10153 = vperm.slane %v10147, %v10152
        %v10155 = vunpack.c.l.s4 1934713408
        %v10156 = vunpack.c.0.s8 %v10155
        %v10157 = vperm.slane %v10149, %v10156
        %v10158 = vrot.slane %v10121, 4
        %v10159 = vsel %vm251, %v10158, %v10109
        %v10160 = vrot.slane %v10109, 4
        %v10161 = vsel %vm251, %v10121, %v10160
        %v10163 = vunpack.c.l.s4 1934713408
        %v10164 = vunpack.c.0.s8 %v10163
        %v10165 = vperm.slane %v10159, %v10164
        %v10167 = vunpack.c.l.s4 1934713408
        %v10168 = vunpack.c.0.s8 %v10167
        %v10169 = vperm.slane %v10161, %v10168
        %v10170 = vrot.slane %v10153, 4
        %v10171 = vsel %vm251, %v10170, %v10129
        %v10172 = vrot.slane %v10129, 4
        %v10173 = vsel %vm251, %v10153, %v10172
        %v10174 = vrot.slane %v10157, 4
        %v10175 = vsel %vm251, %v10174, %v10133
        %v10176 = vrot.slane %v10133, 4
        %v10177 = vsel %vm251, %v10157, %v10176
        %v10178 = vrot.slane %v10165, 4
        %v10179 = vsel %vm251, %v10178, %v10141
        %v10180 = vrot.slane %v10141, 4
        %v10181 = vsel %vm251, %v10165, %v10180
        %v10182 = vrot.slane %v10169, 4
        %v10183 = vsel %vm251, %v10182, %v10145
        %v10184 = vrot.slane %v10145, 4
        %v10185 = vsel %vm251, %v10169, %v10184
        %v10186 = vrot.slane %v9839, 4
        %v10187 = vsel %vm251, %v10186, %v9835
        %v10188 = vrot.slane %v9835, 4
        %v10189 = vsel %vm251, %v9839, %v10188
        %v10191 = vunpack.c.l.s4 1983009808
        %v10192 = vunpack.c.0.s8 %v10191
        %v10193 = vperm.slane %v10187, %v10192
        %v10195 = vunpack.c.l.s4 1983009808
        %v10196 = vunpack.c.0.s8 %v10195
        %v10197 = vperm.slane %v10189, %v10196
        %v10198 = vrot.slane %v9841, 4
        %v10199 = vsel %vm251, %v10198, %v9837
        %v10200 = vrot.slane %v9837, 4
        %v10201 = vsel %vm251, %v9841, %v10200
        %v10203 = vunpack.c.l.s4 1983009808
        %v10204 = vunpack.c.0.s8 %v10203
        %v10205 = vperm.slane %v10199, %v10204
        %v10207 = vunpack.c.l.s4 1983009808
        %v10208 = vunpack.c.0.s8 %v10207
        %v10209 = vperm.slane %v10201, %v10208
        %v10210 = vrot.slane %v9847, 4
        %v10211 = vsel %vm251, %v10210, %v9843
        %v10212 = vrot.slane %v9843, 4
        %v10213 = vsel %vm251, %v9847, %v10212
        %v10215 = vunpack.c.l.s4 1983009808
        %v10216 = vunpack.c.0.s8 %v10215
        %v10217 = vperm.slane %v10211, %v10216
        %v10219 = vunpack.c.l.s4 1983009808
        %v10220 = vunpack.c.0.s8 %v10219
        %v10221 = vperm.slane %v10213, %v10220
        %v10222 = vrot.slane %v9849, 4
        %v10223 = vsel %vm251, %v10222, %v9845
        %v10224 = vrot.slane %v9845, 4
        %v10225 = vsel %vm251, %v9849, %v10224
        %v10227 = vunpack.c.l.s4 1983009808
        %v10228 = vunpack.c.0.s8 %v10227
        %v10229 = vperm.slane %v10223, %v10228
        %v10231 = vunpack.c.l.s4 1983009808
        %v10232 = vunpack.c.0.s8 %v10231
        %v10233 = vperm.slane %v10225, %v10232
        %v10234 = vrot.slane %v10205, 4
        %v10235 = vsel %vm251, %v10234, %v10193
        %v10236 = vrot.slane %v10193, 4
        %v10237 = vsel %vm251, %v10205, %v10236
        %v10239 = vunpack.c.l.s4 1934713408
        %v10240 = vunpack.c.0.s8 %v10239
        %v10241 = vperm.slane %v10235, %v10240
        %v10243 = vunpack.c.l.s4 1934713408
        %v10244 = vunpack.c.0.s8 %v10243
        %v10245 = vperm.slane %v10237, %v10244
        %v10246 = vrot.slane %v10209, 4
        %v10247 = vsel %vm251, %v10246, %v10197
        %v10248 = vrot.slane %v10197, 4
        %v10249 = vsel %vm251, %v10209, %v10248
        %v10251 = vunpack.c.l.s4 1934713408
        %v10252 = vunpack.c.0.s8 %v10251
        %v10253 = vperm.slane %v10247, %v10252
        %v10255 = vunpack.c.l.s4 1934713408
        %v10256 = vunpack.c.0.s8 %v10255
        %v10257 = vperm.slane %v10249, %v10256
        %v10258 = vrot.slane %v10229, 4
        %v10259 = vsel %vm251, %v10258, %v10217
        %v10260 = vrot.slane %v10217, 4
        %v10261 = vsel %vm251, %v10229, %v10260
        %v10263 = vunpack.c.l.s4 1934713408
        %v10264 = vunpack.c.0.s8 %v10263
        %v10265 = vperm.slane %v10259, %v10264
        %v10267 = vunpack.c.l.s4 1934713408
        %v10268 = vunpack.c.0.s8 %v10267
        %v10269 = vperm.slane %v10261, %v10268
        %v10270 = vrot.slane %v10233, 4
        %v10271 = vsel %vm251, %v10270, %v10221
        %v10272 = vrot.slane %v10221, 4
        %v10273 = vsel %vm251, %v10233, %v10272
        %v10275 = vunpack.c.l.s4 1934713408
        %v10276 = vunpack.c.0.s8 %v10275
        %v10277 = vperm.slane %v10271, %v10276
        %v10279 = vunpack.c.l.s4 1934713408
        %v10280 = vunpack.c.0.s8 %v10279
        %v10281 = vperm.slane %v10273, %v10280
        %v10282 = vrot.slane %v10265, 4
        %v10283 = vsel %vm251, %v10282, %v10241
        %v10284 = vrot.slane %v10241, 4
        %v10285 = vsel %vm251, %v10265, %v10284
        %v10286 = vrot.slane %v10269, 4
        %v10287 = vsel %vm251, %v10286, %v10245
        %v10288 = vrot.slane %v10245, 4
        %v10289 = vsel %vm251, %v10269, %v10288
        %v10290 = vrot.slane %v10277, 4
        %v10291 = vsel %vm251, %v10290, %v10253
        %v10292 = vrot.slane %v10253, 4
        %v10293 = vsel %vm251, %v10277, %v10292
        %v10294 = vrot.slane %v10281, 4
        %v10295 = vsel %vm251, %v10294, %v10257
        %v10296 = vrot.slane %v10257, 4
        %v10297 = vsel %vm251, %v10281, %v10296
        %v10298 = vrot.slane %v10063, 4
        %v10299 = vsel %vm251, %v10298, %v10059
        %v10300 = vrot.slane %v10059, 4
        %v10301 = vsel %vm251, %v10063, %v10300
        %v10303 = vunpack.c.l.s4 1983009808
        %v10304 = vunpack.c.0.s8 %v10303
        %v10305 = vperm.slane %v10299, %v10304
        %v10307 = vunpack.c.l.s4 1983009808
        %v10308 = vunpack.c.0.s8 %v10307
        %v10309 = vperm.slane %v10301, %v10308
        %v10310 = vrot.slane %v10065, 4
        %v10311 = vsel %vm251, %v10310, %v10061
        %v10312 = vrot.slane %v10061, 4
        %v10313 = vsel %vm251, %v10065, %v10312
        %v10315 = vunpack.c.l.s4 1983009808
        %v10316 = vunpack.c.0.s8 %v10315
        %v10317 = vperm.slane %v10311, %v10316
        %v10319 = vunpack.c.l.s4 1983009808
        %v10320 = vunpack.c.0.s8 %v10319
        %v10321 = vperm.slane %v10313, %v10320
        %v10322 = vrot.slane %v10071, 4
        %v10323 = vsel %vm251, %v10322, %v10067
        %v10324 = vrot.slane %v10067, 4
        %v10325 = vsel %vm251, %v10071, %v10324
        %v10327 = vunpack.c.l.s4 1983009808
        %v10328 = vunpack.c.0.s8 %v10327
        %v10329 = vperm.slane %v10323, %v10328
        %v10331 = vunpack.c.l.s4 1983009808
        %v10332 = vunpack.c.0.s8 %v10331
        %v10333 = vperm.slane %v10325, %v10332
        %v10334 = vrot.slane %v10073, 4
        %v10335 = vsel %vm251, %v10334, %v10069
        %v10336 = vrot.slane %v10069, 4
        %v10337 = vsel %vm251, %v10073, %v10336
        %v10339 = vunpack.c.l.s4 1983009808
        %v10340 = vunpack.c.0.s8 %v10339
        %v10341 = vperm.slane %v10335, %v10340
        %v10343 = vunpack.c.l.s4 1983009808
        %v10344 = vunpack.c.0.s8 %v10343
        %v10345 = vperm.slane %v10337, %v10344
        %v10346 = vrot.slane %v10317, 4
        %v10347 = vsel %vm251, %v10346, %v10305
        %v10348 = vrot.slane %v10305, 4
        %v10349 = vsel %vm251, %v10317, %v10348
        %v10351 = vunpack.c.l.s4 1934713408
        %v10352 = vunpack.c.0.s8 %v10351
        %v10353 = vperm.slane %v10347, %v10352
        %v10355 = vunpack.c.l.s4 1934713408
        %v10356 = vunpack.c.0.s8 %v10355
        %v10357 = vperm.slane %v10349, %v10356
        %v10358 = vrot.slane %v10321, 4
        %v10359 = vsel %vm251, %v10358, %v10309
        %v10360 = vrot.slane %v10309, 4
        %v10361 = vsel %vm251, %v10321, %v10360
        %v10363 = vunpack.c.l.s4 1934713408
        %v10364 = vunpack.c.0.s8 %v10363
        %v10365 = vperm.slane %v10359, %v10364
        %v10367 = vunpack.c.l.s4 1934713408
        %v10368 = vunpack.c.0.s8 %v10367
        %v10369 = vperm.slane %v10361, %v10368
        %v10370 = vrot.slane %v10341, 4
        %v10371 = vsel %vm251, %v10370, %v10329
        %v10372 = vrot.slane %v10329, 4
        %v10373 = vsel %vm251, %v10341, %v10372
        %v10375 = vunpack.c.l.s4 1934713408
        %v10376 = vunpack.c.0.s8 %v10375
        %v10377 = vperm.slane %v10371, %v10376
        %v10379 = vunpack.c.l.s4 1934713408
        %v10380 = vunpack.c.0.s8 %v10379
        %v10381 = vperm.slane %v10373, %v10380
        %v10382 = vrot.slane %v10345, 4
        %v10383 = vsel %vm251, %v10382, %v10333
        %v10384 = vrot.slane %v10333, 4
        %v10385 = vsel %vm251, %v10345, %v10384
        %v10387 = vunpack.c.l.s4 1934713408
        %v10388 = vunpack.c.0.s8 %v10387
        %v10389 = vperm.slane %v10383, %v10388
        %v10391 = vunpack.c.l.s4 1934713408
        %v10392 = vunpack.c.0.s8 %v10391
        %v10393 = vperm.slane %v10385, %v10392
        %v10394 = vrot.slane %v10377, 4
        %v10395 = vsel %vm251, %v10394, %v10353
        %v10396 = vrot.slane %v10353, 4
        %v10397 = vsel %vm251, %v10377, %v10396
        %v10398 = vrot.slane %v10381, 4
        %v10399 = vsel %vm251, %v10398, %v10357
        %v10400 = vrot.slane %v10357, 4
        %v10401 = vsel %vm251, %v10381, %v10400
        %v10402 = vrot.slane %v10389, 4
        %v10403 = vsel %vm251, %v10402, %v10365
        %v10404 = vrot.slane %v10365, 4
        %v10405 = vsel %vm251, %v10389, %v10404
        %v10406 = vrot.slane %v10393, 4
        %v10407 = vsel %vm251, %v10406, %v10369
        %v10408 = vrot.slane %v10369, 4
        %v10409 = vsel %vm251, %v10393, %v10408
        %v10410 = vrot.slane %v9951, 4
        %v10411 = vsel %vm251, %v10410, %v9947
        %v10412 = vrot.slane %v9947, 4
        %v10413 = vsel %vm251, %v9951, %v10412
        %v10415 = vunpack.c.l.s4 1983009808
        %v10416 = vunpack.c.0.s8 %v10415
        %v10417 = vperm.slane %v10411, %v10416
        %v10419 = vunpack.c.l.s4 1983009808
        %v10420 = vunpack.c.0.s8 %v10419
        %v10421 = vperm.slane %v10413, %v10420
        %v10422 = vrot.slane %v9953, 4
        %v10423 = vsel %vm251, %v10422, %v9949
        %v10424 = vrot.slane %v9949, 4
        %v10425 = vsel %vm251, %v9953, %v10424
        %v10427 = vunpack.c.l.s4 1983009808
        %v10428 = vunpack.c.0.s8 %v10427
        %v10429 = vperm.slane %v10423, %v10428
        %v10431 = vunpack.c.l.s4 1983009808
        %v10432 = vunpack.c.0.s8 %v10431
        %v10433 = vperm.slane %v10425, %v10432
        %v10434 = vrot.slane %v9959, 4
        %v10435 = vsel %vm251, %v10434, %v9955
        %v10436 = vrot.slane %v9955, 4
        %v10437 = vsel %vm251, %v9959, %v10436
        %v10439 = vunpack.c.l.s4 1983009808
        %v10440 = vunpack.c.0.s8 %v10439
        %v10441 = vperm.slane %v10435, %v10440
        %v10443 = vunpack.c.l.s4 1983009808
        %v10444 = vunpack.c.0.s8 %v10443
        %v10445 = vperm.slane %v10437, %v10444
        %v10446 = vrot.slane %v9961, 4
        %v10447 = vsel %vm251, %v10446, %v9957
        %v10448 = vrot.slane %v9957, 4
        %v10449 = vsel %vm251, %v9961, %v10448
        %v10451 = vunpack.c.l.s4 1983009808
        %v10452 = vunpack.c.0.s8 %v10451
        %v10453 = vperm.slane %v10447, %v10452
        %v10455 = vunpack.c.l.s4 1983009808
        %v10456 = vunpack.c.0.s8 %v10455
        %v10457 = vperm.slane %v10449, %v10456
        %v10458 = vrot.slane %v10429, 4
        %v10459 = vsel %vm251, %v10458, %v10417
        %v10460 = vrot.slane %v10417, 4
        %v10461 = vsel %vm251, %v10429, %v10460
        %v10463 = vunpack.c.l.s4 1934713408
        %v10464 = vunpack.c.0.s8 %v10463
        %v10465 = vperm.slane %v10459, %v10464
        %v10467 = vunpack.c.l.s4 1934713408
        %v10468 = vunpack.c.0.s8 %v10467
        %v10469 = vperm.slane %v10461, %v10468
        %v10470 = vrot.slane %v10433, 4
        %v10471 = vsel %vm251, %v10470, %v10421
        %v10472 = vrot.slane %v10421, 4
        %v10473 = vsel %vm251, %v10433, %v10472
        %v10475 = vunpack.c.l.s4 1934713408
        %v10476 = vunpack.c.0.s8 %v10475
        %v10477 = vperm.slane %v10471, %v10476
        %v10479 = vunpack.c.l.s4 1934713408
        %v10480 = vunpack.c.0.s8 %v10479
        %v10481 = vperm.slane %v10473, %v10480
        %v10482 = vrot.slane %v10453, 4
        %v10483 = vsel %vm251, %v10482, %v10441
        %v10484 = vrot.slane %v10441, 4
        %v10485 = vsel %vm251, %v10453, %v10484
        %v10487 = vunpack.c.l.s4 1934713408
        %v10488 = vunpack.c.0.s8 %v10487
        %v10489 = vperm.slane %v10483, %v10488
        %v10491 = vunpack.c.l.s4 1934713408
        %v10492 = vunpack.c.0.s8 %v10491
        %v10493 = vperm.slane %v10485, %v10492
        %v10494 = vrot.slane %v10457, 4
        %v10495 = vsel %vm251, %v10494, %v10445
        %v10496 = vrot.slane %v10445, 4
        %v10497 = vsel %vm251, %v10457, %v10496
        %v10499 = vunpack.c.l.s4 1934713408
        %v10500 = vunpack.c.0.s8 %v10499
        %v10501 = vperm.slane %v10495, %v10500
        %v10503 = vunpack.c.l.s4 1934713408
        %v10504 = vunpack.c.0.s8 %v10503
        %v10505 = vperm.slane %v10497, %v10504
        %v10506 = vrot.slane %v10489, 4
        %v10507 = vsel %vm251, %v10506, %v10465
        %v10508 = vrot.slane %v10465, 4
        %v10509 = vsel %vm251, %v10489, %v10508
        %v10510 = vrot.slane %v10493, 4
        %v10511 = vsel %vm251, %v10510, %v10469
        %v10512 = vrot.slane %v10469, 4
        %v10513 = vsel %vm251, %v10493, %v10512
        %v10514 = vrot.slane %v10501, 4
        %v10515 = vsel %vm251, %v10514, %v10477
        %v10516 = vrot.slane %v10477, 4
        %v10517 = vsel %vm251, %v10501, %v10516
        %v10518 = vrot.slane %v10505, 4
        %v10519 = vsel %vm251, %v10518, %v10481
        %v10520 = vrot.slane %v10481, 4
        %v10521 = vsel %vm251, %v10505, %v10520
        %v10522 = vrot.slane %v10175, 4
        %v10523 = vsel %vm251, %v10522, %v10171
        %v10524 = vrot.slane %v10171, 4
        %v10525 = vsel %vm251, %v10175, %v10524
        %v10527 = vunpack.c.l.s4 1983009808
        %v10528 = vunpack.c.0.s8 %v10527
        %v10529 = vperm.slane %v10523, %v10528
        %v10531 = vunpack.c.l.s4 1983009808
        %v10532 = vunpack.c.0.s8 %v10531
        %v10533 = vperm.slane %v10525, %v10532
        %v10534 = vrot.slane %v10177, 4
        %v10535 = vsel %vm251, %v10534, %v10173
        %v10536 = vrot.slane %v10173, 4
        %v10537 = vsel %vm251, %v10177, %v10536
        %v10539 = vunpack.c.l.s4 1983009808
        %v10540 = vunpack.c.0.s8 %v10539
        %v10541 = vperm.slane %v10535, %v10540
        %v10543 = vunpack.c.l.s4 1983009808
        %v10544 = vunpack.c.0.s8 %v10543
        %v10545 = vperm.slane %v10537, %v10544
        %v10546 = vrot.slane %v10183, 4
        %v10547 = vsel %vm251, %v10546, %v10179
        %v10548 = vrot.slane %v10179, 4
        %v10549 = vsel %vm251, %v10183, %v10548
        %v10551 = vunpack.c.l.s4 1983009808
        %v10552 = vunpack.c.0.s8 %v10551
        %v10553 = vperm.slane %v10547, %v10552
        %v10555 = vunpack.c.l.s4 1983009808
        %v10556 = vunpack.c.0.s8 %v10555
        %v10557 = vperm.slane %v10549, %v10556
        %v10558 = vrot.slane %v10185, 4
        %v10559 = vsel %vm251, %v10558, %v10181
        %v10560 = vrot.slane %v10181, 4
        %v10561 = vsel %vm251, %v10185, %v10560
        %v10563 = vunpack.c.l.s4 1983009808
        %v10564 = vunpack.c.0.s8 %v10563
        %v10565 = vperm.slane %v10559, %v10564
        %v10567 = vunpack.c.l.s4 1983009808
        %v10568 = vunpack.c.0.s8 %v10567
        %v10569 = vperm.slane %v10561, %v10568
        %v10570 = vrot.slane %v10541, 4
        %v10571 = vsel %vm251, %v10570, %v10529
        %v10572 = vrot.slane %v10529, 4
        %v10573 = vsel %vm251, %v10541, %v10572
        %v10575 = vunpack.c.l.s4 1934713408
        %v10576 = vunpack.c.0.s8 %v10575
        %v10577 = vperm.slane %v10571, %v10576
        %v10579 = vunpack.c.l.s4 1934713408
        %v10580 = vunpack.c.0.s8 %v10579
        %v10581 = vperm.slane %v10573, %v10580
        %v10582 = vrot.slane %v10545, 4
        %v10583 = vsel %vm251, %v10582, %v10533
        %v10584 = vrot.slane %v10533, 4
        %v10585 = vsel %vm251, %v10545, %v10584
        %v10587 = vunpack.c.l.s4 1934713408
        %v10588 = vunpack.c.0.s8 %v10587
        %v10589 = vperm.slane %v10583, %v10588
        %v10591 = vunpack.c.l.s4 1934713408
        %v10592 = vunpack.c.0.s8 %v10591
        %v10593 = vperm.slane %v10585, %v10592
        %v10594 = vrot.slane %v10565, 4
        %v10595 = vsel %vm251, %v10594, %v10553
        %v10596 = vrot.slane %v10553, 4
        %v10597 = vsel %vm251, %v10565, %v10596
        %v10599 = vunpack.c.l.s4 1934713408
        %v10600 = vunpack.c.0.s8 %v10599
        %v10601 = vperm.slane %v10595, %v10600
        %v10603 = vunpack.c.l.s4 1934713408
        %v10604 = vunpack.c.0.s8 %v10603
        %v10605 = vperm.slane %v10597, %v10604
        %v10606 = vrot.slane %v10569, 4
        %v10607 = vsel %vm251, %v10606, %v10557
        %v10608 = vrot.slane %v10557, 4
        %v10609 = vsel %vm251, %v10569, %v10608
        %v10611 = vunpack.c.l.s4 1934713408
        %v10612 = vunpack.c.0.s8 %v10611
        %v10613 = vperm.slane %v10607, %v10612
        %v10615 = vunpack.c.l.s4 1934713408
        %v10616 = vunpack.c.0.s8 %v10615
        %v10617 = vperm.slane %v10609, %v10616
        %v10618 = vrot.slane %v10601, 4
        %v10619 = vsel %vm251, %v10618, %v10577
        %v10620 = vrot.slane %v10577, 4
        %v10621 = vsel %vm251, %v10601, %v10620
        %v10622 = vrot.slane %v10605, 4
        %v10623 = vsel %vm251, %v10622, %v10581
        %v10624 = vrot.slane %v10581, 4
        %v10625 = vsel %vm251, %v10605, %v10624
        %v10626 = vrot.slane %v10613, 4
        %v10627 = vsel %vm251, %v10626, %v10589
        %v10628 = vrot.slane %v10589, 4
        %v10629 = vsel %vm251, %v10613, %v10628
        %v10630 = vrot.slane %v10617, 4
        %v10631 = vsel %vm251, %v10630, %v10593
        %v10632 = vrot.slane %v10593, 4
        %v10633 = vsel %vm251, %v10617, %v10632
        %v10634 = vrot.slane %v10287, 4
        %v10635 = vsel %vm251, %v10634, %v10283
        %v10636 = vrot.slane %v10283, 4
        %v10637 = vsel %vm251, %v10287, %v10636
        %v10639 = vunpack.c.l.s4 1983009808
        %v10640 = vunpack.c.0.s8 %v10639
        %v10641 = vperm.slane %v10635, %v10640
        %v10643 = vunpack.c.l.s4 1983009808
        %v10644 = vunpack.c.0.s8 %v10643
        %v10645 = vperm.slane %v10637, %v10644
        %v10646 = vrot.slane %v10289, 4
        %v10647 = vsel %vm251, %v10646, %v10285
        %v10648 = vrot.slane %v10285, 4
        %v10649 = vsel %vm251, %v10289, %v10648
        %v10651 = vunpack.c.l.s4 1983009808
        %v10652 = vunpack.c.0.s8 %v10651
        %v10653 = vperm.slane %v10647, %v10652
        %v10655 = vunpack.c.l.s4 1983009808
        %v10656 = vunpack.c.0.s8 %v10655
        %v10657 = vperm.slane %v10649, %v10656
        %v10658 = vrot.slane %v10295, 4
        %v10659 = vsel %vm251, %v10658, %v10291
        %v10660 = vrot.slane %v10291, 4
        %v10661 = vsel %vm251, %v10295, %v10660
        %v10663 = vunpack.c.l.s4 1983009808
        %v10664 = vunpack.c.0.s8 %v10663
        %v10665 = vperm.slane %v10659, %v10664
        %v10667 = vunpack.c.l.s4 1983009808
        %v10668 = vunpack.c.0.s8 %v10667
        %v10669 = vperm.slane %v10661, %v10668
        %v10670 = vrot.slane %v10297, 4
        %v10671 = vsel %vm251, %v10670, %v10293
        %v10672 = vrot.slane %v10293, 4
        %v10673 = vsel %vm251, %v10297, %v10672
        %v10675 = vunpack.c.l.s4 1983009808
        %v10676 = vunpack.c.0.s8 %v10675
        %v10677 = vperm.slane %v10671, %v10676
        %v10679 = vunpack.c.l.s4 1983009808
        %v10680 = vunpack.c.0.s8 %v10679
        %v10681 = vperm.slane %v10673, %v10680
        %v10682 = vrot.slane %v10653, 4
        %v10683 = vsel %vm251, %v10682, %v10641
        %v10684 = vrot.slane %v10641, 4
        %v10685 = vsel %vm251, %v10653, %v10684
        %v10687 = vunpack.c.l.s4 1934713408
        %v10688 = vunpack.c.0.s8 %v10687
        %v10689 = vperm.slane %v10683, %v10688
        %v10691 = vunpack.c.l.s4 1934713408
        %v10692 = vunpack.c.0.s8 %v10691
        %v10693 = vperm.slane %v10685, %v10692
        %v10694 = vrot.slane %v10657, 4
        %v10695 = vsel %vm251, %v10694, %v10645
        %v10696 = vrot.slane %v10645, 4
        %v10697 = vsel %vm251, %v10657, %v10696
        %v10699 = vunpack.c.l.s4 1934713408
        %v10700 = vunpack.c.0.s8 %v10699
        %v10701 = vperm.slane %v10695, %v10700
        %v10703 = vunpack.c.l.s4 1934713408
        %v10704 = vunpack.c.0.s8 %v10703
        %v10705 = vperm.slane %v10697, %v10704
        %v10706 = vrot.slane %v10677, 4
        %v10707 = vsel %vm251, %v10706, %v10665
        %v10708 = vrot.slane %v10665, 4
        %v10709 = vsel %vm251, %v10677, %v10708
        %v10711 = vunpack.c.l.s4 1934713408
        %v10712 = vunpack.c.0.s8 %v10711
        %v10713 = vperm.slane %v10707, %v10712
        %v10715 = vunpack.c.l.s4 1934713408
        %v10716 = vunpack.c.0.s8 %v10715
        %v10717 = vperm.slane %v10709, %v10716
        %v10718 = vrot.slane %v10681, 4
        %v10719 = vsel %vm251, %v10718, %v10669
        %v10720 = vrot.slane %v10669, 4
        %v10721 = vsel %vm251, %v10681, %v10720
        %v10723 = vunpack.c.l.s4 1934713408
        %v10724 = vunpack.c.0.s8 %v10723
        %v10725 = vperm.slane %v10719, %v10724
        %v10727 = vunpack.c.l.s4 1934713408
        %v10728 = vunpack.c.0.s8 %v10727
        %v10729 = vperm.slane %v10721, %v10728
        %v10730 = vrot.slane %v10713, 4
        %v10731 = vsel %vm251, %v10730, %v10689
        %v10732 = vrot.slane %v10689, 4
        %v10733 = vsel %vm251, %v10713, %v10732
        %v10734 = vrot.slane %v10717, 4
        %v10735 = vsel %vm251, %v10734, %v10693
        %v10736 = vrot.slane %v10693, 4
        %v10737 = vsel %vm251, %v10717, %v10736
        %v10738 = vrot.slane %v10725, 4
        %v10739 = vsel %vm251, %v10738, %v10701
        %v10740 = vrot.slane %v10701, 4
        %v10741 = vsel %vm251, %v10725, %v10740
        %v10742 = vrot.slane %v10729, 4
        %v10743 = vsel %vm251, %v10742, %v10705
        %v10744 = vrot.slane %v10705, 4
        %v10745 = vsel %vm251, %v10729, %v10744
        %v10746 = vrot.slane %v10511, 4
        %v10747 = vsel %vm251, %v10746, %v10507
        %v10748 = vrot.slane %v10507, 4
        %v10749 = vsel %vm251, %v10511, %v10748
        %v10751 = vunpack.c.l.s4 1983009808
        %v10752 = vunpack.c.0.s8 %v10751
        %v10753 = vperm.slane %v10747, %v10752
        %v10755 = vunpack.c.l.s4 1983009808
        %v10756 = vunpack.c.0.s8 %v10755
        %v10757 = vperm.slane %v10749, %v10756
        %v10758 = vrot.slane %v10513, 4
        %v10759 = vsel %vm251, %v10758, %v10509
        %v10760 = vrot.slane %v10509, 4
        %v10761 = vsel %vm251, %v10513, %v10760
        %v10763 = vunpack.c.l.s4 1983009808
        %v10764 = vunpack.c.0.s8 %v10763
        %v10765 = vperm.slane %v10759, %v10764
        %v10767 = vunpack.c.l.s4 1983009808
        %v10768 = vunpack.c.0.s8 %v10767
        %v10769 = vperm.slane %v10761, %v10768
        %v10770 = vrot.slane %v10519, 4
        %v10771 = vsel %vm251, %v10770, %v10515
        %v10772 = vrot.slane %v10515, 4
        %v10773 = vsel %vm251, %v10519, %v10772
        %v10775 = vunpack.c.l.s4 1983009808
        %v10776 = vunpack.c.0.s8 %v10775
        %v10777 = vperm.slane %v10771, %v10776
        %v10779 = vunpack.c.l.s4 1983009808
        %v10780 = vunpack.c.0.s8 %v10779
        %v10781 = vperm.slane %v10773, %v10780
        %v10782 = vrot.slane %v10521, 4
        %v10783 = vsel %vm251, %v10782, %v10517
        %v10784 = vrot.slane %v10517, 4
        %v10785 = vsel %vm251, %v10521, %v10784
        %v10787 = vunpack.c.l.s4 1983009808
        %v10788 = vunpack.c.0.s8 %v10787
        %v10789 = vperm.slane %v10783, %v10788
        %v10791 = vunpack.c.l.s4 1983009808
        %v10792 = vunpack.c.0.s8 %v10791
        %v10793 = vperm.slane %v10785, %v10792
        %v10794 = vrot.slane %v10765, 4
        %v10795 = vsel %vm251, %v10794, %v10753
        %v10796 = vrot.slane %v10753, 4
        %v10797 = vsel %vm251, %v10765, %v10796
        %v10799 = vunpack.c.l.s4 1934713408
        %v10800 = vunpack.c.0.s8 %v10799
        %v10801 = vperm.slane %v10795, %v10800
        %v10803 = vunpack.c.l.s4 1934713408
        %v10804 = vunpack.c.0.s8 %v10803
        %v10805 = vperm.slane %v10797, %v10804
        %v10806 = vrot.slane %v10769, 4
        %v10807 = vsel %vm251, %v10806, %v10757
        %v10808 = vrot.slane %v10757, 4
        %v10809 = vsel %vm251, %v10769, %v10808
        %v10811 = vunpack.c.l.s4 1934713408
        %v10812 = vunpack.c.0.s8 %v10811
        %v10813 = vperm.slane %v10807, %v10812
        %v10815 = vunpack.c.l.s4 1934713408
        %v10816 = vunpack.c.0.s8 %v10815
        %v10817 = vperm.slane %v10809, %v10816
        %v10818 = vrot.slane %v10789, 4
        %v10819 = vsel %vm251, %v10818, %v10777
        %v10820 = vrot.slane %v10777, 4
        %v10821 = vsel %vm251, %v10789, %v10820
        %v10823 = vunpack.c.l.s4 1934713408
        %v10824 = vunpack.c.0.s8 %v10823
        %v10825 = vperm.slane %v10819, %v10824
        %v10827 = vunpack.c.l.s4 1934713408
        %v10828 = vunpack.c.0.s8 %v10827
        %v10829 = vperm.slane %v10821, %v10828
        %v10830 = vrot.slane %v10793, 4
        %v10831 = vsel %vm251, %v10830, %v10781
        %v10832 = vrot.slane %v10781, 4
        %v10833 = vsel %vm251, %v10793, %v10832
        %v10835 = vunpack.c.l.s4 1934713408
        %v10836 = vunpack.c.0.s8 %v10835
        %v10837 = vperm.slane %v10831, %v10836
        %v10839 = vunpack.c.l.s4 1934713408
        %v10840 = vunpack.c.0.s8 %v10839
        %v10841 = vperm.slane %v10833, %v10840
        %v10842 = vrot.slane %v10825, 4
        %v10843 = vsel %vm251, %v10842, %v10801
        %v10844 = vrot.slane %v10801, 4
        %v10845 = vsel %vm251, %v10825, %v10844
        %v10846 = vrot.slane %v10829, 4
        %v10847 = vsel %vm251, %v10846, %v10805
        %v10848 = vrot.slane %v10805, 4
        %v10849 = vsel %vm251, %v10829, %v10848
        %v10850 = vrot.slane %v10837, 4
        %v10851 = vsel %vm251, %v10850, %v10813
        %v10852 = vrot.slane %v10813, 4
        %v10853 = vsel %vm251, %v10837, %v10852
        %v10854 = vrot.slane %v10841, 4
        %v10855 = vsel %vm251, %v10854, %v10817
        %v10856 = vrot.slane %v10817, 4
        %v10857 = vsel %vm251, %v10841, %v10856
        %v10858 = vrot.slane %v10399, 4
        %v10859 = vsel %vm251, %v10858, %v10395
        %v10860 = vrot.slane %v10395, 4
        %v10861 = vsel %vm251, %v10399, %v10860
        %v10863 = vunpack.c.l.s4 1983009808
        %v10864 = vunpack.c.0.s8 %v10863
        %v10865 = vperm.slane %v10859, %v10864
        %v10867 = vunpack.c.l.s4 1983009808
        %v10868 = vunpack.c.0.s8 %v10867
        %v10869 = vperm.slane %v10861, %v10868
        %v10870 = vrot.slane %v10401, 4
        %v10871 = vsel %vm251, %v10870, %v10397
        %v10872 = vrot.slane %v10397, 4
        %v10873 = vsel %vm251, %v10401, %v10872
        %v10875 = vunpack.c.l.s4 1983009808
        %v10876 = vunpack.c.0.s8 %v10875
        %v10877 = vperm.slane %v10871, %v10876
        %v10879 = vunpack.c.l.s4 1983009808
        %v10880 = vunpack.c.0.s8 %v10879
        %v10881 = vperm.slane %v10873, %v10880
        %v10882 = vrot.slane %v10407, 4
        %v10883 = vsel %vm251, %v10882, %v10403
        %v10884 = vrot.slane %v10403, 4
        %v10885 = vsel %vm251, %v10407, %v10884
        %v10887 = vunpack.c.l.s4 1983009808
        %v10888 = vunpack.c.0.s8 %v10887
        %v10889 = vperm.slane %v10883, %v10888
        %v10891 = vunpack.c.l.s4 1983009808
        %v10892 = vunpack.c.0.s8 %v10891
        %v10893 = vperm.slane %v10885, %v10892
        %v10894 = vrot.slane %v10409, 4
        %v10895 = vsel %vm251, %v10894, %v10405
        %v10896 = vrot.slane %v10405, 4
        %v10897 = vsel %vm251, %v10409, %v10896
        %v10899 = vunpack.c.l.s4 1983009808
        %v10900 = vunpack.c.0.s8 %v10899
        %v10901 = vperm.slane %v10895, %v10900
        %v10903 = vunpack.c.l.s4 1983009808
        %v10904 = vunpack.c.0.s8 %v10903
        %v10905 = vperm.slane %v10897, %v10904
        %v10906 = vrot.slane %v10877, 4
        %v10907 = vsel %vm251, %v10906, %v10865
        %v10908 = vrot.slane %v10865, 4
        %v10909 = vsel %vm251, %v10877, %v10908
        %v10911 = vunpack.c.l.s4 1934713408
        %v10912 = vunpack.c.0.s8 %v10911
        %v10913 = vperm.slane %v10907, %v10912
        %v10915 = vunpack.c.l.s4 1934713408
        %v10916 = vunpack.c.0.s8 %v10915
        %v10917 = vperm.slane %v10909, %v10916
        %v10918 = vrot.slane %v10881, 4
        %v10919 = vsel %vm251, %v10918, %v10869
        %v10920 = vrot.slane %v10869, 4
        %v10921 = vsel %vm251, %v10881, %v10920
        %v10923 = vunpack.c.l.s4 1934713408
        %v10924 = vunpack.c.0.s8 %v10923
        %v10925 = vperm.slane %v10919, %v10924
        %v10927 = vunpack.c.l.s4 1934713408
        %v10928 = vunpack.c.0.s8 %v10927
        %v10929 = vperm.slane %v10921, %v10928
        %v10930 = vrot.slane %v10901, 4
        %v10931 = vsel %vm251, %v10930, %v10889
        %v10932 = vrot.slane %v10889, 4
        %v10933 = vsel %vm251, %v10901, %v10932
        %v10935 = vunpack.c.l.s4 1934713408
        %v10936 = vunpack.c.0.s8 %v10935
        %v10937 = vperm.slane %v10931, %v10936
        %v10939 = vunpack.c.l.s4 1934713408
        %v10940 = vunpack.c.0.s8 %v10939
        %v10941 = vperm.slane %v10933, %v10940
        %v10942 = vrot.slane %v10905, 4
        %v10943 = vsel %vm251, %v10942, %v10893
        %v10944 = vrot.slane %v10893, 4
        %v10945 = vsel %vm251, %v10905, %v10944
        %v10947 = vunpack.c.l.s4 1934713408
        %v10948 = vunpack.c.0.s8 %v10947
        %v10949 = vperm.slane %v10943, %v10948
        %v10951 = vunpack.c.l.s4 1934713408
        %v10952 = vunpack.c.0.s8 %v10951
        %v10953 = vperm.slane %v10945, %v10952
        %v10954 = vrot.slane %v10937, 4
        %v10955 = vsel %vm251, %v10954, %v10913
        %v10956 = vrot.slane %v10913, 4
        %v10957 = vsel %vm251, %v10937, %v10956
        %v10958 = vrot.slane %v10941, 4
        %v10959 = vsel %vm251, %v10958, %v10917
        %v10960 = vrot.slane %v10917, 4
        %v10961 = vsel %vm251, %v10941, %v10960
        %v10962 = vrot.slane %v10949, 4
        %v10963 = vsel %vm251, %v10962, %v10925
        %v10964 = vrot.slane %v10925, 4
        %v10965 = vsel %vm251, %v10949, %v10964
        %v10966 = vrot.slane %v10953, 4
        %v10967 = vsel %vm251, %v10966, %v10929
        %v10968 = vrot.slane %v10929, 4
        %v10969 = vsel %vm251, %v10953, %v10968
        %v10970 = vrot.slane %v10623, 4
        %v10971 = vsel %vm251, %v10970, %v10619
        %v10972 = vrot.slane %v10619, 4
        %v10973 = vsel %vm251, %v10623, %v10972
        %v10975 = vunpack.c.l.s4 1983009808
        %v10976 = vunpack.c.0.s8 %v10975
        %v10977 = vperm.slane %v10971, %v10976
        %v10979 = vunpack.c.l.s4 1983009808
        %v10980 = vunpack.c.0.s8 %v10979
        %v10981 = vperm.slane %v10973, %v10980
        %v10982 = vrot.slane %v10625, 4
        %v10983 = vsel %vm251, %v10982, %v10621
        %v10984 = vrot.slane %v10621, 4
        %v10985 = vsel %vm251, %v10625, %v10984
        %v10987 = vunpack.c.l.s4 1983009808
        %v10988 = vunpack.c.0.s8 %v10987
        %v10989 = vperm.slane %v10983, %v10988
        %v10991 = vunpack.c.l.s4 1983009808
        %v10992 = vunpack.c.0.s8 %v10991
        %v10993 = vperm.slane %v10985, %v10992
        %v10994 = vrot.slane %v10631, 4
        %v10995 = vsel %vm251, %v10994, %v10627
        %v10996 = vrot.slane %v10627, 4
        %v10997 = vsel %vm251, %v10631, %v10996
        %v10999 = vunpack.c.l.s4 1983009808
        %v11000 = vunpack.c.0.s8 %v10999
        %v11001 = vperm.slane %v10995, %v11000
        %v11003 = vunpack.c.l.s4 1983009808
        %v11004 = vunpack.c.0.s8 %v11003
        %v11005 = vperm.slane %v10997, %v11004
        %v11006 = vrot.slane %v10633, 4
        %v11007 = vsel %vm251, %v11006, %v10629
        %v11008 = vrot.slane %v10629, 4
        %v11009 = vsel %vm251, %v10633, %v11008
        %v11011 = vunpack.c.l.s4 1983009808
        %v11012 = vunpack.c.0.s8 %v11011
        %v11013 = vperm.slane %v11007, %v11012
        %v11015 = vunpack.c.l.s4 1983009808
        %v11016 = vunpack.c.0.s8 %v11015
        %v11017 = vperm.slane %v11009, %v11016
        %v11018 = vrot.slane %v10989, 4
        %v11019 = vsel %vm251, %v11018, %v10977
        %v11020 = vrot.slane %v10977, 4
        %v11021 = vsel %vm251, %v10989, %v11020
        %v11023 = vunpack.c.l.s4 1934713408
        %v11024 = vunpack.c.0.s8 %v11023
        %v11025 = vperm.slane %v11019, %v11024
        %v11027 = vunpack.c.l.s4 1934713408
        %v11028 = vunpack.c.0.s8 %v11027
        %v11029 = vperm.slane %v11021, %v11028
        %v11030 = vrot.slane %v10993, 4
        %v11031 = vsel %vm251, %v11030, %v10981
        %v11032 = vrot.slane %v10981, 4
        %v11033 = vsel %vm251, %v10993, %v11032
        %v11035 = vunpack.c.l.s4 1934713408
        %v11036 = vunpack.c.0.s8 %v11035
        %v11037 = vperm.slane %v11031, %v11036
        %v11039 = vunpack.c.l.s4 1934713408
        %v11040 = vunpack.c.0.s8 %v11039
        %v11041 = vperm.slane %v11033, %v11040
        %v11042 = vrot.slane %v11013, 4
        %v11043 = vsel %vm251, %v11042, %v11001
        %v11044 = vrot.slane %v11001, 4
        %v11045 = vsel %vm251, %v11013, %v11044
        %v11047 = vunpack.c.l.s4 1934713408
        %v11048 = vunpack.c.0.s8 %v11047
        %v11049 = vperm.slane %v11043, %v11048
        %v11051 = vunpack.c.l.s4 1934713408
        %v11052 = vunpack.c.0.s8 %v11051
        %v11053 = vperm.slane %v11045, %v11052
        %v11054 = vrot.slane %v11017, 4
        %v11055 = vsel %vm251, %v11054, %v11005
        %v11056 = vrot.slane %v11005, 4
        %v11057 = vsel %vm251, %v11017, %v11056
        %v11059 = vunpack.c.l.s4 1934713408
        %v11060 = vunpack.c.0.s8 %v11059
        %v11061 = vperm.slane %v11055, %v11060
        %v11063 = vunpack.c.l.s4 1934713408
        %v11064 = vunpack.c.0.s8 %v11063
        %v11065 = vperm.slane %v11057, %v11064
        %v11066 = vrot.slane %v11049, 4
        %v11067 = vsel %vm251, %v11066, %v11025
        %v11068 = vrot.slane %v11025, 4
        %v11069 = vsel %vm251, %v11049, %v11068
        %v11070 = vrot.slane %v11053, 4
        %v11071 = vsel %vm251, %v11070, %v11029
        %v11072 = vrot.slane %v11029, 4
        %v11073 = vsel %vm251, %v11053, %v11072
        %v11074 = vrot.slane %v11061, 4
        %v11075 = vsel %vm251, %v11074, %v11037
        %v11076 = vrot.slane %v11037, 4
        %v11077 = vsel %vm251, %v11061, %v11076
        %v11078 = vrot.slane %v11065, 4
        %v11079 = vsel %vm251, %v11078, %v11041
        %v11080 = vrot.slane %v11041, 4
        %v11081 = vsel %vm251, %v11065, %v11080
        %11084 = vrot.lane.b32.xlu0 %v10733, 16
        %v11085 = vpop.permute.xlu0 %11084
        %11086 = vrot.lane.b32.xlu0 %v10845, 16
        %v11087 = vpop.permute.xlu0 %11086
        %11092 = vrot.lane.b32.xlu0 %v10735, 32
        %v11093 = vpop.permute.xlu0 %11092
        %11094 = vrot.lane.b32.xlu0 %v10847, 32
        %v11095 = vpop.permute.xlu0 %11094
        %11100 = vrot.lane.b32.xlu0 %v10737, 48
        %v11101 = vpop.permute.xlu0 %11100
        %11102 = vrot.lane.b32.xlu0 %v10849, 48
        %v11103 = vpop.permute.xlu0 %11102
        %11108 = vrot.lane.b32.xlu0 %v10739, 64
        %v11109 = vpop.permute.xlu0 %11108
        %11110 = vrot.lane.b32.xlu0 %v10851, 64
        %v11111 = vpop.permute.xlu0 %11110
        %11116 = vrot.lane.b32.xlu0 %v10741, 80
        %v11117 = vpop.permute.xlu0 %11116
        %11118 = vrot.lane.b32.xlu0 %v10853, 80
        %v11119 = vpop.permute.xlu0 %11118
        %11124 = vrot.lane.b32.xlu0 %v10743, 96
        %v11125 = vpop.permute.xlu0 %11124
        %11126 = vrot.lane.b32.xlu0 %v10855, 96
        %v11127 = vpop.permute.xlu0 %11126
        %11132 = vrot.lane.b32.xlu0 %v10745, 112
        %v11133 = vpop.permute.xlu0 %11132
        %11134 = vrot.lane.b32.xlu0 %v10857, 112
        %v11135 = vpop.permute.xlu0 %11134
        %11140 = vrot.lane.b32.xlu0 %v10957, 16
        %v11141 = vpop.permute.xlu0 %11140
        %11142 = vrot.lane.b32.xlu0 %v11069, 16
        %v11143 = vpop.permute.xlu0 %11142
        %11148 = vrot.lane.b32.xlu0 %v10959, 32
        %v11149 = vpop.permute.xlu0 %11148
        %11150 = vrot.lane.b32.xlu0 %v11071, 32
        %v11151 = vpop.permute.xlu0 %11150
        %11156 = vrot.lane.b32.xlu0 %v10961, 48
        %v11157 = vpop.permute.xlu0 %11156
        %11158 = vrot.lane.b32.xlu0 %v11073, 48
        %v11159 = vpop.permute.xlu0 %11158
        %11164 = vrot.lane.b32.xlu0 %v10963, 64
        %v11165 = vpop.permute.xlu0 %11164
        %11166 = vrot.lane.b32.xlu0 %v11075, 64
        %v11167 = vpop.permute.xlu0 %11166
        %11172 = vrot.lane.b32.xlu0 %v10965, 80
        %v11173 = vpop.permute.xlu0 %11172
        %11174 = vrot.lane.b32.xlu0 %v11077, 80
        %v11175 = vpop.permute.xlu0 %11174
        %11180 = vrot.lane.b32.xlu0 %v10967, 96
        %v11181 = vpop.permute.xlu0 %11180
        %11182 = vrot.lane.b32.xlu0 %v11079, 96
        %v11183 = vpop.permute.xlu0 %11182
        %11188 = vrot.lane.b32.xlu0 %v10969, 112
        %v11189 = vpop.permute.xlu0 %11188
        %11190 = vrot.lane.b32.xlu0 %v11081, 112
        %v11191 = vpop.permute.xlu0 %11190
        %v11194 = vsel %vm1707, %v10731, %v11085
        %v11195 = vsel %vm1707, %v10843, %v11087
        %v11196 = vsel %vm1710, %v11194, %v11093
        %v11197 = vsel %vm1710, %v11195, %v11095
        %v11198 = vsel %vm1713, %v11196, %v11101
        %v11199 = vsel %vm1713, %v11197, %v11103
        %v11200 = vsel %vm1716, %v11198, %v11109
        %v11201 = vsel %vm1716, %v11199, %v11111
        %v11202 = vsel %vm1719, %v11200, %v11117
        %v11203 = vsel %vm1719, %v11201, %v11119
        %v11204 = vsel %vm1722, %v11202, %v11125
        %v11205 = vsel %vm1722, %v11203, %v11127
        %v11206 = vsel %vm1725, %v11204, %v11133
        %v11207 = vsel %vm1725, %v11205, %v11135
        %v11208 = vsel %vm1707, %v10955, %v11141
        %v11209 = vsel %vm1707, %v11067, %v11143
        %v11210 = vsel %vm1710, %v11208, %v11149
        %v11211 = vsel %vm1710, %v11209, %v11151
        %v11212 = vsel %vm1713, %v11210, %v11157
        %v11213 = vsel %vm1713, %v11211, %v11159
        %v11214 = vsel %vm1716, %v11212, %v11165
        %v11215 = vsel %vm1716, %v11213, %v11167
        %v11216 = vsel %vm1719, %v11214, %v11173
        %v11217 = vsel %vm1719, %v11215, %v11175
        %v11218 = vsel %vm1722, %v11216, %v11181
        %v11219 = vsel %vm1722, %v11217, %v11183
        %v11220 = vsel %vm1725, %v11218, %v11189
        %v11221 = vsel %vm1725, %v11219, %v11191
        %11222 = vst [vmem:[%s155 + $0xc0] sm:$0xff] %v11206
        %11223 = vst [vmem:[%s155 + $0xc8] sm:$0xff] %v11220
        %11224 = vst [vmem:[%s155 + $0xd0] sm:$0xff] %v11207
        %11225 = vst [vmem:[%s155 + $0xd8] sm:$0xff] %v11221
        %v11226 = vld [vmem:[%s136 + $0xe0] sm:$0xff]
        %v11227 = vld [vmem:[%s136 + $0xe8] sm:$0xff]
        %v11228 = vld [vmem:[%s136 + $0xf0] sm:$0xff]
        %v11229 = vld [vmem:[%s136 + $0xf8] sm:$0xff]
        %11232 = vrot.lane.b32.xlu0 %v11226, 112
        %v11233 = vpop.permute.xlu0 %11232
        %11234 = vrot.lane.b32.xlu0 %v11228, 112
        %v11235 = vpop.permute.xlu0 %11234
        %11238 = vrot.lane.b32.xlu0 %v11226, 96
        %v11239 = vpop.permute.xlu0 %11238
        %11240 = vrot.lane.b32.xlu0 %v11228, 96
        %v11241 = vpop.permute.xlu0 %11240
        %11244 = vrot.lane.b32.xlu0 %v11226, 80
        %v11245 = vpop.permute.xlu0 %11244
        %11246 = vrot.lane.b32.xlu0 %v11228, 80
        %v11247 = vpop.permute.xlu0 %11246
        %11250 = vrot.lane.b32.xlu0 %v11226, 64
        %v11251 = vpop.permute.xlu0 %11250
        %11252 = vrot.lane.b32.xlu0 %v11228, 64
        %v11253 = vpop.permute.xlu0 %11252
        %11256 = vrot.lane.b32.xlu0 %v11226, 48
        %v11257 = vpop.permute.xlu0 %11256
        %11258 = vrot.lane.b32.xlu0 %v11228, 48
        %v11259 = vpop.permute.xlu0 %11258
        %11262 = vrot.lane.b32.xlu0 %v11226, 32
        %v11263 = vpop.permute.xlu0 %11262
        %11264 = vrot.lane.b32.xlu0 %v11228, 32
        %v11265 = vpop.permute.xlu0 %11264
        %11268 = vrot.lane.b32.xlu0 %v11226, 16
        %v11269 = vpop.permute.xlu0 %11268
        %11270 = vrot.lane.b32.xlu0 %v11228, 16
        %v11271 = vpop.permute.xlu0 %11270
        %11276 = vrot.lane.b32.xlu0 %v11227, 112
        %v11277 = vpop.permute.xlu0 %11276
        %11278 = vrot.lane.b32.xlu0 %v11229, 112
        %v11279 = vpop.permute.xlu0 %11278
        %11282 = vrot.lane.b32.xlu0 %v11227, 96
        %v11283 = vpop.permute.xlu0 %11282
        %11284 = vrot.lane.b32.xlu0 %v11229, 96
        %v11285 = vpop.permute.xlu0 %11284
        %11288 = vrot.lane.b32.xlu0 %v11227, 80
        %v11289 = vpop.permute.xlu0 %11288
        %11290 = vrot.lane.b32.xlu0 %v11229, 80
        %v11291 = vpop.permute.xlu0 %11290
        %11294 = vrot.lane.b32.xlu0 %v11227, 64
        %v11295 = vpop.permute.xlu0 %11294
        %11296 = vrot.lane.b32.xlu0 %v11229, 64
        %v11297 = vpop.permute.xlu0 %11296
        %11300 = vrot.lane.b32.xlu0 %v11227, 48
        %v11301 = vpop.permute.xlu0 %11300
        %11302 = vrot.lane.b32.xlu0 %v11229, 48
        %v11303 = vpop.permute.xlu0 %11302
        %11306 = vrot.lane.b32.xlu0 %v11227, 32
        %v11307 = vpop.permute.xlu0 %11306
        %11308 = vrot.lane.b32.xlu0 %v11229, 32
        %v11309 = vpop.permute.xlu0 %11308
        %11312 = vrot.lane.b32.xlu0 %v11227, 16
        %v11313 = vpop.permute.xlu0 %11312
        %11314 = vrot.lane.b32.xlu0 %v11229, 16
        %v11315 = vpop.permute.xlu0 %11314
        %v11318 = vrot.slane %v11239, 4
        %v11319 = vsel %vm251, %v11318, %v11226
        %v11320 = vrot.slane %v11226, 4
        %v11321 = vsel %vm251, %v11239, %v11320
        %v11323 = vunpack.c.l.s4 1983009808
        %v11324 = vunpack.c.0.s8 %v11323
        %v11325 = vperm.slane %v11319, %v11324
        %v11327 = vunpack.c.l.s4 1983009808
        %v11328 = vunpack.c.0.s8 %v11327
        %v11329 = vperm.slane %v11321, %v11328
        %v11330 = vrot.slane %v11245, 4
        %v11331 = vsel %vm251, %v11330, %v11233
        %v11332 = vrot.slane %v11233, 4
        %v11333 = vsel %vm251, %v11245, %v11332
        %v11335 = vunpack.c.l.s4 1983009808
        %v11336 = vunpack.c.0.s8 %v11335
        %v11337 = vperm.slane %v11331, %v11336
        %v11339 = vunpack.c.l.s4 1983009808
        %v11340 = vunpack.c.0.s8 %v11339
        %v11341 = vperm.slane %v11333, %v11340
        %v11342 = vrot.slane %v11263, 4
        %v11343 = vsel %vm251, %v11342, %v11251
        %v11344 = vrot.slane %v11251, 4
        %v11345 = vsel %vm251, %v11263, %v11344
        %v11347 = vunpack.c.l.s4 1983009808
        %v11348 = vunpack.c.0.s8 %v11347
        %v11349 = vperm.slane %v11343, %v11348
        %v11351 = vunpack.c.l.s4 1983009808
        %v11352 = vunpack.c.0.s8 %v11351
        %v11353 = vperm.slane %v11345, %v11352
        %v11354 = vrot.slane %v11269, 4
        %v11355 = vsel %vm251, %v11354, %v11257
        %v11356 = vrot.slane %v11257, 4
        %v11357 = vsel %vm251, %v11269, %v11356
        %v11359 = vunpack.c.l.s4 1983009808
        %v11360 = vunpack.c.0.s8 %v11359
        %v11361 = vperm.slane %v11355, %v11360
        %v11363 = vunpack.c.l.s4 1983009808
        %v11364 = vunpack.c.0.s8 %v11363
        %v11365 = vperm.slane %v11357, %v11364
        %v11366 = vrot.slane %v11337, 4
        %v11367 = vsel %vm251, %v11366, %v11325
        %v11368 = vrot.slane %v11325, 4
        %v11369 = vsel %vm251, %v11337, %v11368
        %v11371 = vunpack.c.l.s4 1934713408
        %v11372 = vunpack.c.0.s8 %v11371
        %v11373 = vperm.slane %v11367, %v11372
        %v11375 = vunpack.c.l.s4 1934713408
        %v11376 = vunpack.c.0.s8 %v11375
        %v11377 = vperm.slane %v11369, %v11376
        %v11378 = vrot.slane %v11341, 4
        %v11379 = vsel %vm251, %v11378, %v11329
        %v11380 = vrot.slane %v11329, 4
        %v11381 = vsel %vm251, %v11341, %v11380
        %v11383 = vunpack.c.l.s4 1934713408
        %v11384 = vunpack.c.0.s8 %v11383
        %v11385 = vperm.slane %v11379, %v11384
        %v11387 = vunpack.c.l.s4 1934713408
        %v11388 = vunpack.c.0.s8 %v11387
        %v11389 = vperm.slane %v11381, %v11388
        %v11390 = vrot.slane %v11361, 4
        %v11391 = vsel %vm251, %v11390, %v11349
        %v11392 = vrot.slane %v11349, 4
        %v11393 = vsel %vm251, %v11361, %v11392
        %v11395 = vunpack.c.l.s4 1934713408
        %v11396 = vunpack.c.0.s8 %v11395
        %v11397 = vperm.slane %v11391, %v11396
        %v11399 = vunpack.c.l.s4 1934713408
        %v11400 = vunpack.c.0.s8 %v11399
        %v11401 = vperm.slane %v11393, %v11400
        %v11402 = vrot.slane %v11365, 4
        %v11403 = vsel %vm251, %v11402, %v11353
        %v11404 = vrot.slane %v11353, 4
        %v11405 = vsel %vm251, %v11365, %v11404
        %v11407 = vunpack.c.l.s4 1934713408
        %v11408 = vunpack.c.0.s8 %v11407
        %v11409 = vperm.slane %v11403, %v11408
        %v11411 = vunpack.c.l.s4 1934713408
        %v11412 = vunpack.c.0.s8 %v11411
        %v11413 = vperm.slane %v11405, %v11412
        %v11414 = vrot.slane %v11397, 4
        %v11415 = vsel %vm251, %v11414, %v11373
        %v11416 = vrot.slane %v11373, 4
        %v11417 = vsel %vm251, %v11397, %v11416
        %v11418 = vrot.slane %v11401, 4
        %v11419 = vsel %vm251, %v11418, %v11377
        %v11420 = vrot.slane %v11377, 4
        %v11421 = vsel %vm251, %v11401, %v11420
        %v11422 = vrot.slane %v11409, 4
        %v11423 = vsel %vm251, %v11422, %v11385
        %v11424 = vrot.slane %v11385, 4
        %v11425 = vsel %vm251, %v11409, %v11424
        %v11426 = vrot.slane %v11413, 4
        %v11427 = vsel %vm251, %v11426, %v11389
        %v11428 = vrot.slane %v11389, 4
        %v11429 = vsel %vm251, %v11413, %v11428
        %v11430 = vrot.slane %v11283, 4
        %v11431 = vsel %vm251, %v11430, %v11227
        %v11432 = vrot.slane %v11227, 4
        %v11433 = vsel %vm251, %v11283, %v11432
        %v11435 = vunpack.c.l.s4 1983009808
        %v11436 = vunpack.c.0.s8 %v11435
        %v11437 = vperm.slane %v11431, %v11436
        %v11439 = vunpack.c.l.s4 1983009808
        %v11440 = vunpack.c.0.s8 %v11439
        %v11441 = vperm.slane %v11433, %v11440
        %v11442 = vrot.slane %v11289, 4
        %v11443 = vsel %vm251, %v11442, %v11277
        %v11444 = vrot.slane %v11277, 4
        %v11445 = vsel %vm251, %v11289, %v11444
        %v11447 = vunpack.c.l.s4 1983009808
        %v11448 = vunpack.c.0.s8 %v11447
        %v11449 = vperm.slane %v11443, %v11448
        %v11451 = vunpack.c.l.s4 1983009808
        %v11452 = vunpack.c.0.s8 %v11451
        %v11453 = vperm.slane %v11445, %v11452
        %v11454 = vrot.slane %v11307, 4
        %v11455 = vsel %vm251, %v11454, %v11295
        %v11456 = vrot.slane %v11295, 4
        %v11457 = vsel %vm251, %v11307, %v11456
        %v11459 = vunpack.c.l.s4 1983009808
        %v11460 = vunpack.c.0.s8 %v11459
        %v11461 = vperm.slane %v11455, %v11460
        %v11463 = vunpack.c.l.s4 1983009808
        %v11464 = vunpack.c.0.s8 %v11463
        %v11465 = vperm.slane %v11457, %v11464
        %v11466 = vrot.slane %v11313, 4
        %v11467 = vsel %vm251, %v11466, %v11301
        %v11468 = vrot.slane %v11301, 4
        %v11469 = vsel %vm251, %v11313, %v11468
        %v11471 = vunpack.c.l.s4 1983009808
        %v11472 = vunpack.c.0.s8 %v11471
        %v11473 = vperm.slane %v11467, %v11472
        %v11475 = vunpack.c.l.s4 1983009808
        %v11476 = vunpack.c.0.s8 %v11475
        %v11477 = vperm.slane %v11469, %v11476
        %v11478 = vrot.slane %v11449, 4
        %v11479 = vsel %vm251, %v11478, %v11437
        %v11480 = vrot.slane %v11437, 4
        %v11481 = vsel %vm251, %v11449, %v11480
        %v11483 = vunpack.c.l.s4 1934713408
        %v11484 = vunpack.c.0.s8 %v11483
        %v11485 = vperm.slane %v11479, %v11484
        %v11487 = vunpack.c.l.s4 1934713408
        %v11488 = vunpack.c.0.s8 %v11487
        %v11489 = vperm.slane %v11481, %v11488
        %v11490 = vrot.slane %v11453, 4
        %v11491 = vsel %vm251, %v11490, %v11441
        %v11492 = vrot.slane %v11441, 4
        %v11493 = vsel %vm251, %v11453, %v11492
        %v11495 = vunpack.c.l.s4 1934713408
        %v11496 = vunpack.c.0.s8 %v11495
        %v11497 = vperm.slane %v11491, %v11496
        %v11499 = vunpack.c.l.s4 1934713408
        %v11500 = vunpack.c.0.s8 %v11499
        %v11501 = vperm.slane %v11493, %v11500
        %v11502 = vrot.slane %v11473, 4
        %v11503 = vsel %vm251, %v11502, %v11461
        %v11504 = vrot.slane %v11461, 4
        %v11505 = vsel %vm251, %v11473, %v11504
        %v11507 = vunpack.c.l.s4 1934713408
        %v11508 = vunpack.c.0.s8 %v11507
        %v11509 = vperm.slane %v11503, %v11508
        %v11511 = vunpack.c.l.s4 1934713408
        %v11512 = vunpack.c.0.s8 %v11511
        %v11513 = vperm.slane %v11505, %v11512
        %v11514 = vrot.slane %v11477, 4
        %v11515 = vsel %vm251, %v11514, %v11465
        %v11516 = vrot.slane %v11465, 4
        %v11517 = vsel %vm251, %v11477, %v11516
        %v11519 = vunpack.c.l.s4 1934713408
        %v11520 = vunpack.c.0.s8 %v11519
        %v11521 = vperm.slane %v11515, %v11520
        %v11523 = vunpack.c.l.s4 1934713408
        %v11524 = vunpack.c.0.s8 %v11523
        %v11525 = vperm.slane %v11517, %v11524
        %v11526 = vrot.slane %v11509, 4
        %v11527 = vsel %vm251, %v11526, %v11485
        %v11528 = vrot.slane %v11485, 4
        %v11529 = vsel %vm251, %v11509, %v11528
        %v11530 = vrot.slane %v11513, 4
        %v11531 = vsel %vm251, %v11530, %v11489
        %v11532 = vrot.slane %v11489, 4
        %v11533 = vsel %vm251, %v11513, %v11532
        %v11534 = vrot.slane %v11521, 4
        %v11535 = vsel %vm251, %v11534, %v11497
        %v11536 = vrot.slane %v11497, 4
        %v11537 = vsel %vm251, %v11521, %v11536
        %v11538 = vrot.slane %v11525, 4
        %v11539 = vsel %vm251, %v11538, %v11501
        %v11540 = vrot.slane %v11501, 4
        %v11541 = vsel %vm251, %v11525, %v11540
        %v11542 = vrot.slane %v11241, 4
        %v11543 = vsel %vm251, %v11542, %v11228
        %v11544 = vrot.slane %v11228, 4
        %v11545 = vsel %vm251, %v11241, %v11544
        %v11547 = vunpack.c.l.s4 1983009808
        %v11548 = vunpack.c.0.s8 %v11547
        %v11549 = vperm.slane %v11543, %v11548
        %v11551 = vunpack.c.l.s4 1983009808
        %v11552 = vunpack.c.0.s8 %v11551
        %v11553 = vperm.slane %v11545, %v11552
        %v11554 = vrot.slane %v11247, 4
        %v11555 = vsel %vm251, %v11554, %v11235
        %v11556 = vrot.slane %v11235, 4
        %v11557 = vsel %vm251, %v11247, %v11556
        %v11559 = vunpack.c.l.s4 1983009808
        %v11560 = vunpack.c.0.s8 %v11559
        %v11561 = vperm.slane %v11555, %v11560
        %v11563 = vunpack.c.l.s4 1983009808
        %v11564 = vunpack.c.0.s8 %v11563
        %v11565 = vperm.slane %v11557, %v11564
        %v11566 = vrot.slane %v11265, 4
        %v11567 = vsel %vm251, %v11566, %v11253
        %v11568 = vrot.slane %v11253, 4
        %v11569 = vsel %vm251, %v11265, %v11568
        %v11571 = vunpack.c.l.s4 1983009808
        %v11572 = vunpack.c.0.s8 %v11571
        %v11573 = vperm.slane %v11567, %v11572
        %v11575 = vunpack.c.l.s4 1983009808
        %v11576 = vunpack.c.0.s8 %v11575
        %v11577 = vperm.slane %v11569, %v11576
        %v11578 = vrot.slane %v11271, 4
        %v11579 = vsel %vm251, %v11578, %v11259
        %v11580 = vrot.slane %v11259, 4
        %v11581 = vsel %vm251, %v11271, %v11580
        %v11583 = vunpack.c.l.s4 1983009808
        %v11584 = vunpack.c.0.s8 %v11583
        %v11585 = vperm.slane %v11579, %v11584
        %v11587 = vunpack.c.l.s4 1983009808
        %v11588 = vunpack.c.0.s8 %v11587
        %v11589 = vperm.slane %v11581, %v11588
        %v11590 = vrot.slane %v11561, 4
        %v11591 = vsel %vm251, %v11590, %v11549
        %v11592 = vrot.slane %v11549, 4
        %v11593 = vsel %vm251, %v11561, %v11592
        %v11595 = vunpack.c.l.s4 1934713408
        %v11596 = vunpack.c.0.s8 %v11595
        %v11597 = vperm.slane %v11591, %v11596
        %v11599 = vunpack.c.l.s4 1934713408
        %v11600 = vunpack.c.0.s8 %v11599
        %v11601 = vperm.slane %v11593, %v11600
        %v11602 = vrot.slane %v11565, 4
        %v11603 = vsel %vm251, %v11602, %v11553
        %v11604 = vrot.slane %v11553, 4
        %v11605 = vsel %vm251, %v11565, %v11604
        %v11607 = vunpack.c.l.s4 1934713408
        %v11608 = vunpack.c.0.s8 %v11607
        %v11609 = vperm.slane %v11603, %v11608
        %v11611 = vunpack.c.l.s4 1934713408
        %v11612 = vunpack.c.0.s8 %v11611
        %v11613 = vperm.slane %v11605, %v11612
        %v11614 = vrot.slane %v11585, 4
        %v11615 = vsel %vm251, %v11614, %v11573
        %v11616 = vrot.slane %v11573, 4
        %v11617 = vsel %vm251, %v11585, %v11616
        %v11619 = vunpack.c.l.s4 1934713408
        %v11620 = vunpack.c.0.s8 %v11619
        %v11621 = vperm.slane %v11615, %v11620
        %v11623 = vunpack.c.l.s4 1934713408
        %v11624 = vunpack.c.0.s8 %v11623
        %v11625 = vperm.slane %v11617, %v11624
        %v11626 = vrot.slane %v11589, 4
        %v11627 = vsel %vm251, %v11626, %v11577
        %v11628 = vrot.slane %v11577, 4
        %v11629 = vsel %vm251, %v11589, %v11628
        %v11631 = vunpack.c.l.s4 1934713408
        %v11632 = vunpack.c.0.s8 %v11631
        %v11633 = vperm.slane %v11627, %v11632
        %v11635 = vunpack.c.l.s4 1934713408
        %v11636 = vunpack.c.0.s8 %v11635
        %v11637 = vperm.slane %v11629, %v11636
        %v11638 = vrot.slane %v11621, 4
        %v11639 = vsel %vm251, %v11638, %v11597
        %v11640 = vrot.slane %v11597, 4
        %v11641 = vsel %vm251, %v11621, %v11640
        %v11642 = vrot.slane %v11625, 4
        %v11643 = vsel %vm251, %v11642, %v11601
        %v11644 = vrot.slane %v11601, 4
        %v11645 = vsel %vm251, %v11625, %v11644
        %v11646 = vrot.slane %v11633, 4
        %v11647 = vsel %vm251, %v11646, %v11609
        %v11648 = vrot.slane %v11609, 4
        %v11649 = vsel %vm251, %v11633, %v11648
        %v11650 = vrot.slane %v11637, 4
        %v11651 = vsel %vm251, %v11650, %v11613
        %v11652 = vrot.slane %v11613, 4
        %v11653 = vsel %vm251, %v11637, %v11652
        %v11654 = vrot.slane %v11285, 4
        %v11655 = vsel %vm251, %v11654, %v11229
        %v11656 = vrot.slane %v11229, 4
        %v11657 = vsel %vm251, %v11285, %v11656
        %v11659 = vunpack.c.l.s4 1983009808
        %v11660 = vunpack.c.0.s8 %v11659
        %v11661 = vperm.slane %v11655, %v11660
        %v11663 = vunpack.c.l.s4 1983009808
        %v11664 = vunpack.c.0.s8 %v11663
        %v11665 = vperm.slane %v11657, %v11664
        %v11666 = vrot.slane %v11291, 4
        %v11667 = vsel %vm251, %v11666, %v11279
        %v11668 = vrot.slane %v11279, 4
        %v11669 = vsel %vm251, %v11291, %v11668
        %v11671 = vunpack.c.l.s4 1983009808
        %v11672 = vunpack.c.0.s8 %v11671
        %v11673 = vperm.slane %v11667, %v11672
        %v11675 = vunpack.c.l.s4 1983009808
        %v11676 = vunpack.c.0.s8 %v11675
        %v11677 = vperm.slane %v11669, %v11676
        %v11678 = vrot.slane %v11309, 4
        %v11679 = vsel %vm251, %v11678, %v11297
        %v11680 = vrot.slane %v11297, 4
        %v11681 = vsel %vm251, %v11309, %v11680
        %v11683 = vunpack.c.l.s4 1983009808
        %v11684 = vunpack.c.0.s8 %v11683
        %v11685 = vperm.slane %v11679, %v11684
        %v11687 = vunpack.c.l.s4 1983009808
        %v11688 = vunpack.c.0.s8 %v11687
        %v11689 = vperm.slane %v11681, %v11688
        %v11690 = vrot.slane %v11315, 4
        %v11691 = vsel %vm251, %v11690, %v11303
        %v11692 = vrot.slane %v11303, 4
        %v11693 = vsel %vm251, %v11315, %v11692
        %v11695 = vunpack.c.l.s4 1983009808
        %v11696 = vunpack.c.0.s8 %v11695
        %v11697 = vperm.slane %v11691, %v11696
        %v11699 = vunpack.c.l.s4 1983009808
        %v11700 = vunpack.c.0.s8 %v11699
        %v11701 = vperm.slane %v11693, %v11700
        %v11702 = vrot.slane %v11673, 4
        %v11703 = vsel %vm251, %v11702, %v11661
        %v11704 = vrot.slane %v11661, 4
        %v11705 = vsel %vm251, %v11673, %v11704
        %v11707 = vunpack.c.l.s4 1934713408
        %v11708 = vunpack.c.0.s8 %v11707
        %v11709 = vperm.slane %v11703, %v11708
        %v11711 = vunpack.c.l.s4 1934713408
        %v11712 = vunpack.c.0.s8 %v11711
        %v11713 = vperm.slane %v11705, %v11712
        %v11714 = vrot.slane %v11677, 4
        %v11715 = vsel %vm251, %v11714, %v11665
        %v11716 = vrot.slane %v11665, 4
        %v11717 = vsel %vm251, %v11677, %v11716
        %v11719 = vunpack.c.l.s4 1934713408
        %v11720 = vunpack.c.0.s8 %v11719
        %v11721 = vperm.slane %v11715, %v11720
        %v11723 = vunpack.c.l.s4 1934713408
        %v11724 = vunpack.c.0.s8 %v11723
        %v11725 = vperm.slane %v11717, %v11724
        %v11726 = vrot.slane %v11697, 4
        %v11727 = vsel %vm251, %v11726, %v11685
        %v11728 = vrot.slane %v11685, 4
        %v11729 = vsel %vm251, %v11697, %v11728
        %v11731 = vunpack.c.l.s4 1934713408
        %v11732 = vunpack.c.0.s8 %v11731
        %v11733 = vperm.slane %v11727, %v11732
        %v11735 = vunpack.c.l.s4 1934713408
        %v11736 = vunpack.c.0.s8 %v11735
        %v11737 = vperm.slane %v11729, %v11736
        %v11738 = vrot.slane %v11701, 4
        %v11739 = vsel %vm251, %v11738, %v11689
        %v11740 = vrot.slane %v11689, 4
        %v11741 = vsel %vm251, %v11701, %v11740
        %v11743 = vunpack.c.l.s4 1934713408
        %v11744 = vunpack.c.0.s8 %v11743
        %v11745 = vperm.slane %v11739, %v11744
        %v11747 = vunpack.c.l.s4 1934713408
        %v11748 = vunpack.c.0.s8 %v11747
        %v11749 = vperm.slane %v11741, %v11748
        %v11750 = vrot.slane %v11733, 4
        %v11751 = vsel %vm251, %v11750, %v11709
        %v11752 = vrot.slane %v11709, 4
        %v11753 = vsel %vm251, %v11733, %v11752
        %v11754 = vrot.slane %v11737, 4
        %v11755 = vsel %vm251, %v11754, %v11713
        %v11756 = vrot.slane %v11713, 4
        %v11757 = vsel %vm251, %v11737, %v11756
        %v11758 = vrot.slane %v11745, 4
        %v11759 = vsel %vm251, %v11758, %v11721
        %v11760 = vrot.slane %v11721, 4
        %v11761 = vsel %vm251, %v11745, %v11760
        %v11762 = vrot.slane %v11749, 4
        %v11763 = vsel %vm251, %v11762, %v11725
        %v11764 = vrot.slane %v11725, 4
        %v11765 = vsel %vm251, %v11749, %v11764
        %v11766 = vrot.slane %v11419, 4
        %v11767 = vsel %vm251, %v11766, %v11415
        %v11768 = vrot.slane %v11415, 4
        %v11769 = vsel %vm251, %v11419, %v11768
        %v11771 = vunpack.c.l.s4 1983009808
        %v11772 = vunpack.c.0.s8 %v11771
        %v11773 = vperm.slane %v11767, %v11772
        %v11775 = vunpack.c.l.s4 1983009808
        %v11776 = vunpack.c.0.s8 %v11775
        %v11777 = vperm.slane %v11769, %v11776
        %v11778 = vrot.slane %v11421, 4
        %v11779 = vsel %vm251, %v11778, %v11417
        %v11780 = vrot.slane %v11417, 4
        %v11781 = vsel %vm251, %v11421, %v11780
        %v11783 = vunpack.c.l.s4 1983009808
        %v11784 = vunpack.c.0.s8 %v11783
        %v11785 = vperm.slane %v11779, %v11784
        %v11787 = vunpack.c.l.s4 1983009808
        %v11788 = vunpack.c.0.s8 %v11787
        %v11789 = vperm.slane %v11781, %v11788
        %v11790 = vrot.slane %v11427, 4
        %v11791 = vsel %vm251, %v11790, %v11423
        %v11792 = vrot.slane %v11423, 4
        %v11793 = vsel %vm251, %v11427, %v11792
        %v11795 = vunpack.c.l.s4 1983009808
        %v11796 = vunpack.c.0.s8 %v11795
        %v11797 = vperm.slane %v11791, %v11796
        %v11799 = vunpack.c.l.s4 1983009808
        %v11800 = vunpack.c.0.s8 %v11799
        %v11801 = vperm.slane %v11793, %v11800
        %v11802 = vrot.slane %v11429, 4
        %v11803 = vsel %vm251, %v11802, %v11425
        %v11804 = vrot.slane %v11425, 4
        %v11805 = vsel %vm251, %v11429, %v11804
        %v11807 = vunpack.c.l.s4 1983009808
        %v11808 = vunpack.c.0.s8 %v11807
        %v11809 = vperm.slane %v11803, %v11808
        %v11811 = vunpack.c.l.s4 1983009808
        %v11812 = vunpack.c.0.s8 %v11811
        %v11813 = vperm.slane %v11805, %v11812
        %v11814 = vrot.slane %v11785, 4
        %v11815 = vsel %vm251, %v11814, %v11773
        %v11816 = vrot.slane %v11773, 4
        %v11817 = vsel %vm251, %v11785, %v11816
        %v11819 = vunpack.c.l.s4 1934713408
        %v11820 = vunpack.c.0.s8 %v11819
        %v11821 = vperm.slane %v11815, %v11820
        %v11823 = vunpack.c.l.s4 1934713408
        %v11824 = vunpack.c.0.s8 %v11823
        %v11825 = vperm.slane %v11817, %v11824
        %v11826 = vrot.slane %v11789, 4
        %v11827 = vsel %vm251, %v11826, %v11777
        %v11828 = vrot.slane %v11777, 4
        %v11829 = vsel %vm251, %v11789, %v11828
        %v11831 = vunpack.c.l.s4 1934713408
        %v11832 = vunpack.c.0.s8 %v11831
        %v11833 = vperm.slane %v11827, %v11832
        %v11835 = vunpack.c.l.s4 1934713408
        %v11836 = vunpack.c.0.s8 %v11835
        %v11837 = vperm.slane %v11829, %v11836
        %v11838 = vrot.slane %v11809, 4
        %v11839 = vsel %vm251, %v11838, %v11797
        %v11840 = vrot.slane %v11797, 4
        %v11841 = vsel %vm251, %v11809, %v11840
        %v11843 = vunpack.c.l.s4 1934713408
        %v11844 = vunpack.c.0.s8 %v11843
        %v11845 = vperm.slane %v11839, %v11844
        %v11847 = vunpack.c.l.s4 1934713408
        %v11848 = vunpack.c.0.s8 %v11847
        %v11849 = vperm.slane %v11841, %v11848
        %v11850 = vrot.slane %v11813, 4
        %v11851 = vsel %vm251, %v11850, %v11801
        %v11852 = vrot.slane %v11801, 4
        %v11853 = vsel %vm251, %v11813, %v11852
        %v11855 = vunpack.c.l.s4 1934713408
        %v11856 = vunpack.c.0.s8 %v11855
        %v11857 = vperm.slane %v11851, %v11856
        %v11859 = vunpack.c.l.s4 1934713408
        %v11860 = vunpack.c.0.s8 %v11859
        %v11861 = vperm.slane %v11853, %v11860
        %v11862 = vrot.slane %v11845, 4
        %v11863 = vsel %vm251, %v11862, %v11821
        %v11864 = vrot.slane %v11821, 4
        %v11865 = vsel %vm251, %v11845, %v11864
        %v11866 = vrot.slane %v11849, 4
        %v11867 = vsel %vm251, %v11866, %v11825
        %v11868 = vrot.slane %v11825, 4
        %v11869 = vsel %vm251, %v11849, %v11868
        %v11870 = vrot.slane %v11857, 4
        %v11871 = vsel %vm251, %v11870, %v11833
        %v11872 = vrot.slane %v11833, 4
        %v11873 = vsel %vm251, %v11857, %v11872
        %v11874 = vrot.slane %v11861, 4
        %v11875 = vsel %vm251, %v11874, %v11837
        %v11876 = vrot.slane %v11837, 4
        %v11877 = vsel %vm251, %v11861, %v11876
        %v11878 = vrot.slane %v11643, 4
        %v11879 = vsel %vm251, %v11878, %v11639
        %v11880 = vrot.slane %v11639, 4
        %v11881 = vsel %vm251, %v11643, %v11880
        %v11883 = vunpack.c.l.s4 1983009808
        %v11884 = vunpack.c.0.s8 %v11883
        %v11885 = vperm.slane %v11879, %v11884
        %v11887 = vunpack.c.l.s4 1983009808
        %v11888 = vunpack.c.0.s8 %v11887
        %v11889 = vperm.slane %v11881, %v11888
        %v11890 = vrot.slane %v11645, 4
        %v11891 = vsel %vm251, %v11890, %v11641
        %v11892 = vrot.slane %v11641, 4
        %v11893 = vsel %vm251, %v11645, %v11892
        %v11895 = vunpack.c.l.s4 1983009808
        %v11896 = vunpack.c.0.s8 %v11895
        %v11897 = vperm.slane %v11891, %v11896
        %v11899 = vunpack.c.l.s4 1983009808
        %v11900 = vunpack.c.0.s8 %v11899
        %v11901 = vperm.slane %v11893, %v11900
        %v11902 = vrot.slane %v11651, 4
        %v11903 = vsel %vm251, %v11902, %v11647
        %v11904 = vrot.slane %v11647, 4
        %v11905 = vsel %vm251, %v11651, %v11904
        %v11907 = vunpack.c.l.s4 1983009808
        %v11908 = vunpack.c.0.s8 %v11907
        %v11909 = vperm.slane %v11903, %v11908
        %v11911 = vunpack.c.l.s4 1983009808
        %v11912 = vunpack.c.0.s8 %v11911
        %v11913 = vperm.slane %v11905, %v11912
        %v11914 = vrot.slane %v11653, 4
        %v11915 = vsel %vm251, %v11914, %v11649
        %v11916 = vrot.slane %v11649, 4
        %v11917 = vsel %vm251, %v11653, %v11916
        %v11919 = vunpack.c.l.s4 1983009808
        %v11920 = vunpack.c.0.s8 %v11919
        %v11921 = vperm.slane %v11915, %v11920
        %v11923 = vunpack.c.l.s4 1983009808
        %v11924 = vunpack.c.0.s8 %v11923
        %v11925 = vperm.slane %v11917, %v11924
        %v11926 = vrot.slane %v11897, 4
        %v11927 = vsel %vm251, %v11926, %v11885
        %v11928 = vrot.slane %v11885, 4
        %v11929 = vsel %vm251, %v11897, %v11928
        %v11931 = vunpack.c.l.s4 1934713408
        %v11932 = vunpack.c.0.s8 %v11931
        %v11933 = vperm.slane %v11927, %v11932
        %v11935 = vunpack.c.l.s4 1934713408
        %v11936 = vunpack.c.0.s8 %v11935
        %v11937 = vperm.slane %v11929, %v11936
        %v11938 = vrot.slane %v11901, 4
        %v11939 = vsel %vm251, %v11938, %v11889
        %v11940 = vrot.slane %v11889, 4
        %v11941 = vsel %vm251, %v11901, %v11940
        %v11943 = vunpack.c.l.s4 1934713408
        %v11944 = vunpack.c.0.s8 %v11943
        %v11945 = vperm.slane %v11939, %v11944
        %v11947 = vunpack.c.l.s4 1934713408
        %v11948 = vunpack.c.0.s8 %v11947
        %v11949 = vperm.slane %v11941, %v11948
        %v11950 = vrot.slane %v11921, 4
        %v11951 = vsel %vm251, %v11950, %v11909
        %v11952 = vrot.slane %v11909, 4
        %v11953 = vsel %vm251, %v11921, %v11952
        %v11955 = vunpack.c.l.s4 1934713408
        %v11956 = vunpack.c.0.s8 %v11955
        %v11957 = vperm.slane %v11951, %v11956
        %v11959 = vunpack.c.l.s4 1934713408
        %v11960 = vunpack.c.0.s8 %v11959
        %v11961 = vperm.slane %v11953, %v11960
        %v11962 = vrot.slane %v11925, 4
        %v11963 = vsel %vm251, %v11962, %v11913
        %v11964 = vrot.slane %v11913, 4
        %v11965 = vsel %vm251, %v11925, %v11964
        %v11967 = vunpack.c.l.s4 1934713408
        %v11968 = vunpack.c.0.s8 %v11967
        %v11969 = vperm.slane %v11963, %v11968
        %v11971 = vunpack.c.l.s4 1934713408
        %v11972 = vunpack.c.0.s8 %v11971
        %v11973 = vperm.slane %v11965, %v11972
        %v11974 = vrot.slane %v11957, 4
        %v11975 = vsel %vm251, %v11974, %v11933
        %v11976 = vrot.slane %v11933, 4
        %v11977 = vsel %vm251, %v11957, %v11976
        %v11978 = vrot.slane %v11961, 4
        %v11979 = vsel %vm251, %v11978, %v11937
        %v11980 = vrot.slane %v11937, 4
        %v11981 = vsel %vm251, %v11961, %v11980
        %v11982 = vrot.slane %v11969, 4
        %v11983 = vsel %vm251, %v11982, %v11945
        %v11984 = vrot.slane %v11945, 4
        %v11985 = vsel %vm251, %v11969, %v11984
        %v11986 = vrot.slane %v11973, 4
        %v11987 = vsel %vm251, %v11986, %v11949
        %v11988 = vrot.slane %v11949, 4
        %v11989 = vsel %vm251, %v11973, %v11988
        %v11990 = vrot.slane %v11531, 4
        %v11991 = vsel %vm251, %v11990, %v11527
        %v11992 = vrot.slane %v11527, 4
        %v11993 = vsel %vm251, %v11531, %v11992
        %v11995 = vunpack.c.l.s4 1983009808
        %v11996 = vunpack.c.0.s8 %v11995
        %v11997 = vperm.slane %v11991, %v11996
        %v11999 = vunpack.c.l.s4 1983009808
        %v12000 = vunpack.c.0.s8 %v11999
        %v12001 = vperm.slane %v11993, %v12000
        %v12002 = vrot.slane %v11533, 4
        %v12003 = vsel %vm251, %v12002, %v11529
        %v12004 = vrot.slane %v11529, 4
        %v12005 = vsel %vm251, %v11533, %v12004
        %v12007 = vunpack.c.l.s4 1983009808
        %v12008 = vunpack.c.0.s8 %v12007
        %v12009 = vperm.slane %v12003, %v12008
        %v12011 = vunpack.c.l.s4 1983009808
        %v12012 = vunpack.c.0.s8 %v12011
        %v12013 = vperm.slane %v12005, %v12012
        %v12014 = vrot.slane %v11539, 4
        %v12015 = vsel %vm251, %v12014, %v11535
        %v12016 = vrot.slane %v11535, 4
        %v12017 = vsel %vm251, %v11539, %v12016
        %v12019 = vunpack.c.l.s4 1983009808
        %v12020 = vunpack.c.0.s8 %v12019
        %v12021 = vperm.slane %v12015, %v12020
        %v12023 = vunpack.c.l.s4 1983009808
        %v12024 = vunpack.c.0.s8 %v12023
        %v12025 = vperm.slane %v12017, %v12024
        %v12026 = vrot.slane %v11541, 4
        %v12027 = vsel %vm251, %v12026, %v11537
        %v12028 = vrot.slane %v11537, 4
        %v12029 = vsel %vm251, %v11541, %v12028
        %v12031 = vunpack.c.l.s4 1983009808
        %v12032 = vunpack.c.0.s8 %v12031
        %v12033 = vperm.slane %v12027, %v12032
        %v12035 = vunpack.c.l.s4 1983009808
        %v12036 = vunpack.c.0.s8 %v12035
        %v12037 = vperm.slane %v12029, %v12036
        %v12038 = vrot.slane %v12009, 4
        %v12039 = vsel %vm251, %v12038, %v11997
        %v12040 = vrot.slane %v11997, 4
        %v12041 = vsel %vm251, %v12009, %v12040
        %v12043 = vunpack.c.l.s4 1934713408
        %v12044 = vunpack.c.0.s8 %v12043
        %v12045 = vperm.slane %v12039, %v12044
        %v12047 = vunpack.c.l.s4 1934713408
        %v12048 = vunpack.c.0.s8 %v12047
        %v12049 = vperm.slane %v12041, %v12048
        %v12050 = vrot.slane %v12013, 4
        %v12051 = vsel %vm251, %v12050, %v12001
        %v12052 = vrot.slane %v12001, 4
        %v12053 = vsel %vm251, %v12013, %v12052
        %v12055 = vunpack.c.l.s4 1934713408
        %v12056 = vunpack.c.0.s8 %v12055
        %v12057 = vperm.slane %v12051, %v12056
        %v12059 = vunpack.c.l.s4 1934713408
        %v12060 = vunpack.c.0.s8 %v12059
        %v12061 = vperm.slane %v12053, %v12060
        %v12062 = vrot.slane %v12033, 4
        %v12063 = vsel %vm251, %v12062, %v12021
        %v12064 = vrot.slane %v12021, 4
        %v12065 = vsel %vm251, %v12033, %v12064
        %v12067 = vunpack.c.l.s4 1934713408
        %v12068 = vunpack.c.0.s8 %v12067
        %v12069 = vperm.slane %v12063, %v12068
        %v12071 = vunpack.c.l.s4 1934713408
        %v12072 = vunpack.c.0.s8 %v12071
        %v12073 = vperm.slane %v12065, %v12072
        %v12074 = vrot.slane %v12037, 4
        %v12075 = vsel %vm251, %v12074, %v12025
        %v12076 = vrot.slane %v12025, 4
        %v12077 = vsel %vm251, %v12037, %v12076
        %v12079 = vunpack.c.l.s4 1934713408
        %v12080 = vunpack.c.0.s8 %v12079
        %v12081 = vperm.slane %v12075, %v12080
        %v12083 = vunpack.c.l.s4 1934713408
        %v12084 = vunpack.c.0.s8 %v12083
        %v12085 = vperm.slane %v12077, %v12084
        %v12086 = vrot.slane %v12069, 4
        %v12087 = vsel %vm251, %v12086, %v12045
        %v12088 = vrot.slane %v12045, 4
        %v12089 = vsel %vm251, %v12069, %v12088
        %v12090 = vrot.slane %v12073, 4
        %v12091 = vsel %vm251, %v12090, %v12049
        %v12092 = vrot.slane %v12049, 4
        %v12093 = vsel %vm251, %v12073, %v12092
        %v12094 = vrot.slane %v12081, 4
        %v12095 = vsel %vm251, %v12094, %v12057
        %v12096 = vrot.slane %v12057, 4
        %v12097 = vsel %vm251, %v12081, %v12096
        %v12098 = vrot.slane %v12085, 4
        %v12099 = vsel %vm251, %v12098, %v12061
        %v12100 = vrot.slane %v12061, 4
        %v12101 = vsel %vm251, %v12085, %v12100
        %v12102 = vrot.slane %v11755, 4
        %v12103 = vsel %vm251, %v12102, %v11751
        %v12104 = vrot.slane %v11751, 4
        %v12105 = vsel %vm251, %v11755, %v12104
        %v12107 = vunpack.c.l.s4 1983009808
        %v12108 = vunpack.c.0.s8 %v12107
        %v12109 = vperm.slane %v12103, %v12108
        %v12111 = vunpack.c.l.s4 1983009808
        %v12112 = vunpack.c.0.s8 %v12111
        %v12113 = vperm.slane %v12105, %v12112
        %v12114 = vrot.slane %v11757, 4
        %v12115 = vsel %vm251, %v12114, %v11753
        %v12116 = vrot.slane %v11753, 4
        %v12117 = vsel %vm251, %v11757, %v12116
        %v12119 = vunpack.c.l.s4 1983009808
        %v12120 = vunpack.c.0.s8 %v12119
        %v12121 = vperm.slane %v12115, %v12120
        %v12123 = vunpack.c.l.s4 1983009808
        %v12124 = vunpack.c.0.s8 %v12123
        %v12125 = vperm.slane %v12117, %v12124
        %v12126 = vrot.slane %v11763, 4
        %v12127 = vsel %vm251, %v12126, %v11759
        %v12128 = vrot.slane %v11759, 4
        %v12129 = vsel %vm251, %v11763, %v12128
        %v12131 = vunpack.c.l.s4 1983009808
        %v12132 = vunpack.c.0.s8 %v12131
        %v12133 = vperm.slane %v12127, %v12132
        %v12135 = vunpack.c.l.s4 1983009808
        %v12136 = vunpack.c.0.s8 %v12135
        %v12137 = vperm.slane %v12129, %v12136
        %v12138 = vrot.slane %v11765, 4
        %v12139 = vsel %vm251, %v12138, %v11761
        %v12140 = vrot.slane %v11761, 4
        %v12141 = vsel %vm251, %v11765, %v12140
        %v12143 = vunpack.c.l.s4 1983009808
        %v12144 = vunpack.c.0.s8 %v12143
        %v12145 = vperm.slane %v12139, %v12144
        %v12147 = vunpack.c.l.s4 1983009808
        %v12148 = vunpack.c.0.s8 %v12147
        %v12149 = vperm.slane %v12141, %v12148
        %v12150 = vrot.slane %v12121, 4
        %v12151 = vsel %vm251, %v12150, %v12109
        %v12152 = vrot.slane %v12109, 4
        %v12153 = vsel %vm251, %v12121, %v12152
        %v12155 = vunpack.c.l.s4 1934713408
        %v12156 = vunpack.c.0.s8 %v12155
        %v12157 = vperm.slane %v12151, %v12156
        %v12159 = vunpack.c.l.s4 1934713408
        %v12160 = vunpack.c.0.s8 %v12159
        %v12161 = vperm.slane %v12153, %v12160
        %v12162 = vrot.slane %v12125, 4
        %v12163 = vsel %vm251, %v12162, %v12113
        %v12164 = vrot.slane %v12113, 4
        %v12165 = vsel %vm251, %v12125, %v12164
        %v12167 = vunpack.c.l.s4 1934713408
        %v12168 = vunpack.c.0.s8 %v12167
        %v12169 = vperm.slane %v12163, %v12168
        %v12171 = vunpack.c.l.s4 1934713408
        %v12172 = vunpack.c.0.s8 %v12171
        %v12173 = vperm.slane %v12165, %v12172
        %v12174 = vrot.slane %v12145, 4
        %v12175 = vsel %vm251, %v12174, %v12133
        %v12176 = vrot.slane %v12133, 4
        %v12177 = vsel %vm251, %v12145, %v12176
        %v12179 = vunpack.c.l.s4 1934713408
        %v12180 = vunpack.c.0.s8 %v12179
        %v12181 = vperm.slane %v12175, %v12180
        %v12183 = vunpack.c.l.s4 1934713408
        %v12184 = vunpack.c.0.s8 %v12183
        %v12185 = vperm.slane %v12177, %v12184
        %v12186 = vrot.slane %v12149, 4
        %v12187 = vsel %vm251, %v12186, %v12137
        %v12188 = vrot.slane %v12137, 4
        %v12189 = vsel %vm251, %v12149, %v12188
        %v12191 = vunpack.c.l.s4 1934713408
        %v12192 = vunpack.c.0.s8 %v12191
        %v12193 = vperm.slane %v12187, %v12192
        %v12195 = vunpack.c.l.s4 1934713408
        %v12196 = vunpack.c.0.s8 %v12195
        %v12197 = vperm.slane %v12189, %v12196
        %v12198 = vrot.slane %v12181, 4
        %v12199 = vsel %vm251, %v12198, %v12157
        %v12200 = vrot.slane %v12157, 4
        %v12201 = vsel %vm251, %v12181, %v12200
        %v12202 = vrot.slane %v12185, 4
        %v12203 = vsel %vm251, %v12202, %v12161
        %v12204 = vrot.slane %v12161, 4
        %v12205 = vsel %vm251, %v12185, %v12204
        %v12206 = vrot.slane %v12193, 4
        %v12207 = vsel %vm251, %v12206, %v12169
        %v12208 = vrot.slane %v12169, 4
        %v12209 = vsel %vm251, %v12193, %v12208
        %v12210 = vrot.slane %v12197, 4
        %v12211 = vsel %vm251, %v12210, %v12173
        %v12212 = vrot.slane %v12173, 4
        %v12213 = vsel %vm251, %v12197, %v12212
        %v12214 = vrot.slane %v11867, 4
        %v12215 = vsel %vm251, %v12214, %v11863
        %v12216 = vrot.slane %v11863, 4
        %v12217 = vsel %vm251, %v11867, %v12216
        %v12219 = vunpack.c.l.s4 1983009808
        %v12220 = vunpack.c.0.s8 %v12219
        %v12221 = vperm.slane %v12215, %v12220
        %v12223 = vunpack.c.l.s4 1983009808
        %v12224 = vunpack.c.0.s8 %v12223
        %v12225 = vperm.slane %v12217, %v12224
        %v12226 = vrot.slane %v11869, 4
        %v12227 = vsel %vm251, %v12226, %v11865
        %v12228 = vrot.slane %v11865, 4
        %v12229 = vsel %vm251, %v11869, %v12228
        %v12231 = vunpack.c.l.s4 1983009808
        %v12232 = vunpack.c.0.s8 %v12231
        %v12233 = vperm.slane %v12227, %v12232
        %v12235 = vunpack.c.l.s4 1983009808
        %v12236 = vunpack.c.0.s8 %v12235
        %v12237 = vperm.slane %v12229, %v12236
        %v12238 = vrot.slane %v11875, 4
        %v12239 = vsel %vm251, %v12238, %v11871
        %v12240 = vrot.slane %v11871, 4
        %v12241 = vsel %vm251, %v11875, %v12240
        %v12243 = vunpack.c.l.s4 1983009808
        %v12244 = vunpack.c.0.s8 %v12243
        %v12245 = vperm.slane %v12239, %v12244
        %v12247 = vunpack.c.l.s4 1983009808
        %v12248 = vunpack.c.0.s8 %v12247
        %v12249 = vperm.slane %v12241, %v12248
        %v12250 = vrot.slane %v11877, 4
        %v12251 = vsel %vm251, %v12250, %v11873
        %v12252 = vrot.slane %v11873, 4
        %v12253 = vsel %vm251, %v11877, %v12252
        %v12255 = vunpack.c.l.s4 1983009808
        %v12256 = vunpack.c.0.s8 %v12255
        %v12257 = vperm.slane %v12251, %v12256
        %v12259 = vunpack.c.l.s4 1983009808
        %v12260 = vunpack.c.0.s8 %v12259
        %v12261 = vperm.slane %v12253, %v12260
        %v12262 = vrot.slane %v12233, 4
        %v12263 = vsel %vm251, %v12262, %v12221
        %v12264 = vrot.slane %v12221, 4
        %v12265 = vsel %vm251, %v12233, %v12264
        %v12267 = vunpack.c.l.s4 1934713408
        %v12268 = vunpack.c.0.s8 %v12267
        %v12269 = vperm.slane %v12263, %v12268
        %v12271 = vunpack.c.l.s4 1934713408
        %v12272 = vunpack.c.0.s8 %v12271
        %v12273 = vperm.slane %v12265, %v12272
        %v12274 = vrot.slane %v12237, 4
        %v12275 = vsel %vm251, %v12274, %v12225
        %v12276 = vrot.slane %v12225, 4
        %v12277 = vsel %vm251, %v12237, %v12276
        %v12279 = vunpack.c.l.s4 1934713408
        %v12280 = vunpack.c.0.s8 %v12279
        %v12281 = vperm.slane %v12275, %v12280
        %v12283 = vunpack.c.l.s4 1934713408
        %v12284 = vunpack.c.0.s8 %v12283
        %v12285 = vperm.slane %v12277, %v12284
        %v12286 = vrot.slane %v12257, 4
        %v12287 = vsel %vm251, %v12286, %v12245
        %v12288 = vrot.slane %v12245, 4
        %v12289 = vsel %vm251, %v12257, %v12288
        %v12291 = vunpack.c.l.s4 1934713408
        %v12292 = vunpack.c.0.s8 %v12291
        %v12293 = vperm.slane %v12287, %v12292
        %v12295 = vunpack.c.l.s4 1934713408
        %v12296 = vunpack.c.0.s8 %v12295
        %v12297 = vperm.slane %v12289, %v12296
        %v12298 = vrot.slane %v12261, 4
        %v12299 = vsel %vm251, %v12298, %v12249
        %v12300 = vrot.slane %v12249, 4
        %v12301 = vsel %vm251, %v12261, %v12300
        %v12303 = vunpack.c.l.s4 1934713408
        %v12304 = vunpack.c.0.s8 %v12303
        %v12305 = vperm.slane %v12299, %v12304
        %v12307 = vunpack.c.l.s4 1934713408
        %v12308 = vunpack.c.0.s8 %v12307
        %v12309 = vperm.slane %v12301, %v12308
        %v12310 = vrot.slane %v12293, 4
        %v12311 = vsel %vm251, %v12310, %v12269
        %v12312 = vrot.slane %v12269, 4
        %v12313 = vsel %vm251, %v12293, %v12312
        %v12314 = vrot.slane %v12297, 4
        %v12315 = vsel %vm251, %v12314, %v12273
        %v12316 = vrot.slane %v12273, 4
        %v12317 = vsel %vm251, %v12297, %v12316
        %v12318 = vrot.slane %v12305, 4
        %v12319 = vsel %vm251, %v12318, %v12281
        %v12320 = vrot.slane %v12281, 4
        %v12321 = vsel %vm251, %v12305, %v12320
        %v12322 = vrot.slane %v12309, 4
        %v12323 = vsel %vm251, %v12322, %v12285
        %v12324 = vrot.slane %v12285, 4
        %v12325 = vsel %vm251, %v12309, %v12324
        %v12326 = vrot.slane %v12091, 4
        %v12327 = vsel %vm251, %v12326, %v12087
        %v12328 = vrot.slane %v12087, 4
        %v12329 = vsel %vm251, %v12091, %v12328
        %v12331 = vunpack.c.l.s4 1983009808
        %v12332 = vunpack.c.0.s8 %v12331
        %v12333 = vperm.slane %v12327, %v12332
        %v12335 = vunpack.c.l.s4 1983009808
        %v12336 = vunpack.c.0.s8 %v12335
        %v12337 = vperm.slane %v12329, %v12336
        %v12338 = vrot.slane %v12093, 4
        %v12339 = vsel %vm251, %v12338, %v12089
        %v12340 = vrot.slane %v12089, 4
        %v12341 = vsel %vm251, %v12093, %v12340
        %v12343 = vunpack.c.l.s4 1983009808
        %v12344 = vunpack.c.0.s8 %v12343
        %v12345 = vperm.slane %v12339, %v12344
        %v12347 = vunpack.c.l.s4 1983009808
        %v12348 = vunpack.c.0.s8 %v12347
        %v12349 = vperm.slane %v12341, %v12348
        %v12350 = vrot.slane %v12099, 4
        %v12351 = vsel %vm251, %v12350, %v12095
        %v12352 = vrot.slane %v12095, 4
        %v12353 = vsel %vm251, %v12099, %v12352
        %v12355 = vunpack.c.l.s4 1983009808
        %v12356 = vunpack.c.0.s8 %v12355
        %v12357 = vperm.slane %v12351, %v12356
        %v12359 = vunpack.c.l.s4 1983009808
        %v12360 = vunpack.c.0.s8 %v12359
        %v12361 = vperm.slane %v12353, %v12360
        %v12362 = vrot.slane %v12101, 4
        %v12363 = vsel %vm251, %v12362, %v12097
        %v12364 = vrot.slane %v12097, 4
        %v12365 = vsel %vm251, %v12101, %v12364
        %v12367 = vunpack.c.l.s4 1983009808
        %v12368 = vunpack.c.0.s8 %v12367
        %v12369 = vperm.slane %v12363, %v12368
        %v12371 = vunpack.c.l.s4 1983009808
        %v12372 = vunpack.c.0.s8 %v12371
        %v12373 = vperm.slane %v12365, %v12372
        %v12374 = vrot.slane %v12345, 4
        %v12375 = vsel %vm251, %v12374, %v12333
        %v12376 = vrot.slane %v12333, 4
        %v12377 = vsel %vm251, %v12345, %v12376
        %v12379 = vunpack.c.l.s4 1934713408
        %v12380 = vunpack.c.0.s8 %v12379
        %v12381 = vperm.slane %v12375, %v12380
        %v12383 = vunpack.c.l.s4 1934713408
        %v12384 = vunpack.c.0.s8 %v12383
        %v12385 = vperm.slane %v12377, %v12384
        %v12386 = vrot.slane %v12349, 4
        %v12387 = vsel %vm251, %v12386, %v12337
        %v12388 = vrot.slane %v12337, 4
        %v12389 = vsel %vm251, %v12349, %v12388
        %v12391 = vunpack.c.l.s4 1934713408
        %v12392 = vunpack.c.0.s8 %v12391
        %v12393 = vperm.slane %v12387, %v12392
        %v12395 = vunpack.c.l.s4 1934713408
        %v12396 = vunpack.c.0.s8 %v12395
        %v12397 = vperm.slane %v12389, %v12396
        %v12398 = vrot.slane %v12369, 4
        %v12399 = vsel %vm251, %v12398, %v12357
        %v12400 = vrot.slane %v12357, 4
        %v12401 = vsel %vm251, %v12369, %v12400
        %v12403 = vunpack.c.l.s4 1934713408
        %v12404 = vunpack.c.0.s8 %v12403
        %v12405 = vperm.slane %v12399, %v12404
        %v12407 = vunpack.c.l.s4 1934713408
        %v12408 = vunpack.c.0.s8 %v12407
        %v12409 = vperm.slane %v12401, %v12408
        %v12410 = vrot.slane %v12373, 4
        %v12411 = vsel %vm251, %v12410, %v12361
        %v12412 = vrot.slane %v12361, 4
        %v12413 = vsel %vm251, %v12373, %v12412
        %v12415 = vunpack.c.l.s4 1934713408
        %v12416 = vunpack.c.0.s8 %v12415
        %v12417 = vperm.slane %v12411, %v12416
        %v12419 = vunpack.c.l.s4 1934713408
        %v12420 = vunpack.c.0.s8 %v12419
        %v12421 = vperm.slane %v12413, %v12420
        %v12422 = vrot.slane %v12405, 4
        %v12423 = vsel %vm251, %v12422, %v12381
        %v12424 = vrot.slane %v12381, 4
        %v12425 = vsel %vm251, %v12405, %v12424
        %v12426 = vrot.slane %v12409, 4
        %v12427 = vsel %vm251, %v12426, %v12385
        %v12428 = vrot.slane %v12385, 4
        %v12429 = vsel %vm251, %v12409, %v12428
        %v12430 = vrot.slane %v12417, 4
        %v12431 = vsel %vm251, %v12430, %v12393
        %v12432 = vrot.slane %v12393, 4
        %v12433 = vsel %vm251, %v12417, %v12432
        %v12434 = vrot.slane %v12421, 4
        %v12435 = vsel %vm251, %v12434, %v12397
        %v12436 = vrot.slane %v12397, 4
        %v12437 = vsel %vm251, %v12421, %v12436
        %v12438 = vrot.slane %v11979, 4
        %v12439 = vsel %vm251, %v12438, %v11975
        %v12440 = vrot.slane %v11975, 4
        %v12441 = vsel %vm251, %v11979, %v12440
        %v12443 = vunpack.c.l.s4 1983009808
        %v12444 = vunpack.c.0.s8 %v12443
        %v12445 = vperm.slane %v12439, %v12444
        %v12447 = vunpack.c.l.s4 1983009808
        %v12448 = vunpack.c.0.s8 %v12447
        %v12449 = vperm.slane %v12441, %v12448
        %v12450 = vrot.slane %v11981, 4
        %v12451 = vsel %vm251, %v12450, %v11977
        %v12452 = vrot.slane %v11977, 4
        %v12453 = vsel %vm251, %v11981, %v12452
        %v12455 = vunpack.c.l.s4 1983009808
        %v12456 = vunpack.c.0.s8 %v12455
        %v12457 = vperm.slane %v12451, %v12456
        %v12459 = vunpack.c.l.s4 1983009808
        %v12460 = vunpack.c.0.s8 %v12459
        %v12461 = vperm.slane %v12453, %v12460
        %v12462 = vrot.slane %v11987, 4
        %v12463 = vsel %vm251, %v12462, %v11983
        %v12464 = vrot.slane %v11983, 4
        %v12465 = vsel %vm251, %v11987, %v12464
        %v12467 = vunpack.c.l.s4 1983009808
        %v12468 = vunpack.c.0.s8 %v12467
        %v12469 = vperm.slane %v12463, %v12468
        %v12471 = vunpack.c.l.s4 1983009808
        %v12472 = vunpack.c.0.s8 %v12471
        %v12473 = vperm.slane %v12465, %v12472
        %v12474 = vrot.slane %v11989, 4
        %v12475 = vsel %vm251, %v12474, %v11985
        %v12476 = vrot.slane %v11985, 4
        %v12477 = vsel %vm251, %v11989, %v12476
        %v12479 = vunpack.c.l.s4 1983009808
        %v12480 = vunpack.c.0.s8 %v12479
        %v12481 = vperm.slane %v12475, %v12480
        %v12483 = vunpack.c.l.s4 1983009808
        %v12484 = vunpack.c.0.s8 %v12483
        %v12485 = vperm.slane %v12477, %v12484
        %v12486 = vrot.slane %v12457, 4
        %v12487 = vsel %vm251, %v12486, %v12445
        %v12488 = vrot.slane %v12445, 4
        %v12489 = vsel %vm251, %v12457, %v12488
        %v12491 = vunpack.c.l.s4 1934713408
        %v12492 = vunpack.c.0.s8 %v12491
        %v12493 = vperm.slane %v12487, %v12492
        %v12495 = vunpack.c.l.s4 1934713408
        %v12496 = vunpack.c.0.s8 %v12495
        %v12497 = vperm.slane %v12489, %v12496
        %v12498 = vrot.slane %v12461, 4
        %v12499 = vsel %vm251, %v12498, %v12449
        %v12500 = vrot.slane %v12449, 4
        %v12501 = vsel %vm251, %v12461, %v12500
        %v12503 = vunpack.c.l.s4 1934713408
        %v12504 = vunpack.c.0.s8 %v12503
        %v12505 = vperm.slane %v12499, %v12504
        %v12507 = vunpack.c.l.s4 1934713408
        %v12508 = vunpack.c.0.s8 %v12507
        %v12509 = vperm.slane %v12501, %v12508
        %v12510 = vrot.slane %v12481, 4
        %v12511 = vsel %vm251, %v12510, %v12469
        %v12512 = vrot.slane %v12469, 4
        %v12513 = vsel %vm251, %v12481, %v12512
        %v12515 = vunpack.c.l.s4 1934713408
        %v12516 = vunpack.c.0.s8 %v12515
        %v12517 = vperm.slane %v12511, %v12516
        %v12519 = vunpack.c.l.s4 1934713408
        %v12520 = vunpack.c.0.s8 %v12519
        %v12521 = vperm.slane %v12513, %v12520
        %v12522 = vrot.slane %v12485, 4
        %v12523 = vsel %vm251, %v12522, %v12473
        %v12524 = vrot.slane %v12473, 4
        %v12525 = vsel %vm251, %v12485, %v12524
        %v12527 = vunpack.c.l.s4 1934713408
        %v12528 = vunpack.c.0.s8 %v12527
        %v12529 = vperm.slane %v12523, %v12528
        %v12531 = vunpack.c.l.s4 1934713408
        %v12532 = vunpack.c.0.s8 %v12531
        %v12533 = vperm.slane %v12525, %v12532
        %v12534 = vrot.slane %v12517, 4
        %v12535 = vsel %vm251, %v12534, %v12493
        %v12536 = vrot.slane %v12493, 4
        %v12537 = vsel %vm251, %v12517, %v12536
        %v12538 = vrot.slane %v12521, 4
        %v12539 = vsel %vm251, %v12538, %v12497
        %v12540 = vrot.slane %v12497, 4
        %v12541 = vsel %vm251, %v12521, %v12540
        %v12542 = vrot.slane %v12529, 4
        %v12543 = vsel %vm251, %v12542, %v12505
        %v12544 = vrot.slane %v12505, 4
        %v12545 = vsel %vm251, %v12529, %v12544
        %v12546 = vrot.slane %v12533, 4
        %v12547 = vsel %vm251, %v12546, %v12509
        %v12548 = vrot.slane %v12509, 4
        %v12549 = vsel %vm251, %v12533, %v12548
        %v12550 = vrot.slane %v12203, 4
        %v12551 = vsel %vm251, %v12550, %v12199
        %v12552 = vrot.slane %v12199, 4
        %v12553 = vsel %vm251, %v12203, %v12552
        %v12555 = vunpack.c.l.s4 1983009808
        %v12556 = vunpack.c.0.s8 %v12555
        %v12557 = vperm.slane %v12551, %v12556
        %v12559 = vunpack.c.l.s4 1983009808
        %v12560 = vunpack.c.0.s8 %v12559
        %v12561 = vperm.slane %v12553, %v12560
        %v12562 = vrot.slane %v12205, 4
        %v12563 = vsel %vm251, %v12562, %v12201
        %v12564 = vrot.slane %v12201, 4
        %v12565 = vsel %vm251, %v12205, %v12564
        %v12567 = vunpack.c.l.s4 1983009808
        %v12568 = vunpack.c.0.s8 %v12567
        %v12569 = vperm.slane %v12563, %v12568
        %v12571 = vunpack.c.l.s4 1983009808
        %v12572 = vunpack.c.0.s8 %v12571
        %v12573 = vperm.slane %v12565, %v12572
        %v12574 = vrot.slane %v12211, 4
        %v12575 = vsel %vm251, %v12574, %v12207
        %v12576 = vrot.slane %v12207, 4
        %v12577 = vsel %vm251, %v12211, %v12576
        %v12579 = vunpack.c.l.s4 1983009808
        %v12580 = vunpack.c.0.s8 %v12579
        %v12581 = vperm.slane %v12575, %v12580
        %v12583 = vunpack.c.l.s4 1983009808
        %v12584 = vunpack.c.0.s8 %v12583
        %v12585 = vperm.slane %v12577, %v12584
        %v12586 = vrot.slane %v12213, 4
        %v12587 = vsel %vm251, %v12586, %v12209
        %v12588 = vrot.slane %v12209, 4
        %v12589 = vsel %vm251, %v12213, %v12588
        %v12591 = vunpack.c.l.s4 1983009808
        %v12592 = vunpack.c.0.s8 %v12591
        %v12593 = vperm.slane %v12587, %v12592
        %v12595 = vunpack.c.l.s4 1983009808
        %v12596 = vunpack.c.0.s8 %v12595
        %v12597 = vperm.slane %v12589, %v12596
        %v12598 = vrot.slane %v12569, 4
        %v12599 = vsel %vm251, %v12598, %v12557
        %v12600 = vrot.slane %v12557, 4
        %v12601 = vsel %vm251, %v12569, %v12600
        %v12603 = vunpack.c.l.s4 1934713408
        %v12604 = vunpack.c.0.s8 %v12603
        %v12605 = vperm.slane %v12599, %v12604
        %v12607 = vunpack.c.l.s4 1934713408
        %v12608 = vunpack.c.0.s8 %v12607
        %v12609 = vperm.slane %v12601, %v12608
        %v12610 = vrot.slane %v12573, 4
        %v12611 = vsel %vm251, %v12610, %v12561
        %v12612 = vrot.slane %v12561, 4
        %v12613 = vsel %vm251, %v12573, %v12612
        %v12615 = vunpack.c.l.s4 1934713408
        %v12616 = vunpack.c.0.s8 %v12615
        %v12617 = vperm.slane %v12611, %v12616
        %v12619 = vunpack.c.l.s4 1934713408
        %v12620 = vunpack.c.0.s8 %v12619
        %v12621 = vperm.slane %v12613, %v12620
        %v12622 = vrot.slane %v12593, 4
        %v12623 = vsel %vm251, %v12622, %v12581
        %v12624 = vrot.slane %v12581, 4
        %v12625 = vsel %vm251, %v12593, %v12624
        %v12627 = vunpack.c.l.s4 1934713408
        %v12628 = vunpack.c.0.s8 %v12627
        %v12629 = vperm.slane %v12623, %v12628
        %v12631 = vunpack.c.l.s4 1934713408
        %v12632 = vunpack.c.0.s8 %v12631
        %v12633 = vperm.slane %v12625, %v12632
        %v12634 = vrot.slane %v12597, 4
        %v12635 = vsel %vm251, %v12634, %v12585
        %v12636 = vrot.slane %v12585, 4
        %v12637 = vsel %vm251, %v12597, %v12636
        %v12639 = vunpack.c.l.s4 1934713408
        %v12640 = vunpack.c.0.s8 %v12639
        %v12641 = vperm.slane %v12635, %v12640
        %v12643 = vunpack.c.l.s4 1934713408
        %v12644 = vunpack.c.0.s8 %v12643
        %v12645 = vperm.slane %v12637, %v12644
        %v12646 = vrot.slane %v12629, 4
        %v12647 = vsel %vm251, %v12646, %v12605
        %v12648 = vrot.slane %v12605, 4
        %v12649 = vsel %vm251, %v12629, %v12648
        %v12650 = vrot.slane %v12633, 4
        %v12651 = vsel %vm251, %v12650, %v12609
        %v12652 = vrot.slane %v12609, 4
        %v12653 = vsel %vm251, %v12633, %v12652
        %v12654 = vrot.slane %v12641, 4
        %v12655 = vsel %vm251, %v12654, %v12617
        %v12656 = vrot.slane %v12617, 4
        %v12657 = vsel %vm251, %v12641, %v12656
        %v12658 = vrot.slane %v12645, 4
        %v12659 = vsel %vm251, %v12658, %v12621
        %v12660 = vrot.slane %v12621, 4
        %v12661 = vsel %vm251, %v12645, %v12660
        %12664 = vrot.lane.b32.xlu0 %v12313, 16
        %v12665 = vpop.permute.xlu0 %12664
        %12666 = vrot.lane.b32.xlu0 %v12425, 16
        %v12667 = vpop.permute.xlu0 %12666
        %12672 = vrot.lane.b32.xlu0 %v12315, 32
        %v12673 = vpop.permute.xlu0 %12672
        %12674 = vrot.lane.b32.xlu0 %v12427, 32
        %v12675 = vpop.permute.xlu0 %12674
        %12680 = vrot.lane.b32.xlu0 %v12317, 48
        %v12681 = vpop.permute.xlu0 %12680
        %12682 = vrot.lane.b32.xlu0 %v12429, 48
        %v12683 = vpop.permute.xlu0 %12682
        %12688 = vrot.lane.b32.xlu0 %v12319, 64
        %v12689 = vpop.permute.xlu0 %12688
        %12690 = vrot.lane.b32.xlu0 %v12431, 64
        %v12691 = vpop.permute.xlu0 %12690
        %12696 = vrot.lane.b32.xlu0 %v12321, 80
        %v12697 = vpop.permute.xlu0 %12696
        %12698 = vrot.lane.b32.xlu0 %v12433, 80
        %v12699 = vpop.permute.xlu0 %12698
        %12704 = vrot.lane.b32.xlu0 %v12323, 96
        %v12705 = vpop.permute.xlu0 %12704
        %12706 = vrot.lane.b32.xlu0 %v12435, 96
        %v12707 = vpop.permute.xlu0 %12706
        %12712 = vrot.lane.b32.xlu0 %v12325, 112
        %v12713 = vpop.permute.xlu0 %12712
        %12714 = vrot.lane.b32.xlu0 %v12437, 112
        %v12715 = vpop.permute.xlu0 %12714
        %12720 = vrot.lane.b32.xlu0 %v12537, 16
        %v12721 = vpop.permute.xlu0 %12720
        %12722 = vrot.lane.b32.xlu0 %v12649, 16
        %v12723 = vpop.permute.xlu0 %12722
        %12728 = vrot.lane.b32.xlu0 %v12539, 32
        %v12729 = vpop.permute.xlu0 %12728
        %12730 = vrot.lane.b32.xlu0 %v12651, 32
        %v12731 = vpop.permute.xlu0 %12730
        %12736 = vrot.lane.b32.xlu0 %v12541, 48
        %v12737 = vpop.permute.xlu0 %12736
        %12738 = vrot.lane.b32.xlu0 %v12653, 48
        %v12739 = vpop.permute.xlu0 %12738
        %12744 = vrot.lane.b32.xlu0 %v12543, 64
        %v12745 = vpop.permute.xlu0 %12744
        %12746 = vrot.lane.b32.xlu0 %v12655, 64
        %v12747 = vpop.permute.xlu0 %12746
        %12752 = vrot.lane.b32.xlu0 %v12545, 80
        %v12753 = vpop.permute.xlu0 %12752
        %12754 = vrot.lane.b32.xlu0 %v12657, 80
        %v12755 = vpop.permute.xlu0 %12754
        %12760 = vrot.lane.b32.xlu0 %v12547, 96
        %v12761 = vpop.permute.xlu0 %12760
        %12762 = vrot.lane.b32.xlu0 %v12659, 96
        %v12763 = vpop.permute.xlu0 %12762
        %12768 = vrot.lane.b32.xlu0 %v12549, 112
        %v12769 = vpop.permute.xlu0 %12768
        %12770 = vrot.lane.b32.xlu0 %v12661, 112
        %v12771 = vpop.permute.xlu0 %12770
        %v12774 = vsel %vm1707, %v12311, %v12665
        %v12775 = vsel %vm1707, %v12423, %v12667
        %v12776 = vsel %vm1710, %v12774, %v12673
        %v12777 = vsel %vm1710, %v12775, %v12675
        %v12778 = vsel %vm1713, %v12776, %v12681
        %v12779 = vsel %vm1713, %v12777, %v12683
        %v12780 = vsel %vm1716, %v12778, %v12689
        %v12781 = vsel %vm1716, %v12779, %v12691
        %v12782 = vsel %vm1719, %v12780, %v12697
        %v12783 = vsel %vm1719, %v12781, %v12699
        %v12784 = vsel %vm1722, %v12782, %v12705
        %v12785 = vsel %vm1722, %v12783, %v12707
        %v12786 = vsel %vm1725, %v12784, %v12713
        %v12787 = vsel %vm1725, %v12785, %v12715
        %v12788 = vsel %vm1707, %v12535, %v12721
        %v12789 = vsel %vm1707, %v12647, %v12723
        %v12790 = vsel %vm1710, %v12788, %v12729
        %v12791 = vsel %vm1710, %v12789, %v12731
        %v12792 = vsel %vm1713, %v12790, %v12737
        %v12793 = vsel %vm1713, %v12791, %v12739
        %v12794 = vsel %vm1716, %v12792, %v12745
        %v12795 = vsel %vm1716, %v12793, %v12747
        %v12796 = vsel %vm1719, %v12794, %v12753
        %v12797 = vsel %vm1719, %v12795, %v12755
        %v12798 = vsel %vm1722, %v12796, %v12761
        %v12799 = vsel %vm1722, %v12797, %v12763
        %v12800 = vsel %vm1725, %v12798, %v12769
        %v12801 = vsel %vm1725, %v12799, %v12771
        %12802 = vst [vmem:[%s155 + $0xe0] sm:$0xff] %v12786
        %12803 = vst [vmem:[%s155 + $0xe8] sm:$0xff] %v12800
        %12804 = vst [vmem:[%s155 + $0xf0] sm:$0xff] %v12787
        %12805 = vst [vmem:[%s155 + $0xf8] sm:$0xff] %v12801
        %s12806 = sand.u32 %s68, 1
        %s12807 = scalar_lea.sflag [#allocation4], %s12806
        %s12808 = sand.u32 %s68, 1
        %s12809 = smul.addr %s12808, 256
        %s12810 = scalar_lea.vmem [#allocation5], %s12809
        // Predicated region
        $region29: #{tpu_custom_call.1} parent=23 // pred_check
          %p12811 = pneg %p78
        $region30: #{tpu_custom_call.1} parent=23 // pred_check_branch
          %12813 = sbr.rel (%p12811) target = $region32
        $region31: #{tpu_custom_call.1} parent=23 // pred_region
          %s12814 = smul.u32 16, %s23
          %12816 = vsyncadd %s12807, 0
          %s12817 = smul.addr %s12814, 2
          %s12818 = smul.addr %s22, 64
          %s12819 = sadd.s32 %s12817, %s12818
          %s12820 = smul.addr %s12819, 8
          %s12821 = scalar_lea.hbm %s1, %s12820
          %s12822 = sshll.u32 %s12810, 4
          %s12823 = int_to_ptr.vmem [resolvable:$true] %s12822
          %s12824 = sshll.u32 %s12821, 4
          %s12825 = int_to_ptr.hbm [resolvable:$true] %s12824
          %12830 = dma.vmem_to_hbm [thread:$0]  %s12823, 4096, %s12825, %s12807, 256, 256, 16
        $region32: #{tpu_custom_call.1} parent=23 // pred_fallthru
          _
      $region24: #{tpu_custom_call.1} parent=5 // pred_fallthru
        _
      %p12831 = scmp.le.s32.totalorder 2, %s13
      // Predicated region
      $region33: #{tpu_custom_call.1} parent=5 // pred_check
        %p12832 = pneg %p12831
      $region34: #{tpu_custom_call.1} parent=5 // pred_check_branch
        %12834 = sbr.rel (%p12832) target = $region36
      $region35: #{tpu_custom_call.1} parent=5 // pred_region
        %s12835 = ssub.s32 %s13, 2
        // Predicated region
        $region37: #{tpu_custom_call.1} parent=35 // pred_check
          %p12836 = pneg %p84
        $region38: #{tpu_custom_call.1} parent=35 // pred_check_branch
          %12838 = sbr.rel (%p12836) target = $region40
        $region39: #{tpu_custom_call.1} parent=35 // pred_region
          %s12839 = sand.u32 %s69, 1
          %s12840 = scalar_lea.sflag [#allocation4], %s12839
          %s12841 = sand.u32 %s69, 1
          %s12842 = smul.addr %s12841, 256
          %s12843 = scalar_lea.vmem [#allocation5], %s12842
          %12845 = dma.done %s12840, 4096
        $region40: #{tpu_custom_call.1} parent=35 // pred_fallthru
          _
      $region36: #{tpu_custom_call.1} parent=5 // pred_fallthru
        _
    $region6: #{tpu_custom_call.1} parent=1 // loop_footer
      %s17 = sadd.s32 1, %s13
    $region7: #{tpu_custom_call.1} parent=1 // loop_footer_branch
      %12 = sbr.rel target = $region3
    $region8: #{tpu_custom_call.1} parent=1 // loop_exit
      _
    %12846 = vsyncpa [#allocation3], 1
    %s12847 = scalar_lea.sflag [#allocation3], 1
    %12848 = vsyncpa %s12847, 1
    %12849 = vsyncpa [#allocation4], 1
    %s12850 = scalar_lea.sflag [#allocation4], 1
    %12851 = vsyncpa %s12850, 1

</llo_original>
